<compile_context>
chip_gen: v7x
topology: tpu7x:2x2x1
jax: 0.10.0
libtpu: 0.0.40
codegen_flags: <defaults>
</compile_context>

<pallas_src>
import functools

import jax
import jax.numpy as jnp
from jax.experimental import pallas as pl
from jax.experimental.pallas import tpu as pltpu

LATENT_DIM = 8        # N
CATEG_DIM = 16        # K
IN_DIM = 2352         # 3 * 28 * 28
IN_PAD = 2432         # 19 * 128 (lane-dense padding of 2352 for the MXU K dim)
NK = LATENT_DIM * CATEG_DIM   # 128


def _round_up(a, m):
    return (a + m - 1) // m * m


# ---------------------------------------------------------------------------
# Pallas kernel: full DiscreteVAE forward for one batch tile.
# Weights stay VMEM-resident across the batch grid (constant index_map).
# ---------------------------------------------------------------------------
def _vae_kernel(tau, hard, N, K,
                x_ref, g_ref,
                w1, b1, w2, b2, w3, b3,
                w4, b4, w5, b5, w6, b6,
                recon_ref, qy_ref,
                xpad_ref):
    bm = x_ref.shape[0]
    d_in = x_ref.shape[1]          # 2352
    d_out = recon_ref.shape[1]     # 2352
    f32 = jnp.float32
    bf16 = jnp.bfloat16

    def linear(h, w, b):
        # bf16 x bf16 on the MXU, f32 accumulation, f32 bias.
        return jnp.dot(h, w[...], preferred_element_type=f32) + b[...]

    def lin_relu_bf16(h, w, b):
        return jnp.maximum(linear(h, w, b), 0.0).astype(bf16)

    def softmax_last(v):
        m = jnp.max(v, axis=-1, keepdims=True)
        e = jnp.exp(v - m)
        return e / jnp.sum(e, axis=-1, keepdims=True)

    # ---- cast + zero-pad x to the lane-aligned 2432-wide VMEM scratch ----
    # (zero-fill every tile: under "parallel" semantics each core owns its own
    #  scratch and may start at any program_id, so a one-time init is unsafe.)
    xpad_ref[...] = jnp.zeros_like(xpad_ref)
    xpad_ref[:, :d_in] = x_ref[...].astype(bf16)
    x = xpad_ref[...]                               # (bm, 2432) bf16

    # ---- encoder ----
    h1 = lin_relu_bf16(x, w1, b1)                   # (bm, 512)
    h2 = lin_relu_bf16(h1, w2, b2)                  # (bm, 256)
    q = jnp.maximum(linear(h2, w3, b3), 0.0)        # (bm, 128) f32

    q3 = q.reshape(bm, N, K)

    # second forward output: F.softmax(q_y, dim=-1)
    qy_ref[...] = softmax_last(q3).reshape(bm, N * K)

    # ---- gumbel-softmax sample ----
    g = g_ref[...].reshape(bm, N, K)                # f32 gumbel noise
    y_soft = softmax_last((q3 + g) / tau)
    if hard:
        # Forward value of the straight-through estimator == first-argmax
        # one-hot.  TODO(synk): wrap in jax.custom_vjp (grad w.r.t. y_soft)
        # if this kernel is ever used for training.
        iota = jax.lax.broadcasted_iota(jnp.int32, y_soft.shape, 2)
        mx = jnp.max(y_soft, axis=-1, keepdims=True)
        first = jnp.min(jnp.where(y_soft >= mx, iota, K),
                        axis=-1, keepdims=True)
        y = (iota == first).astype(f32)
    else:
        y = y_soft
    z = y.reshape(bm, N * K).astype(bf16)

    # ---- decoder ----
    h4 = lin_relu_bf16(z, w4, b4)                   # (bm, 256)
    h5 = lin_relu_bf16(h4, w5, b5)                  # (bm, 512)
    logits = linear(h5, w6, b6)                     # (bm, 2432) f32
    # Store only the real 2352 columns -> lane-dense output array, no wrapper
    # column-slice pass (last 48-lane vreg per row is a masked store).
    recon_ref[...] = jax.nn.sigmoid(logits[:, :d_out])


# ---------------------------------------------------------------------------
# Parameter preparation: cast to bf16 and pad the 2352-dim matrices once.
# ---------------------------------------------------------------------------
def prepare_params(params_f32):
    pad_in = IN_PAD - IN_DIM
    p = {}
    p["w1"] = jnp.pad(params_f32["w1"], ((0, pad_in), (0, 0))).astype(jnp.bfloat16)
    p["b1"] = params_f32["b1"].astype(jnp.float32)
    for i in (2, 3, 4, 5):
        p[f"w{i}"] = params_f32[f"w{i}"].astype(jnp.bfloat16)
        p[f"b{i}"] = params_f32[f"b{i}"].astype(jnp.float32)
    p["w6"] = jnp.pad(params_f32["w6"], ((0, 0), (0, pad_in))).astype(jnp.bfloat16)
    p["b6"] = jnp.pad(params_f32["b6"], ((0, 0), (0, pad_in))).astype(jnp.float32)
    return p


# ---------------------------------------------------------------------------
# Wrapper
# ---------------------------------------------------------------------------
_PARAM_KEYS = ("w1", "b1", "w2", "b2", "w3", "b3",
               "w4", "b4", "w5", "b5", "w6", "b6")


@functools.partial(jax.jit,
                   static_argnames=("temp", "hard", "latent_dim",
                                    "categorical_dim"))
def discrete_vae_forward(x, gumbel_noise, params, *, temp, hard,
                         latent_dim=LATENT_DIM, categorical_dim=CATEG_DIM):
    B = x.shape[0]
    nk = latent_dim * categorical_dim

    # Balanced batch tiling: <=256 rows per tile, tiles sized to minimize
    # padded-row waste; >=2 tiles for B>=64 so both v7x cores get work.
    num_tiles = max(pl.cdiv(B, 256), 2 if B >= 64 else 1)
    bm = _round_up(pl.cdiv(B, num_tiles), 16)     # 16: legal sublane tile for f32 & bf16
    B_pad = bm * num_tiles

    x_flat = x.reshape(B, IN_DIM)
    g = gumbel_noise.astype(jnp.float32)
    if B_pad != B:
        # Row-pad only (rare path).  Cast to bf16 so the pad pass writes half
        # the bytes; the kernel's astype(bf16) is then a no-op.
        x_flat = jnp.pad(x_flat, ((0, B_pad - B), (0, 0))).astype(jnp.bfloat16)
        g = jnp.pad(g, ((0, B_pad - B), (0, 0)))

    kernel = functools.partial(_vae_kernel, float(temp), bool(hard),
                               latent_dim, categorical_dim)

    in_specs = (
        [pl.BlockSpec((bm, IN_DIM), lambda i: (i, 0)),   # x tile (pipelined)
         pl.BlockSpec((bm, nk), lambda i: (i, 0))]       # gumbel tile
        + [pl.BlockSpec(params[k].shape, lambda i: (0, 0))  # resident weights
           for k in _PARAM_KEYS]
    )
    out_specs = (pl.BlockSpec((bm, IN_DIM), lambda i: (i, 0)),
                 pl.BlockSpec((bm, nk), lambda i: (i, 0)))

    # Advisory cost estimate so XLA overlaps the (small) wrapper ops.
    weight_bytes = sum(int(params[k].size) * params[k].dtype.itemsize
                       for k in _PARAM_KEYS)
    bytes_accessed = (int(x_flat.size) * x_flat.dtype.itemsize
                      + B_pad * nk * 4          # gumbel in
                      + weight_bytes
                      + B_pad * IN_DIM * 4      # recon out
                      + B_pad * nk * 4)         # qy out
    flops = 2 * B_pad * (IN_PAD * 512 + 512 * 256 + 256 * nk
                         + nk * 256 + 256 * 512 + 512 * IN_PAD)
    transcendentals = B_pad * (IN_PAD + 2 * nk + 2 * latent_dim)

    recon_p, qy_p = pl.pallas_call(
        kernel,
        out_shape=(jax.ShapeDtypeStruct((B_pad, IN_DIM), jnp.float32),
                   jax.ShapeDtypeStruct((B_pad, nk), jnp.float32)),
        grid_spec=pltpu.PrefetchScalarGridSpec(
            num_scalar_prefetch=0,
            grid=(num_tiles,),
            in_specs=in_specs,
            out_specs=out_specs,
            scratch_shapes=[pltpu.VMEM((bm, IN_PAD), jnp.bfloat16)]),
        compiler_params=pltpu.CompilerParams(
            # Batch tiles are independent -> shard across v7x's two cores.
            dimension_semantics=("parallel",),
            # ~28 MiB real footprint; 48 MiB is legal on v7x's 64 MiB VMEM.
            vmem_limit_bytes=48 << 20),
        cost_estimate=pl.CostEstimate(flops=int(flops),
                                      transcendentals=int(transcendentals),
                                      bytes_accessed=int(bytes_accessed)),
    )(x_flat, g, *[params[k] for k in _PARAM_KEYS])

    # No column slice needed anymore; the [:B] row slice is a no-op when the
    # batch divides the tile, and the reshape is a bitcast.
    recon = recon_p[:B].reshape(B, 3, 28, 28)
    qy = qy_p[:B].reshape(B * latent_dim, categorical_dim)
    return recon, qy


# ---------------------------------------------------------------------------
# Deterministic parameter init (PyTorch nn.Linear-style uniform bounds)
# ---------------------------------------------------------------------------
def init_params(key):
    dims = [(IN_DIM, 512), (512, 256), (256, NK),
            (NK, 256), (256, 512), (512, IN_DIM)]
    params = {}
    for i, (din, dout) in enumerate(dims, start=1):
        key, kw, kb = jax.random.split(key, 3)
        bound = 1.0 / float(din) ** 0.5
        params[f"w{i}"] = jax.random.uniform(
            kw, (din, dout), jnp.float32, -bound, bound)
        params[f"b{i}"] = jax.random.uniform(
            kb, (1, dout), jnp.float32, -bound, bound)
    return params


def sample_gumbel(key, shape, eps=1e-20):
    # same formula as the PyTorch sample_gumbel
    u = jax.random.uniform(key, shape, jnp.float32)
    return -jnp.log(eps - jnp.log(u + eps))


# ---------------------------------------------------------------------------
# Pure-JAX reference (f32 params) for correctness check
# ---------------------------------------------------------------------------
def reference_forward(x, g, params, temp, hard):
    B = x.shape[0]
    xf = x.reshape(B, IN_DIM)

    def lr(h, w, b):
        return jnp.maximum(h @ w + b, 0.0)

    h1 = lr(xf, params["w1"], params["b1"])
    h2 = lr(h1, params["w2"], params["b2"])
    q = lr(h2, params["w3"], params["b3"])
    q3 = q.reshape(B, LATENT_DIM, CATEG_DIM)
    qy = jax.nn.softmax(q3, axis=-1)
    y_soft = jax.nn.softmax((q3 + g.reshape(q3.shape)) / temp, axis=-1)
    if hard:
        idx = jnp.argmax(y_soft, axis=-1)
        y = jax.nn.one_hot(idx, CATEG_DIM, dtype=jnp.float32) - y_soft + y_soft
    else:
        y = y_soft
    z = y.reshape(B, NK)
    h4 = lr(z, params["w4"], params["b4"])
    h5 = lr(h4, params["w5"], params["b5"])
    out = jax.nn.sigmoid(h5 @ params["w6"] + params["b6"])
    return out.reshape(B, 3, 28, 28), qy.reshape(B * LATENT_DIM, CATEG_DIM)


if __name__ == "__main__":
    key = jax.random.PRNGKey(0)
    kp, kx1, kg1, kx2, kg2 = jax.random.split(key, 5)

    raw_params = init_params(kp)
    params = prepare_params(raw_params)   # bf16 + padded, prepared once

    ATOL = RTOL = 5e-3                    # bf16-weight inference tolerance

    # --- test 1: small batch (row-padded 8->16, bf16-x path), soft sampling ---
    B1 = 8
    x1 = jax.random.uniform(kx1, (B1, 3, 28, 28), jnp.float32)
    g1 = sample_gumbel(kg1, (B1, NK))
    recon1, qy1 = discrete_vae_forward(x1, g1, params, temp=1.0, hard=False)
    jax.block_until_ready((recon1, qy1))
    recon1_ref, qy1_ref = reference_forward(x1, g1, raw_params, 1.0, False)
    assert recon1.shape == (B1, 3, 28, 28)
    assert qy1.shape == (B1 * LATENT_DIM, CATEG_DIM)
    assert jnp.allclose(recon1, recon1_ref, atol=ATOL, rtol=RTOL)
    assert jnp.allclose(qy1, qy1_ref, atol=ATOL, rtol=RTOL)

    # --- test 2: multi-tile batch, no padding (f32-x path, 2 parallel tiles) ---
    B2 = 160
    x2 = jax.random.uniform(kx2, (B2, 3, 28, 28), jnp.float32)
    g2 = sample_gumbel(kg2, (B2, NK))
    recon2, qy2 = discrete_vae_forward(x2, g2, params, temp=0.7, hard=False)
    jax.block_until_ready((recon2, qy2))
    recon2_ref, qy2_ref = reference_forward(x2, g2, raw_params, 0.7, False)
    assert recon2.shape == (B2, 3, 28, 28)
    assert jnp.allclose(recon2, recon2_ref, atol=ATOL, rtol=RTOL)
    assert jnp.allclose(qy2, qy2_ref, atol=ATOL, rtol=RTOL)

    # --- test 3: hard (straight-through one-hot) path ---
    recon3, qy3 = discrete_vae_forward(x1, g1, params, temp=1.0, hard=True)
    jax.block_until_ready((recon3, qy3))
    _, qy3_ref = reference_forward(x1, g1, raw_params, 1.0, True)
    assert jnp.allclose(qy3, qy3_ref, atol=ATOL, rtol=RTOL)
    # recon in hard mode depends on discrete argmax picks that can legitimately
    # flip under bf16 rounding on near-ties, so only sanity-check it here.
    assert bool(jnp.all(jnp.isfinite(recon3)))
    assert bool(jnp.all((recon3 >= 0.0) & (recon3 <= 1.0)))

    print("KERNEL_OK")
</pallas_src>

<mosaic_0001>
module attributes {stable_mosaic.version = 11 : i64} {
  func.func @_vae_kernel(%arg0: i32, %arg1: memref<16x2352xbf16, #tpu.memory_space<vmem>>, %arg2: memref<16x128xf32, #tpu.memory_space<vmem>>, %arg3: memref<2432x512xbf16, #tpu.memory_space<vmem>>, %arg4: memref<1x512xf32, #tpu.memory_space<vmem>>, %arg5: memref<512x256xbf16, #tpu.memory_space<vmem>>, %arg6: memref<1x256xf32, #tpu.memory_space<vmem>>, %arg7: memref<256x128xbf16, #tpu.memory_space<vmem>>, %arg8: memref<1x128xf32, #tpu.memory_space<vmem>>, %arg9: memref<128x256xbf16, #tpu.memory_space<vmem>>, %arg10: memref<1x256xf32, #tpu.memory_space<vmem>>, %arg11: memref<256x512xbf16, #tpu.memory_space<vmem>>, %arg12: memref<1x512xf32, #tpu.memory_space<vmem>>, %arg13: memref<512x2432xbf16, #tpu.memory_space<vmem>>, %arg14: memref<1x2432xf32, #tpu.memory_space<vmem>>, %arg15: memref<16x2352xf32, #tpu.memory_space<vmem>>, %arg16: memref<16x128xf32, #tpu.memory_space<vmem>>, %arg17: memref<16x2432xbf16, #tpu.memory_space<vmem>>) attributes {dimension_semantics = [#tpu.dimension_semantics<parallel>], iteration_bounds = array<i64: 1>, scalar_prefetch = 0 : i64, scratch_operands = 1 : i64, tpu.core_type = #tpu.core_type<tc>, window_params = [{transform_indices = @transform_0, window_bounds = array<i64: 16, 2352>}, {transform_indices = @transform_1, window_bounds = array<i64: 16, 128>}, {pipeline_mode = #tpu.pipeline_mode<synchronous>, transform_indices = @transform_2, window_bounds = array<i64: 2432, 512>}, {pipeline_mode = #tpu.pipeline_mode<synchronous>, transform_indices = @transform_3, window_bounds = array<i64: 1, 512>}, {pipeline_mode = #tpu.pipeline_mode<synchronous>, transform_indices = @transform_4, window_bounds = array<i64: 512, 256>}, {pipeline_mode = #tpu.pipeline_mode<synchronous>, transform_indices = @transform_5, window_bounds = array<i64: 1, 256>}, {pipeline_mode = #tpu.pipeline_mode<synchronous>, transform_indices = @transform_6, window_bounds = array<i64: 256, 128>}, {pipeline_mode = #tpu.pipeline_mode<synchronous>, transform_indices = @transform_7, window_bounds = array<i64: 1, 128>}, {pipeline_mode = #tpu.pipeline_mode<synchronous>, transform_indices = @transform_8, window_bounds = array<i64: 128, 256>}, {pipeline_mode = #tpu.pipeline_mode<synchronous>, transform_indices = @transform_9, window_bounds = array<i64: 1, 256>}, {pipeline_mode = #tpu.pipeline_mode<synchronous>, transform_indices = @transform_10, window_bounds = array<i64: 256, 512>}, {pipeline_mode = #tpu.pipeline_mode<synchronous>, transform_indices = @transform_11, window_bounds = array<i64: 1, 512>}, {pipeline_mode = #tpu.pipeline_mode<synchronous>, transform_indices = @transform_12, window_bounds = array<i64: 512, 2432>}, {pipeline_mode = #tpu.pipeline_mode<synchronous>, transform_indices = @transform_13, window_bounds = array<i64: 1, 2432>}, {transform_indices = @transform_14, window_bounds = array<i64: 16, 2352>}, {transform_indices = @transform_15, window_bounds = array<i64: 16, 128>}]} {
    %cst = arith.constant 0.000000e+00 : bf16
    %0 = vector.broadcast %cst : bf16 to vector<16x2432xbf16>
    %c0 = arith.constant 0 : index
    %c0_0 = arith.constant 0 : index
    %1 = vector.load %arg17[%c0, %c0_0] : memref<16x2432xbf16, #tpu.memory_space<vmem>>, vector<16x2432xbf16>
    tpu.vector_store %arg17[%c0, %c0_0], %0 {strides = array<i32>} : memref<16x2432xbf16, #tpu.memory_space<vmem>>, vector<16x2432xbf16>,
    %c0_1 = arith.constant 0 : index
    %c0_2 = arith.constant 0 : index
    %2 = vector.load %arg1[%c0_1, %c0_2] : memref<16x2352xbf16, #tpu.memory_space<vmem>>, vector<16x2352xbf16>
    %c0_3 = arith.constant 0 : index
    %c0_4 = arith.constant 0 : index
    %3 = vector.load %arg17[%c0_3, %c0_4] : memref<16x2432xbf16, #tpu.memory_space<vmem>>, vector<16x2352xbf16>
    tpu.vector_store %arg17[%c0_3, %c0_4], %2 {strides = array<i32>} : memref<16x2432xbf16, #tpu.memory_space<vmem>>, vector<16x2352xbf16>,
    %c0_5 = arith.constant 0 : index
    %c0_6 = arith.constant 0 : index
    %4 = vector.load %arg17[%c0_5, %c0_6] : memref<16x2432xbf16, #tpu.memory_space<vmem>>, vector<16x2432xbf16>
    %c0_7 = arith.constant 0 : index
    %c0_8 = arith.constant 0 : index
    %5 = vector.load %arg3[%c0_7, %c0_8] : memref<2432x512xbf16, #tpu.memory_space<vmem>>, vector<2432x512xbf16>
    %cst_9 = arith.constant dense<0.000000e+00> : vector<16x512xf32>
    %6 = tpu.matmul %4, %5, %cst_9 {dimension_numbers = #tpu.dot_dimension_numbers<[1], [0], [0], [1], [0, 0, 1, 1], [], []>} : vector<16x2432xbf16>, vector<2432x512xbf16>, vector<16x512xf32> -> vector<16x512xf32>
    %c0_10 = arith.constant 0 : index
    %c0_11 = arith.constant 0 : index
    %7 = vector.load %arg4[%c0_10, %c0_11] : memref<1x512xf32, #tpu.memory_space<vmem>>, vector<1x512xf32>
    %8 = vector.broadcast %7 : vector<1x512xf32> to vector<16x512xf32>
    %9 = arith.addf %6, %8 : vector<16x512xf32>
    %cst_12 = arith.constant 0.000000e+00 : f32
    %10 = vector.broadcast %cst_12 : f32 to vector<16x512xf32>
    %11 = arith.maximumf %9, %10 : vector<16x512xf32>
    %12 = arith.truncf %11 : vector<16x512xf32> to vector<16x512xbf16>
    %c0_13 = arith.constant 0 : index
    %c0_14 = arith.constant 0 : index
    %13 = vector.load %arg5[%c0_13, %c0_14] : memref<512x256xbf16, #tpu.memory_space<vmem>>, vector<512x256xbf16>
    %cst_15 = arith.constant dense<0.000000e+00> : vector<16x256xf32>
    %14 = tpu.matmul %12, %13, %cst_15 {dimension_numbers = #tpu.dot_dimension_numbers<[1], [0], [0], [1], [0, 0, 1, 1], [], []>} : vector<16x512xbf16>, vector<512x256xbf16>, vector<16x256xf32> -> vector<16x256xf32>
    %c0_16 = arith.constant 0 : index
    %c0_17 = arith.constant 0 : index
    %15 = vector.load %arg6[%c0_16, %c0_17] : memref<1x256xf32, #tpu.memory_space<vmem>>, vector<1x256xf32>
    %16 = vector.broadcast %15 : vector<1x256xf32> to vector<16x256xf32>
    %17 = arith.addf %14, %16 : vector<16x256xf32>
    %cst_18 = arith.constant 0.000000e+00 : f32
    %18 = vector.broadcast %cst_18 : f32 to vector<16x256xf32>
    %19 = arith.maximumf %17, %18 : vector<16x256xf32>
    %20 = arith.truncf %19 : vector<16x256xf32> to vector<16x256xbf16>
    %c0_19 = arith.constant 0 : index
    %c0_20 = arith.constant 0 : index
    %21 = vector.load %arg7[%c0_19, %c0_20] : memref<256x128xbf16, #tpu.memory_space<vmem>>, vector<256x128xbf16>
    %cst_21 = arith.constant dense<0.000000e+00> : vector<16x128xf32>
    %22 = tpu.matmul %20, %21, %cst_21 {dimension_numbers = #tpu.dot_dimension_numbers<[1], [0], [0], [1], [0, 0, 1, 1], [], []>} : vector<16x256xbf16>, vector<256x128xbf16>, vector<16x128xf32> -> vector<16x128xf32>
    %c0_22 = arith.constant 0 : index
    %c0_23 = arith.constant 0 : index
    %23 = vector.load %arg8[%c0_22, %c0_23] : memref<1x128xf32, #tpu.memory_space<vmem>>, vector<1x128xf32>
    %24 = vector.broadcast %23 : vector<1x128xf32> to vector<16x128xf32>
    %25 = arith.addf %22, %24 : vector<16x128xf32>
    %cst_24 = arith.constant 0.000000e+00 : f32
    %26 = vector.broadcast %cst_24 : f32 to vector<16x128xf32>
    %27 = arith.maximumf %25, %26 : vector<16x128xf32>
    %28 = vector.shape_cast %27 : vector<16x128xf32> to vector<16x8x16xf32>
    %cst_25 = arith.constant dense<0xFF800000> : vector<16x8xf32>
    %29 = vector.multi_reduction <maximumf>, %28, %cst_25 [2] : vector<16x8x16xf32> to vector<16x8xf32>
    %30 = vector.shape_cast %29 : vector<16x8xf32> to vector<16x8x1xf32>
    %31 = vector.broadcast %30 : vector<16x8x1xf32> to vector<16x8x16xf32>
    %32 = arith.subf %28, %31 : vector<16x8x16xf32>
    %33 = math.exp %32 : vector<16x8x16xf32>
    %cst_26 = arith.constant dense<0.000000e+00> : vector<16x8xf32>
    %34 = vector.multi_reduction <add>, %33, %cst_26 [2] : vector<16x8x16xf32> to vector<16x8xf32>
    %35 = vector.shape_cast %34 : vector<16x8xf32> to vector<16x8x1xf32>
    %36 = vector.broadcast %35 : vector<16x8x1xf32> to vector<16x8x16xf32>
    %37 = arith.divf %33, %36 : vector<16x8x16xf32>
    %38 = vector.shape_cast %37 : vector<16x8x16xf32> to vector<16x128xf32>
    %c0_27 = arith.constant 0 : index
    %c0_28 = arith.constant 0 : index
    %39 = vector.load %arg16[%c0_27, %c0_28] : memref<16x128xf32, #tpu.memory_space<vmem>>, vector<16x128xf32>
    tpu.vector_store %arg16[%c0_27, %c0_28], %38 {strides = array<i32>} : memref<16x128xf32, #tpu.memory_space<vmem>>, vector<16x128xf32>,
    %c0_29 = arith.constant 0 : index
    %c0_30 = arith.constant 0 : index
    %40 = vector.load %arg2[%c0_29, %c0_30] : memref<16x128xf32, #tpu.memory_space<vmem>>, vector<16x128xf32>
    %41 = vector.shape_cast %40 : vector<16x128xf32> to vector<16x8x16xf32>
    %42 = arith.addf %28, %41 : vector<16x8x16xf32>
    %cst_31 = arith.constant 1.000000e+00 : f32
    %43 = vector.broadcast %cst_31 : f32 to vector<16x8x16xf32>
    %44 = arith.divf %42, %43 : vector<16x8x16xf32>
    %cst_32 = arith.constant dense<0xFF800000> : vector<16x8xf32>
    %45 = vector.multi_reduction <maximumf>, %44, %cst_32 [2] : vector<16x8x16xf32> to vector<16x8xf32>
    %46 = vector.shape_cast %45 : vector<16x8xf32> to vector<16x8x1xf32>
    %47 = vector.broadcast %46 : vector<16x8x1xf32> to vector<16x8x16xf32>
    %48 = arith.subf %44, %47 : vector<16x8x16xf32>
    %49 = math.exp %48 : vector<16x8x16xf32>
    %cst_33 = arith.constant dense<0.000000e+00> : vector<16x8xf32>
    %50 = vector.multi_reduction <add>, %49, %cst_33 [2] : vector<16x8x16xf32> to vector<16x8xf32>
    %51 = vector.shape_cast %50 : vector<16x8xf32> to vector<16x8x1xf32>
    %52 = vector.broadcast %51 : vector<16x8x1xf32> to vector<16x8x16xf32>
    %53 = arith.divf %49, %52 : vector<16x8x16xf32>
    %54 = vector.shape_cast %53 : vector<16x8x16xf32> to vector<16x128xf32>
    %55 = arith.truncf %54 : vector<16x128xf32> to vector<16x128xbf16>
    %c0_34 = arith.constant 0 : index
    %c0_35 = arith.constant 0 : index
    %56 = vector.load %arg9[%c0_34, %c0_35] : memref<128x256xbf16, #tpu.memory_space<vmem>>, vector<128x256xbf16>
    %cst_36 = arith.constant dense<0.000000e+00> : vector<16x256xf32>
    %57 = tpu.matmul %55, %56, %cst_36 {dimension_numbers = #tpu.dot_dimension_numbers<[1], [0], [0], [1], [0, 0, 1, 1], [], []>} : vector<16x128xbf16>, vector<128x256xbf16>, vector<16x256xf32> -> vector<16x256xf32>
    %c0_37 = arith.constant 0 : index
    %c0_38 = arith.constant 0 : index
    %58 = vector.load %arg10[%c0_37, %c0_38] : memref<1x256xf32, #tpu.memory_space<vmem>>, vector<1x256xf32>
    %59 = vector.broadcast %58 : vector<1x256xf32> to vector<16x256xf32>
    %60 = arith.addf %57, %59 : vector<16x256xf32>
    %cst_39 = arith.constant 0.000000e+00 : f32
    %61 = vector.broadcast %cst_39 : f32 to vector<16x256xf32>
    %62 = arith.maximumf %60, %61 : vector<16x256xf32>
    %63 = arith.truncf %62 : vector<16x256xf32> to vector<16x256xbf16>
    %c0_40 = arith.constant 0 : index
    %c0_41 = arith.constant 0 : index
    %64 = vector.load %arg11[%c0_40, %c0_41] : memref<256x512xbf16, #tpu.memory_space<vmem>>, vector<256x512xbf16>
    %cst_42 = arith.constant dense<0.000000e+00> : vector<16x512xf32>
    %65 = tpu.matmul %63, %64, %cst_42 {dimension_numbers = #tpu.dot_dimension_numbers<[1], [0], [0], [1], [0, 0, 1, 1], [], []>} : vector<16x256xbf16>, vector<256x512xbf16>, vector<16x512xf32> -> vector<16x512xf32>
    %c0_43 = arith.constant 0 : index
    %c0_44 = arith.constant 0 : index
    %66 = vector.load %arg12[%c0_43, %c0_44] : memref<1x512xf32, #tpu.memory_space<vmem>>, vector<1x512xf32>
    %67 = vector.broadcast %66 : vector<1x512xf32> to vector<16x512xf32>
    %68 = arith.addf %65, %67 : vector<16x512xf32>
    %cst_45 = arith.constant 0.000000e+00 : f32
    %69 = vector.broadcast %cst_45 : f32 to vector<16x512xf32>
    %70 = arith.maximumf %68, %69 : vector<16x512xf32>
    %71 = arith.truncf %70 : vector<16x512xf32> to vector<16x512xbf16>
    %c0_46 = arith.constant 0 : index
    %c0_47 = arith.constant 0 : index
    %72 = vector.load %arg13[%c0_46, %c0_47] : memref<512x2432xbf16, #tpu.memory_space<vmem>>, vector<512x2432xbf16>
    %cst_48 = arith.constant dense<0.000000e+00> : vector<16x2432xf32>
    %73 = tpu.matmul %71, %72, %cst_48 {dimension_numbers = #tpu.dot_dimension_numbers<[1], [0], [0], [1], [0, 0, 1, 1], [], []>} : vector<16x512xbf16>, vector<512x2432xbf16>, vector<16x2432xf32> -> vector<16x2432xf32>
    %c0_49 = arith.constant 0 : index
    %c0_50 = arith.constant 0 : index
    %74 = vector.load %arg14[%c0_49, %c0_50] : memref<1x2432xf32, #tpu.memory_space<vmem>>, vector<1x2432xf32>
    %75 = vector.broadcast %74 : vector<1x2432xf32> to vector<16x2432xf32>
    %76 = arith.addf %73, %75 : vector<16x2432xf32>
    %77 = vector.extract_strided_slice %76 {offsets = [0, 0], sizes = [16, 2352], strides = [1, 1]} : vector<16x2432xf32> to vector<16x2352xf32>
    %78 = arith.negf %77 : vector<16x2352xf32>
    %79 = math.exp %78 : vector<16x2352xf32>
    %cst_51 = arith.constant 1.000000e+00 : f32
    %80 = vector.broadcast %cst_51 : f32 to vector<16x2352xf32>
    %81 = arith.addf %80, %79 : vector<16x2352xf32>
    %82 = arith.divf %80, %81 : vector<16x2352xf32>
    %c0_52 = arith.constant 0 : index
    %c0_53 = arith.constant 0 : index
    %83 = vector.load %arg15[%c0_52, %c0_53] : memref<16x2352xf32, #tpu.memory_space<vmem>>, vector<16x2352xf32>
    tpu.vector_store %arg15[%c0_52, %c0_53], %82 {strides = array<i32>} : memref<16x2352xf32, #tpu.memory_space<vmem>>, vector<16x2352xf32>,
    return
  }
  func.func @transform_0(%arg0: i32) -> (i32, i32) {
    %c0_i32 = arith.constant 0 : i32
    %c0_i32_0 = arith.constant 0 : i32
    return %arg0, %c0_i32 : i32, i32
  }
  func.func @transform_1(%arg0: i32) -> (i32, i32) {
    %c0_i32 = arith.constant 0 : i32
    %c0_i32_0 = arith.constant 0 : i32
    return %arg0, %c0_i32 : i32, i32
  }
  func.func @transform_2(%arg0: i32) -> (i32, i32) {
    %c0_i32 = arith.constant 0 : i32
    %c0_i32_0 = arith.constant 0 : i32
    %c0_i32_1 = arith.constant 0 : i32
    return %c0_i32, %c0_i32_0 : i32, i32
  }
  func.func @transform_3(%arg0: i32) -> (i32, i32) {
    %c0_i32 = arith.constant 0 : i32
    %c0_i32_0 = arith.constant 0 : i32
    %c0_i32_1 = arith.constant 0 : i32
    return %c0_i32, %c0_i32_0 : i32, i32
  }
  func.func @transform_4(%arg0: i32) -> (i32, i32) {
    %c0_i32 = arith.constant 0 : i32
    %c0_i32_0 = arith.constant 0 : i32
    %c0_i32_1 = arith.constant 0 : i32
    return %c0_i32, %c0_i32_0 : i32, i32
  }
  func.func @transform_5(%arg0: i32) -> (i32, i32) {
    %c0_i32 = arith.constant 0 : i32
    %c0_i32_0 = arith.constant 0 : i32
    %c0_i32_1 = arith.constant 0 : i32
    return %c0_i32, %c0_i32_0 : i32, i32
  }
  func.func @transform_6(%arg0: i32) -> (i32, i32) {
    %c0_i32 = arith.constant 0 : i32
    %c0_i32_0 = arith.constant 0 : i32
    %c0_i32_1 = arith.constant 0 : i32
    return %c0_i32, %c0_i32_0 : i32, i32
  }
  func.func @transform_7(%arg0: i32) -> (i32, i32) {
    %c0_i32 = arith.constant 0 : i32
    %c0_i32_0 = arith.constant 0 : i32
    %c0_i32_1 = arith.constant 0 : i32
    return %c0_i32, %c0_i32_0 : i32, i32
  }
  func.func @transform_8(%arg0: i32) -> (i32, i32) {
    %c0_i32 = arith.constant 0 : i32
    %c0_i32_0 = arith.constant 0 : i32
    %c0_i32_1 = arith.constant 0 : i32
    return %c0_i32, %c0_i32_0 : i32, i32
  }
  func.func @transform_9(%arg0: i32) -> (i32, i32) {
    %c0_i32 = arith.constant 0 : i32
    %c0_i32_0 = arith.constant 0 : i32
    %c0_i32_1 = arith.constant 0 : i32
    return %c0_i32, %c0_i32_0 : i32, i32
  }
  func.func @transform_10(%arg0: i32) -> (i32, i32) {
    %c0_i32 = arith.constant 0 : i32
    %c0_i32_0 = arith.constant 0 : i32
    %c0_i32_1 = arith.constant 0 : i32
    return %c0_i32, %c0_i32_0 : i32, i32
  }
  func.func @transform_11(%arg0: i32) -> (i32, i32) {
    %c0_i32 = arith.constant 0 : i32
    %c0_i32_0 = arith.constant 0 : i32
    %c0_i32_1 = arith.constant 0 : i32
    return %c0_i32, %c0_i32_0 : i32, i32
  }
  func.func @transform_12(%arg0: i32) -> (i32, i32) {
    %c0_i32 = arith.constant 0 : i32
    %c0_i32_0 = arith.constant 0 : i32
    %c0_i32_1 = arith.constant 0 : i32
    return %c0_i32, %c0_i32_0 : i32, i32
  }
  func.func @transform_13(%arg0: i32) -> (i32, i32) {
    %c0_i32 = arith.constant 0 : i32
    %c0_i32_0 = arith.constant 0 : i32
    %c0_i32_1 = arith.constant 0 : i32
    return %c0_i32, %c0_i32_0 : i32, i32
  }
  func.func @transform_14(%arg0: i32) -> (i32, i32) {
    %c0_i32 = arith.constant 0 : i32
    %c0_i32_0 = arith.constant 0 : i32
    return %arg0, %c0_i32 : i32, i32
  }
  func.func @transform_15(%arg0: i32) -> (i32, i32) {
    %c0_i32 = arith.constant 0 : i32
    %c0_i32_0 = arith.constant 0 : i32
    return %arg0, %c0_i32 : i32, i32
  }
}

</mosaic_0001>

<llo_original>
// kernel: discrete_vae_forward.1
$region0: #{discrete_vae_forward.1}
  #allocation0 [shape = 'u32[]', space=smem, size = 0x4, offset = 0x4, fixed_abs, tag = 'smem constant byte address 0x4 - core index']
  #allocation1 [shape = 'u32[144,128]{1,0:T(1,128)}', space=vmem, size = 0x12000, scoped, tag = 'internal scratch']
  #allocation2 [shape = 'bf16[16,2432]{1,0:T(16,128)(2,1)}', space=vmem, size = 0x13000, scoped, tag = 'scratch operand']
  %s0 = inlined_call_operand.vmem [shape: bf16[16,2352], index: 0, kind: input, shape index: {}]
  %s1 = inlined_call_operand.vmem [shape: f32[16,128], index: 1, kind: input, shape index: {}]
  %s2 = inlined_call_operand.hbm [shape: bf16[2432,512], index: 2, kind: input, shape index: {}]
  %s3 = inlined_call_operand.hbm [shape: f32[1,512], index: 3, kind: input, shape index: {}]
  %s4 = inlined_call_operand.hbm [shape: bf16[512,256], index: 4, kind: input, shape index: {}]
  %s5 = inlined_call_operand.hbm [shape: f32[1,256], index: 5, kind: input, shape index: {}]
  %s6 = inlined_call_operand.hbm [shape: bf16[256,128], index: 6, kind: input, shape index: {}]
  %s7 = inlined_call_operand.hbm [shape: f32[1,128], index: 7, kind: input, shape index: {}]
  %s8 = inlined_call_operand.hbm [shape: bf16[128,256], index: 8, kind: input, shape index: {}]
  %s9 = inlined_call_operand.hbm [shape: f32[1,256], index: 9, kind: input, shape index: {}]
  %s10 = inlined_call_operand.hbm [shape: bf16[256,512], index: 10, kind: input, shape index: {}]
  %s11 = inlined_call_operand.hbm [shape: f32[1,512], index: 11, kind: input, shape index: {}]
  %s12 = inlined_call_operand.hbm [shape: bf16[512,2432], index: 12, kind: input, shape index: {}]
  %s13 = inlined_call_operand.hbm [shape: f32[1,2432], index: 13, kind: input, shape index: {}]
  %s14 = inlined_call_operand.vmem [shape: f32[16,2352], index: 14, kind: output, shape index: {0}]
  %s15 = inlined_call_operand.vmem [shape: f32[16,128], index: 15, kind: output, shape index: {1}]
  %16 = xla_tuple %s14, %s15
  %s17 = sld [smem:[#allocation0]]
  $region122: #{discrete_vae_forward.1} parent=0
    _
  %s19 = ssub.s32 1, %s17
  %s20 = scalar_select 0, %s19, %s17
  $region1: #{discrete_vae_forward.1} parent=0
    #allocation3 [shape = 'u8[2490368]{0}', space=vmem, size = 0x260000, scoped, tag = 'input window, operand 2, single buffered']
    #allocation4 [shape = 's32[1]{0}', space=sflag, size = 0x4, scoped, tag = 'scoped memory for discrete_vae_forward.1']
    #allocation5 [shape = 'u8[2048]{0}', space=vmem, size = 0x800, scoped, tag = 'input window, operand 3, single buffered']
    #allocation6 [shape = 's32[1]{0}', space=sflag, size = 0x4, scoped, tag = 'scoped memory for discrete_vae_forward.1']
    #allocation7 [shape = 'u8[262144]{0}', space=vmem, size = 0x40000, scoped, tag = 'input window, operand 4, single buffered']
    #allocation8 [shape = 'u8[1024]{0}', space=vmem, size = 0x400, scoped, tag = 'input window, operand 5, single buffered']
    #allocation9 [shape = 's32[1]{0}', space=sflag, size = 0x4, scoped, tag = 'scoped memory for discrete_vae_forward.1']
    #allocation10 [shape = 'u8[65536]{0}', space=vmem, size = 0x10000, scoped, tag = 'input window, operand 6, single buffered']
    #allocation11 [shape = 'u8[512]{0}', space=vmem, size = 0x400, scoped, tag = 'input window, operand 7, single buffered']
    #allocation12 [shape = 's32[1]{0}', space=sflag, size = 0x4, scoped, tag = 'scoped memory for discrete_vae_forward.1']
    #allocation13 [shape = 'u8[65536]{0}', space=vmem, size = 0x10000, scoped, tag = 'input window, operand 8, single buffered']
    #allocation14 [shape = 'u8[1024]{0}', space=vmem, size = 0x400, scoped, tag = 'input window, operand 9, single buffered']
    #allocation15 [shape = 's32[1]{0}', space=sflag, size = 0x4, scoped, tag = 'scoped memory for discrete_vae_forward.1']
    #allocation16 [shape = 'u8[262144]{0}', space=vmem, size = 0x40000, scoped, tag = 'input window, operand 10, single buffered']
    #allocation17 [shape = 'u8[2048]{0}', space=vmem, size = 0x800, scoped, tag = 'input window, operand 11, single buffered']
    #allocation18 [shape = 's32[1]{0}', space=sflag, size = 0x4, scoped, tag = 'scoped memory for discrete_vae_forward.1']
    #allocation19 [shape = 'u8[2490368]{0}', space=vmem, size = 0x260000, scoped, tag = 'input window, operand 12, single buffered']
    #allocation20 [shape = 'u8[9728]{0}', space=vmem, size = 0x2800, scoped, tag = 'input window, operand 13, single buffered']
    #allocation21 [shape = 's32[1]{0}', space=sflag, size = 0x4, scoped, tag = 'scoped memory for discrete_vae_forward.1']
    %21 = vsyncpa [#allocation4], 0
    %22 = vsyncpa [#allocation6], 0
    %23 = vsyncpa [#allocation9], 0
    %24 = vsyncpa [#allocation12], 0
    %25 = vsyncpa [#allocation15], 0
    %26 = vsyncpa [#allocation18], 0
    %27 = vsyncpa [#allocation21], 0
    // Predicated region
    $region2: #{discrete_vae_forward.1} parent=1 // pred_check
      _
    $region3: #{discrete_vae_forward.1} parent=1 // pred_check_branch
      %29 = sbr.rel (0) target = $region5
    $region4: #{discrete_vae_forward.1} parent=1 // pred_region
      _
    $region5: #{discrete_vae_forward.1} parent=1 // pred_fallthru
      _
    // Predicated region
    $region6: #{discrete_vae_forward.1} parent=1 // pred_check
      _
    $region7: #{discrete_vae_forward.1} parent=1 // pred_check_branch
      %31 = sbr.rel (0) target = $region9
    $region8: #{discrete_vae_forward.1} parent=1 // pred_region
      _
    $region9: #{discrete_vae_forward.1} parent=1 // pred_fallthru
      _
    // Predicated region
    $region10: #{discrete_vae_forward.1} parent=1 // pred_check
      _
    $region11: #{discrete_vae_forward.1} parent=1 // pred_check_branch
      %33 = sbr.rel (0) target = $region13
    $region12: #{discrete_vae_forward.1} parent=1 // pred_region
      %s35 = ssub.s32 77824, 77824
      %36 = vsyncadd [#allocation4], %s35
      %s37 = sshll.u32 [#allocation3], 4
      %s38 = int_to_ptr.vmem [resolvable:$true] %s37
      %43 = dma.hbm_to_vmem [thread:$0]  %s2, 77824, %s38, [#allocation4], 256, 256, 16
    $region13: #{discrete_vae_forward.1} parent=1 // pred_fallthru
      _
    // Predicated region
    $region14: #{discrete_vae_forward.1} parent=1 // pred_check
      _
    $region15: #{discrete_vae_forward.1} parent=1 // pred_check_branch
      %45 = sbr.rel (0) target = $region17
    $region16: #{discrete_vae_forward.1} parent=1 // pred_region
      %s47 = ssub.s32 64, 64
      %48 = vsyncadd [#allocation6], %s47
      %s50 = sshll.u32 [#allocation5], 4
      %s51 = int_to_ptr.vmem [resolvable:$true] %s50
      %53 = dma.hbm_to_vmem [thread:$0]  %s3, 64, %s51, [#allocation6]
    $region17: #{discrete_vae_forward.1} parent=1 // pred_fallthru
      _
    // Predicated region
    $region18: #{discrete_vae_forward.1} parent=1 // pred_check
      _
    $region19: #{discrete_vae_forward.1} parent=1 // pred_check_branch
      %55 = sbr.rel (0) target = $region21
    $region20: #{discrete_vae_forward.1} parent=1 // pred_region
      %s57 = ssub.s32 8192, 8192
      %58 = vsyncadd [#allocation6], %s57
      %s59 = sshll.u32 [#allocation7], 4
      %s60 = int_to_ptr.vmem [resolvable:$true] %s59
      %65 = dma.hbm_to_vmem [thread:$0]  %s4, 8192, %s60, [#allocation6], 128, 128, 8
    $region21: #{discrete_vae_forward.1} parent=1 // pred_fallthru
      _
    // Predicated region
    $region22: #{discrete_vae_forward.1} parent=1 // pred_check
      _
    $region23: #{discrete_vae_forward.1} parent=1 // pred_check_branch
      %67 = sbr.rel (0) target = $region25
    $region24: #{discrete_vae_forward.1} parent=1 // pred_region
      %s69 = ssub.s32 32, 32
      %70 = vsyncadd [#allocation9], %s69
      %s72 = sshll.u32 [#allocation8], 4
      %s73 = int_to_ptr.vmem [resolvable:$true] %s72
      %75 = dma.hbm_to_vmem [thread:$0]  %s5, 32, %s73, [#allocation9]
    $region25: #{discrete_vae_forward.1} parent=1 // pred_fallthru
      _
    // Predicated region
    $region26: #{discrete_vae_forward.1} parent=1 // pred_check
      _
    $region27: #{discrete_vae_forward.1} parent=1 // pred_check_branch
      %77 = sbr.rel (0) target = $region29
    $region28: #{discrete_vae_forward.1} parent=1 // pred_region
      %s79 = ssub.s32 2048, 2048
      %80 = vsyncadd [#allocation9], %s79
      %s81 = sshll.u32 [#allocation10], 4
      %s82 = int_to_ptr.vmem [resolvable:$true] %s81
      %87 = dma.hbm_to_vmem [thread:$0]  %s6, 2048, %s82, [#allocation9], 64, 64, 4
    $region29: #{discrete_vae_forward.1} parent=1 // pred_fallthru
      _
    // Predicated region
    $region30: #{discrete_vae_forward.1} parent=1 // pred_check
      _
    $region31: #{discrete_vae_forward.1} parent=1 // pred_check_branch
      %89 = sbr.rel (0) target = $region33
    $region32: #{discrete_vae_forward.1} parent=1 // pred_region
      %s91 = ssub.s32 16, 16
      %92 = vsyncadd [#allocation12], %s91
      %s94 = sshll.u32 [#allocation11], 4
      %s95 = int_to_ptr.vmem [resolvable:$true] %s94
      %97 = dma.hbm_to_vmem [thread:$0]  %s7, 16, %s95, [#allocation12]
    $region33: #{discrete_vae_forward.1} parent=1 // pred_fallthru
      _
    // Predicated region
    $region34: #{discrete_vae_forward.1} parent=1 // pred_check
      _
    $region35: #{discrete_vae_forward.1} parent=1 // pred_check_branch
      %99 = sbr.rel (0) target = $region37
    $region36: #{discrete_vae_forward.1} parent=1 // pred_region
      %s101 = ssub.s32 2048, 2048
      %102 = vsyncadd [#allocation12], %s101
      %s103 = sshll.u32 [#allocation13], 4
      %s104 = int_to_ptr.vmem [resolvable:$true] %s103
      %109 = dma.hbm_to_vmem [thread:$0]  %s8, 2048, %s104, [#allocation12], 128, 128, 8
    $region37: #{discrete_vae_forward.1} parent=1 // pred_fallthru
      _
    // Predicated region
    $region38: #{discrete_vae_forward.1} parent=1 // pred_check
      _
    $region39: #{discrete_vae_forward.1} parent=1 // pred_check_branch
      %111 = sbr.rel (0) target = $region41
    $region40: #{discrete_vae_forward.1} parent=1 // pred_region
      %s113 = ssub.s32 32, 32
      %114 = vsyncadd [#allocation15], %s113
      %s116 = sshll.u32 [#allocation14], 4
      %s117 = int_to_ptr.vmem [resolvable:$true] %s116
      %119 = dma.hbm_to_vmem [thread:$0]  %s9, 32, %s117, [#allocation15]
    $region41: #{discrete_vae_forward.1} parent=1 // pred_fallthru
      _
    // Predicated region
    $region42: #{discrete_vae_forward.1} parent=1 // pred_check
      _
    $region43: #{discrete_vae_forward.1} parent=1 // pred_check_branch
      %121 = sbr.rel (0) target = $region45
    $region44: #{discrete_vae_forward.1} parent=1 // pred_region
      %s123 = ssub.s32 8192, 8192
      %124 = vsyncadd [#allocation15], %s123
      %s125 = sshll.u32 [#allocation16], 4
      %s126 = int_to_ptr.vmem [resolvable:$true] %s125
      %131 = dma.hbm_to_vmem [thread:$0]  %s10, 8192, %s126, [#allocation15], 256, 256, 16
    $region45: #{discrete_vae_forward.1} parent=1 // pred_fallthru
      _
    // Predicated region
    $region46: #{discrete_vae_forward.1} parent=1 // pred_check
      _
    $region47: #{discrete_vae_forward.1} parent=1 // pred_check_branch
      %133 = sbr.rel (0) target = $region49
    $region48: #{discrete_vae_forward.1} parent=1 // pred_region
      %s135 = ssub.s32 64, 64
      %136 = vsyncadd [#allocation18], %s135
      %s138 = sshll.u32 [#allocation17], 4
      %s139 = int_to_ptr.vmem [resolvable:$true] %s138
      %141 = dma.hbm_to_vmem [thread:$0]  %s11, 64, %s139, [#allocation18]
    $region49: #{discrete_vae_forward.1} parent=1 // pred_fallthru
      _
    // Predicated region
    $region50: #{discrete_vae_forward.1} parent=1 // pred_check
      _
    $region51: #{discrete_vae_forward.1} parent=1 // pred_check_branch
      %143 = sbr.rel (0) target = $region53
    $region52: #{discrete_vae_forward.1} parent=1 // pred_region
      %s145 = ssub.s32 77824, 77824
      %146 = vsyncadd [#allocation18], %s145
      %s147 = sshll.u32 [#allocation19], 4
      %s148 = int_to_ptr.vmem [resolvable:$true] %s147
      %153 = dma.hbm_to_vmem [thread:$0]  %s12, 77824, %s148, [#allocation18], 1216, 1216, 76
    $region53: #{discrete_vae_forward.1} parent=1 // pred_fallthru
      _
    // Predicated region
    $region54: #{discrete_vae_forward.1} parent=1 // pred_check
      _
    $region55: #{discrete_vae_forward.1} parent=1 // pred_check_branch
      %155 = sbr.rel (0) target = $region57
    $region56: #{discrete_vae_forward.1} parent=1 // pred_region
      %s157 = ssub.s32 304, 304
      %158 = vsyncadd [#allocation21], %s157
      %s160 = sshll.u32 [#allocation20], 4
      %s161 = int_to_ptr.vmem [resolvable:$true] %s160
      %163 = dma.hbm_to_vmem [thread:$0]  %s13, 304, %s161, [#allocation21]
    $region57: #{discrete_vae_forward.1} parent=1 // pred_fallthru
      _
    // Predicated region
    $region58: #{discrete_vae_forward.1} parent=1 // pred_check
      _
    $region59: #{discrete_vae_forward.1} parent=1 // pred_check_branch
      %165 = sbr.rel (0) target = $region61
    $region60: #{discrete_vae_forward.1} parent=1 // pred_region
      %166 = dma.done [#allocation4], 77824
    $region61: #{discrete_vae_forward.1} parent=1 // pred_fallthru
      _
    // Predicated region
    $region62: #{discrete_vae_forward.1} parent=1 // pred_check
      _
    $region63: #{discrete_vae_forward.1} parent=1 // pred_check_branch
      %168 = sbr.rel (0) target = $region65
    $region64: #{discrete_vae_forward.1} parent=1 // pred_region
      %169 = dma.done [#allocation6], 64
    $region65: #{discrete_vae_forward.1} parent=1 // pred_fallthru
      _
    // Predicated region
    $region66: #{discrete_vae_forward.1} parent=1 // pred_check
      _
    $region67: #{discrete_vae_forward.1} parent=1 // pred_check_branch
      %171 = sbr.rel (0) target = $region69
    $region68: #{discrete_vae_forward.1} parent=1 // pred_region
      %172 = dma.done [#allocation6], 8192
    $region69: #{discrete_vae_forward.1} parent=1 // pred_fallthru
      _
    // Predicated region
    $region70: #{discrete_vae_forward.1} parent=1 // pred_check
      _
    $region71: #{discrete_vae_forward.1} parent=1 // pred_check_branch
      %174 = sbr.rel (0) target = $region73
    $region72: #{discrete_vae_forward.1} parent=1 // pred_region
      %175 = dma.done [#allocation9], 32
    $region73: #{discrete_vae_forward.1} parent=1 // pred_fallthru
      _
    // Predicated region
    $region74: #{discrete_vae_forward.1} parent=1 // pred_check
      _
    $region75: #{discrete_vae_forward.1} parent=1 // pred_check_branch
      %177 = sbr.rel (0) target = $region77
    $region76: #{discrete_vae_forward.1} parent=1 // pred_region
      %178 = dma.done [#allocation9], 2048
    $region77: #{discrete_vae_forward.1} parent=1 // pred_fallthru
      _
    // Predicated region
    $region78: #{discrete_vae_forward.1} parent=1 // pred_check
      _
    $region79: #{discrete_vae_forward.1} parent=1 // pred_check_branch
      %180 = sbr.rel (0) target = $region81
    $region80: #{discrete_vae_forward.1} parent=1 // pred_region
      %181 = dma.done [#allocation12], 16
    $region81: #{discrete_vae_forward.1} parent=1 // pred_fallthru
      _
    // Predicated region
    $region82: #{discrete_vae_forward.1} parent=1 // pred_check
      _
    $region83: #{discrete_vae_forward.1} parent=1 // pred_check_branch
      %183 = sbr.rel (0) target = $region85
    $region84: #{discrete_vae_forward.1} parent=1 // pred_region
      %184 = dma.done [#allocation12], 2048
    $region85: #{discrete_vae_forward.1} parent=1 // pred_fallthru
      _
    // Predicated region
    $region86: #{discrete_vae_forward.1} parent=1 // pred_check
      _
    $region87: #{discrete_vae_forward.1} parent=1 // pred_check_branch
      %186 = sbr.rel (0) target = $region89
    $region88: #{discrete_vae_forward.1} parent=1 // pred_region
      %187 = dma.done [#allocation15], 32
    $region89: #{discrete_vae_forward.1} parent=1 // pred_fallthru
      _
    // Predicated region
    $region90: #{discrete_vae_forward.1} parent=1 // pred_check
      _
    $region91: #{discrete_vae_forward.1} parent=1 // pred_check_branch
      %189 = sbr.rel (0) target = $region93
    $region92: #{discrete_vae_forward.1} parent=1 // pred_region
      %190 = dma.done [#allocation15], 8192
    $region93: #{discrete_vae_forward.1} parent=1 // pred_fallthru
      _
    // Predicated region
    $region94: #{discrete_vae_forward.1} parent=1 // pred_check
      _
    $region95: #{discrete_vae_forward.1} parent=1 // pred_check_branch
      %192 = sbr.rel (0) target = $region97
    $region96: #{discrete_vae_forward.1} parent=1 // pred_region
      %193 = dma.done [#allocation18], 64
    $region97: #{discrete_vae_forward.1} parent=1 // pred_fallthru
      _
    // Predicated region
    $region98: #{discrete_vae_forward.1} parent=1 // pred_check
      _
    $region99: #{discrete_vae_forward.1} parent=1 // pred_check_branch
      %195 = sbr.rel (0) target = $region101
    $region100: #{discrete_vae_forward.1} parent=1 // pred_region
      %196 = dma.done [#allocation18], 77824
    $region101: #{discrete_vae_forward.1} parent=1 // pred_fallthru
      _
    // Predicated region
    $region102: #{discrete_vae_forward.1} parent=1 // pred_check
      _
    $region103: #{discrete_vae_forward.1} parent=1 // pred_check_branch
      %198 = sbr.rel (0) target = $region105
    $region104: #{discrete_vae_forward.1} parent=1 // pred_region
      %199 = dma.done [#allocation21], 304
    $region105: #{discrete_vae_forward.1} parent=1 // pred_fallthru
      _
    %201 = vst [vmem:[#allocation2] sm:$0xff] 0
    %202 = vst [vmem:[#allocation2 + $0x8] sm:$0xff] 0
    %203 = vst [vmem:[#allocation2 + $0x10] sm:$0xff] 0
    %204 = vst [vmem:[#allocation2 + $0x18] sm:$0xff] 0
    %205 = vst [vmem:[#allocation2 + $0x20] sm:$0xff] 0
    %206 = vst [vmem:[#allocation2 + $0x28] sm:$0xff] 0
    %207 = vst [vmem:[#allocation2 + $0x30] sm:$0xff] 0
    %208 = vst [vmem:[#allocation2 + $0x38] sm:$0xff] 0
    %209 = vst [vmem:[#allocation2 + $0x40] sm:$0xff] 0
    %210 = vst [vmem:[#allocation2 + $0x48] sm:$0xff] 0
    %211 = vst [vmem:[#allocation2 + $0x50] sm:$0xff] 0
    %212 = vst [vmem:[#allocation2 + $0x58] sm:$0xff] 0
    %213 = vst [vmem:[#allocation2 + $0x60] sm:$0xff] 0
    %214 = vst [vmem:[#allocation2 + $0x68] sm:$0xff] 0
    %215 = vst [vmem:[#allocation2 + $0x70] sm:$0xff] 0
    %216 = vst [vmem:[#allocation2 + $0x78] sm:$0xff] 0
    %217 = vst [vmem:[#allocation2 + $0x80] sm:$0xff] 0
    %218 = vst [vmem:[#allocation2 + $0x88] sm:$0xff] 0
    %219 = vst [vmem:[#allocation2 + $0x90] sm:$0xff] 0
    %v220 = vld [vmem:[%s0] sm:$0xff]
    %v221 = vld [vmem:[%s0 + $0x8] sm:$0xff]
    %v222 = vld [vmem:[%s0 + $0x10] sm:$0xff]
    %v223 = vld [vmem:[%s0 + $0x18] sm:$0xff]
    %v224 = vld [vmem:[%s0 + $0x20] sm:$0xff]
    %v225 = vld [vmem:[%s0 + $0x28] sm:$0xff]
    %v226 = vld [vmem:[%s0 + $0x30] sm:$0xff]
    %v227 = vld [vmem:[%s0 + $0x38] sm:$0xff]
    %v228 = vld [vmem:[%s0 + $0x40] sm:$0xff]
    %v229 = vld [vmem:[%s0 + $0x48] sm:$0xf]
    %v230 = vld [vmem:[%s0 + $0x4c] sm:$0xff]
    %v231 = vld [vmem:[%s0 + $0x54] sm:$0xff]
    %v232 = vld [vmem:[%s0 + $0x5c] sm:$0xff]
    %v233 = vld [vmem:[%s0 + $0x64] sm:$0xff]
    %v234 = vld [vmem:[%s0 + $0x6c] sm:$0xff]
    %v235 = vld [vmem:[%s0 + $0x74] sm:$0xff]
    %v236 = vld [vmem:[%s0 + $0x7c] sm:$0xff]
    %v237 = vld [vmem:[%s0 + $0x84] sm:$0xff]
    %v238 = vld [vmem:[%s0 + $0x8c] sm:$0xff]
    %v239 = vld [vmem:[%s0 + $0x94] sm:$0xf]
    %v260 = vunpack.c.l.b16 %v220
    %v261 = vunpack.c.h.b16 %v220
    %v262 = vunpack.c.l.b16 %v221
    %v263 = vunpack.c.h.b16 %v221
    %v264 = vunpack.c.l.b16 %v222
    %v265 = vunpack.c.h.b16 %v222
    %v266 = vunpack.c.l.b16 %v223
    %v267 = vunpack.c.h.b16 %v223
    %v268 = vunpack.c.l.b16 %v224
    %v269 = vunpack.c.h.b16 %v224
    %v270 = vunpack.c.l.b16 %v225
    %v271 = vunpack.c.h.b16 %v225
    %v272 = vunpack.c.l.b16 %v226
    %v273 = vunpack.c.h.b16 %v226
    %v274 = vunpack.c.l.b16 %v227
    %v275 = vunpack.c.h.b16 %v227
    %v276 = vunpack.c.l.b16 %v228
    %v277 = vunpack.c.h.b16 %v228
    %v278 = vunpack.c.l.b16 %v229
    %v279 = vunpack.c.l.b16 %v230
    %v280 = vunpack.c.h.b16 %v230
    %v281 = vunpack.c.l.b16 %v231
    %v282 = vunpack.c.h.b16 %v231
    %v283 = vunpack.c.l.b16 %v232
    %v284 = vunpack.c.h.b16 %v232
    %v285 = vunpack.c.l.b16 %v233
    %v286 = vunpack.c.h.b16 %v233
    %v287 = vunpack.c.l.b16 %v234
    %v288 = vunpack.c.h.b16 %v234
    %v289 = vunpack.c.l.b16 %v235
    %v290 = vunpack.c.h.b16 %v235
    %v291 = vunpack.c.l.b16 %v236
    %v292 = vunpack.c.h.b16 %v236
    %v293 = vunpack.c.l.b16 %v237
    %v294 = vunpack.c.h.b16 %v237
    %v295 = vunpack.c.l.b16 %v238
    %v296 = vunpack.c.h.b16 %v238
    %v297 = vunpack.c.l.b16 %v239
    %v298 = vpack.c.b16 %v279, %v260
    %v299 = vpack.c.b16 %v280, %v261
    %v300 = vpack.c.b16 %v281, %v262
    %v301 = vpack.c.b16 %v282, %v263
    %v302 = vpack.c.b16 %v283, %v264
    %v303 = vpack.c.b16 %v284, %v265
    %v304 = vpack.c.b16 %v285, %v266
    %v305 = vpack.c.b16 %v286, %v267
    %v306 = vpack.c.b16 %v287, %v268
    %v307 = vpack.c.b16 %v288, %v269
    %v308 = vpack.c.b16 %v289, %v270
    %v309 = vpack.c.b16 %v290, %v271
    %v310 = vpack.c.b16 %v291, %v272
    %v311 = vpack.c.b16 %v292, %v273
    %v312 = vpack.c.b16 %v293, %v274
    %v313 = vpack.c.b16 %v294, %v275
    %v314 = vpack.c.b16 %v295, %v276
    %v315 = vpack.c.b16 %v296, %v277
    %v316 = vpack.c.b16 %v297, %v278
    %336 = vst [vmem:[#allocation2] sm:$0xff] %v298
    %337 = vst [vmem:[#allocation2 + $0x8] sm:$0xff] %v299
    %338 = vst [vmem:[#allocation2 + $0x10] sm:$0xff] %v300
    %339 = vst [vmem:[#allocation2 + $0x18] sm:$0xff] %v301
    %340 = vst [vmem:[#allocation2 + $0x20] sm:$0xff] %v302
    %341 = vst [vmem:[#allocation2 + $0x28] sm:$0xff] %v303
    %342 = vst [vmem:[#allocation2 + $0x30] sm:$0xff] %v304
    %343 = vst [vmem:[#allocation2 + $0x38] sm:$0xff] %v305
    %344 = vst [vmem:[#allocation2 + $0x40] sm:$0xff] %v306
    %345 = vst [vmem:[#allocation2 + $0x48] sm:$0xff] %v307
    %346 = vst [vmem:[#allocation2 + $0x50] sm:$0xff] %v308
    %347 = vst [vmem:[#allocation2 + $0x58] sm:$0xff] %v309
    %348 = vst [vmem:[#allocation2 + $0x60] sm:$0xff] %v310
    %349 = vst [vmem:[#allocation2 + $0x68] sm:$0xff] %v311
    %350 = vst [vmem:[#allocation2 + $0x70] sm:$0xff] %v312
    %351 = vst [vmem:[#allocation2 + $0x78] sm:$0xff] %v313
    %352 = vst [vmem:[#allocation2 + $0x80] sm:$0xff] %v314
    %353 = vst [vmem:[#allocation2 + $0x88] sm:$0xff] %v315
    %vm354 = vcmask 392192
    %355 = vst.msk [vmem:[#allocation2 + $0x90] sm:$0xff] %vm354, %v316
    %v356 = vld [vmem:[#allocation2] sm:$0xff]
    %v357 = vld [vmem:[#allocation2 + $0x8] sm:$0xff]
    %v358 = vld [vmem:[#allocation2 + $0x10] sm:$0xff]
    %v359 = vld [vmem:[#allocation2 + $0x18] sm:$0xff]
    %v360 = vld [vmem:[#allocation2 + $0x20] sm:$0xff]
    %v361 = vld [vmem:[#allocation2 + $0x28] sm:$0xff]
    %v362 = vld [vmem:[#allocation2 + $0x30] sm:$0xff]
    %v363 = vld [vmem:[#allocation2 + $0x38] sm:$0xff]
    %v364 = vld [vmem:[#allocation2 + $0x40] sm:$0xff]
    %v365 = vld [vmem:[#allocation2 + $0x48] sm:$0xff]
    %v366 = vld [vmem:[#allocation2 + $0x50] sm:$0xff]
    %v367 = vld [vmem:[#allocation2 + $0x58] sm:$0xff]
    %v368 = vld [vmem:[#allocation2 + $0x60] sm:$0xff]
    %v369 = vld [vmem:[#allocation2 + $0x68] sm:$0xff]
    %v370 = vld [vmem:[#allocation2 + $0x70] sm:$0xff]
    %v371 = vld [vmem:[#allocation2 + $0x78] sm:$0xff]
    %v372 = vld [vmem:[#allocation2 + $0x80] sm:$0xff]
    %v373 = vld [vmem:[#allocation2 + $0x88] sm:$0xff]
    %v374 = vld [vmem:[#allocation2 + $0x90] sm:$0xff]
    %v375 = vld [vmem:[#allocation3] sm:$0xff]
    %v376 = vld [vmem:[#allocation3 + $0x8] sm:$0xff]
    %v377 = vld [vmem:[#allocation3 + $0x10] sm:$0xff]
    %v378 = vld [vmem:[#allocation3 + $0x18] sm:$0xff]
    %v379 = vld [vmem:[#allocation3 + $0x20] sm:$0xff]
    %v380 = vld [vmem:[#allocation3 + $0x28] sm:$0xff]
    %v381 = vld [vmem:[#allocation3 + $0x30] sm:$0xff]
    %v382 = vld [vmem:[#allocation3 + $0x38] sm:$0xff]
    %v383 = vld [vmem:[#allocation3 + $0x40] sm:$0xff]
    %v384 = vld [vmem:[#allocation3 + $0x48] sm:$0xff]
    %v385 = vld [vmem:[#allocation3 + $0x50] sm:$0xff]
    %v386 = vld [vmem:[#allocation3 + $0x58] sm:$0xff]
    %v387 = vld [vmem:[#allocation3 + $0x60] sm:$0xff]
    %v388 = vld [vmem:[#allocation3 + $0x68] sm:$0xff]
    %v389 = vld [vmem:[#allocation3 + $0x70] sm:$0xff]
    %v390 = vld [vmem:[#allocation3 + $0x78] sm:$0xff]
    %v391 = vld [vmem:[#allocation3 + $0x80] sm:$0xff]
    %v392 = vld [vmem:[#allocation3 + $0x88] sm:$0xff]
    %v393 = vld [vmem:[#allocation3 + $0x90] sm:$0xff]
    %v394 = vld [vmem:[#allocation3 + $0x98] sm:$0xff]
    %v395 = vld [vmem:[#allocation3 + $0xa0] sm:$0xff]
    %v396 = vld [vmem:[#allocation3 + $0xa8] sm:$0xff]
    %v397 = vld [vmem:[#allocation3 + $0xb0] sm:$0xff]
    %v398 = vld [vmem:[#allocation3 + $0xb8] sm:$0xff]
    %v399 = vld [vmem:[#allocation3 + $0xc0] sm:$0xff]
    %v400 = vld [vmem:[#allocation3 + $0xc8] sm:$0xff]
    %v401 = vld [vmem:[#allocation3 + $0xd0] sm:$0xff]
    %v402 = vld [vmem:[#allocation3 + $0xd8] sm:$0xff]
    %v403 = vld [vmem:[#allocation3 + $0xe0] sm:$0xff]
    %v404 = vld [vmem:[#allocation3 + $0xe8] sm:$0xff]
    %v405 = vld [vmem:[#allocation3 + $0xf0] sm:$0xff]
    %v406 = vld [vmem:[#allocation3 + $0xf8] sm:$0xff]
    %v407 = vld [vmem:[#allocation3 + $0x100] sm:$0xff]
    %v408 = vld [vmem:[#allocation3 + $0x108] sm:$0xff]
    %v409 = vld [vmem:[#allocation3 + $0x110] sm:$0xff]
    %v410 = vld [vmem:[#allocation3 + $0x118] sm:$0xff]
    %v411 = vld [vmem:[#allocation3 + $0x120] sm:$0xff]
    %v412 = vld [vmem:[#allocation3 + $0x128] sm:$0xff]
    %v413 = vld [vmem:[#allocation3 + $0x130] sm:$0xff]
    %v414 = vld [vmem:[#allocation3 + $0x138] sm:$0xff]
    %v415 = vld [vmem:[#allocation3 + $0x140] sm:$0xff]
    %v416 = vld [vmem:[#allocation3 + $0x148] sm:$0xff]
    %v417 = vld [vmem:[#allocation3 + $0x150] sm:$0xff]
    %v418 = vld [vmem:[#allocation3 + $0x158] sm:$0xff]
    %v419 = vld [vmem:[#allocation3 + $0x160] sm:$0xff]
    %v420 = vld [vmem:[#allocation3 + $0x168] sm:$0xff]
    %v421 = vld [vmem:[#allocation3 + $0x170] sm:$0xff]
    %v422 = vld [vmem:[#allocation3 + $0x178] sm:$0xff]
    %v423 = vld [vmem:[#allocation3 + $0x180] sm:$0xff]
    %v424 = vld [vmem:[#allocation3 + $0x188] sm:$0xff]
    %v425 = vld [vmem:[#allocation3 + $0x190] sm:$0xff]
    %v426 = vld [vmem:[#allocation3 + $0x198] sm:$0xff]
    %v427 = vld [vmem:[#allocation3 + $0x1a0] sm:$0xff]
    %v428 = vld [vmem:[#allocation3 + $0x1a8] sm:$0xff]
    %v429 = vld [vmem:[#allocation3 + $0x1b0] sm:$0xff]
    %v430 = vld [vmem:[#allocation3 + $0x1b8] sm:$0xff]
    %v431 = vld [vmem:[#allocation3 + $0x1c0] sm:$0xff]
    %v432 = vld [vmem:[#allocation3 + $0x1c8] sm:$0xff]
    %v433 = vld [vmem:[#allocation3 + $0x1d0] sm:$0xff]
    %v434 = vld [vmem:[#allocation3 + $0x1d8] sm:$0xff]
    %v435 = vld [vmem:[#allocation3 + $0x1e0] sm:$0xff]
    %v436 = vld [vmem:[#allocation3 + $0x1e8] sm:$0xff]
    %v437 = vld [vmem:[#allocation3 + $0x1f0] sm:$0xff]
    %v438 = vld [vmem:[#allocation3 + $0x1f8] sm:$0xff]
    %v439 = vld [vmem:[#allocation3 + $0x200] sm:$0xff]
    %v440 = vld [vmem:[#allocation3 + $0x208] sm:$0xff]
    %v441 = vld [vmem:[#allocation3 + $0x210] sm:$0xff]
    %v442 = vld [vmem:[#allocation3 + $0x218] sm:$0xff]
    %v443 = vld [vmem:[#allocation3 + $0x220] sm:$0xff]
    %v444 = vld [vmem:[#allocation3 + $0x228] sm:$0xff]
    %v445 = vld [vmem:[#allocation3 + $0x230] sm:$0xff]
    %v446 = vld [vmem:[#allocation3 + $0x238] sm:$0xff]
    %v447 = vld [vmem:[#allocation3 + $0x240] sm:$0xff]
    %v448 = vld [vmem:[#allocation3 + $0x248] sm:$0xff]
    %v449 = vld [vmem:[#allocation3 + $0x250] sm:$0xff]
    %v450 = vld [vmem:[#allocation3 + $0x258] sm:$0xff]
    %v451 = vld [vmem:[#allocation3 + $0x260] sm:$0xff]
    %v452 = vld [vmem:[#allocation3 + $0x268] sm:$0xff]
    %v453 = vld [vmem:[#allocation3 + $0x270] sm:$0xff]
    %v454 = vld [vmem:[#allocation3 + $0x278] sm:$0xff]
    %v455 = vld [vmem:[#allocation3 + $0x280] sm:$0xff]
    %v456 = vld [vmem:[#allocation3 + $0x288] sm:$0xff]
    %v457 = vld [vmem:[#allocation3 + $0x290] sm:$0xff]
    %v458 = vld [vmem:[#allocation3 + $0x298] sm:$0xff]
    %v459 = vld [vmem:[#allocation3 + $0x2a0] sm:$0xff]
    %v460 = vld [vmem:[#allocation3 + $0x2a8] sm:$0xff]
    %v461 = vld [vmem:[#allocation3 + $0x2b0] sm:$0xff]
    %v462 = vld [vmem:[#allocation3 + $0x2b8] sm:$0xff]
    %v463 = vld [vmem:[#allocation3 + $0x2c0] sm:$0xff]
    %v464 = vld [vmem:[#allocation3 + $0x2c8] sm:$0xff]
    %v465 = vld [vmem:[#allocation3 + $0x2d0] sm:$0xff]
    %v466 = vld [vmem:[#allocation3 + $0x2d8] sm:$0xff]
    %v467 = vld [vmem:[#allocation3 + $0x2e0] sm:$0xff]
    %v468 = vld [vmem:[#allocation3 + $0x2e8] sm:$0xff]
    %v469 = vld [vmem:[#allocation3 + $0x2f0] sm:$0xff]
    %v470 = vld [vmem:[#allocation3 + $0x2f8] sm:$0xff]
    %v471 = vld [vmem:[#allocation3 + $0x300] sm:$0xff]
    %v472 = vld [vmem:[#allocation3 + $0x308] sm:$0xff]
    %v473 = vld [vmem:[#allocation3 + $0x310] sm:$0xff]
    %v474 = vld [vmem:[#allocation3 + $0x318] sm:$0xff]
    %v475 = vld [vmem:[#allocation3 + $0x320] sm:$0xff]
    %v476 = vld [vmem:[#allocation3 + $0x328] sm:$0xff]
    %v477 = vld [vmem:[#allocation3 + $0x330] sm:$0xff]
    %v478 = vld [vmem:[#allocation3 + $0x338] sm:$0xff]
    %v479 = vld [vmem:[#allocation3 + $0x340] sm:$0xff]
    %v480 = vld [vmem:[#allocation3 + $0x348] sm:$0xff]
    %v481 = vld [vmem:[#allocation3 + $0x350] sm:$0xff]
    %v482 = vld [vmem:[#allocation3 + $0x358] sm:$0xff]
    %v483 = vld [vmem:[#allocation3 + $0x360] sm:$0xff]
    %v484 = vld [vmem:[#allocation3 + $0x368] sm:$0xff]
    %v485 = vld [vmem:[#allocation3 + $0x370] sm:$0xff]
    %v486 = vld [vmem:[#allocation3 + $0x378] sm:$0xff]
    %v487 = vld [vmem:[#allocation3 + $0x380] sm:$0xff]
    %v488 = vld [vmem:[#allocation3 + $0x388] sm:$0xff]
    %v489 = vld [vmem:[#allocation3 + $0x390] sm:$0xff]
    %v490 = vld [vmem:[#allocation3 + $0x398] sm:$0xff]
    %v491 = vld [vmem:[#allocation3 + $0x3a0] sm:$0xff]
    %v492 = vld [vmem:[#allocation3 + $0x3a8] sm:$0xff]
    %v493 = vld [vmem:[#allocation3 + $0x3b0] sm:$0xff]
    %v494 = vld [vmem:[#allocation3 + $0x3b8] sm:$0xff]
    %v495 = vld [vmem:[#allocation3 + $0x3c0] sm:$0xff]
    %v496 = vld [vmem:[#allocation3 + $0x3c8] sm:$0xff]
    %v497 = vld [vmem:[#allocation3 + $0x3d0] sm:$0xff]
    %v498 = vld [vmem:[#allocation3 + $0x3d8] sm:$0xff]
    %v499 = vld [vmem:[#allocation3 + $0x3e0] sm:$0xff]
    %v500 = vld [vmem:[#allocation3 + $0x3e8] sm:$0xff]
    %v501 = vld [vmem:[#allocation3 + $0x3f0] sm:$0xff]
    %v502 = vld [vmem:[#allocation3 + $0x3f8] sm:$0xff]
    %v503 = vld [vmem:[#allocation3 + $0x400] sm:$0xff]
    %v504 = vld [vmem:[#allocation3 + $0x408] sm:$0xff]
    %v505 = vld [vmem:[#allocation3 + $0x410] sm:$0xff]
    %v506 = vld [vmem:[#allocation3 + $0x418] sm:$0xff]
    %v507 = vld [vmem:[#allocation3 + $0x420] sm:$0xff]
    %v508 = vld [vmem:[#allocation3 + $0x428] sm:$0xff]
    %v509 = vld [vmem:[#allocation3 + $0x430] sm:$0xff]
    %v510 = vld [vmem:[#allocation3 + $0x438] sm:$0xff]
    %v511 = vld [vmem:[#allocation3 + $0x440] sm:$0xff]
    %v512 = vld [vmem:[#allocation3 + $0x448] sm:$0xff]
    %v513 = vld [vmem:[#allocation3 + $0x450] sm:$0xff]
    %v514 = vld [vmem:[#allocation3 + $0x458] sm:$0xff]
    %v515 = vld [vmem:[#allocation3 + $0x460] sm:$0xff]
    %v516 = vld [vmem:[#allocation3 + $0x468] sm:$0xff]
    %v517 = vld [vmem:[#allocation3 + $0x470] sm:$0xff]
    %v518 = vld [vmem:[#allocation3 + $0x478] sm:$0xff]
    %v519 = vld [vmem:[#allocation3 + $0x480] sm:$0xff]
    %v520 = vld [vmem:[#allocation3 + $0x488] sm:$0xff]
    %v521 = vld [vmem:[#allocation3 + $0x490] sm:$0xff]
    %v522 = vld [vmem:[#allocation3 + $0x498] sm:$0xff]
    %v523 = vld [vmem:[#allocation3 + $0x4a0] sm:$0xff]
    %v524 = vld [vmem:[#allocation3 + $0x4a8] sm:$0xff]
    %v525 = vld [vmem:[#allocation3 + $0x4b0] sm:$0xff]
    %v526 = vld [vmem:[#allocation3 + $0x4b8] sm:$0xff]
    %v527 = vld [vmem:[#allocation3 + $0x4c0] sm:$0xff]
    %v528 = vld [vmem:[#allocation3 + $0x4c8] sm:$0xff]
    %v529 = vld [vmem:[#allocation3 + $0x4d0] sm:$0xff]
    %v530 = vld [vmem:[#allocation3 + $0x4d8] sm:$0xff]
    %v531 = vld [vmem:[#allocation3 + $0x4e0] sm:$0xff]
    %v532 = vld [vmem:[#allocation3 + $0x4e8] sm:$0xff]
    %v533 = vld [vmem:[#allocation3 + $0x4f0] sm:$0xff]
    %v534 = vld [vmem:[#allocation3 + $0x4f8] sm:$0xff]
    %v535 = vld [vmem:[#allocation3 + $0x500] sm:$0xff]
    %v536 = vld [vmem:[#allocation3 + $0x508] sm:$0xff]
    %v537 = vld [vmem:[#allocation3 + $0x510] sm:$0xff]
    %v538 = vld [vmem:[#allocation3 + $0x518] sm:$0xff]
    %v539 = vld [vmem:[#allocation3 + $0x520] sm:$0xff]
    %v540 = vld [vmem:[#allocation3 + $0x528] sm:$0xff]
    %v541 = vld [vmem:[#allocation3 + $0x530] sm:$0xff]
    %v542 = vld [vmem:[#allocation3 + $0x538] sm:$0xff]
    %v543 = vld [vmem:[#allocation3 + $0x540] sm:$0xff]
    %v544 = vld [vmem:[#allocation3 + $0x548] sm:$0xff]
    %v545 = vld [vmem:[#allocation3 + $0x550] sm:$0xff]
    %v546 = vld [vmem:[#allocation3 + $0x558] sm:$0xff]
    %v547 = vld [vmem:[#allocation3 + $0x560] sm:$0xff]
    %v548 = vld [vmem:[#allocation3 + $0x568] sm:$0xff]
    %v549 = vld [vmem:[#allocation3 + $0x570] sm:$0xff]
    %v550 = vld [vmem:[#allocation3 + $0x578] sm:$0xff]
    %v551 = vld [vmem:[#allocation3 + $0x580] sm:$0xff]
    %v552 = vld [vmem:[#allocation3 + $0x588] sm:$0xff]
    %v553 = vld [vmem:[#allocation3 + $0x590] sm:$0xff]
    %v554 = vld [vmem:[#allocation3 + $0x598] sm:$0xff]
    %v555 = vld [vmem:[#allocation3 + $0x5a0] sm:$0xff]
    %v556 = vld [vmem:[#allocation3 + $0x5a8] sm:$0xff]
    %v557 = vld [vmem:[#allocation3 + $0x5b0] sm:$0xff]
    %v558 = vld [vmem:[#allocation3 + $0x5b8] sm:$0xff]
    %v559 = vld [vmem:[#allocation3 + $0x5c0] sm:$0xff]
    %v560 = vld [vmem:[#allocation3 + $0x5c8] sm:$0xff]
    %v561 = vld [vmem:[#allocation3 + $0x5d0] sm:$0xff]
    %v562 = vld [vmem:[#allocation3 + $0x5d8] sm:$0xff]
    %v563 = vld [vmem:[#allocation3 + $0x5e0] sm:$0xff]
    %v564 = vld [vmem:[#allocation3 + $0x5e8] sm:$0xff]
    %v565 = vld [vmem:[#allocation3 + $0x5f0] sm:$0xff]
    %v566 = vld [vmem:[#allocation3 + $0x5f8] sm:$0xff]
    %v567 = vld [vmem:[#allocation3 + $0x600] sm:$0xff]
    %v568 = vld [vmem:[#allocation3 + $0x608] sm:$0xff]
    %v569 = vld [vmem:[#allocation3 + $0x610] sm:$0xff]
    %v570 = vld [vmem:[#allocation3 + $0x618] sm:$0xff]
    %v571 = vld [vmem:[#allocation3 + $0x620] sm:$0xff]
    %v572 = vld [vmem:[#allocation3 + $0x628] sm:$0xff]
    %v573 = vld [vmem:[#allocation3 + $0x630] sm:$0xff]
    %v574 = vld [vmem:[#allocation3 + $0x638] sm:$0xff]
    %v575 = vld [vmem:[#allocation3 + $0x640] sm:$0xff]
    %v576 = vld [vmem:[#allocation3 + $0x648] sm:$0xff]
    %v577 = vld [vmem:[#allocation3 + $0x650] sm:$0xff]
    %v578 = vld [vmem:[#allocation3 + $0x658] sm:$0xff]
    %v579 = vld [vmem:[#allocation3 + $0x660] sm:$0xff]
    %v580 = vld [vmem:[#allocation3 + $0x668] sm:$0xff]
    %v581 = vld [vmem:[#allocation3 + $0x670] sm:$0xff]
    %v582 = vld [vmem:[#allocation3 + $0x678] sm:$0xff]
    %v583 = vld [vmem:[#allocation3 + $0x680] sm:$0xff]
    %v584 = vld [vmem:[#allocation3 + $0x688] sm:$0xff]
    %v585 = vld [vmem:[#allocation3 + $0x690] sm:$0xff]
    %v586 = vld [vmem:[#allocation3 + $0x698] sm:$0xff]
    %v587 = vld [vmem:[#allocation3 + $0x6a0] sm:$0xff]
    %v588 = vld [vmem:[#allocation3 + $0x6a8] sm:$0xff]
    %v589 = vld [vmem:[#allocation3 + $0x6b0] sm:$0xff]
    %v590 = vld [vmem:[#allocation3 + $0x6b8] sm:$0xff]
    %v591 = vld [vmem:[#allocation3 + $0x6c0] sm:$0xff]
    %v592 = vld [vmem:[#allocation3 + $0x6c8] sm:$0xff]
    %v593 = vld [vmem:[#allocation3 + $0x6d0] sm:$0xff]
    %v594 = vld [vmem:[#allocation3 + $0x6d8] sm:$0xff]
    %v595 = vld [vmem:[#allocation3 + $0x6e0] sm:$0xff]
    %v596 = vld [vmem:[#allocation3 + $0x6e8] sm:$0xff]
    %v597 = vld [vmem:[#allocation3 + $0x6f0] sm:$0xff]
    %v598 = vld [vmem:[#allocation3 + $0x6f8] sm:$0xff]
    %v599 = vld [vmem:[#allocation3 + $0x700] sm:$0xff]
    %v600 = vld [vmem:[#allocation3 + $0x708] sm:$0xff]
    %v601 = vld [vmem:[#allocation3 + $0x710] sm:$0xff]
    %v602 = vld [vmem:[#allocation3 + $0x718] sm:$0xff]
    %v603 = vld [vmem:[#allocation3 + $0x720] sm:$0xff]
    %v604 = vld [vmem:[#allocation3 + $0x728] sm:$0xff]
    %v605 = vld [vmem:[#allocation3 + $0x730] sm:$0xff]
    %v606 = vld [vmem:[#allocation3 + $0x738] sm:$0xff]
    %v607 = vld [vmem:[#allocation3 + $0x740] sm:$0xff]
    %v608 = vld [vmem:[#allocation3 + $0x748] sm:$0xff]
    %v609 = vld [vmem:[#allocation3 + $0x750] sm:$0xff]
    %v610 = vld [vmem:[#allocation3 + $0x758] sm:$0xff]
    %v611 = vld [vmem:[#allocation3 + $0x760] sm:$0xff]
    %v612 = vld [vmem:[#allocation3 + $0x768] sm:$0xff]
    %v613 = vld [vmem:[#allocation3 + $0x770] sm:$0xff]
    %v614 = vld [vmem:[#allocation3 + $0x778] sm:$0xff]
    %v615 = vld [vmem:[#allocation3 + $0x780] sm:$0xff]
    %v616 = vld [vmem:[#allocation3 + $0x788] sm:$0xff]
    %v617 = vld [vmem:[#allocation3 + $0x790] sm:$0xff]
    %v618 = vld [vmem:[#allocation3 + $0x798] sm:$0xff]
    %v619 = vld [vmem:[#allocation3 + $0x7a0] sm:$0xff]
    %v620 = vld [vmem:[#allocation3 + $0x7a8] sm:$0xff]
    %v621 = vld [vmem:[#allocation3 + $0x7b0] sm:$0xff]
    %v622 = vld [vmem:[#allocation3 + $0x7b8] sm:$0xff]
    %v623 = vld [vmem:[#allocation3 + $0x7c0] sm:$0xff]
    %v624 = vld [vmem:[#allocation3 + $0x7c8] sm:$0xff]
    %v625 = vld [vmem:[#allocation3 + $0x7d0] sm:$0xff]
    %v626 = vld [vmem:[#allocation3 + $0x7d8] sm:$0xff]
    %v627 = vld [vmem:[#allocation3 + $0x7e0] sm:$0xff]
    %v628 = vld [vmem:[#allocation3 + $0x7e8] sm:$0xff]
    %v629 = vld [vmem:[#allocation3 + $0x7f0] sm:$0xff]
    %v630 = vld [vmem:[#allocation3 + $0x7f8] sm:$0xff]
    %v631 = vld [vmem:[#allocation3 + $0x800] sm:$0xff]
    %v632 = vld [vmem:[#allocation3 + $0x808] sm:$0xff]
    %v633 = vld [vmem:[#allocation3 + $0x810] sm:$0xff]
    %v634 = vld [vmem:[#allocation3 + $0x818] sm:$0xff]
    %v635 = vld [vmem:[#allocation3 + $0x820] sm:$0xff]
    %v636 = vld [vmem:[#allocation3 + $0x828] sm:$0xff]
    %v637 = vld [vmem:[#allocation3 + $0x830] sm:$0xff]
    %v638 = vld [vmem:[#allocation3 + $0x838] sm:$0xff]
    %v639 = vld [vmem:[#allocation3 + $0x840] sm:$0xff]
    %v640 = vld [vmem:[#allocation3 + $0x848] sm:$0xff]
    %v641 = vld [vmem:[#allocation3 + $0x850] sm:$0xff]
    %v642 = vld [vmem:[#allocation3 + $0x858] sm:$0xff]
    %v643 = vld [vmem:[#allocation3 + $0x860] sm:$0xff]
    %v644 = vld [vmem:[#allocation3 + $0x868] sm:$0xff]
    %v645 = vld [vmem:[#allocation3 + $0x870] sm:$0xff]
    %v646 = vld [vmem:[#allocation3 + $0x878] sm:$0xff]
    %v647 = vld [vmem:[#allocation3 + $0x880] sm:$0xff]
    %v648 = vld [vmem:[#allocation3 + $0x888] sm:$0xff]
    %v649 = vld [vmem:[#allocation3 + $0x890] sm:$0xff]
    %v650 = vld [vmem:[#allocation3 + $0x898] sm:$0xff]
    %v651 = vld [vmem:[#allocation3 + $0x8a0] sm:$0xff]
    %v652 = vld [vmem:[#allocation3 + $0x8a8] sm:$0xff]
    %v653 = vld [vmem:[#allocation3 + $0x8b0] sm:$0xff]
    %v654 = vld [vmem:[#allocation3 + $0x8b8] sm:$0xff]
    %v655 = vld [vmem:[#allocation3 + $0x8c0] sm:$0xff]
    %v656 = vld [vmem:[#allocation3 + $0x8c8] sm:$0xff]
    %v657 = vld [vmem:[#allocation3 + $0x8d0] sm:$0xff]
    %v658 = vld [vmem:[#allocation3 + $0x8d8] sm:$0xff]
    %v659 = vld [vmem:[#allocation3 + $0x8e0] sm:$0xff]
    %v660 = vld [vmem:[#allocation3 + $0x8e8] sm:$0xff]
    %v661 = vld [vmem:[#allocation3 + $0x8f0] sm:$0xff]
    %v662 = vld [vmem:[#allocation3 + $0x8f8] sm:$0xff]
    %v663 = vld [vmem:[#allocation3 + $0x900] sm:$0xff]
    %v664 = vld [vmem:[#allocation3 + $0x908] sm:$0xff]
    %v665 = vld [vmem:[#allocation3 + $0x910] sm:$0xff]
    %v666 = vld [vmem:[#allocation3 + $0x918] sm:$0xff]
    %v667 = vld [vmem:[#allocation3 + $0x920] sm:$0xff]
    %v668 = vld [vmem:[#allocation3 + $0x928] sm:$0xff]
    %v669 = vld [vmem:[#allocation3 + $0x930] sm:$0xff]
    %v670 = vld [vmem:[#allocation3 + $0x938] sm:$0xff]
    %v671 = vld [vmem:[#allocation3 + $0x940] sm:$0xff]
    %v672 = vld [vmem:[#allocation3 + $0x948] sm:$0xff]
    %v673 = vld [vmem:[#allocation3 + $0x950] sm:$0xff]
    %v674 = vld [vmem:[#allocation3 + $0x958] sm:$0xff]
    %v675 = vld [vmem:[#allocation3 + $0x960] sm:$0xff]
    %v676 = vld [vmem:[#allocation3 + $0x968] sm:$0xff]
    %v677 = vld [vmem:[#allocation3 + $0x970] sm:$0xff]
    %v678 = vld [vmem:[#allocation3 + $0x978] sm:$0xff]
    %v679 = vld [vmem:[#allocation3 + $0x980] sm:$0xff]
    %v680 = vld [vmem:[#allocation3 + $0x988] sm:$0xff]
    %v681 = vld [vmem:[#allocation3 + $0x990] sm:$0xff]
    %v682 = vld [vmem:[#allocation3 + $0x998] sm:$0xff]
    %v683 = vld [vmem:[#allocation3 + $0x9a0] sm:$0xff]
    %v684 = vld [vmem:[#allocation3 + $0x9a8] sm:$0xff]
    %v685 = vld [vmem:[#allocation3 + $0x9b0] sm:$0xff]
    %v686 = vld [vmem:[#allocation3 + $0x9b8] sm:$0xff]
    %v687 = vld [vmem:[#allocation3 + $0x9c0] sm:$0xff]
    %v688 = vld [vmem:[#allocation3 + $0x9c8] sm:$0xff]
    %v689 = vld [vmem:[#allocation3 + $0x9d0] sm:$0xff]
    %v690 = vld [vmem:[#allocation3 + $0x9d8] sm:$0xff]
    %v691 = vld [vmem:[#allocation3 + $0x9e0] sm:$0xff]
    %v692 = vld [vmem:[#allocation3 + $0x9e8] sm:$0xff]
    %v693 = vld [vmem:[#allocation3 + $0x9f0] sm:$0xff]
    %v694 = vld [vmem:[#allocation3 + $0x9f8] sm:$0xff]
    %v695 = vld [vmem:[#allocation3 + $0xa00] sm:$0xff]
    %v696 = vld [vmem:[#allocation3 + $0xa08] sm:$0xff]
    %v697 = vld [vmem:[#allocation3 + $0xa10] sm:$0xff]
    %v698 = vld [vmem:[#allocation3 + $0xa18] sm:$0xff]
    %v699 = vld [vmem:[#allocation3 + $0xa20] sm:$0xff]
    %v700 = vld [vmem:[#allocation3 + $0xa28] sm:$0xff]
    %v701 = vld [vmem:[#allocation3 + $0xa30] sm:$0xff]
    %v702 = vld [vmem:[#allocation3 + $0xa38] sm:$0xff]
    %v703 = vld [vmem:[#allocation3 + $0xa40] sm:$0xff]
    %v704 = vld [vmem:[#allocation3 + $0xa48] sm:$0xff]
    %v705 = vld [vmem:[#allocation3 + $0xa50] sm:$0xff]
    %v706 = vld [vmem:[#allocation3 + $0xa58] sm:$0xff]
    %v707 = vld [vmem:[#allocation3 + $0xa60] sm:$0xff]
    %v708 = vld [vmem:[#allocation3 + $0xa68] sm:$0xff]
    %v709 = vld [vmem:[#allocation3 + $0xa70] sm:$0xff]
    %v710 = vld [vmem:[#allocation3 + $0xa78] sm:$0xff]
    %v711 = vld [vmem:[#allocation3 + $0xa80] sm:$0xff]
    %v712 = vld [vmem:[#allocation3 + $0xa88] sm:$0xff]
    %v713 = vld [vmem:[#allocation3 + $0xa90] sm:$0xff]
    %v714 = vld [vmem:[#allocation3 + $0xa98] sm:$0xff]
    %v715 = vld [vmem:[#allocation3 + $0xaa0] sm:$0xff]
    %v716 = vld [vmem:[#allocation3 + $0xaa8] sm:$0xff]
    %v717 = vld [vmem:[#allocation3 + $0xab0] sm:$0xff]
    %v718 = vld [vmem:[#allocation3 + $0xab8] sm:$0xff]
    %v719 = vld [vmem:[#allocation3 + $0xac0] sm:$0xff]
    %v720 = vld [vmem:[#allocation3 + $0xac8] sm:$0xff]
    %v721 = vld [vmem:[#allocation3 + $0xad0] sm:$0xff]
    %v722 = vld [vmem:[#allocation3 + $0xad8] sm:$0xff]
    %v723 = vld [vmem:[#allocation3 + $0xae0] sm:$0xff]
    %v724 = vld [vmem:[#allocation3 + $0xae8] sm:$0xff]
    %v725 = vld [vmem:[#allocation3 + $0xaf0] sm:$0xff]
    %v726 = vld [vmem:[#allocation3 + $0xaf8] sm:$0xff]
    %v727 = vld [vmem:[#allocation3 + $0xb00] sm:$0xff]
    %v728 = vld [vmem:[#allocation3 + $0xb08] sm:$0xff]
    %v729 = vld [vmem:[#allocation3 + $0xb10] sm:$0xff]
    %v730 = vld [vmem:[#allocation3 + $0xb18] sm:$0xff]
    %v731 = vld [vmem:[#allocation3 + $0xb20] sm:$0xff]
    %v732 = vld [vmem:[#allocation3 + $0xb28] sm:$0xff]
    %v733 = vld [vmem:[#allocation3 + $0xb30] sm:$0xff]
    %v734 = vld [vmem:[#allocation3 + $0xb38] sm:$0xff]
    %v735 = vld [vmem:[#allocation3 + $0xb40] sm:$0xff]
    %v736 = vld [vmem:[#allocation3 + $0xb48] sm:$0xff]
    %v737 = vld [vmem:[#allocation3 + $0xb50] sm:$0xff]
    %v738 = vld [vmem:[#allocation3 + $0xb58] sm:$0xff]
    %v739 = vld [vmem:[#allocation3 + $0xb60] sm:$0xff]
    %v740 = vld [vmem:[#allocation3 + $0xb68] sm:$0xff]
    %v741 = vld [vmem:[#allocation3 + $0xb70] sm:$0xff]
    %v742 = vld [vmem:[#allocation3 + $0xb78] sm:$0xff]
    %v743 = vld [vmem:[#allocation3 + $0xb80] sm:$0xff]
    %v744 = vld [vmem:[#allocation3 + $0xb88] sm:$0xff]
    %v745 = vld [vmem:[#allocation3 + $0xb90] sm:$0xff]
    %v746 = vld [vmem:[#allocation3 + $0xb98] sm:$0xff]
    %v747 = vld [vmem:[#allocation3 + $0xba0] sm:$0xff]
    %v748 = vld [vmem:[#allocation3 + $0xba8] sm:$0xff]
    %v749 = vld [vmem:[#allocation3 + $0xbb0] sm:$0xff]
    %v750 = vld [vmem:[#allocation3 + $0xbb8] sm:$0xff]
    %v751 = vld [vmem:[#allocation3 + $0xbc0] sm:$0xff]
    %v752 = vld [vmem:[#allocation3 + $0xbc8] sm:$0xff]
    %v753 = vld [vmem:[#allocation3 + $0xbd0] sm:$0xff]
    %v754 = vld [vmem:[#allocation3 + $0xbd8] sm:$0xff]
    %v755 = vld [vmem:[#allocation3 + $0xbe0] sm:$0xff]
    %v756 = vld [vmem:[#allocation3 + $0xbe8] sm:$0xff]
    %v757 = vld [vmem:[#allocation3 + $0xbf0] sm:$0xff]
    %v758 = vld [vmem:[#allocation3 + $0xbf8] sm:$0xff]
    %v759 = vld [vmem:[#allocation3 + $0xc00] sm:$0xff]
    %v760 = vld [vmem:[#allocation3 + $0xc08] sm:$0xff]
    %v761 = vld [vmem:[#allocation3 + $0xc10] sm:$0xff]
    %v762 = vld [vmem:[#allocation3 + $0xc18] sm:$0xff]
    %v763 = vld [vmem:[#allocation3 + $0xc20] sm:$0xff]
    %v764 = vld [vmem:[#allocation3 + $0xc28] sm:$0xff]
    %v765 = vld [vmem:[#allocation3 + $0xc30] sm:$0xff]
    %v766 = vld [vmem:[#allocation3 + $0xc38] sm:$0xff]
    %v767 = vld [vmem:[#allocation3 + $0xc40] sm:$0xff]
    %v768 = vld [vmem:[#allocation3 + $0xc48] sm:$0xff]
    %v769 = vld [vmem:[#allocation3 + $0xc50] sm:$0xff]
    %v770 = vld [vmem:[#allocation3 + $0xc58] sm:$0xff]
    %v771 = vld [vmem:[#allocation3 + $0xc60] sm:$0xff]
    %v772 = vld [vmem:[#allocation3 + $0xc68] sm:$0xff]
    %v773 = vld [vmem:[#allocation3 + $0xc70] sm:$0xff]
    %v774 = vld [vmem:[#allocation3 + $0xc78] sm:$0xff]
    %v775 = vld [vmem:[#allocation3 + $0xc80] sm:$0xff]
    %v776 = vld [vmem:[#allocation3 + $0xc88] sm:$0xff]
    %v777 = vld [vmem:[#allocation3 + $0xc90] sm:$0xff]
    %v778 = vld [vmem:[#allocation3 + $0xc98] sm:$0xff]
    %v779 = vld [vmem:[#allocation3 + $0xca0] sm:$0xff]
    %v780 = vld [vmem:[#allocation3 + $0xca8] sm:$0xff]
    %v781 = vld [vmem:[#allocation3 + $0xcb0] sm:$0xff]
    %v782 = vld [vmem:[#allocation3 + $0xcb8] sm:$0xff]
    %v783 = vld [vmem:[#allocation3 + $0xcc0] sm:$0xff]
    %v784 = vld [vmem:[#allocation3 + $0xcc8] sm:$0xff]
    %v785 = vld [vmem:[#allocation3 + $0xcd0] sm:$0xff]
    %v786 = vld [vmem:[#allocation3 + $0xcd8] sm:$0xff]
    %v787 = vld [vmem:[#allocation3 + $0xce0] sm:$0xff]
    %v788 = vld [vmem:[#allocation3 + $0xce8] sm:$0xff]
    %v789 = vld [vmem:[#allocation3 + $0xcf0] sm:$0xff]
    %v790 = vld [vmem:[#allocation3 + $0xcf8] sm:$0xff]
    %v791 = vld [vmem:[#allocation3 + $0xd00] sm:$0xff]
    %v792 = vld [vmem:[#allocation3 + $0xd08] sm:$0xff]
    %v793 = vld [vmem:[#allocation3 + $0xd10] sm:$0xff]
    %v794 = vld [vmem:[#allocation3 + $0xd18] sm:$0xff]
    %v795 = vld [vmem:[#allocation3 + $0xd20] sm:$0xff]
    %v796 = vld [vmem:[#allocation3 + $0xd28] sm:$0xff]
    %v797 = vld [vmem:[#allocation3 + $0xd30] sm:$0xff]
    %v798 = vld [vmem:[#allocation3 + $0xd38] sm:$0xff]
    %v799 = vld [vmem:[#allocation3 + $0xd40] sm:$0xff]
    %v800 = vld [vmem:[#allocation3 + $0xd48] sm:$0xff]
    %v801 = vld [vmem:[#allocation3 + $0xd50] sm:$0xff]
    %v802 = vld [vmem:[#allocation3 + $0xd58] sm:$0xff]
    %v803 = vld [vmem:[#allocation3 + $0xd60] sm:$0xff]
    %v804 = vld [vmem:[#allocation3 + $0xd68] sm:$0xff]
    %v805 = vld [vmem:[#allocation3 + $0xd70] sm:$0xff]
    %v806 = vld [vmem:[#allocation3 + $0xd78] sm:$0xff]
    %v807 = vld [vmem:[#allocation3 + $0xd80] sm:$0xff]
    %v808 = vld [vmem:[#allocation3 + $0xd88] sm:$0xff]
    %v809 = vld [vmem:[#allocation3 + $0xd90] sm:$0xff]
    %v810 = vld [vmem:[#allocation3 + $0xd98] sm:$0xff]
    %v811 = vld [vmem:[#allocation3 + $0xda0] sm:$0xff]
    %v812 = vld [vmem:[#allocation3 + $0xda8] sm:$0xff]
    %v813 = vld [vmem:[#allocation3 + $0xdb0] sm:$0xff]
    %v814 = vld [vmem:[#allocation3 + $0xdb8] sm:$0xff]
    %v815 = vld [vmem:[#allocation3 + $0xdc0] sm:$0xff]
    %v816 = vld [vmem:[#allocation3 + $0xdc8] sm:$0xff]
    %v817 = vld [vmem:[#allocation3 + $0xdd0] sm:$0xff]
    %v818 = vld [vmem:[#allocation3 + $0xdd8] sm:$0xff]
    %v819 = vld [vmem:[#allocation3 + $0xde0] sm:$0xff]
    %v820 = vld [vmem:[#allocation3 + $0xde8] sm:$0xff]
    %v821 = vld [vmem:[#allocation3 + $0xdf0] sm:$0xff]
    %v822 = vld [vmem:[#allocation3 + $0xdf8] sm:$0xff]
    %v823 = vld [vmem:[#allocation3 + $0xe00] sm:$0xff]
    %v824 = vld [vmem:[#allocation3 + $0xe08] sm:$0xff]
    %v825 = vld [vmem:[#allocation3 + $0xe10] sm:$0xff]
    %v826 = vld [vmem:[#allocation3 + $0xe18] sm:$0xff]
    %v827 = vld [vmem:[#allocation3 + $0xe20] sm:$0xff]
    %v828 = vld [vmem:[#allocation3 + $0xe28] sm:$0xff]
    %v829 = vld [vmem:[#allocation3 + $0xe30] sm:$0xff]
    %v830 = vld [vmem:[#allocation3 + $0xe38] sm:$0xff]
    %v831 = vld [vmem:[#allocation3 + $0xe40] sm:$0xff]
    %v832 = vld [vmem:[#allocation3 + $0xe48] sm:$0xff]
    %v833 = vld [vmem:[#allocation3 + $0xe50] sm:$0xff]
    %v834 = vld [vmem:[#allocation3 + $0xe58] sm:$0xff]
    %v835 = vld [vmem:[#allocation3 + $0xe60] sm:$0xff]
    %v836 = vld [vmem:[#allocation3 + $0xe68] sm:$0xff]
    %v837 = vld [vmem:[#allocation3 + $0xe70] sm:$0xff]
    %v838 = vld [vmem:[#allocation3 + $0xe78] sm:$0xff]
    %v839 = vld [vmem:[#allocation3 + $0xe80] sm:$0xff]
    %v840 = vld [vmem:[#allocation3 + $0xe88] sm:$0xff]
    %v841 = vld [vmem:[#allocation3 + $0xe90] sm:$0xff]
    %v842 = vld [vmem:[#allocation3 + $0xe98] sm:$0xff]
    %v843 = vld [vmem:[#allocation3 + $0xea0] sm:$0xff]
    %v844 = vld [vmem:[#allocation3 + $0xea8] sm:$0xff]
    %v845 = vld [vmem:[#allocation3 + $0xeb0] sm:$0xff]
    %v846 = vld [vmem:[#allocation3 + $0xeb8] sm:$0xff]
    %v847 = vld [vmem:[#allocation3 + $0xec0] sm:$0xff]
    %v848 = vld [vmem:[#allocation3 + $0xec8] sm:$0xff]
    %v849 = vld [vmem:[#allocation3 + $0xed0] sm:$0xff]
    %v850 = vld [vmem:[#allocation3 + $0xed8] sm:$0xff]
    %v851 = vld [vmem:[#allocation3 + $0xee0] sm:$0xff]
    %v852 = vld [vmem:[#allocation3 + $0xee8] sm:$0xff]
    %v853 = vld [vmem:[#allocation3 + $0xef0] sm:$0xff]
    %v854 = vld [vmem:[#allocation3 + $0xef8] sm:$0xff]
    %v855 = vld [vmem:[#allocation3 + $0xf00] sm:$0xff]
    %v856 = vld [vmem:[#allocation3 + $0xf08] sm:$0xff]
    %v857 = vld [vmem:[#allocation3 + $0xf10] sm:$0xff]
    %v858 = vld [vmem:[#allocation3 + $0xf18] sm:$0xff]
    %v859 = vld [vmem:[#allocation3 + $0xf20] sm:$0xff]
    %v860 = vld [vmem:[#allocation3 + $0xf28] sm:$0xff]
    %v861 = vld [vmem:[#allocation3 + $0xf30] sm:$0xff]
    %v862 = vld [vmem:[#allocation3 + $0xf38] sm:$0xff]
    %v863 = vld [vmem:[#allocation3 + $0xf40] sm:$0xff]
    %v864 = vld [vmem:[#allocation3 + $0xf48] sm:$0xff]
    %v865 = vld [vmem:[#allocation3 + $0xf50] sm:$0xff]
    %v866 = vld [vmem:[#allocation3 + $0xf58] sm:$0xff]
    %v867 = vld [vmem:[#allocation3 + $0xf60] sm:$0xff]
    %v868 = vld [vmem:[#allocation3 + $0xf68] sm:$0xff]
    %v869 = vld [vmem:[#allocation3 + $0xf70] sm:$0xff]
    %v870 = vld [vmem:[#allocation3 + $0xf78] sm:$0xff]
    %v871 = vld [vmem:[#allocation3 + $0xf80] sm:$0xff]
    %v872 = vld [vmem:[#allocation3 + $0xf88] sm:$0xff]
    %v873 = vld [vmem:[#allocation3 + $0xf90] sm:$0xff]
    %v874 = vld [vmem:[#allocation3 + $0xf98] sm:$0xff]
    %v875 = vld [vmem:[#allocation3 + $0xfa0] sm:$0xff]
    %v876 = vld [vmem:[#allocation3 + $0xfa8] sm:$0xff]
    %v877 = vld [vmem:[#allocation3 + $0xfb0] sm:$0xff]
    %v878 = vld [vmem:[#allocation3 + $0xfb8] sm:$0xff]
    %v879 = vld [vmem:[#allocation3 + $0xfc0] sm:$0xff]
    %v880 = vld [vmem:[#allocation3 + $0xfc8] sm:$0xff]
    %v881 = vld [vmem:[#allocation3 + $0xfd0] sm:$0xff]
    %v882 = vld [vmem:[#allocation3 + $0xfd8] sm:$0xff]
    %v883 = vld [vmem:[#allocation3 + $0xfe0] sm:$0xff]
    %v884 = vld [vmem:[#allocation3 + $0xfe8] sm:$0xff]
    %v885 = vld [vmem:[#allocation3 + $0xff0] sm:$0xff]
    %v886 = vld [vmem:[#allocation3 + $0xff8] sm:$0xff]
    %v887 = vld [vmem:[#allocation3 + $0x1000] sm:$0xff]
    %v888 = vld [vmem:[#allocation3 + $0x1008] sm:$0xff]
    %v889 = vld [vmem:[#allocation3 + $0x1010] sm:$0xff]
    %v890 = vld [vmem:[#allocation3 + $0x1018] sm:$0xff]
    %v891 = vld [vmem:[#allocation3 + $0x1020] sm:$0xff]
    %v892 = vld [vmem:[#allocation3 + $0x1028] sm:$0xff]
    %v893 = vld [vmem:[#allocation3 + $0x1030] sm:$0xff]
    %v894 = vld [vmem:[#allocation3 + $0x1038] sm:$0xff]
    %v895 = vld [vmem:[#allocation3 + $0x1040] sm:$0xff]
    %v896 = vld [vmem:[#allocation3 + $0x1048] sm:$0xff]
    %v897 = vld [vmem:[#allocation3 + $0x1050] sm:$0xff]
    %v898 = vld [vmem:[#allocation3 + $0x1058] sm:$0xff]
    %v899 = vld [vmem:[#allocation3 + $0x1060] sm:$0xff]
    %v900 = vld [vmem:[#allocation3 + $0x1068] sm:$0xff]
    %v901 = vld [vmem:[#allocation3 + $0x1070] sm:$0xff]
    %v902 = vld [vmem:[#allocation3 + $0x1078] sm:$0xff]
    %v903 = vld [vmem:[#allocation3 + $0x1080] sm:$0xff]
    %v904 = vld [vmem:[#allocation3 + $0x1088] sm:$0xff]
    %v905 = vld [vmem:[#allocation3 + $0x1090] sm:$0xff]
    %v906 = vld [vmem:[#allocation3 + $0x1098] sm:$0xff]
    %v907 = vld [vmem:[#allocation3 + $0x10a0] sm:$0xff]
    %v908 = vld [vmem:[#allocation3 + $0x10a8] sm:$0xff]
    %v909 = vld [vmem:[#allocation3 + $0x10b0] sm:$0xff]
    %v910 = vld [vmem:[#allocation3 + $0x10b8] sm:$0xff]
    %v911 = vld [vmem:[#allocation3 + $0x10c0] sm:$0xff]
    %v912 = vld [vmem:[#allocation3 + $0x10c8] sm:$0xff]
    %v913 = vld [vmem:[#allocation3 + $0x10d0] sm:$0xff]
    %v914 = vld [vmem:[#allocation3 + $0x10d8] sm:$0xff]
    %v915 = vld [vmem:[#allocation3 + $0x10e0] sm:$0xff]
    %v916 = vld [vmem:[#allocation3 + $0x10e8] sm:$0xff]
    %v917 = vld [vmem:[#allocation3 + $0x10f0] sm:$0xff]
    %v918 = vld [vmem:[#allocation3 + $0x10f8] sm:$0xff]
    %v919 = vld [vmem:[#allocation3 + $0x1100] sm:$0xff]
    %v920 = vld [vmem:[#allocation3 + $0x1108] sm:$0xff]
    %v921 = vld [vmem:[#allocation3 + $0x1110] sm:$0xff]
    %v922 = vld [vmem:[#allocation3 + $0x1118] sm:$0xff]
    %v923 = vld [vmem:[#allocation3 + $0x1120] sm:$0xff]
    %v924 = vld [vmem:[#allocation3 + $0x1128] sm:$0xff]
    %v925 = vld [vmem:[#allocation3 + $0x1130] sm:$0xff]
    %v926 = vld [vmem:[#allocation3 + $0x1138] sm:$0xff]
    %v927 = vld [vmem:[#allocation3 + $0x1140] sm:$0xff]
    %v928 = vld [vmem:[#allocation3 + $0x1148] sm:$0xff]
    %v929 = vld [vmem:[#allocation3 + $0x1150] sm:$0xff]
    %v930 = vld [vmem:[#allocation3 + $0x1158] sm:$0xff]
    %v931 = vld [vmem:[#allocation3 + $0x1160] sm:$0xff]
    %v932 = vld [vmem:[#allocation3 + $0x1168] sm:$0xff]
    %v933 = vld [vmem:[#allocation3 + $0x1170] sm:$0xff]
    %v934 = vld [vmem:[#allocation3 + $0x1178] sm:$0xff]
    %v935 = vld [vmem:[#allocation3 + $0x1180] sm:$0xff]
    %v936 = vld [vmem:[#allocation3 + $0x1188] sm:$0xff]
    %v937 = vld [vmem:[#allocation3 + $0x1190] sm:$0xff]
    %v938 = vld [vmem:[#allocation3 + $0x1198] sm:$0xff]
    %v939 = vld [vmem:[#allocation3 + $0x11a0] sm:$0xff]
    %v940 = vld [vmem:[#allocation3 + $0x11a8] sm:$0xff]
    %v941 = vld [vmem:[#allocation3 + $0x11b0] sm:$0xff]
    %v942 = vld [vmem:[#allocation3 + $0x11b8] sm:$0xff]
    %v943 = vld [vmem:[#allocation3 + $0x11c0] sm:$0xff]
    %v944 = vld [vmem:[#allocation3 + $0x11c8] sm:$0xff]
    %v945 = vld [vmem:[#allocation3 + $0x11d0] sm:$0xff]
    %v946 = vld [vmem:[#allocation3 + $0x11d8] sm:$0xff]
    %v947 = vld [vmem:[#allocation3 + $0x11e0] sm:$0xff]
    %v948 = vld [vmem:[#allocation3 + $0x11e8] sm:$0xff]
    %v949 = vld [vmem:[#allocation3 + $0x11f0] sm:$0xff]
    %v950 = vld [vmem:[#allocation3 + $0x11f8] sm:$0xff]
    %v951 = vld [vmem:[#allocation3 + $0x1200] sm:$0xff]
    %v952 = vld [vmem:[#allocation3 + $0x1208] sm:$0xff]
    %v953 = vld [vmem:[#allocation3 + $0x1210] sm:$0xff]
    %v954 = vld [vmem:[#allocation3 + $0x1218] sm:$0xff]
    %v955 = vld [vmem:[#allocation3 + $0x1220] sm:$0xff]
    %v956 = vld [vmem:[#allocation3 + $0x1228] sm:$0xff]
    %v957 = vld [vmem:[#allocation3 + $0x1230] sm:$0xff]
    %v958 = vld [vmem:[#allocation3 + $0x1238] sm:$0xff]
    %v959 = vld [vmem:[#allocation3 + $0x1240] sm:$0xff]
    %v960 = vld [vmem:[#allocation3 + $0x1248] sm:$0xff]
    %v961 = vld [vmem:[#allocation3 + $0x1250] sm:$0xff]
    %v962 = vld [vmem:[#allocation3 + $0x1258] sm:$0xff]
    %v963 = vld [vmem:[#allocation3 + $0x1260] sm:$0xff]
    %v964 = vld [vmem:[#allocation3 + $0x1268] sm:$0xff]
    %v965 = vld [vmem:[#allocation3 + $0x1270] sm:$0xff]
    %v966 = vld [vmem:[#allocation3 + $0x1278] sm:$0xff]
    %v967 = vld [vmem:[#allocation3 + $0x1280] sm:$0xff]
    %v968 = vld [vmem:[#allocation3 + $0x1288] sm:$0xff]
    %v969 = vld [vmem:[#allocation3 + $0x1290] sm:$0xff]
    %v970 = vld [vmem:[#allocation3 + $0x1298] sm:$0xff]
    %v971 = vld [vmem:[#allocation3 + $0x12a0] sm:$0xff]
    %v972 = vld [vmem:[#allocation3 + $0x12a8] sm:$0xff]
    %v973 = vld [vmem:[#allocation3 + $0x12b0] sm:$0xff]
    %v974 = vld [vmem:[#allocation3 + $0x12b8] sm:$0xff]
    %v975 = vld [vmem:[#allocation3 + $0x12c0] sm:$0xff]
    %v976 = vld [vmem:[#allocation3 + $0x12c8] sm:$0xff]
    %v977 = vld [vmem:[#allocation3 + $0x12d0] sm:$0xff]
    %v978 = vld [vmem:[#allocation3 + $0x12d8] sm:$0xff]
    %v979 = vld [vmem:[#allocation3 + $0x12e0] sm:$0xff]
    %v980 = vld [vmem:[#allocation3 + $0x12e8] sm:$0xff]
    %v981 = vld [vmem:[#allocation3 + $0x12f0] sm:$0xff]
    %v982 = vld [vmem:[#allocation3 + $0x12f8] sm:$0xff]
    %v983 = vld [vmem:[#allocation5] sm:$0xf]
    %v985 = vlaneseq
    %v986 = vshrl.u32 %v985, 7
    %v987 = vsub.s32 0, %v986
    %v988 = vrot.slane %v983, %v987
    %v989 = vlaneseq
    %v990 = vshrl.u32 %v989, 7
    %v991 = vsub.s32 1, %v990
    %v992 = vrot.slane %v983, %v991
    %v993 = vlaneseq
    %v994 = vshrl.u32 %v993, 7
    %v995 = vsub.s32 2, %v994
    %v996 = vrot.slane %v983, %v995
    %v997 = vlaneseq
    %v998 = vshrl.u32 %v997, 7
    %v999 = vsub.s32 3, %v998
    %v1000 = vrot.slane %v983, %v999
    %v1613 = vunpack.c.l.b16 %v375
    %v1614 = vunpack.c.h.b16 %v375
    %v1615 = vunpack.c.l.b16 %v376
    %v1616 = vunpack.c.h.b16 %v376
    %v1617 = vunpack.c.l.b16 %v377
    %v1618 = vunpack.c.h.b16 %v377
    %v1619 = vunpack.c.l.b16 %v378
    %v1620 = vunpack.c.h.b16 %v378
    %v1621 = vunpack.c.l.b16 %v379
    %v1622 = vunpack.c.h.b16 %v379
    %v1623 = vunpack.c.l.b16 %v380
    %v1624 = vunpack.c.h.b16 %v380
    %v1625 = vunpack.c.l.b16 %v381
    %v1626 = vunpack.c.h.b16 %v381
    %v1627 = vunpack.c.l.b16 %v382
    %v1628 = vunpack.c.h.b16 %v382
    %v1629 = vunpack.c.l.b16 %v383
    %v1630 = vunpack.c.h.b16 %v383
    %v1631 = vunpack.c.l.b16 %v384
    %v1632 = vunpack.c.h.b16 %v384
    %v1633 = vunpack.c.l.b16 %v385
    %v1634 = vunpack.c.h.b16 %v385
    %v1635 = vunpack.c.l.b16 %v386
    %v1636 = vunpack.c.h.b16 %v386
    %v1637 = vunpack.c.l.b16 %v387
    %v1638 = vunpack.c.h.b16 %v387
    %v1639 = vunpack.c.l.b16 %v388
    %v1640 = vunpack.c.h.b16 %v388
    %v1641 = vunpack.c.l.b16 %v389
    %v1642 = vunpack.c.h.b16 %v389
    %v1643 = vunpack.c.l.b16 %v390
    %v1644 = vunpack.c.h.b16 %v390
    %v1645 = vunpack.c.l.b16 %v391
    %v1646 = vunpack.c.h.b16 %v391
    %v1647 = vunpack.c.l.b16 %v392
    %v1648 = vunpack.c.h.b16 %v392
    %v1649 = vunpack.c.l.b16 %v393
    %v1650 = vunpack.c.h.b16 %v393
    %v1651 = vunpack.c.l.b16 %v394
    %v1652 = vunpack.c.h.b16 %v394
    %v1653 = vunpack.c.l.b16 %v395
    %v1654 = vunpack.c.h.b16 %v395
    %v1655 = vunpack.c.l.b16 %v396
    %v1656 = vunpack.c.h.b16 %v396
    %v1657 = vunpack.c.l.b16 %v397
    %v1658 = vunpack.c.h.b16 %v397
    %v1659 = vunpack.c.l.b16 %v398
    %v1660 = vunpack.c.h.b16 %v398
    %v1661 = vunpack.c.l.b16 %v399
    %v1662 = vunpack.c.h.b16 %v399
    %v1663 = vunpack.c.l.b16 %v400
    %v1664 = vunpack.c.h.b16 %v400
    %v1665 = vunpack.c.l.b16 %v401
    %v1666 = vunpack.c.h.b16 %v401
    %v1667 = vunpack.c.l.b16 %v402
    %v1668 = vunpack.c.h.b16 %v402
    %v1669 = vunpack.c.l.b16 %v403
    %v1670 = vunpack.c.h.b16 %v403
    %v1671 = vunpack.c.l.b16 %v404
    %v1672 = vunpack.c.h.b16 %v404
    %v1673 = vunpack.c.l.b16 %v405
    %v1674 = vunpack.c.h.b16 %v405
    %v1675 = vunpack.c.l.b16 %v406
    %v1676 = vunpack.c.h.b16 %v406
    %v1677 = vunpack.c.l.b16 %v407
    %v1678 = vunpack.c.h.b16 %v407
    %v1679 = vunpack.c.l.b16 %v408
    %v1680 = vunpack.c.h.b16 %v408
    %v1681 = vunpack.c.l.b16 %v409
    %v1682 = vunpack.c.h.b16 %v409
    %v1683 = vunpack.c.l.b16 %v410
    %v1684 = vunpack.c.h.b16 %v410
    %v1685 = vunpack.c.l.b16 %v411
    %v1686 = vunpack.c.h.b16 %v411
    %v1687 = vunpack.c.l.b16 %v412
    %v1688 = vunpack.c.h.b16 %v412
    %v1689 = vunpack.c.l.b16 %v413
    %v1690 = vunpack.c.h.b16 %v413
    %v1691 = vunpack.c.l.b16 %v414
    %v1692 = vunpack.c.h.b16 %v414
    %v1693 = vunpack.c.l.b16 %v415
    %v1694 = vunpack.c.h.b16 %v415
    %v1695 = vunpack.c.l.b16 %v416
    %v1696 = vunpack.c.h.b16 %v416
    %v1697 = vunpack.c.l.b16 %v417
    %v1698 = vunpack.c.h.b16 %v417
    %v1699 = vunpack.c.l.b16 %v418
    %v1700 = vunpack.c.h.b16 %v418
    %v1701 = vunpack.c.l.b16 %v419
    %v1702 = vunpack.c.h.b16 %v419
    %v1703 = vunpack.c.l.b16 %v420
    %v1704 = vunpack.c.h.b16 %v420
    %v1705 = vunpack.c.l.b16 %v421
    %v1706 = vunpack.c.h.b16 %v421
    %v1707 = vunpack.c.l.b16 %v422
    %v1708 = vunpack.c.h.b16 %v422
    %v1709 = vunpack.c.l.b16 %v423
    %v1710 = vunpack.c.h.b16 %v423
    %v1711 = vunpack.c.l.b16 %v424
    %v1712 = vunpack.c.h.b16 %v424
    %v1713 = vunpack.c.l.b16 %v425
    %v1714 = vunpack.c.h.b16 %v425
    %v1715 = vunpack.c.l.b16 %v426
    %v1716 = vunpack.c.h.b16 %v426
    %v1717 = vunpack.c.l.b16 %v427
    %v1718 = vunpack.c.h.b16 %v427
    %v1719 = vunpack.c.l.b16 %v428
    %v1720 = vunpack.c.h.b16 %v428
    %v1721 = vunpack.c.l.b16 %v429
    %v1722 = vunpack.c.h.b16 %v429
    %v1723 = vunpack.c.l.b16 %v430
    %v1724 = vunpack.c.h.b16 %v430
    %v1725 = vunpack.c.l.b16 %v431
    %v1726 = vunpack.c.h.b16 %v431
    %v1727 = vunpack.c.l.b16 %v432
    %v1728 = vunpack.c.h.b16 %v432
    %v1729 = vunpack.c.l.b16 %v433
    %v1730 = vunpack.c.h.b16 %v433
    %v1731 = vunpack.c.l.b16 %v434
    %v1732 = vunpack.c.h.b16 %v434
    %v1733 = vunpack.c.l.b16 %v435
    %v1734 = vunpack.c.h.b16 %v435
    %v1735 = vunpack.c.l.b16 %v436
    %v1736 = vunpack.c.h.b16 %v436
    %v1737 = vunpack.c.l.b16 %v437
    %v1738 = vunpack.c.h.b16 %v437
    %v1739 = vunpack.c.l.b16 %v438
    %v1740 = vunpack.c.h.b16 %v438
    %v1741 = vunpack.c.l.b16 %v439
    %v1742 = vunpack.c.h.b16 %v439
    %v1743 = vunpack.c.l.b16 %v440
    %v1744 = vunpack.c.h.b16 %v440
    %v1745 = vunpack.c.l.b16 %v441
    %v1746 = vunpack.c.h.b16 %v441
    %v1747 = vunpack.c.l.b16 %v442
    %v1748 = vunpack.c.h.b16 %v442
    %v1749 = vunpack.c.l.b16 %v443
    %v1750 = vunpack.c.h.b16 %v443
    %v1751 = vunpack.c.l.b16 %v444
    %v1752 = vunpack.c.h.b16 %v444
    %v1753 = vunpack.c.l.b16 %v445
    %v1754 = vunpack.c.h.b16 %v445
    %v1755 = vunpack.c.l.b16 %v446
    %v1756 = vunpack.c.h.b16 %v446
    %v1757 = vunpack.c.l.b16 %v447
    %v1758 = vunpack.c.h.b16 %v447
    %v1759 = vunpack.c.l.b16 %v448
    %v1760 = vunpack.c.h.b16 %v448
    %v1761 = vunpack.c.l.b16 %v449
    %v1762 = vunpack.c.h.b16 %v449
    %v1763 = vunpack.c.l.b16 %v450
    %v1764 = vunpack.c.h.b16 %v450
    %v1765 = vunpack.c.l.b16 %v451
    %v1766 = vunpack.c.h.b16 %v451
    %v1767 = vunpack.c.l.b16 %v452
    %v1768 = vunpack.c.h.b16 %v452
    %v1769 = vunpack.c.l.b16 %v453
    %v1770 = vunpack.c.h.b16 %v453
    %v1771 = vunpack.c.l.b16 %v454
    %v1772 = vunpack.c.h.b16 %v454
    %v1773 = vunpack.c.l.b16 %v455
    %v1774 = vunpack.c.h.b16 %v455
    %v1775 = vunpack.c.l.b16 %v456
    %v1776 = vunpack.c.h.b16 %v456
    %v1777 = vunpack.c.l.b16 %v457
    %v1778 = vunpack.c.h.b16 %v457
    %v1779 = vunpack.c.l.b16 %v458
    %v1780 = vunpack.c.h.b16 %v458
    %v1781 = vunpack.c.l.b16 %v459
    %v1782 = vunpack.c.h.b16 %v459
    %v1783 = vunpack.c.l.b16 %v460
    %v1784 = vunpack.c.h.b16 %v460
    %v1785 = vunpack.c.l.b16 %v461
    %v1786 = vunpack.c.h.b16 %v461
    %v1787 = vunpack.c.l.b16 %v462
    %v1788 = vunpack.c.h.b16 %v462
    %v1789 = vunpack.c.l.b16 %v463
    %v1790 = vunpack.c.h.b16 %v463
    %v1791 = vunpack.c.l.b16 %v464
    %v1792 = vunpack.c.h.b16 %v464
    %v1793 = vunpack.c.l.b16 %v465
    %v1794 = vunpack.c.h.b16 %v465
    %v1795 = vunpack.c.l.b16 %v466
    %v1796 = vunpack.c.h.b16 %v466
    %v1797 = vunpack.c.l.b16 %v467
    %v1798 = vunpack.c.h.b16 %v467
    %v1799 = vunpack.c.l.b16 %v468
    %v1800 = vunpack.c.h.b16 %v468
    %v1801 = vunpack.c.l.b16 %v469
    %v1802 = vunpack.c.h.b16 %v469
    %v1803 = vunpack.c.l.b16 %v470
    %v1804 = vunpack.c.h.b16 %v470
    %v1805 = vunpack.c.l.b16 %v471
    %v1806 = vunpack.c.h.b16 %v471
    %v1807 = vunpack.c.l.b16 %v472
    %v1808 = vunpack.c.h.b16 %v472
    %v1809 = vunpack.c.l.b16 %v473
    %v1810 = vunpack.c.h.b16 %v473
    %v1811 = vunpack.c.l.b16 %v474
    %v1812 = vunpack.c.h.b16 %v474
    %v1813 = vunpack.c.l.b16 %v475
    %v1814 = vunpack.c.h.b16 %v475
    %v1815 = vunpack.c.l.b16 %v476
    %v1816 = vunpack.c.h.b16 %v476
    %v1817 = vunpack.c.l.b16 %v477
    %v1818 = vunpack.c.h.b16 %v477
    %v1819 = vunpack.c.l.b16 %v478
    %v1820 = vunpack.c.h.b16 %v478
    %v1821 = vunpack.c.l.b16 %v479
    %v1822 = vunpack.c.h.b16 %v479
    %v1823 = vunpack.c.l.b16 %v480
    %v1824 = vunpack.c.h.b16 %v480
    %v1825 = vunpack.c.l.b16 %v481
    %v1826 = vunpack.c.h.b16 %v481
    %v1827 = vunpack.c.l.b16 %v482
    %v1828 = vunpack.c.h.b16 %v482
    %v1829 = vunpack.c.l.b16 %v483
    %v1830 = vunpack.c.h.b16 %v483
    %v1831 = vunpack.c.l.b16 %v484
    %v1832 = vunpack.c.h.b16 %v484
    %v1833 = vunpack.c.l.b16 %v485
    %v1834 = vunpack.c.h.b16 %v485
    %v1835 = vunpack.c.l.b16 %v486
    %v1836 = vunpack.c.h.b16 %v486
    %v1837 = vunpack.c.l.b16 %v487
    %v1838 = vunpack.c.h.b16 %v487
    %v1839 = vunpack.c.l.b16 %v488
    %v1840 = vunpack.c.h.b16 %v488
    %v1841 = vunpack.c.l.b16 %v489
    %v1842 = vunpack.c.h.b16 %v489
    %v1843 = vunpack.c.l.b16 %v490
    %v1844 = vunpack.c.h.b16 %v490
    %v1845 = vunpack.c.l.b16 %v491
    %v1846 = vunpack.c.h.b16 %v491
    %v1847 = vunpack.c.l.b16 %v492
    %v1848 = vunpack.c.h.b16 %v492
    %v1849 = vunpack.c.l.b16 %v493
    %v1850 = vunpack.c.h.b16 %v493
    %v1851 = vunpack.c.l.b16 %v494
    %v1852 = vunpack.c.h.b16 %v494
    %v1853 = vunpack.c.l.b16 %v495
    %v1854 = vunpack.c.h.b16 %v495
    %v1855 = vunpack.c.l.b16 %v496
    %v1856 = vunpack.c.h.b16 %v496
    %v1857 = vunpack.c.l.b16 %v497
    %v1858 = vunpack.c.h.b16 %v497
    %v1859 = vunpack.c.l.b16 %v498
    %v1860 = vunpack.c.h.b16 %v498
    %v1861 = vunpack.c.l.b16 %v499
    %v1862 = vunpack.c.h.b16 %v499
    %v1863 = vunpack.c.l.b16 %v500
    %v1864 = vunpack.c.h.b16 %v500
    %v1865 = vunpack.c.l.b16 %v501
    %v1866 = vunpack.c.h.b16 %v501
    %v1867 = vunpack.c.l.b16 %v502
    %v1868 = vunpack.c.h.b16 %v502
    %v1869 = vunpack.c.l.b16 %v503
    %v1870 = vunpack.c.h.b16 %v503
    %v1871 = vunpack.c.l.b16 %v504
    %v1872 = vunpack.c.h.b16 %v504
    %v1873 = vunpack.c.l.b16 %v505
    %v1874 = vunpack.c.h.b16 %v505
    %v1875 = vunpack.c.l.b16 %v506
    %v1876 = vunpack.c.h.b16 %v506
    %v1877 = vunpack.c.l.b16 %v507
    %v1878 = vunpack.c.h.b16 %v507
    %v1879 = vunpack.c.l.b16 %v508
    %v1880 = vunpack.c.h.b16 %v508
    %v1881 = vunpack.c.l.b16 %v509
    %v1882 = vunpack.c.h.b16 %v509
    %v1883 = vunpack.c.l.b16 %v510
    %v1884 = vunpack.c.h.b16 %v510
    %v1885 = vunpack.c.l.b16 %v511
    %v1886 = vunpack.c.h.b16 %v511
    %v1887 = vunpack.c.l.b16 %v512
    %v1888 = vunpack.c.h.b16 %v512
    %v1889 = vunpack.c.l.b16 %v513
    %v1890 = vunpack.c.h.b16 %v513
    %v1891 = vunpack.c.l.b16 %v514
    %v1892 = vunpack.c.h.b16 %v514
    %v1893 = vunpack.c.l.b16 %v515
    %v1894 = vunpack.c.h.b16 %v515
    %v1895 = vunpack.c.l.b16 %v516
    %v1896 = vunpack.c.h.b16 %v516
    %v1897 = vunpack.c.l.b16 %v517
    %v1898 = vunpack.c.h.b16 %v517
    %v1899 = vunpack.c.l.b16 %v518
    %v1900 = vunpack.c.h.b16 %v518
    %v1901 = vunpack.c.l.b16 %v519
    %v1902 = vunpack.c.h.b16 %v519
    %v1903 = vunpack.c.l.b16 %v520
    %v1904 = vunpack.c.h.b16 %v520
    %v1905 = vunpack.c.l.b16 %v521
    %v1906 = vunpack.c.h.b16 %v521
    %v1907 = vunpack.c.l.b16 %v522
    %v1908 = vunpack.c.h.b16 %v522
    %v1909 = vunpack.c.l.b16 %v523
    %v1910 = vunpack.c.h.b16 %v523
    %v1911 = vunpack.c.l.b16 %v524
    %v1912 = vunpack.c.h.b16 %v524
    %v1913 = vunpack.c.l.b16 %v525
    %v1914 = vunpack.c.h.b16 %v525
    %v1915 = vunpack.c.l.b16 %v526
    %v1916 = vunpack.c.h.b16 %v526
    %v1917 = vunpack.c.l.b16 %v527
    %v1918 = vunpack.c.h.b16 %v527
    %v1919 = vunpack.c.l.b16 %v528
    %v1920 = vunpack.c.h.b16 %v528
    %v1921 = vunpack.c.l.b16 %v529
    %v1922 = vunpack.c.h.b16 %v529
    %v1923 = vunpack.c.l.b16 %v530
    %v1924 = vunpack.c.h.b16 %v530
    %v1925 = vunpack.c.l.b16 %v531
    %v1926 = vunpack.c.h.b16 %v531
    %v1927 = vunpack.c.l.b16 %v532
    %v1928 = vunpack.c.h.b16 %v532
    %v1929 = vunpack.c.l.b16 %v533
    %v1930 = vunpack.c.h.b16 %v533
    %v1931 = vunpack.c.l.b16 %v534
    %v1932 = vunpack.c.h.b16 %v534
    %v1933 = vunpack.c.l.b16 %v535
    %v1934 = vunpack.c.h.b16 %v535
    %v1935 = vunpack.c.l.b16 %v536
    %v1936 = vunpack.c.h.b16 %v536
    %v1937 = vunpack.c.l.b16 %v537
    %v1938 = vunpack.c.h.b16 %v537
    %v1939 = vunpack.c.l.b16 %v538
    %v1940 = vunpack.c.h.b16 %v538
    %v1941 = vunpack.c.l.b16 %v539
    %v1942 = vunpack.c.h.b16 %v539
    %v1943 = vunpack.c.l.b16 %v540
    %v1944 = vunpack.c.h.b16 %v540
    %v1945 = vunpack.c.l.b16 %v541
    %v1946 = vunpack.c.h.b16 %v541
    %v1947 = vunpack.c.l.b16 %v542
    %v1948 = vunpack.c.h.b16 %v542
    %v1949 = vunpack.c.l.b16 %v543
    %v1950 = vunpack.c.h.b16 %v543
    %v1951 = vunpack.c.l.b16 %v544
    %v1952 = vunpack.c.h.b16 %v544
    %v1953 = vunpack.c.l.b16 %v545
    %v1954 = vunpack.c.h.b16 %v545
    %v1955 = vunpack.c.l.b16 %v546
    %v1956 = vunpack.c.h.b16 %v546
    %v1957 = vunpack.c.l.b16 %v547
    %v1958 = vunpack.c.h.b16 %v547
    %v1959 = vunpack.c.l.b16 %v548
    %v1960 = vunpack.c.h.b16 %v548
    %v1961 = vunpack.c.l.b16 %v549
    %v1962 = vunpack.c.h.b16 %v549
    %v1963 = vunpack.c.l.b16 %v550
    %v1964 = vunpack.c.h.b16 %v550
    %v1965 = vunpack.c.l.b16 %v551
    %v1966 = vunpack.c.h.b16 %v551
    %v1967 = vunpack.c.l.b16 %v552
    %v1968 = vunpack.c.h.b16 %v552
    %v1969 = vunpack.c.l.b16 %v553
    %v1970 = vunpack.c.h.b16 %v553
    %v1971 = vunpack.c.l.b16 %v554
    %v1972 = vunpack.c.h.b16 %v554
    %v1973 = vunpack.c.l.b16 %v555
    %v1974 = vunpack.c.h.b16 %v555
    %v1975 = vunpack.c.l.b16 %v556
    %v1976 = vunpack.c.h.b16 %v556
    %v1977 = vunpack.c.l.b16 %v557
    %v1978 = vunpack.c.h.b16 %v557
    %v1979 = vunpack.c.l.b16 %v558
    %v1980 = vunpack.c.h.b16 %v558
    %v1981 = vunpack.c.l.b16 %v559
    %v1982 = vunpack.c.h.b16 %v559
    %v1983 = vunpack.c.l.b16 %v560
    %v1984 = vunpack.c.h.b16 %v560
    %v1985 = vunpack.c.l.b16 %v561
    %v1986 = vunpack.c.h.b16 %v561
    %v1987 = vunpack.c.l.b16 %v562
    %v1988 = vunpack.c.h.b16 %v562
    %v1989 = vunpack.c.l.b16 %v563
    %v1990 = vunpack.c.h.b16 %v563
    %v1991 = vunpack.c.l.b16 %v564
    %v1992 = vunpack.c.h.b16 %v564
    %v1993 = vunpack.c.l.b16 %v565
    %v1994 = vunpack.c.h.b16 %v565
    %v1995 = vunpack.c.l.b16 %v566
    %v1996 = vunpack.c.h.b16 %v566
    %v1997 = vunpack.c.l.b16 %v567
    %v1998 = vunpack.c.h.b16 %v567
    %v1999 = vunpack.c.l.b16 %v568
    %v2000 = vunpack.c.h.b16 %v568
    %v2001 = vunpack.c.l.b16 %v569
    %v2002 = vunpack.c.h.b16 %v569
    %v2003 = vunpack.c.l.b16 %v570
    %v2004 = vunpack.c.h.b16 %v570
    %v2005 = vunpack.c.l.b16 %v571
    %v2006 = vunpack.c.h.b16 %v571
    %v2007 = vunpack.c.l.b16 %v572
    %v2008 = vunpack.c.h.b16 %v572
    %v2009 = vunpack.c.l.b16 %v573
    %v2010 = vunpack.c.h.b16 %v573
    %v2011 = vunpack.c.l.b16 %v574
    %v2012 = vunpack.c.h.b16 %v574
    %v2013 = vunpack.c.l.b16 %v575
    %v2014 = vunpack.c.h.b16 %v575
    %v2015 = vunpack.c.l.b16 %v576
    %v2016 = vunpack.c.h.b16 %v576
    %v2017 = vunpack.c.l.b16 %v577
    %v2018 = vunpack.c.h.b16 %v577
    %v2019 = vunpack.c.l.b16 %v578
    %v2020 = vunpack.c.h.b16 %v578
    %v2021 = vunpack.c.l.b16 %v579
    %v2022 = vunpack.c.h.b16 %v579
    %v2023 = vunpack.c.l.b16 %v580
    %v2024 = vunpack.c.h.b16 %v580
    %v2025 = vunpack.c.l.b16 %v581
    %v2026 = vunpack.c.h.b16 %v581
    %v2027 = vunpack.c.l.b16 %v582
    %v2028 = vunpack.c.h.b16 %v582
    %v2029 = vunpack.c.l.b16 %v583
    %v2030 = vunpack.c.h.b16 %v583
    %v2031 = vunpack.c.l.b16 %v584
    %v2032 = vunpack.c.h.b16 %v584
    %v2033 = vunpack.c.l.b16 %v585
    %v2034 = vunpack.c.h.b16 %v585
    %v2035 = vunpack.c.l.b16 %v586
    %v2036 = vunpack.c.h.b16 %v586
    %v2037 = vunpack.c.l.b16 %v587
    %v2038 = vunpack.c.h.b16 %v587
    %v2039 = vunpack.c.l.b16 %v588
    %v2040 = vunpack.c.h.b16 %v588
    %v2041 = vunpack.c.l.b16 %v589
    %v2042 = vunpack.c.h.b16 %v589
    %v2043 = vunpack.c.l.b16 %v590
    %v2044 = vunpack.c.h.b16 %v590
    %v2045 = vunpack.c.l.b16 %v591
    %v2046 = vunpack.c.h.b16 %v591
    %v2047 = vunpack.c.l.b16 %v592
    %v2048 = vunpack.c.h.b16 %v592
    %v2049 = vunpack.c.l.b16 %v593
    %v2050 = vunpack.c.h.b16 %v593
    %v2051 = vunpack.c.l.b16 %v594
    %v2052 = vunpack.c.h.b16 %v594
    %v2053 = vunpack.c.l.b16 %v595
    %v2054 = vunpack.c.h.b16 %v595
    %v2055 = vunpack.c.l.b16 %v596
    %v2056 = vunpack.c.h.b16 %v596
    %v2057 = vunpack.c.l.b16 %v597
    %v2058 = vunpack.c.h.b16 %v597
    %v2059 = vunpack.c.l.b16 %v598
    %v2060 = vunpack.c.h.b16 %v598
    %v2061 = vunpack.c.l.b16 %v599
    %v2062 = vunpack.c.h.b16 %v599
    %v2063 = vunpack.c.l.b16 %v600
    %v2064 = vunpack.c.h.b16 %v600
    %v2065 = vunpack.c.l.b16 %v601
    %v2066 = vunpack.c.h.b16 %v601
    %v2067 = vunpack.c.l.b16 %v602
    %v2068 = vunpack.c.h.b16 %v602
    %v2069 = vunpack.c.l.b16 %v603
    %v2070 = vunpack.c.h.b16 %v603
    %v2071 = vunpack.c.l.b16 %v604
    %v2072 = vunpack.c.h.b16 %v604
    %v2073 = vunpack.c.l.b16 %v605
    %v2074 = vunpack.c.h.b16 %v605
    %v2075 = vunpack.c.l.b16 %v606
    %v2076 = vunpack.c.h.b16 %v606
    %v2077 = vunpack.c.l.b16 %v607
    %v2078 = vunpack.c.h.b16 %v607
    %v2079 = vunpack.c.l.b16 %v608
    %v2080 = vunpack.c.h.b16 %v608
    %v2081 = vunpack.c.l.b16 %v609
    %v2082 = vunpack.c.h.b16 %v609
    %v2083 = vunpack.c.l.b16 %v610
    %v2084 = vunpack.c.h.b16 %v610
    %v2085 = vunpack.c.l.b16 %v611
    %v2086 = vunpack.c.h.b16 %v611
    %v2087 = vunpack.c.l.b16 %v612
    %v2088 = vunpack.c.h.b16 %v612
    %v2089 = vunpack.c.l.b16 %v613
    %v2090 = vunpack.c.h.b16 %v613
    %v2091 = vunpack.c.l.b16 %v614
    %v2092 = vunpack.c.h.b16 %v614
    %v2093 = vunpack.c.l.b16 %v615
    %v2094 = vunpack.c.h.b16 %v615
    %v2095 = vunpack.c.l.b16 %v616
    %v2096 = vunpack.c.h.b16 %v616
    %v2097 = vunpack.c.l.b16 %v617
    %v2098 = vunpack.c.h.b16 %v617
    %v2099 = vunpack.c.l.b16 %v618
    %v2100 = vunpack.c.h.b16 %v618
    %v2101 = vunpack.c.l.b16 %v619
    %v2102 = vunpack.c.h.b16 %v619
    %v2103 = vunpack.c.l.b16 %v620
    %v2104 = vunpack.c.h.b16 %v620
    %v2105 = vunpack.c.l.b16 %v621
    %v2106 = vunpack.c.h.b16 %v621
    %v2107 = vunpack.c.l.b16 %v622
    %v2108 = vunpack.c.h.b16 %v622
    %v2109 = vunpack.c.l.b16 %v623
    %v2110 = vunpack.c.h.b16 %v623
    %v2111 = vunpack.c.l.b16 %v624
    %v2112 = vunpack.c.h.b16 %v624
    %v2113 = vunpack.c.l.b16 %v625
    %v2114 = vunpack.c.h.b16 %v625
    %v2115 = vunpack.c.l.b16 %v626
    %v2116 = vunpack.c.h.b16 %v626
    %v2117 = vunpack.c.l.b16 %v627
    %v2118 = vunpack.c.h.b16 %v627
    %v2119 = vunpack.c.l.b16 %v628
    %v2120 = vunpack.c.h.b16 %v628
    %v2121 = vunpack.c.l.b16 %v629
    %v2122 = vunpack.c.h.b16 %v629
    %v2123 = vunpack.c.l.b16 %v630
    %v2124 = vunpack.c.h.b16 %v630
    %v2125 = vunpack.c.l.b16 %v631
    %v2126 = vunpack.c.h.b16 %v631
    %v2127 = vunpack.c.l.b16 %v632
    %v2128 = vunpack.c.h.b16 %v632
    %v2129 = vunpack.c.l.b16 %v633
    %v2130 = vunpack.c.h.b16 %v633
    %v2131 = vunpack.c.l.b16 %v634
    %v2132 = vunpack.c.h.b16 %v634
    %v2133 = vunpack.c.l.b16 %v635
    %v2134 = vunpack.c.h.b16 %v635
    %v2135 = vunpack.c.l.b16 %v636
    %v2136 = vunpack.c.h.b16 %v636
    %v2137 = vunpack.c.l.b16 %v637
    %v2138 = vunpack.c.h.b16 %v637
    %v2139 = vunpack.c.l.b16 %v638
    %v2140 = vunpack.c.h.b16 %v638
    %v2141 = vunpack.c.l.b16 %v639
    %v2142 = vunpack.c.h.b16 %v639
    %v2143 = vunpack.c.l.b16 %v640
    %v2144 = vunpack.c.h.b16 %v640
    %v2145 = vunpack.c.l.b16 %v641
    %v2146 = vunpack.c.h.b16 %v641
    %v2147 = vunpack.c.l.b16 %v642
    %v2148 = vunpack.c.h.b16 %v642
    %v2149 = vunpack.c.l.b16 %v643
    %v2150 = vunpack.c.h.b16 %v643
    %v2151 = vunpack.c.l.b16 %v644
    %v2152 = vunpack.c.h.b16 %v644
    %v2153 = vunpack.c.l.b16 %v645
    %v2154 = vunpack.c.h.b16 %v645
    %v2155 = vunpack.c.l.b16 %v646
    %v2156 = vunpack.c.h.b16 %v646
    %v2157 = vunpack.c.l.b16 %v647
    %v2158 = vunpack.c.h.b16 %v647
    %v2159 = vunpack.c.l.b16 %v648
    %v2160 = vunpack.c.h.b16 %v648
    %v2161 = vunpack.c.l.b16 %v649
    %v2162 = vunpack.c.h.b16 %v649
    %v2163 = vunpack.c.l.b16 %v650
    %v2164 = vunpack.c.h.b16 %v650
    %v2165 = vunpack.c.l.b16 %v651
    %v2166 = vunpack.c.h.b16 %v651
    %v2167 = vunpack.c.l.b16 %v652
    %v2168 = vunpack.c.h.b16 %v652
    %v2169 = vunpack.c.l.b16 %v653
    %v2170 = vunpack.c.h.b16 %v653
    %v2171 = vunpack.c.l.b16 %v654
    %v2172 = vunpack.c.h.b16 %v654
    %v2173 = vunpack.c.l.b16 %v655
    %v2174 = vunpack.c.h.b16 %v655
    %v2175 = vunpack.c.l.b16 %v656
    %v2176 = vunpack.c.h.b16 %v656
    %v2177 = vunpack.c.l.b16 %v657
    %v2178 = vunpack.c.h.b16 %v657
    %v2179 = vunpack.c.l.b16 %v658
    %v2180 = vunpack.c.h.b16 %v658
    %v2181 = vunpack.c.l.b16 %v659
    %v2182 = vunpack.c.h.b16 %v659
    %v2183 = vunpack.c.l.b16 %v660
    %v2184 = vunpack.c.h.b16 %v660
    %v2185 = vunpack.c.l.b16 %v661
    %v2186 = vunpack.c.h.b16 %v661
    %v2187 = vunpack.c.l.b16 %v662
    %v2188 = vunpack.c.h.b16 %v662
    %v2189 = vunpack.c.l.b16 %v663
    %v2190 = vunpack.c.h.b16 %v663
    %v2191 = vunpack.c.l.b16 %v664
    %v2192 = vunpack.c.h.b16 %v664
    %v2193 = vunpack.c.l.b16 %v665
    %v2194 = vunpack.c.h.b16 %v665
    %v2195 = vunpack.c.l.b16 %v666
    %v2196 = vunpack.c.h.b16 %v666
    %v2197 = vunpack.c.l.b16 %v667
    %v2198 = vunpack.c.h.b16 %v667
    %v2199 = vunpack.c.l.b16 %v668
    %v2200 = vunpack.c.h.b16 %v668
    %v2201 = vunpack.c.l.b16 %v669
    %v2202 = vunpack.c.h.b16 %v669
    %v2203 = vunpack.c.l.b16 %v670
    %v2204 = vunpack.c.h.b16 %v670
    %v2205 = vunpack.c.l.b16 %v671
    %v2206 = vunpack.c.h.b16 %v671
    %v2207 = vunpack.c.l.b16 %v672
    %v2208 = vunpack.c.h.b16 %v672
    %v2209 = vunpack.c.l.b16 %v673
    %v2210 = vunpack.c.h.b16 %v673
    %v2211 = vunpack.c.l.b16 %v674
    %v2212 = vunpack.c.h.b16 %v674
    %v2213 = vunpack.c.l.b16 %v675
    %v2214 = vunpack.c.h.b16 %v675
    %v2215 = vunpack.c.l.b16 %v676
    %v2216 = vunpack.c.h.b16 %v676
    %v2217 = vunpack.c.l.b16 %v677
    %v2218 = vunpack.c.h.b16 %v677
    %v2219 = vunpack.c.l.b16 %v678
    %v2220 = vunpack.c.h.b16 %v678
    %v2221 = vunpack.c.l.b16 %v679
    %v2222 = vunpack.c.h.b16 %v679
    %v2223 = vunpack.c.l.b16 %v680
    %v2224 = vunpack.c.h.b16 %v680
    %v2225 = vunpack.c.l.b16 %v681
    %v2226 = vunpack.c.h.b16 %v681
    %v2227 = vunpack.c.l.b16 %v682
    %v2228 = vunpack.c.h.b16 %v682
    %v2229 = vunpack.c.l.b16 %v683
    %v2230 = vunpack.c.h.b16 %v683
    %v2231 = vunpack.c.l.b16 %v684
    %v2232 = vunpack.c.h.b16 %v684
    %v2233 = vunpack.c.l.b16 %v685
    %v2234 = vunpack.c.h.b16 %v685
    %v2235 = vunpack.c.l.b16 %v686
    %v2236 = vunpack.c.h.b16 %v686
    %v2237 = vunpack.c.l.b16 %v687
    %v2238 = vunpack.c.h.b16 %v687
    %v2239 = vunpack.c.l.b16 %v688
    %v2240 = vunpack.c.h.b16 %v688
    %v2241 = vunpack.c.l.b16 %v689
    %v2242 = vunpack.c.h.b16 %v689
    %v2243 = vunpack.c.l.b16 %v690
    %v2244 = vunpack.c.h.b16 %v690
    %v2245 = vunpack.c.l.b16 %v691
    %v2246 = vunpack.c.h.b16 %v691
    %v2247 = vunpack.c.l.b16 %v692
    %v2248 = vunpack.c.h.b16 %v692
    %v2249 = vunpack.c.l.b16 %v693
    %v2250 = vunpack.c.h.b16 %v693
    %v2251 = vunpack.c.l.b16 %v694
    %v2252 = vunpack.c.h.b16 %v694
    %v2253 = vunpack.c.l.b16 %v695
    %v2254 = vunpack.c.h.b16 %v695
    %v2255 = vunpack.c.l.b16 %v696
    %v2256 = vunpack.c.h.b16 %v696
    %v2257 = vunpack.c.l.b16 %v697
    %v2258 = vunpack.c.h.b16 %v697
    %v2259 = vunpack.c.l.b16 %v698
    %v2260 = vunpack.c.h.b16 %v698
    %v2261 = vunpack.c.l.b16 %v699
    %v2262 = vunpack.c.h.b16 %v699
    %v2263 = vunpack.c.l.b16 %v700
    %v2264 = vunpack.c.h.b16 %v700
    %v2265 = vunpack.c.l.b16 %v701
    %v2266 = vunpack.c.h.b16 %v701
    %v2267 = vunpack.c.l.b16 %v702
    %v2268 = vunpack.c.h.b16 %v702
    %v2269 = vunpack.c.l.b16 %v703
    %v2270 = vunpack.c.h.b16 %v703
    %v2271 = vunpack.c.l.b16 %v704
    %v2272 = vunpack.c.h.b16 %v704
    %v2273 = vunpack.c.l.b16 %v705
    %v2274 = vunpack.c.h.b16 %v705
    %v2275 = vunpack.c.l.b16 %v706
    %v2276 = vunpack.c.h.b16 %v706
    %v2277 = vunpack.c.l.b16 %v707
    %v2278 = vunpack.c.h.b16 %v707
    %v2279 = vunpack.c.l.b16 %v708
    %v2280 = vunpack.c.h.b16 %v708
    %v2281 = vunpack.c.l.b16 %v709
    %v2282 = vunpack.c.h.b16 %v709
    %v2283 = vunpack.c.l.b16 %v710
    %v2284 = vunpack.c.h.b16 %v710
    %v2285 = vunpack.c.l.b16 %v711
    %v2286 = vunpack.c.h.b16 %v711
    %v2287 = vunpack.c.l.b16 %v712
    %v2288 = vunpack.c.h.b16 %v712
    %v2289 = vunpack.c.l.b16 %v713
    %v2290 = vunpack.c.h.b16 %v713
    %v2291 = vunpack.c.l.b16 %v714
    %v2292 = vunpack.c.h.b16 %v714
    %v2293 = vunpack.c.l.b16 %v715
    %v2294 = vunpack.c.h.b16 %v715
    %v2295 = vunpack.c.l.b16 %v716
    %v2296 = vunpack.c.h.b16 %v716
    %v2297 = vunpack.c.l.b16 %v717
    %v2298 = vunpack.c.h.b16 %v717
    %v2299 = vunpack.c.l.b16 %v718
    %v2300 = vunpack.c.h.b16 %v718
    %v2301 = vunpack.c.l.b16 %v719
    %v2302 = vunpack.c.h.b16 %v719
    %v2303 = vunpack.c.l.b16 %v720
    %v2304 = vunpack.c.h.b16 %v720
    %v2305 = vunpack.c.l.b16 %v721
    %v2306 = vunpack.c.h.b16 %v721
    %v2307 = vunpack.c.l.b16 %v722
    %v2308 = vunpack.c.h.b16 %v722
    %v2309 = vunpack.c.l.b16 %v723
    %v2310 = vunpack.c.h.b16 %v723
    %v2311 = vunpack.c.l.b16 %v724
    %v2312 = vunpack.c.h.b16 %v724
    %v2313 = vunpack.c.l.b16 %v725
    %v2314 = vunpack.c.h.b16 %v725
    %v2315 = vunpack.c.l.b16 %v726
    %v2316 = vunpack.c.h.b16 %v726
    %v2317 = vunpack.c.l.b16 %v727
    %v2318 = vunpack.c.h.b16 %v727
    %v2319 = vunpack.c.l.b16 %v728
    %v2320 = vunpack.c.h.b16 %v728
    %v2321 = vunpack.c.l.b16 %v729
    %v2322 = vunpack.c.h.b16 %v729
    %v2323 = vunpack.c.l.b16 %v730
    %v2324 = vunpack.c.h.b16 %v730
    %v2325 = vunpack.c.l.b16 %v731
    %v2326 = vunpack.c.h.b16 %v731
    %v2327 = vunpack.c.l.b16 %v732
    %v2328 = vunpack.c.h.b16 %v732
    %v2329 = vunpack.c.l.b16 %v733
    %v2330 = vunpack.c.h.b16 %v733
    %v2331 = vunpack.c.l.b16 %v734
    %v2332 = vunpack.c.h.b16 %v734
    %v2333 = vunpack.c.l.b16 %v735
    %v2334 = vunpack.c.h.b16 %v735
    %v2335 = vunpack.c.l.b16 %v736
    %v2336 = vunpack.c.h.b16 %v736
    %v2337 = vunpack.c.l.b16 %v737
    %v2338 = vunpack.c.h.b16 %v737
    %v2339 = vunpack.c.l.b16 %v738
    %v2340 = vunpack.c.h.b16 %v738
    %v2341 = vunpack.c.l.b16 %v739
    %v2342 = vunpack.c.h.b16 %v739
    %v2343 = vunpack.c.l.b16 %v740
    %v2344 = vunpack.c.h.b16 %v740
    %v2345 = vunpack.c.l.b16 %v741
    %v2346 = vunpack.c.h.b16 %v741
    %v2347 = vunpack.c.l.b16 %v742
    %v2348 = vunpack.c.h.b16 %v742
    %v2349 = vunpack.c.l.b16 %v743
    %v2350 = vunpack.c.h.b16 %v743
    %v2351 = vunpack.c.l.b16 %v744
    %v2352 = vunpack.c.h.b16 %v744
    %v2353 = vunpack.c.l.b16 %v745
    %v2354 = vunpack.c.h.b16 %v745
    %v2355 = vunpack.c.l.b16 %v746
    %v2356 = vunpack.c.h.b16 %v746
    %v2357 = vunpack.c.l.b16 %v747
    %v2358 = vunpack.c.h.b16 %v747
    %v2359 = vunpack.c.l.b16 %v748
    %v2360 = vunpack.c.h.b16 %v748
    %v2361 = vunpack.c.l.b16 %v749
    %v2362 = vunpack.c.h.b16 %v749
    %v2363 = vunpack.c.l.b16 %v750
    %v2364 = vunpack.c.h.b16 %v750
    %v2365 = vunpack.c.l.b16 %v751
    %v2366 = vunpack.c.h.b16 %v751
    %v2367 = vunpack.c.l.b16 %v752
    %v2368 = vunpack.c.h.b16 %v752
    %v2369 = vunpack.c.l.b16 %v753
    %v2370 = vunpack.c.h.b16 %v753
    %v2371 = vunpack.c.l.b16 %v754
    %v2372 = vunpack.c.h.b16 %v754
    %v2373 = vunpack.c.l.b16 %v755
    %v2374 = vunpack.c.h.b16 %v755
    %v2375 = vunpack.c.l.b16 %v756
    %v2376 = vunpack.c.h.b16 %v756
    %v2377 = vunpack.c.l.b16 %v757
    %v2378 = vunpack.c.h.b16 %v757
    %v2379 = vunpack.c.l.b16 %v758
    %v2380 = vunpack.c.h.b16 %v758
    %v2381 = vunpack.c.l.b16 %v759
    %v2382 = vunpack.c.h.b16 %v759
    %v2383 = vunpack.c.l.b16 %v760
    %v2384 = vunpack.c.h.b16 %v760
    %v2385 = vunpack.c.l.b16 %v761
    %v2386 = vunpack.c.h.b16 %v761
    %v2387 = vunpack.c.l.b16 %v762
    %v2388 = vunpack.c.h.b16 %v762
    %v2389 = vunpack.c.l.b16 %v763
    %v2390 = vunpack.c.h.b16 %v763
    %v2391 = vunpack.c.l.b16 %v764
    %v2392 = vunpack.c.h.b16 %v764
    %v2393 = vunpack.c.l.b16 %v765
    %v2394 = vunpack.c.h.b16 %v765
    %v2395 = vunpack.c.l.b16 %v766
    %v2396 = vunpack.c.h.b16 %v766
    %v2397 = vunpack.c.l.b16 %v767
    %v2398 = vunpack.c.h.b16 %v767
    %v2399 = vunpack.c.l.b16 %v768
    %v2400 = vunpack.c.h.b16 %v768
    %v2401 = vunpack.c.l.b16 %v769
    %v2402 = vunpack.c.h.b16 %v769
    %v2403 = vunpack.c.l.b16 %v770
    %v2404 = vunpack.c.h.b16 %v770
    %v2405 = vunpack.c.l.b16 %v771
    %v2406 = vunpack.c.h.b16 %v771
    %v2407 = vunpack.c.l.b16 %v772
    %v2408 = vunpack.c.h.b16 %v772
    %v2409 = vunpack.c.l.b16 %v773
    %v2410 = vunpack.c.h.b16 %v773
    %v2411 = vunpack.c.l.b16 %v774
    %v2412 = vunpack.c.h.b16 %v774
    %v2413 = vunpack.c.l.b16 %v775
    %v2414 = vunpack.c.h.b16 %v775
    %v2415 = vunpack.c.l.b16 %v776
    %v2416 = vunpack.c.h.b16 %v776
    %v2417 = vunpack.c.l.b16 %v777
    %v2418 = vunpack.c.h.b16 %v777
    %v2419 = vunpack.c.l.b16 %v778
    %v2420 = vunpack.c.h.b16 %v778
    %v2421 = vunpack.c.l.b16 %v779
    %v2422 = vunpack.c.h.b16 %v779
    %v2423 = vunpack.c.l.b16 %v780
    %v2424 = vunpack.c.h.b16 %v780
    %v2425 = vunpack.c.l.b16 %v781
    %v2426 = vunpack.c.h.b16 %v781
    %v2427 = vunpack.c.l.b16 %v782
    %v2428 = vunpack.c.h.b16 %v782
    %v2429 = vunpack.c.l.b16 %v783
    %v2430 = vunpack.c.h.b16 %v783
    %v2431 = vunpack.c.l.b16 %v784
    %v2432 = vunpack.c.h.b16 %v784
    %v2433 = vunpack.c.l.b16 %v785
    %v2434 = vunpack.c.h.b16 %v785
    %v2435 = vunpack.c.l.b16 %v786
    %v2436 = vunpack.c.h.b16 %v786
    %v2437 = vunpack.c.l.b16 %v787
    %v2438 = vunpack.c.h.b16 %v787
    %v2439 = vunpack.c.l.b16 %v788
    %v2440 = vunpack.c.h.b16 %v788
    %v2441 = vunpack.c.l.b16 %v789
    %v2442 = vunpack.c.h.b16 %v789
    %v2443 = vunpack.c.l.b16 %v790
    %v2444 = vunpack.c.h.b16 %v790
    %v2445 = vunpack.c.l.b16 %v791
    %v2446 = vunpack.c.h.b16 %v791
    %v2447 = vunpack.c.l.b16 %v792
    %v2448 = vunpack.c.h.b16 %v792
    %v2449 = vunpack.c.l.b16 %v793
    %v2450 = vunpack.c.h.b16 %v793
    %v2451 = vunpack.c.l.b16 %v794
    %v2452 = vunpack.c.h.b16 %v794
    %v2453 = vunpack.c.l.b16 %v795
    %v2454 = vunpack.c.h.b16 %v795
    %v2455 = vunpack.c.l.b16 %v796
    %v2456 = vunpack.c.h.b16 %v796
    %v2457 = vunpack.c.l.b16 %v797
    %v2458 = vunpack.c.h.b16 %v797
    %v2459 = vunpack.c.l.b16 %v798
    %v2460 = vunpack.c.h.b16 %v798
    %v2461 = vunpack.c.l.b16 %v799
    %v2462 = vunpack.c.h.b16 %v799
    %v2463 = vunpack.c.l.b16 %v800
    %v2464 = vunpack.c.h.b16 %v800
    %v2465 = vunpack.c.l.b16 %v801
    %v2466 = vunpack.c.h.b16 %v801
    %v2467 = vunpack.c.l.b16 %v802
    %v2468 = vunpack.c.h.b16 %v802
    %v2469 = vunpack.c.l.b16 %v803
    %v2470 = vunpack.c.h.b16 %v803
    %v2471 = vunpack.c.l.b16 %v804
    %v2472 = vunpack.c.h.b16 %v804
    %v2473 = vunpack.c.l.b16 %v805
    %v2474 = vunpack.c.h.b16 %v805
    %v2475 = vunpack.c.l.b16 %v806
    %v2476 = vunpack.c.h.b16 %v806
    %v2477 = vunpack.c.l.b16 %v807
    %v2478 = vunpack.c.h.b16 %v807
    %v2479 = vunpack.c.l.b16 %v808
    %v2480 = vunpack.c.h.b16 %v808
    %v2481 = vunpack.c.l.b16 %v809
    %v2482 = vunpack.c.h.b16 %v809
    %v2483 = vunpack.c.l.b16 %v810
    %v2484 = vunpack.c.h.b16 %v810
    %v2485 = vunpack.c.l.b16 %v811
    %v2486 = vunpack.c.h.b16 %v811
    %v2487 = vunpack.c.l.b16 %v812
    %v2488 = vunpack.c.h.b16 %v812
    %v2489 = vunpack.c.l.b16 %v813
    %v2490 = vunpack.c.h.b16 %v813
    %v2491 = vunpack.c.l.b16 %v814
    %v2492 = vunpack.c.h.b16 %v814
    %v2493 = vunpack.c.l.b16 %v815
    %v2494 = vunpack.c.h.b16 %v815
    %v2495 = vunpack.c.l.b16 %v816
    %v2496 = vunpack.c.h.b16 %v816
    %v2497 = vunpack.c.l.b16 %v817
    %v2498 = vunpack.c.h.b16 %v817
    %v2499 = vunpack.c.l.b16 %v818
    %v2500 = vunpack.c.h.b16 %v818
    %v2501 = vunpack.c.l.b16 %v819
    %v2502 = vunpack.c.h.b16 %v819
    %v2503 = vunpack.c.l.b16 %v820
    %v2504 = vunpack.c.h.b16 %v820
    %v2505 = vunpack.c.l.b16 %v821
    %v2506 = vunpack.c.h.b16 %v821
    %v2507 = vunpack.c.l.b16 %v822
    %v2508 = vunpack.c.h.b16 %v822
    %v2509 = vunpack.c.l.b16 %v823
    %v2510 = vunpack.c.h.b16 %v823
    %v2511 = vunpack.c.l.b16 %v824
    %v2512 = vunpack.c.h.b16 %v824
    %v2513 = vunpack.c.l.b16 %v825
    %v2514 = vunpack.c.h.b16 %v825
    %v2515 = vunpack.c.l.b16 %v826
    %v2516 = vunpack.c.h.b16 %v826
    %v2517 = vunpack.c.l.b16 %v827
    %v2518 = vunpack.c.h.b16 %v827
    %v2519 = vunpack.c.l.b16 %v828
    %v2520 = vunpack.c.h.b16 %v828
    %v2521 = vunpack.c.l.b16 %v829
    %v2522 = vunpack.c.h.b16 %v829
    %v2523 = vunpack.c.l.b16 %v830
    %v2524 = vunpack.c.h.b16 %v830
    %v2525 = vunpack.c.l.b16 %v831
    %v2526 = vunpack.c.h.b16 %v831
    %v2527 = vunpack.c.l.b16 %v832
    %v2528 = vunpack.c.h.b16 %v832
    %v2529 = vunpack.c.l.b16 %v833
    %v2530 = vunpack.c.h.b16 %v833
    %v2531 = vunpack.c.l.b16 %v834
    %v2532 = vunpack.c.h.b16 %v834
    %v2533 = vunpack.c.l.b16 %v835
    %v2534 = vunpack.c.h.b16 %v835
    %v2535 = vunpack.c.l.b16 %v836
    %v2536 = vunpack.c.h.b16 %v836
    %v2537 = vunpack.c.l.b16 %v837
    %v2538 = vunpack.c.h.b16 %v837
    %v2539 = vunpack.c.l.b16 %v838
    %v2540 = vunpack.c.h.b16 %v838
    %v2541 = vunpack.c.l.b16 %v839
    %v2542 = vunpack.c.h.b16 %v839
    %v2543 = vunpack.c.l.b16 %v840
    %v2544 = vunpack.c.h.b16 %v840
    %v2545 = vunpack.c.l.b16 %v841
    %v2546 = vunpack.c.h.b16 %v841
    %v2547 = vunpack.c.l.b16 %v842
    %v2548 = vunpack.c.h.b16 %v842
    %v2549 = vunpack.c.l.b16 %v843
    %v2550 = vunpack.c.h.b16 %v843
    %v2551 = vunpack.c.l.b16 %v844
    %v2552 = vunpack.c.h.b16 %v844
    %v2553 = vunpack.c.l.b16 %v845
    %v2554 = vunpack.c.h.b16 %v845
    %v2555 = vunpack.c.l.b16 %v846
    %v2556 = vunpack.c.h.b16 %v846
    %v2557 = vunpack.c.l.b16 %v847
    %v2558 = vunpack.c.h.b16 %v847
    %v2559 = vunpack.c.l.b16 %v848
    %v2560 = vunpack.c.h.b16 %v848
    %v2561 = vunpack.c.l.b16 %v849
    %v2562 = vunpack.c.h.b16 %v849
    %v2563 = vunpack.c.l.b16 %v850
    %v2564 = vunpack.c.h.b16 %v850
    %v2565 = vunpack.c.l.b16 %v851
    %v2566 = vunpack.c.h.b16 %v851
    %v2567 = vunpack.c.l.b16 %v852
    %v2568 = vunpack.c.h.b16 %v852
    %v2569 = vunpack.c.l.b16 %v853
    %v2570 = vunpack.c.h.b16 %v853
    %v2571 = vunpack.c.l.b16 %v854
    %v2572 = vunpack.c.h.b16 %v854
    %v2573 = vunpack.c.l.b16 %v855
    %v2574 = vunpack.c.h.b16 %v855
    %v2575 = vunpack.c.l.b16 %v856
    %v2576 = vunpack.c.h.b16 %v856
    %v2577 = vunpack.c.l.b16 %v857
    %v2578 = vunpack.c.h.b16 %v857
    %v2579 = vunpack.c.l.b16 %v858
    %v2580 = vunpack.c.h.b16 %v858
    %v2581 = vunpack.c.l.b16 %v859
    %v2582 = vunpack.c.h.b16 %v859
    %v2583 = vunpack.c.l.b16 %v860
    %v2584 = vunpack.c.h.b16 %v860
    %v2585 = vunpack.c.l.b16 %v861
    %v2586 = vunpack.c.h.b16 %v861
    %v2587 = vunpack.c.l.b16 %v862
    %v2588 = vunpack.c.h.b16 %v862
    %v2589 = vunpack.c.l.b16 %v863
    %v2590 = vunpack.c.h.b16 %v863
    %v2591 = vunpack.c.l.b16 %v864
    %v2592 = vunpack.c.h.b16 %v864
    %v2593 = vunpack.c.l.b16 %v865
    %v2594 = vunpack.c.h.b16 %v865
    %v2595 = vunpack.c.l.b16 %v866
    %v2596 = vunpack.c.h.b16 %v866
    %v2597 = vunpack.c.l.b16 %v867
    %v2598 = vunpack.c.h.b16 %v867
    %v2599 = vunpack.c.l.b16 %v868
    %v2600 = vunpack.c.h.b16 %v868
    %v2601 = vunpack.c.l.b16 %v869
    %v2602 = vunpack.c.h.b16 %v869
    %v2603 = vunpack.c.l.b16 %v870
    %v2604 = vunpack.c.h.b16 %v870
    %v2605 = vunpack.c.l.b16 %v871
    %v2606 = vunpack.c.h.b16 %v871
    %v2607 = vunpack.c.l.b16 %v872
    %v2608 = vunpack.c.h.b16 %v872
    %v2609 = vunpack.c.l.b16 %v873
    %v2610 = vunpack.c.h.b16 %v873
    %v2611 = vunpack.c.l.b16 %v874
    %v2612 = vunpack.c.h.b16 %v874
    %v2613 = vunpack.c.l.b16 %v875
    %v2614 = vunpack.c.h.b16 %v875
    %v2615 = vunpack.c.l.b16 %v876
    %v2616 = vunpack.c.h.b16 %v876
    %v2617 = vunpack.c.l.b16 %v877
    %v2618 = vunpack.c.h.b16 %v877
    %v2619 = vunpack.c.l.b16 %v878
    %v2620 = vunpack.c.h.b16 %v878
    %v2621 = vunpack.c.l.b16 %v879
    %v2622 = vunpack.c.h.b16 %v879
    %v2623 = vunpack.c.l.b16 %v880
    %v2624 = vunpack.c.h.b16 %v880
    %v2625 = vunpack.c.l.b16 %v881
    %v2626 = vunpack.c.h.b16 %v881
    %v2627 = vunpack.c.l.b16 %v882
    %v2628 = vunpack.c.h.b16 %v882
    %v2629 = vunpack.c.l.b16 %v883
    %v2630 = vunpack.c.h.b16 %v883
    %v2631 = vunpack.c.l.b16 %v884
    %v2632 = vunpack.c.h.b16 %v884
    %v2633 = vunpack.c.l.b16 %v885
    %v2634 = vunpack.c.h.b16 %v885
    %v2635 = vunpack.c.l.b16 %v886
    %v2636 = vunpack.c.h.b16 %v886
    %v2637 = vunpack.c.l.b16 %v887
    %v2638 = vunpack.c.h.b16 %v887
    %v2639 = vunpack.c.l.b16 %v888
    %v2640 = vunpack.c.h.b16 %v888
    %v2641 = vunpack.c.l.b16 %v889
    %v2642 = vunpack.c.h.b16 %v889
    %v2643 = vunpack.c.l.b16 %v890
    %v2644 = vunpack.c.h.b16 %v890
    %v2645 = vunpack.c.l.b16 %v891
    %v2646 = vunpack.c.h.b16 %v891
    %v2647 = vunpack.c.l.b16 %v892
    %v2648 = vunpack.c.h.b16 %v892
    %v2649 = vunpack.c.l.b16 %v893
    %v2650 = vunpack.c.h.b16 %v893
    %v2651 = vunpack.c.l.b16 %v894
    %v2652 = vunpack.c.h.b16 %v894
    %v2653 = vunpack.c.l.b16 %v895
    %v2654 = vunpack.c.h.b16 %v895
    %v2655 = vunpack.c.l.b16 %v896
    %v2656 = vunpack.c.h.b16 %v896
    %v2657 = vunpack.c.l.b16 %v897
    %v2658 = vunpack.c.h.b16 %v897
    %v2659 = vunpack.c.l.b16 %v898
    %v2660 = vunpack.c.h.b16 %v898
    %v2661 = vunpack.c.l.b16 %v899
    %v2662 = vunpack.c.h.b16 %v899
    %v2663 = vunpack.c.l.b16 %v900
    %v2664 = vunpack.c.h.b16 %v900
    %v2665 = vunpack.c.l.b16 %v901
    %v2666 = vunpack.c.h.b16 %v901
    %v2667 = vunpack.c.l.b16 %v902
    %v2668 = vunpack.c.h.b16 %v902
    %v2669 = vunpack.c.l.b16 %v903
    %v2670 = vunpack.c.h.b16 %v903
    %v2671 = vunpack.c.l.b16 %v904
    %v2672 = vunpack.c.h.b16 %v904
    %v2673 = vunpack.c.l.b16 %v905
    %v2674 = vunpack.c.h.b16 %v905
    %v2675 = vunpack.c.l.b16 %v906
    %v2676 = vunpack.c.h.b16 %v906
    %v2677 = vunpack.c.l.b16 %v907
    %v2678 = vunpack.c.h.b16 %v907
    %v2679 = vunpack.c.l.b16 %v908
    %v2680 = vunpack.c.h.b16 %v908
    %v2681 = vunpack.c.l.b16 %v909
    %v2682 = vunpack.c.h.b16 %v909
    %v2683 = vunpack.c.l.b16 %v910
    %v2684 = vunpack.c.h.b16 %v910
    %v2685 = vunpack.c.l.b16 %v911
    %v2686 = vunpack.c.h.b16 %v911
    %v2687 = vunpack.c.l.b16 %v912
    %v2688 = vunpack.c.h.b16 %v912
    %v2689 = vunpack.c.l.b16 %v913
    %v2690 = vunpack.c.h.b16 %v913
    %v2691 = vunpack.c.l.b16 %v914
    %v2692 = vunpack.c.h.b16 %v914
    %v2693 = vunpack.c.l.b16 %v915
    %v2694 = vunpack.c.h.b16 %v915
    %v2695 = vunpack.c.l.b16 %v916
    %v2696 = vunpack.c.h.b16 %v916
    %v2697 = vunpack.c.l.b16 %v917
    %v2698 = vunpack.c.h.b16 %v917
    %v2699 = vunpack.c.l.b16 %v918
    %v2700 = vunpack.c.h.b16 %v918
    %v2701 = vunpack.c.l.b16 %v919
    %v2702 = vunpack.c.h.b16 %v919
    %v2703 = vunpack.c.l.b16 %v920
    %v2704 = vunpack.c.h.b16 %v920
    %v2705 = vunpack.c.l.b16 %v921
    %v2706 = vunpack.c.h.b16 %v921
    %v2707 = vunpack.c.l.b16 %v922
    %v2708 = vunpack.c.h.b16 %v922
    %v2709 = vunpack.c.l.b16 %v923
    %v2710 = vunpack.c.h.b16 %v923
    %v2711 = vunpack.c.l.b16 %v924
    %v2712 = vunpack.c.h.b16 %v924
    %v2713 = vunpack.c.l.b16 %v925
    %v2714 = vunpack.c.h.b16 %v925
    %v2715 = vunpack.c.l.b16 %v926
    %v2716 = vunpack.c.h.b16 %v926
    %v2717 = vunpack.c.l.b16 %v927
    %v2718 = vunpack.c.h.b16 %v927
    %v2719 = vunpack.c.l.b16 %v928
    %v2720 = vunpack.c.h.b16 %v928
    %v2721 = vunpack.c.l.b16 %v929
    %v2722 = vunpack.c.h.b16 %v929
    %v2723 = vunpack.c.l.b16 %v930
    %v2724 = vunpack.c.h.b16 %v930
    %v2725 = vunpack.c.l.b16 %v931
    %v2726 = vunpack.c.h.b16 %v931
    %v2727 = vunpack.c.l.b16 %v932
    %v2728 = vunpack.c.h.b16 %v932
    %v2729 = vunpack.c.l.b16 %v933
    %v2730 = vunpack.c.h.b16 %v933
    %v2731 = vunpack.c.l.b16 %v934
    %v2732 = vunpack.c.h.b16 %v934
    %v2733 = vunpack.c.l.b16 %v935
    %v2734 = vunpack.c.h.b16 %v935
    %v2735 = vunpack.c.l.b16 %v936
    %v2736 = vunpack.c.h.b16 %v936
    %v2737 = vunpack.c.l.b16 %v937
    %v2738 = vunpack.c.h.b16 %v937
    %v2739 = vunpack.c.l.b16 %v938
    %v2740 = vunpack.c.h.b16 %v938
    %v2741 = vunpack.c.l.b16 %v939
    %v2742 = vunpack.c.h.b16 %v939
    %v2743 = vunpack.c.l.b16 %v940
    %v2744 = vunpack.c.h.b16 %v940
    %v2745 = vunpack.c.l.b16 %v941
    %v2746 = vunpack.c.h.b16 %v941
    %v2747 = vunpack.c.l.b16 %v942
    %v2748 = vunpack.c.h.b16 %v942
    %v2749 = vunpack.c.l.b16 %v943
    %v2750 = vunpack.c.h.b16 %v943
    %v2751 = vunpack.c.l.b16 %v944
    %v2752 = vunpack.c.h.b16 %v944
    %v2753 = vunpack.c.l.b16 %v945
    %v2754 = vunpack.c.h.b16 %v945
    %v2755 = vunpack.c.l.b16 %v946
    %v2756 = vunpack.c.h.b16 %v946
    %v2757 = vunpack.c.l.b16 %v947
    %v2758 = vunpack.c.h.b16 %v947
    %v2759 = vunpack.c.l.b16 %v948
    %v2760 = vunpack.c.h.b16 %v948
    %v2761 = vunpack.c.l.b16 %v949
    %v2762 = vunpack.c.h.b16 %v949
    %v2763 = vunpack.c.l.b16 %v950
    %v2764 = vunpack.c.h.b16 %v950
    %v2765 = vunpack.c.l.b16 %v951
    %v2766 = vunpack.c.h.b16 %v951
    %v2767 = vunpack.c.l.b16 %v952
    %v2768 = vunpack.c.h.b16 %v952
    %v2769 = vunpack.c.l.b16 %v953
    %v2770 = vunpack.c.h.b16 %v953
    %v2771 = vunpack.c.l.b16 %v954
    %v2772 = vunpack.c.h.b16 %v954
    %v2773 = vunpack.c.l.b16 %v955
    %v2774 = vunpack.c.h.b16 %v955
    %v2775 = vunpack.c.l.b16 %v956
    %v2776 = vunpack.c.h.b16 %v956
    %v2777 = vunpack.c.l.b16 %v957
    %v2778 = vunpack.c.h.b16 %v957
    %v2779 = vunpack.c.l.b16 %v958
    %v2780 = vunpack.c.h.b16 %v958
    %v2781 = vunpack.c.l.b16 %v959
    %v2782 = vunpack.c.h.b16 %v959
    %v2783 = vunpack.c.l.b16 %v960
    %v2784 = vunpack.c.h.b16 %v960
    %v2785 = vunpack.c.l.b16 %v961
    %v2786 = vunpack.c.h.b16 %v961
    %v2787 = vunpack.c.l.b16 %v962
    %v2788 = vunpack.c.h.b16 %v962
    %v2789 = vunpack.c.l.b16 %v963
    %v2790 = vunpack.c.h.b16 %v963
    %v2791 = vunpack.c.l.b16 %v964
    %v2792 = vunpack.c.h.b16 %v964
    %v2793 = vunpack.c.l.b16 %v965
    %v2794 = vunpack.c.h.b16 %v965
    %v2795 = vunpack.c.l.b16 %v966
    %v2796 = vunpack.c.h.b16 %v966
    %v2797 = vunpack.c.l.b16 %v967
    %v2798 = vunpack.c.h.b16 %v967
    %v2799 = vunpack.c.l.b16 %v968
    %v2800 = vunpack.c.h.b16 %v968
    %v2801 = vunpack.c.l.b16 %v969
    %v2802 = vunpack.c.h.b16 %v969
    %v2803 = vunpack.c.l.b16 %v970
    %v2804 = vunpack.c.h.b16 %v970
    %v2805 = vunpack.c.l.b16 %v971
    %v2806 = vunpack.c.h.b16 %v971
    %v2807 = vunpack.c.l.b16 %v972
    %v2808 = vunpack.c.h.b16 %v972
    %v2809 = vunpack.c.l.b16 %v973
    %v2810 = vunpack.c.h.b16 %v973
    %v2811 = vunpack.c.l.b16 %v974
    %v2812 = vunpack.c.h.b16 %v974
    %v2813 = vunpack.c.l.b16 %v975
    %v2814 = vunpack.c.h.b16 %v975
    %v2815 = vunpack.c.l.b16 %v976
    %v2816 = vunpack.c.h.b16 %v976
    %v2817 = vunpack.c.l.b16 %v977
    %v2818 = vunpack.c.h.b16 %v977
    %v2819 = vunpack.c.l.b16 %v978
    %v2820 = vunpack.c.h.b16 %v978
    %v2821 = vunpack.c.l.b16 %v979
    %v2822 = vunpack.c.h.b16 %v979
    %v2823 = vunpack.c.l.b16 %v980
    %v2824 = vunpack.c.h.b16 %v980
    %v2825 = vunpack.c.l.b16 %v981
    %v2826 = vunpack.c.h.b16 %v981
    %v2827 = vunpack.c.l.b16 %v982
    %v2828 = vunpack.c.h.b16 %v982
    %v2829 = vpack.c.b16 %v1617, %v1613
    %v2830 = vpack.c.b16 %v1618, %v1614
    %v2831 = vpack.c.b16 %v1619, %v1615
    %v2832 = vpack.c.b16 %v1620, %v1616
    %v2833 = vpack.c.b16 %v1625, %v1621
    %v2834 = vpack.c.b16 %v1626, %v1622
    %v2835 = vpack.c.b16 %v1627, %v1623
    %v2836 = vpack.c.b16 %v1628, %v1624
    %v2837 = vpack.c.b16 %v1633, %v1629
    %v2838 = vpack.c.b16 %v1634, %v1630
    %v2839 = vpack.c.b16 %v1635, %v1631
    %v2840 = vpack.c.b16 %v1636, %v1632
    %v2841 = vpack.c.b16 %v1641, %v1637
    %v2842 = vpack.c.b16 %v1642, %v1638
    %v2843 = vpack.c.b16 %v1643, %v1639
    %v2844 = vpack.c.b16 %v1644, %v1640
    %v2845 = vpack.c.b16 %v1649, %v1645
    %v2846 = vpack.c.b16 %v1650, %v1646
    %v2847 = vpack.c.b16 %v1651, %v1647
    %v2848 = vpack.c.b16 %v1652, %v1648
    %v2849 = vpack.c.b16 %v1657, %v1653
    %v2850 = vpack.c.b16 %v1658, %v1654
    %v2851 = vpack.c.b16 %v1659, %v1655
    %v2852 = vpack.c.b16 %v1660, %v1656
    %v2853 = vpack.c.b16 %v1665, %v1661
    %v2854 = vpack.c.b16 %v1666, %v1662
    %v2855 = vpack.c.b16 %v1667, %v1663
    %v2856 = vpack.c.b16 %v1668, %v1664
    %v2857 = vpack.c.b16 %v1673, %v1669
    %v2858 = vpack.c.b16 %v1674, %v1670
    %v2859 = vpack.c.b16 %v1675, %v1671
    %v2860 = vpack.c.b16 %v1676, %v1672
    %v2861 = vpack.c.b16 %v1681, %v1677
    %v2862 = vpack.c.b16 %v1682, %v1678
    %v2863 = vpack.c.b16 %v1683, %v1679
    %v2864 = vpack.c.b16 %v1684, %v1680
    %v2865 = vpack.c.b16 %v1689, %v1685
    %v2866 = vpack.c.b16 %v1690, %v1686
    %v2867 = vpack.c.b16 %v1691, %v1687
    %v2868 = vpack.c.b16 %v1692, %v1688
    %v2869 = vpack.c.b16 %v1697, %v1693
    %v2870 = vpack.c.b16 %v1698, %v1694
    %v2871 = vpack.c.b16 %v1699, %v1695
    %v2872 = vpack.c.b16 %v1700, %v1696
    %v2873 = vpack.c.b16 %v1705, %v1701
    %v2874 = vpack.c.b16 %v1706, %v1702
    %v2875 = vpack.c.b16 %v1707, %v1703
    %v2876 = vpack.c.b16 %v1708, %v1704
    %v2877 = vpack.c.b16 %v1713, %v1709
    %v2878 = vpack.c.b16 %v1714, %v1710
    %v2879 = vpack.c.b16 %v1715, %v1711
    %v2880 = vpack.c.b16 %v1716, %v1712
    %v2881 = vpack.c.b16 %v1721, %v1717
    %v2882 = vpack.c.b16 %v1722, %v1718
    %v2883 = vpack.c.b16 %v1723, %v1719
    %v2884 = vpack.c.b16 %v1724, %v1720
    %v2885 = vpack.c.b16 %v1729, %v1725
    %v2886 = vpack.c.b16 %v1730, %v1726
    %v2887 = vpack.c.b16 %v1731, %v1727
    %v2888 = vpack.c.b16 %v1732, %v1728
    %v2889 = vpack.c.b16 %v1737, %v1733
    %v2890 = vpack.c.b16 %v1738, %v1734
    %v2891 = vpack.c.b16 %v1739, %v1735
    %v2892 = vpack.c.b16 %v1740, %v1736
    %v2893 = vpack.c.b16 %v1745, %v1741
    %v2894 = vpack.c.b16 %v1746, %v1742
    %v2895 = vpack.c.b16 %v1747, %v1743
    %v2896 = vpack.c.b16 %v1748, %v1744
    %v2897 = vpack.c.b16 %v1753, %v1749
    %v2898 = vpack.c.b16 %v1754, %v1750
    %v2899 = vpack.c.b16 %v1755, %v1751
    %v2900 = vpack.c.b16 %v1756, %v1752
    %v2901 = vpack.c.b16 %v1761, %v1757
    %v2902 = vpack.c.b16 %v1762, %v1758
    %v2903 = vpack.c.b16 %v1763, %v1759
    %v2904 = vpack.c.b16 %v1764, %v1760
    %v2905 = vpack.c.b16 %v1769, %v1765
    %v2906 = vpack.c.b16 %v1770, %v1766
    %v2907 = vpack.c.b16 %v1771, %v1767
    %v2908 = vpack.c.b16 %v1772, %v1768
    %v2909 = vpack.c.b16 %v1777, %v1773
    %v2910 = vpack.c.b16 %v1778, %v1774
    %v2911 = vpack.c.b16 %v1779, %v1775
    %v2912 = vpack.c.b16 %v1780, %v1776
    %v2913 = vpack.c.b16 %v1785, %v1781
    %v2914 = vpack.c.b16 %v1786, %v1782
    %v2915 = vpack.c.b16 %v1787, %v1783
    %v2916 = vpack.c.b16 %v1788, %v1784
    %v2917 = vpack.c.b16 %v1793, %v1789
    %v2918 = vpack.c.b16 %v1794, %v1790
    %v2919 = vpack.c.b16 %v1795, %v1791
    %v2920 = vpack.c.b16 %v1796, %v1792
    %v2921 = vpack.c.b16 %v1801, %v1797
    %v2922 = vpack.c.b16 %v1802, %v1798
    %v2923 = vpack.c.b16 %v1803, %v1799
    %v2924 = vpack.c.b16 %v1804, %v1800
    %v2925 = vpack.c.b16 %v1809, %v1805
    %v2926 = vpack.c.b16 %v1810, %v1806
    %v2927 = vpack.c.b16 %v1811, %v1807
    %v2928 = vpack.c.b16 %v1812, %v1808
    %v2929 = vpack.c.b16 %v1817, %v1813
    %v2930 = vpack.c.b16 %v1818, %v1814
    %v2931 = vpack.c.b16 %v1819, %v1815
    %v2932 = vpack.c.b16 %v1820, %v1816
    %v2933 = vpack.c.b16 %v1825, %v1821
    %v2934 = vpack.c.b16 %v1826, %v1822
    %v2935 = vpack.c.b16 %v1827, %v1823
    %v2936 = vpack.c.b16 %v1828, %v1824
    %v2937 = vpack.c.b16 %v1833, %v1829
    %v2938 = vpack.c.b16 %v1834, %v1830
    %v2939 = vpack.c.b16 %v1835, %v1831
    %v2940 = vpack.c.b16 %v1836, %v1832
    %v2941 = vpack.c.b16 %v1841, %v1837
    %v2942 = vpack.c.b16 %v1842, %v1838
    %v2943 = vpack.c.b16 %v1843, %v1839
    %v2944 = vpack.c.b16 %v1844, %v1840
    %v2945 = vpack.c.b16 %v1849, %v1845
    %v2946 = vpack.c.b16 %v1850, %v1846
    %v2947 = vpack.c.b16 %v1851, %v1847
    %v2948 = vpack.c.b16 %v1852, %v1848
    %v2949 = vpack.c.b16 %v1857, %v1853
    %v2950 = vpack.c.b16 %v1858, %v1854
    %v2951 = vpack.c.b16 %v1859, %v1855
    %v2952 = vpack.c.b16 %v1860, %v1856
    %v2953 = vpack.c.b16 %v1865, %v1861
    %v2954 = vpack.c.b16 %v1866, %v1862
    %v2955 = vpack.c.b16 %v1867, %v1863
    %v2956 = vpack.c.b16 %v1868, %v1864
    %v2957 = vpack.c.b16 %v1873, %v1869
    %v2958 = vpack.c.b16 %v1874, %v1870
    %v2959 = vpack.c.b16 %v1875, %v1871
    %v2960 = vpack.c.b16 %v1876, %v1872
    %v2961 = vpack.c.b16 %v1881, %v1877
    %v2962 = vpack.c.b16 %v1882, %v1878
    %v2963 = vpack.c.b16 %v1883, %v1879
    %v2964 = vpack.c.b16 %v1884, %v1880
    %v2965 = vpack.c.b16 %v1889, %v1885
    %v2966 = vpack.c.b16 %v1890, %v1886
    %v2967 = vpack.c.b16 %v1891, %v1887
    %v2968 = vpack.c.b16 %v1892, %v1888
    %v2969 = vpack.c.b16 %v1897, %v1893
    %v2970 = vpack.c.b16 %v1898, %v1894
    %v2971 = vpack.c.b16 %v1899, %v1895
    %v2972 = vpack.c.b16 %v1900, %v1896
    %v2973 = vpack.c.b16 %v1905, %v1901
    %v2974 = vpack.c.b16 %v1906, %v1902
    %v2975 = vpack.c.b16 %v1907, %v1903
    %v2976 = vpack.c.b16 %v1908, %v1904
    %v2977 = vpack.c.b16 %v1913, %v1909
    %v2978 = vpack.c.b16 %v1914, %v1910
    %v2979 = vpack.c.b16 %v1915, %v1911
    %v2980 = vpack.c.b16 %v1916, %v1912
    %v2981 = vpack.c.b16 %v1921, %v1917
    %v2982 = vpack.c.b16 %v1922, %v1918
    %v2983 = vpack.c.b16 %v1923, %v1919
    %v2984 = vpack.c.b16 %v1924, %v1920
    %v2985 = vpack.c.b16 %v1929, %v1925
    %v2986 = vpack.c.b16 %v1930, %v1926
    %v2987 = vpack.c.b16 %v1931, %v1927
    %v2988 = vpack.c.b16 %v1932, %v1928
    %v2989 = vpack.c.b16 %v1937, %v1933
    %v2990 = vpack.c.b16 %v1938, %v1934
    %v2991 = vpack.c.b16 %v1939, %v1935
    %v2992 = vpack.c.b16 %v1940, %v1936
    %v2993 = vpack.c.b16 %v1945, %v1941
    %v2994 = vpack.c.b16 %v1946, %v1942
    %v2995 = vpack.c.b16 %v1947, %v1943
    %v2996 = vpack.c.b16 %v1948, %v1944
    %v2997 = vpack.c.b16 %v1953, %v1949
    %v2998 = vpack.c.b16 %v1954, %v1950
    %v2999 = vpack.c.b16 %v1955, %v1951
    %v3000 = vpack.c.b16 %v1956, %v1952
    %v3001 = vpack.c.b16 %v1961, %v1957
    %v3002 = vpack.c.b16 %v1962, %v1958
    %v3003 = vpack.c.b16 %v1963, %v1959
    %v3004 = vpack.c.b16 %v1964, %v1960
    %v3005 = vpack.c.b16 %v1969, %v1965
    %v3006 = vpack.c.b16 %v1970, %v1966
    %v3007 = vpack.c.b16 %v1971, %v1967
    %v3008 = vpack.c.b16 %v1972, %v1968
    %v3009 = vpack.c.b16 %v1977, %v1973
    %v3010 = vpack.c.b16 %v1978, %v1974
    %v3011 = vpack.c.b16 %v1979, %v1975
    %v3012 = vpack.c.b16 %v1980, %v1976
    %v3013 = vpack.c.b16 %v1985, %v1981
    %v3014 = vpack.c.b16 %v1986, %v1982
    %v3015 = vpack.c.b16 %v1987, %v1983
    %v3016 = vpack.c.b16 %v1988, %v1984
    %v3017 = vpack.c.b16 %v1993, %v1989
    %v3018 = vpack.c.b16 %v1994, %v1990
    %v3019 = vpack.c.b16 %v1995, %v1991
    %v3020 = vpack.c.b16 %v1996, %v1992
    %v3021 = vpack.c.b16 %v2001, %v1997
    %v3022 = vpack.c.b16 %v2002, %v1998
    %v3023 = vpack.c.b16 %v2003, %v1999
    %v3024 = vpack.c.b16 %v2004, %v2000
    %v3025 = vpack.c.b16 %v2009, %v2005
    %v3026 = vpack.c.b16 %v2010, %v2006
    %v3027 = vpack.c.b16 %v2011, %v2007
    %v3028 = vpack.c.b16 %v2012, %v2008
    %v3029 = vpack.c.b16 %v2017, %v2013
    %v3030 = vpack.c.b16 %v2018, %v2014
    %v3031 = vpack.c.b16 %v2019, %v2015
    %v3032 = vpack.c.b16 %v2020, %v2016
    %v3033 = vpack.c.b16 %v2025, %v2021
    %v3034 = vpack.c.b16 %v2026, %v2022
    %v3035 = vpack.c.b16 %v2027, %v2023
    %v3036 = vpack.c.b16 %v2028, %v2024
    %v3037 = vpack.c.b16 %v2033, %v2029
    %v3038 = vpack.c.b16 %v2034, %v2030
    %v3039 = vpack.c.b16 %v2035, %v2031
    %v3040 = vpack.c.b16 %v2036, %v2032
    %v3041 = vpack.c.b16 %v2041, %v2037
    %v3042 = vpack.c.b16 %v2042, %v2038
    %v3043 = vpack.c.b16 %v2043, %v2039
    %v3044 = vpack.c.b16 %v2044, %v2040
    %v3045 = vpack.c.b16 %v2049, %v2045
    %v3046 = vpack.c.b16 %v2050, %v2046
    %v3047 = vpack.c.b16 %v2051, %v2047
    %v3048 = vpack.c.b16 %v2052, %v2048
    %v3049 = vpack.c.b16 %v2057, %v2053
    %v3050 = vpack.c.b16 %v2058, %v2054
    %v3051 = vpack.c.b16 %v2059, %v2055
    %v3052 = vpack.c.b16 %v2060, %v2056
    %v3053 = vpack.c.b16 %v2065, %v2061
    %v3054 = vpack.c.b16 %v2066, %v2062
    %v3055 = vpack.c.b16 %v2067, %v2063
    %v3056 = vpack.c.b16 %v2068, %v2064
    %v3057 = vpack.c.b16 %v2073, %v2069
    %v3058 = vpack.c.b16 %v2074, %v2070
    %v3059 = vpack.c.b16 %v2075, %v2071
    %v3060 = vpack.c.b16 %v2076, %v2072
    %v3061 = vpack.c.b16 %v2081, %v2077
    %v3062 = vpack.c.b16 %v2082, %v2078
    %v3063 = vpack.c.b16 %v2083, %v2079
    %v3064 = vpack.c.b16 %v2084, %v2080
    %v3065 = vpack.c.b16 %v2089, %v2085
    %v3066 = vpack.c.b16 %v2090, %v2086
    %v3067 = vpack.c.b16 %v2091, %v2087
    %v3068 = vpack.c.b16 %v2092, %v2088
    %v3069 = vpack.c.b16 %v2097, %v2093
    %v3070 = vpack.c.b16 %v2098, %v2094
    %v3071 = vpack.c.b16 %v2099, %v2095
    %v3072 = vpack.c.b16 %v2100, %v2096
    %v3073 = vpack.c.b16 %v2105, %v2101
    %v3074 = vpack.c.b16 %v2106, %v2102
    %v3075 = vpack.c.b16 %v2107, %v2103
    %v3076 = vpack.c.b16 %v2108, %v2104
    %v3077 = vpack.c.b16 %v2113, %v2109
    %v3078 = vpack.c.b16 %v2114, %v2110
    %v3079 = vpack.c.b16 %v2115, %v2111
    %v3080 = vpack.c.b16 %v2116, %v2112
    %v3081 = vpack.c.b16 %v2121, %v2117
    %v3082 = vpack.c.b16 %v2122, %v2118
    %v3083 = vpack.c.b16 %v2123, %v2119
    %v3084 = vpack.c.b16 %v2124, %v2120
    %v3085 = vpack.c.b16 %v2129, %v2125
    %v3086 = vpack.c.b16 %v2130, %v2126
    %v3087 = vpack.c.b16 %v2131, %v2127
    %v3088 = vpack.c.b16 %v2132, %v2128
    %v3089 = vpack.c.b16 %v2137, %v2133
    %v3090 = vpack.c.b16 %v2138, %v2134
    %v3091 = vpack.c.b16 %v2139, %v2135
    %v3092 = vpack.c.b16 %v2140, %v2136
    %v3093 = vpack.c.b16 %v2145, %v2141
    %v3094 = vpack.c.b16 %v2146, %v2142
    %v3095 = vpack.c.b16 %v2147, %v2143
    %v3096 = vpack.c.b16 %v2148, %v2144
    %v3097 = vpack.c.b16 %v2153, %v2149
    %v3098 = vpack.c.b16 %v2154, %v2150
    %v3099 = vpack.c.b16 %v2155, %v2151
    %v3100 = vpack.c.b16 %v2156, %v2152
    %v3101 = vpack.c.b16 %v2161, %v2157
    %v3102 = vpack.c.b16 %v2162, %v2158
    %v3103 = vpack.c.b16 %v2163, %v2159
    %v3104 = vpack.c.b16 %v2164, %v2160
    %v3105 = vpack.c.b16 %v2169, %v2165
    %v3106 = vpack.c.b16 %v2170, %v2166
    %v3107 = vpack.c.b16 %v2171, %v2167
    %v3108 = vpack.c.b16 %v2172, %v2168
    %v3109 = vpack.c.b16 %v2177, %v2173
    %v3110 = vpack.c.b16 %v2178, %v2174
    %v3111 = vpack.c.b16 %v2179, %v2175
    %v3112 = vpack.c.b16 %v2180, %v2176
    %v3113 = vpack.c.b16 %v2185, %v2181
    %v3114 = vpack.c.b16 %v2186, %v2182
    %v3115 = vpack.c.b16 %v2187, %v2183
    %v3116 = vpack.c.b16 %v2188, %v2184
    %v3117 = vpack.c.b16 %v2193, %v2189
    %v3118 = vpack.c.b16 %v2194, %v2190
    %v3119 = vpack.c.b16 %v2195, %v2191
    %v3120 = vpack.c.b16 %v2196, %v2192
    %v3121 = vpack.c.b16 %v2201, %v2197
    %v3122 = vpack.c.b16 %v2202, %v2198
    %v3123 = vpack.c.b16 %v2203, %v2199
    %v3124 = vpack.c.b16 %v2204, %v2200
    %v3125 = vpack.c.b16 %v2209, %v2205
    %v3126 = vpack.c.b16 %v2210, %v2206
    %v3127 = vpack.c.b16 %v2211, %v2207
    %v3128 = vpack.c.b16 %v2212, %v2208
    %v3129 = vpack.c.b16 %v2217, %v2213
    %v3130 = vpack.c.b16 %v2218, %v2214
    %v3131 = vpack.c.b16 %v2219, %v2215
    %v3132 = vpack.c.b16 %v2220, %v2216
    %v3133 = vpack.c.b16 %v2225, %v2221
    %v3134 = vpack.c.b16 %v2226, %v2222
    %v3135 = vpack.c.b16 %v2227, %v2223
    %v3136 = vpack.c.b16 %v2228, %v2224
    %v3137 = vpack.c.b16 %v2233, %v2229
    %v3138 = vpack.c.b16 %v2234, %v2230
    %v3139 = vpack.c.b16 %v2235, %v2231
    %v3140 = vpack.c.b16 %v2236, %v2232
    %v3141 = vpack.c.b16 %v2241, %v2237
    %v3142 = vpack.c.b16 %v2242, %v2238
    %v3143 = vpack.c.b16 %v2243, %v2239
    %v3144 = vpack.c.b16 %v2244, %v2240
    %v3145 = vpack.c.b16 %v2249, %v2245
    %v3146 = vpack.c.b16 %v2250, %v2246
    %v3147 = vpack.c.b16 %v2251, %v2247
    %v3148 = vpack.c.b16 %v2252, %v2248
    %v3149 = vpack.c.b16 %v2257, %v2253
    %v3150 = vpack.c.b16 %v2258, %v2254
    %v3151 = vpack.c.b16 %v2259, %v2255
    %v3152 = vpack.c.b16 %v2260, %v2256
    %v3153 = vpack.c.b16 %v2265, %v2261
    %v3154 = vpack.c.b16 %v2266, %v2262
    %v3155 = vpack.c.b16 %v2267, %v2263
    %v3156 = vpack.c.b16 %v2268, %v2264
    %v3157 = vpack.c.b16 %v2273, %v2269
    %v3158 = vpack.c.b16 %v2274, %v2270
    %v3159 = vpack.c.b16 %v2275, %v2271
    %v3160 = vpack.c.b16 %v2276, %v2272
    %v3161 = vpack.c.b16 %v2281, %v2277
    %v3162 = vpack.c.b16 %v2282, %v2278
    %v3163 = vpack.c.b16 %v2283, %v2279
    %v3164 = vpack.c.b16 %v2284, %v2280
    %v3165 = vpack.c.b16 %v2289, %v2285
    %v3166 = vpack.c.b16 %v2290, %v2286
    %v3167 = vpack.c.b16 %v2291, %v2287
    %v3168 = vpack.c.b16 %v2292, %v2288
    %v3169 = vpack.c.b16 %v2297, %v2293
    %v3170 = vpack.c.b16 %v2298, %v2294
    %v3171 = vpack.c.b16 %v2299, %v2295
    %v3172 = vpack.c.b16 %v2300, %v2296
    %v3173 = vpack.c.b16 %v2305, %v2301
    %v3174 = vpack.c.b16 %v2306, %v2302
    %v3175 = vpack.c.b16 %v2307, %v2303
    %v3176 = vpack.c.b16 %v2308, %v2304
    %v3177 = vpack.c.b16 %v2313, %v2309
    %v3178 = vpack.c.b16 %v2314, %v2310
    %v3179 = vpack.c.b16 %v2315, %v2311
    %v3180 = vpack.c.b16 %v2316, %v2312
    %v3181 = vpack.c.b16 %v2321, %v2317
    %v3182 = vpack.c.b16 %v2322, %v2318
    %v3183 = vpack.c.b16 %v2323, %v2319
    %v3184 = vpack.c.b16 %v2324, %v2320
    %v3185 = vpack.c.b16 %v2329, %v2325
    %v3186 = vpack.c.b16 %v2330, %v2326
    %v3187 = vpack.c.b16 %v2331, %v2327
    %v3188 = vpack.c.b16 %v2332, %v2328
    %v3189 = vpack.c.b16 %v2337, %v2333
    %v3190 = vpack.c.b16 %v2338, %v2334
    %v3191 = vpack.c.b16 %v2339, %v2335
    %v3192 = vpack.c.b16 %v2340, %v2336
    %v3193 = vpack.c.b16 %v2345, %v2341
    %v3194 = vpack.c.b16 %v2346, %v2342
    %v3195 = vpack.c.b16 %v2347, %v2343
    %v3196 = vpack.c.b16 %v2348, %v2344
    %v3197 = vpack.c.b16 %v2353, %v2349
    %v3198 = vpack.c.b16 %v2354, %v2350
    %v3199 = vpack.c.b16 %v2355, %v2351
    %v3200 = vpack.c.b16 %v2356, %v2352
    %v3201 = vpack.c.b16 %v2361, %v2357
    %v3202 = vpack.c.b16 %v2362, %v2358
    %v3203 = vpack.c.b16 %v2363, %v2359
    %v3204 = vpack.c.b16 %v2364, %v2360
    %v3205 = vpack.c.b16 %v2369, %v2365
    %v3206 = vpack.c.b16 %v2370, %v2366
    %v3207 = vpack.c.b16 %v2371, %v2367
    %v3208 = vpack.c.b16 %v2372, %v2368
    %v3209 = vpack.c.b16 %v2377, %v2373
    %v3210 = vpack.c.b16 %v2378, %v2374
    %v3211 = vpack.c.b16 %v2379, %v2375
    %v3212 = vpack.c.b16 %v2380, %v2376
    %v3213 = vpack.c.b16 %v2385, %v2381
    %v3214 = vpack.c.b16 %v2386, %v2382
    %v3215 = vpack.c.b16 %v2387, %v2383
    %v3216 = vpack.c.b16 %v2388, %v2384
    %v3217 = vpack.c.b16 %v2393, %v2389
    %v3218 = vpack.c.b16 %v2394, %v2390
    %v3219 = vpack.c.b16 %v2395, %v2391
    %v3220 = vpack.c.b16 %v2396, %v2392
    %v3221 = vpack.c.b16 %v2401, %v2397
    %v3222 = vpack.c.b16 %v2402, %v2398
    %v3223 = vpack.c.b16 %v2403, %v2399
    %v3224 = vpack.c.b16 %v2404, %v2400
    %v3225 = vpack.c.b16 %v2409, %v2405
    %v3226 = vpack.c.b16 %v2410, %v2406
    %v3227 = vpack.c.b16 %v2411, %v2407
    %v3228 = vpack.c.b16 %v2412, %v2408
    %v3229 = vpack.c.b16 %v2417, %v2413
    %v3230 = vpack.c.b16 %v2418, %v2414
    %v3231 = vpack.c.b16 %v2419, %v2415
    %v3232 = vpack.c.b16 %v2420, %v2416
    %v3233 = vpack.c.b16 %v2425, %v2421
    %v3234 = vpack.c.b16 %v2426, %v2422
    %v3235 = vpack.c.b16 %v2427, %v2423
    %v3236 = vpack.c.b16 %v2428, %v2424
    %v3237 = vpack.c.b16 %v2433, %v2429
    %v3238 = vpack.c.b16 %v2434, %v2430
    %v3239 = vpack.c.b16 %v2435, %v2431
    %v3240 = vpack.c.b16 %v2436, %v2432
    %v3241 = vpack.c.b16 %v2441, %v2437
    %v3242 = vpack.c.b16 %v2442, %v2438
    %v3243 = vpack.c.b16 %v2443, %v2439
    %v3244 = vpack.c.b16 %v2444, %v2440
    %v3245 = vpack.c.b16 %v2449, %v2445
    %v3246 = vpack.c.b16 %v2450, %v2446
    %v3247 = vpack.c.b16 %v2451, %v2447
    %v3248 = vpack.c.b16 %v2452, %v2448
    %v3249 = vpack.c.b16 %v2457, %v2453
    %v3250 = vpack.c.b16 %v2458, %v2454
    %v3251 = vpack.c.b16 %v2459, %v2455
    %v3252 = vpack.c.b16 %v2460, %v2456
    %v3253 = vpack.c.b16 %v2465, %v2461
    %v3254 = vpack.c.b16 %v2466, %v2462
    %v3255 = vpack.c.b16 %v2467, %v2463
    %v3256 = vpack.c.b16 %v2468, %v2464
    %v3257 = vpack.c.b16 %v2473, %v2469
    %v3258 = vpack.c.b16 %v2474, %v2470
    %v3259 = vpack.c.b16 %v2475, %v2471
    %v3260 = vpack.c.b16 %v2476, %v2472
    %v3261 = vpack.c.b16 %v2481, %v2477
    %v3262 = vpack.c.b16 %v2482, %v2478
    %v3263 = vpack.c.b16 %v2483, %v2479
    %v3264 = vpack.c.b16 %v2484, %v2480
    %v3265 = vpack.c.b16 %v2489, %v2485
    %v3266 = vpack.c.b16 %v2490, %v2486
    %v3267 = vpack.c.b16 %v2491, %v2487
    %v3268 = vpack.c.b16 %v2492, %v2488
    %v3269 = vpack.c.b16 %v2497, %v2493
    %v3270 = vpack.c.b16 %v2498, %v2494
    %v3271 = vpack.c.b16 %v2499, %v2495
    %v3272 = vpack.c.b16 %v2500, %v2496
    %v3273 = vpack.c.b16 %v2505, %v2501
    %v3274 = vpack.c.b16 %v2506, %v2502
    %v3275 = vpack.c.b16 %v2507, %v2503
    %v3276 = vpack.c.b16 %v2508, %v2504
    %v3277 = vpack.c.b16 %v2513, %v2509
    %v3278 = vpack.c.b16 %v2514, %v2510
    %v3279 = vpack.c.b16 %v2515, %v2511
    %v3280 = vpack.c.b16 %v2516, %v2512
    %v3281 = vpack.c.b16 %v2521, %v2517
    %v3282 = vpack.c.b16 %v2522, %v2518
    %v3283 = vpack.c.b16 %v2523, %v2519
    %v3284 = vpack.c.b16 %v2524, %v2520
    %v3285 = vpack.c.b16 %v2529, %v2525
    %v3286 = vpack.c.b16 %v2530, %v2526
    %v3287 = vpack.c.b16 %v2531, %v2527
    %v3288 = vpack.c.b16 %v2532, %v2528
    %v3289 = vpack.c.b16 %v2537, %v2533
    %v3290 = vpack.c.b16 %v2538, %v2534
    %v3291 = vpack.c.b16 %v2539, %v2535
    %v3292 = vpack.c.b16 %v2540, %v2536
    %v3293 = vpack.c.b16 %v2545, %v2541
    %v3294 = vpack.c.b16 %v2546, %v2542
    %v3295 = vpack.c.b16 %v2547, %v2543
    %v3296 = vpack.c.b16 %v2548, %v2544
    %v3297 = vpack.c.b16 %v2553, %v2549
    %v3298 = vpack.c.b16 %v2554, %v2550
    %v3299 = vpack.c.b16 %v2555, %v2551
    %v3300 = vpack.c.b16 %v2556, %v2552
    %v3301 = vpack.c.b16 %v2561, %v2557
    %v3302 = vpack.c.b16 %v2562, %v2558
    %v3303 = vpack.c.b16 %v2563, %v2559
    %v3304 = vpack.c.b16 %v2564, %v2560
    %v3305 = vpack.c.b16 %v2569, %v2565
    %v3306 = vpack.c.b16 %v2570, %v2566
    %v3307 = vpack.c.b16 %v2571, %v2567
    %v3308 = vpack.c.b16 %v2572, %v2568
    %v3309 = vpack.c.b16 %v2577, %v2573
    %v3310 = vpack.c.b16 %v2578, %v2574
    %v3311 = vpack.c.b16 %v2579, %v2575
    %v3312 = vpack.c.b16 %v2580, %v2576
    %v3313 = vpack.c.b16 %v2585, %v2581
    %v3314 = vpack.c.b16 %v2586, %v2582
    %v3315 = vpack.c.b16 %v2587, %v2583
    %v3316 = vpack.c.b16 %v2588, %v2584
    %v3317 = vpack.c.b16 %v2593, %v2589
    %v3318 = vpack.c.b16 %v2594, %v2590
    %v3319 = vpack.c.b16 %v2595, %v2591
    %v3320 = vpack.c.b16 %v2596, %v2592
    %v3321 = vpack.c.b16 %v2601, %v2597
    %v3322 = vpack.c.b16 %v2602, %v2598
    %v3323 = vpack.c.b16 %v2603, %v2599
    %v3324 = vpack.c.b16 %v2604, %v2600
    %v3325 = vpack.c.b16 %v2609, %v2605
    %v3326 = vpack.c.b16 %v2610, %v2606
    %v3327 = vpack.c.b16 %v2611, %v2607
    %v3328 = vpack.c.b16 %v2612, %v2608
    %v3329 = vpack.c.b16 %v2617, %v2613
    %v3330 = vpack.c.b16 %v2618, %v2614
    %v3331 = vpack.c.b16 %v2619, %v2615
    %v3332 = vpack.c.b16 %v2620, %v2616
    %v3333 = vpack.c.b16 %v2625, %v2621
    %v3334 = vpack.c.b16 %v2626, %v2622
    %v3335 = vpack.c.b16 %v2627, %v2623
    %v3336 = vpack.c.b16 %v2628, %v2624
    %v3337 = vpack.c.b16 %v2633, %v2629
    %v3338 = vpack.c.b16 %v2634, %v2630
    %v3339 = vpack.c.b16 %v2635, %v2631
    %v3340 = vpack.c.b16 %v2636, %v2632
    %v3341 = vpack.c.b16 %v2641, %v2637
    %v3342 = vpack.c.b16 %v2642, %v2638
    %v3343 = vpack.c.b16 %v2643, %v2639
    %v3344 = vpack.c.b16 %v2644, %v2640
    %v3345 = vpack.c.b16 %v2649, %v2645
    %v3346 = vpack.c.b16 %v2650, %v2646
    %v3347 = vpack.c.b16 %v2651, %v2647
    %v3348 = vpack.c.b16 %v2652, %v2648
    %v3349 = vpack.c.b16 %v2657, %v2653
    %v3350 = vpack.c.b16 %v2658, %v2654
    %v3351 = vpack.c.b16 %v2659, %v2655
    %v3352 = vpack.c.b16 %v2660, %v2656
    %v3353 = vpack.c.b16 %v2665, %v2661
    %v3354 = vpack.c.b16 %v2666, %v2662
    %v3355 = vpack.c.b16 %v2667, %v2663
    %v3356 = vpack.c.b16 %v2668, %v2664
    %v3357 = vpack.c.b16 %v2673, %v2669
    %v3358 = vpack.c.b16 %v2674, %v2670
    %v3359 = vpack.c.b16 %v2675, %v2671
    %v3360 = vpack.c.b16 %v2676, %v2672
    %v3361 = vpack.c.b16 %v2681, %v2677
    %v3362 = vpack.c.b16 %v2682, %v2678
    %v3363 = vpack.c.b16 %v2683, %v2679
    %v3364 = vpack.c.b16 %v2684, %v2680
    %v3365 = vpack.c.b16 %v2689, %v2685
    %v3366 = vpack.c.b16 %v2690, %v2686
    %v3367 = vpack.c.b16 %v2691, %v2687
    %v3368 = vpack.c.b16 %v2692, %v2688
    %v3369 = vpack.c.b16 %v2697, %v2693
    %v3370 = vpack.c.b16 %v2698, %v2694
    %v3371 = vpack.c.b16 %v2699, %v2695
    %v3372 = vpack.c.b16 %v2700, %v2696
    %v3373 = vpack.c.b16 %v2705, %v2701
    %v3374 = vpack.c.b16 %v2706, %v2702
    %v3375 = vpack.c.b16 %v2707, %v2703
    %v3376 = vpack.c.b16 %v2708, %v2704
    %v3377 = vpack.c.b16 %v2713, %v2709
    %v3378 = vpack.c.b16 %v2714, %v2710
    %v3379 = vpack.c.b16 %v2715, %v2711
    %v3380 = vpack.c.b16 %v2716, %v2712
    %v3381 = vpack.c.b16 %v2721, %v2717
    %v3382 = vpack.c.b16 %v2722, %v2718
    %v3383 = vpack.c.b16 %v2723, %v2719
    %v3384 = vpack.c.b16 %v2724, %v2720
    %v3385 = vpack.c.b16 %v2729, %v2725
    %v3386 = vpack.c.b16 %v2730, %v2726
    %v3387 = vpack.c.b16 %v2731, %v2727
    %v3388 = vpack.c.b16 %v2732, %v2728
    %v3389 = vpack.c.b16 %v2737, %v2733
    %v3390 = vpack.c.b16 %v2738, %v2734
    %v3391 = vpack.c.b16 %v2739, %v2735
    %v3392 = vpack.c.b16 %v2740, %v2736
    %v3393 = vpack.c.b16 %v2745, %v2741
    %v3394 = vpack.c.b16 %v2746, %v2742
    %v3395 = vpack.c.b16 %v2747, %v2743
    %v3396 = vpack.c.b16 %v2748, %v2744
    %v3397 = vpack.c.b16 %v2753, %v2749
    %v3398 = vpack.c.b16 %v2754, %v2750
    %v3399 = vpack.c.b16 %v2755, %v2751
    %v3400 = vpack.c.b16 %v2756, %v2752
    %v3401 = vpack.c.b16 %v2761, %v2757
    %v3402 = vpack.c.b16 %v2762, %v2758
    %v3403 = vpack.c.b16 %v2763, %v2759
    %v3404 = vpack.c.b16 %v2764, %v2760
    %v3405 = vpack.c.b16 %v2769, %v2765
    %v3406 = vpack.c.b16 %v2770, %v2766
    %v3407 = vpack.c.b16 %v2771, %v2767
    %v3408 = vpack.c.b16 %v2772, %v2768
    %v3409 = vpack.c.b16 %v2777, %v2773
    %v3410 = vpack.c.b16 %v2778, %v2774
    %v3411 = vpack.c.b16 %v2779, %v2775
    %v3412 = vpack.c.b16 %v2780, %v2776
    %v3413 = vpack.c.b16 %v2785, %v2781
    %v3414 = vpack.c.b16 %v2786, %v2782
    %v3415 = vpack.c.b16 %v2787, %v2783
    %v3416 = vpack.c.b16 %v2788, %v2784
    %v3417 = vpack.c.b16 %v2793, %v2789
    %v3418 = vpack.c.b16 %v2794, %v2790
    %v3419 = vpack.c.b16 %v2795, %v2791
    %v3420 = vpack.c.b16 %v2796, %v2792
    %v3421 = vpack.c.b16 %v2801, %v2797
    %v3422 = vpack.c.b16 %v2802, %v2798
    %v3423 = vpack.c.b16 %v2803, %v2799
    %v3424 = vpack.c.b16 %v2804, %v2800
    %v3425 = vpack.c.b16 %v2809, %v2805
    %v3426 = vpack.c.b16 %v2810, %v2806
    %v3427 = vpack.c.b16 %v2811, %v2807
    %v3428 = vpack.c.b16 %v2812, %v2808
    %v3429 = vpack.c.b16 %v2817, %v2813
    %v3430 = vpack.c.b16 %v2818, %v2814
    %v3431 = vpack.c.b16 %v2819, %v2815
    %v3432 = vpack.c.b16 %v2820, %v2816
    %v3433 = vpack.c.b16 %v2825, %v2821
    %v3434 = vpack.c.b16 %v2826, %v2822
    %v3435 = vpack.c.b16 %v2827, %v2823
    %v3436 = vpack.c.b16 %v2828, %v2824
    %4045 = vmatprep.subr.bf16.mxu0 %v2830
    %4046 = vmatpush1.bf16.msra.mxu0 %v2829
    %4047 = vmatprep.subr.bf16.mxu0 %v2834
    %4048 = vmatpush1.bf16.msra.mxu0 %v2833
    %4049 = vmatprep.subr.bf16.mxu0 %v2838
    %4050 = vmatpush1.bf16.msra.mxu0 %v2837
    %4051 = vmatprep.subr.bf16.mxu0 %v2842
    %4052 = vmatpush1.bf16.msra.mxu0 %v2841
    %4053 = vmatprep.subr.bf16.mxu0 %v2846
    %4054 = vmatpush1.bf16.msra.mxu0 %v2845
    %4055 = vmatprep.subr.bf16.mxu0 %v2850
    %4056 = vmatpush1.bf16.msra.mxu0 %v2849
    %4057 = vmatprep.subr.bf16.mxu0 %v2854
    %4058 = vmatpush1.bf16.msra.mxu0 %v2853
    %4059 = vmatprep.subr.bf16.mxu0 %v2858
    %4060 = vmatpush1.bf16.msra.mxu0 %v2857
    %4061 = vmatprep.subr.bf16.mxu0 %v2862
    %4062 = vmatpush1.bf16.msra.mxu0 %v2861
    %4063 = vmatprep.subr.bf16.mxu0 %v2866
    %4064 = vmatpush1.bf16.msra.mxu0 %v2865
    %4065 = vmatprep.subr.bf16.mxu0 %v2870
    %4066 = vmatpush1.bf16.msra.mxu0 %v2869
    %4067 = vmatprep.subr.bf16.mxu0 %v2874
    %4068 = vmatpush1.bf16.msra.mxu0 %v2873
    %4069 = vmatprep.subr.bf16.mxu0 %v2878
    %4070 = vmatpush1.bf16.msra.mxu0 %v2877
    %4071 = vmatprep.subr.bf16.mxu0 %v2882
    %4072 = vmatpush1.bf16.msra.mxu0 %v2881
    %4073 = vmatprep.subr.bf16.mxu0 %v2886
    %4074 = vmatpush1.bf16.msra.mxu0 %v2885
    %4075 = vmatprep.subr.bf16.mxu0 %v2890
    %4076 = vmatpush1.bf16.msra.mxu0 %v2889
    %4077 = vmatprep.mubr.bf16.mxu0 %v357
    %4078 = vmatmul.mubr.bf16.gmra.mrb[0].mxu0 %v356
    %v4079 = vpop.f32.mrb[0].mxu0
    %v4080 = vadd.f32 %v988, %v4079
    %v4081 = vpop.f32.mrb[0].mxu0
    %v4082 = vadd.f32 %v992, %v4081
    %v4083 = vpop.f32.mrb[0].mxu0
    %v4084 = vadd.f32 %v988, %v4083
    %v4085 = vpop.f32.mrb[0].mxu0
    %v4086 = vadd.f32 %v992, %v4085
    %4087 = vdwg.mxu0
    %4088 = vmatprep.subr.bf16.mxu0 %v2894
    %4089 = vmatpush1.bf16.msra.mxu0 %v2893
    %4090 = vmatprep.subr.bf16.mxu0 %v2898
    %4091 = vmatpush1.bf16.msra.mxu0 %v2897
    %4092 = vmatprep.subr.bf16.mxu0 %v2902
    %4093 = vmatpush1.bf16.msra.mxu0 %v2901
    %4094 = vmatprep.subr.bf16.mxu0 %v2906
    %4095 = vmatpush1.bf16.msra.mxu0 %v2905
    %4096 = vmatprep.subr.bf16.mxu0 %v2910
    %4097 = vmatpush1.bf16.msra.mxu0 %v2909
    %4098 = vmatprep.subr.bf16.mxu0 %v2914
    %4099 = vmatpush1.bf16.msra.mxu0 %v2913
    %4100 = vmatprep.subr.bf16.mxu0 %v2918
    %4101 = vmatpush1.bf16.msra.mxu0 %v2917
    %4102 = vmatprep.subr.bf16.mxu0 %v2922
    %4103 = vmatpush1.bf16.msra.mxu0 %v2921
    %4104 = vmatprep.subr.bf16.mxu0 %v2926
    %4105 = vmatpush1.bf16.msra.mxu0 %v2925
    %4106 = vmatprep.subr.bf16.mxu0 %v2930
    %4107 = vmatpush1.bf16.msra.mxu0 %v2929
    %4108 = vmatprep.subr.bf16.mxu0 %v2934
    %4109 = vmatpush1.bf16.msra.mxu0 %v2933
    %4110 = vmatprep.subr.bf16.mxu0 %v2938
    %4111 = vmatpush1.bf16.msra.mxu0 %v2937
    %4112 = vmatprep.subr.bf16.mxu0 %v2942
    %4113 = vmatpush1.bf16.msra.mxu0 %v2941
    %4114 = vmatprep.subr.bf16.mxu0 %v2946
    %4115 = vmatpush1.bf16.msra.mxu0 %v2945
    %4116 = vmatprep.subr.bf16.mxu0 %v2950
    %4117 = vmatpush1.bf16.msra.mxu0 %v2949
    %4118 = vmatprep.subr.bf16.mxu0 %v2954
    %4119 = vmatpush1.bf16.msra.mxu0 %v2953
    %4120 = vmatprep.mubr.bf16.mxu0 %v359
    %4121 = vmatmul.mubr.bf16.gmra.mrb[0].mxu0 %v358
    %v4122 = vpop.f32.mrb[0].mxu0
    %v4123 = vadd.f32 %v4080, %v4122
    %v4124 = vpop.f32.mrb[0].mxu0
    %v4125 = vadd.f32 %v4082, %v4124
    %v4126 = vpop.f32.mrb[0].mxu0
    %v4127 = vadd.f32 %v4084, %v4126
    %v4128 = vpop.f32.mrb[0].mxu0
    %v4129 = vadd.f32 %v4086, %v4128
    %4130 = vdwg.mxu0
    %4131 = vmatprep.subr.bf16.mxu0 %v2958
    %4132 = vmatpush1.bf16.msra.mxu0 %v2957
    %4133 = vmatprep.subr.bf16.mxu0 %v2962
    %4134 = vmatpush1.bf16.msra.mxu0 %v2961
    %4135 = vmatprep.subr.bf16.mxu0 %v2966
    %4136 = vmatpush1.bf16.msra.mxu0 %v2965
    %4137 = vmatprep.subr.bf16.mxu0 %v2970
    %4138 = vmatpush1.bf16.msra.mxu0 %v2969
    %4139 = vmatprep.subr.bf16.mxu0 %v2974
    %4140 = vmatpush1.bf16.msra.mxu0 %v2973
    %4141 = vmatprep.subr.bf16.mxu0 %v2978
    %4142 = vmatpush1.bf16.msra.mxu0 %v2977
    %4143 = vmatprep.subr.bf16.mxu0 %v2982
    %4144 = vmatpush1.bf16.msra.mxu0 %v2981
    %4145 = vmatprep.subr.bf16.mxu0 %v2986
    %4146 = vmatpush1.bf16.msra.mxu0 %v2985
    %4147 = vmatprep.subr.bf16.mxu0 %v2990
    %4148 = vmatpush1.bf16.msra.mxu0 %v2989
    %4149 = vmatprep.subr.bf16.mxu0 %v2994
    %4150 = vmatpush1.bf16.msra.mxu0 %v2993
    %4151 = vmatprep.subr.bf16.mxu0 %v2998
    %4152 = vmatpush1.bf16.msra.mxu0 %v2997
    %4153 = vmatprep.subr.bf16.mxu0 %v3002
    %4154 = vmatpush1.bf16.msra.mxu0 %v3001
    %4155 = vmatprep.subr.bf16.mxu0 %v3006
    %4156 = vmatpush1.bf16.msra.mxu0 %v3005
    %4157 = vmatprep.subr.bf16.mxu0 %v3010
    %4158 = vmatpush1.bf16.msra.mxu0 %v3009
    %4159 = vmatprep.subr.bf16.mxu0 %v3014
    %4160 = vmatpush1.bf16.msra.mxu0 %v3013
    %4161 = vmatprep.subr.bf16.mxu0 %v3018
    %4162 = vmatpush1.bf16.msra.mxu0 %v3017
    %4163 = vmatprep.mubr.bf16.mxu0 %v361
    %4164 = vmatmul.mubr.bf16.gmra.mrb[0].mxu0 %v360
    %v4165 = vpop.f32.mrb[0].mxu0
    %v4166 = vadd.f32 %v4123, %v4165
    %v4167 = vpop.f32.mrb[0].mxu0
    %v4168 = vadd.f32 %v4125, %v4167
    %v4169 = vpop.f32.mrb[0].mxu0
    %v4170 = vadd.f32 %v4127, %v4169
    %v4171 = vpop.f32.mrb[0].mxu0
    %v4172 = vadd.f32 %v4129, %v4171
    %4173 = vdwg.mxu0
    %4174 = vmatprep.subr.bf16.mxu0 %v3022
    %4175 = vmatpush1.bf16.msra.mxu0 %v3021
    %4176 = vmatprep.subr.bf16.mxu0 %v3026
    %4177 = vmatpush1.bf16.msra.mxu0 %v3025
    %4178 = vmatprep.subr.bf16.mxu0 %v3030
    %4179 = vmatpush1.bf16.msra.mxu0 %v3029
    %4180 = vmatprep.subr.bf16.mxu0 %v3034
    %4181 = vmatpush1.bf16.msra.mxu0 %v3033
    %4182 = vmatprep.subr.bf16.mxu0 %v3038
    %4183 = vmatpush1.bf16.msra.mxu0 %v3037
    %4184 = vmatprep.subr.bf16.mxu0 %v3042
    %4185 = vmatpush1.bf16.msra.mxu0 %v3041
    %4186 = vmatprep.subr.bf16.mxu0 %v3046
    %4187 = vmatpush1.bf16.msra.mxu0 %v3045
    %4188 = vmatprep.subr.bf16.mxu0 %v3050
    %4189 = vmatpush1.bf16.msra.mxu0 %v3049
    %4190 = vmatprep.subr.bf16.mxu0 %v3054
    %4191 = vmatpush1.bf16.msra.mxu0 %v3053
    %4192 = vmatprep.subr.bf16.mxu0 %v3058
    %4193 = vmatpush1.bf16.msra.mxu0 %v3057
    %4194 = vmatprep.subr.bf16.mxu0 %v3062
    %4195 = vmatpush1.bf16.msra.mxu0 %v3061
    %4196 = vmatprep.subr.bf16.mxu0 %v3066
    %4197 = vmatpush1.bf16.msra.mxu0 %v3065
    %4198 = vmatprep.subr.bf16.mxu0 %v3070
    %4199 = vmatpush1.bf16.msra.mxu0 %v3069
    %4200 = vmatprep.subr.bf16.mxu0 %v3074
    %4201 = vmatpush1.bf16.msra.mxu0 %v3073
    %4202 = vmatprep.subr.bf16.mxu0 %v3078
    %4203 = vmatpush1.bf16.msra.mxu0 %v3077
    %4204 = vmatprep.subr.bf16.mxu0 %v3082
    %4205 = vmatpush1.bf16.msra.mxu0 %v3081
    %4206 = vmatprep.mubr.bf16.mxu0 %v363
    %4207 = vmatmul.mubr.bf16.gmra.mrb[0].mxu0 %v362
    %v4208 = vpop.f32.mrb[0].mxu0
    %v4209 = vadd.f32 %v4166, %v4208
    %v4210 = vpop.f32.mrb[0].mxu0
    %v4211 = vadd.f32 %v4168, %v4210
    %v4212 = vpop.f32.mrb[0].mxu0
    %v4213 = vadd.f32 %v4170, %v4212
    %v4214 = vpop.f32.mrb[0].mxu0
    %v4215 = vadd.f32 %v4172, %v4214
    %4216 = vdwg.mxu0
    %4217 = vmatprep.subr.bf16.mxu0 %v3086
    %4218 = vmatpush1.bf16.msra.mxu0 %v3085
    %4219 = vmatprep.subr.bf16.mxu0 %v3090
    %4220 = vmatpush1.bf16.msra.mxu0 %v3089
    %4221 = vmatprep.subr.bf16.mxu0 %v3094
    %4222 = vmatpush1.bf16.msra.mxu0 %v3093
    %4223 = vmatprep.subr.bf16.mxu0 %v3098
    %4224 = vmatpush1.bf16.msra.mxu0 %v3097
    %4225 = vmatprep.subr.bf16.mxu0 %v3102
    %4226 = vmatpush1.bf16.msra.mxu0 %v3101
    %4227 = vmatprep.subr.bf16.mxu0 %v3106
    %4228 = vmatpush1.bf16.msra.mxu0 %v3105
    %4229 = vmatprep.subr.bf16.mxu0 %v3110
    %4230 = vmatpush1.bf16.msra.mxu0 %v3109
    %4231 = vmatprep.subr.bf16.mxu0 %v3114
    %4232 = vmatpush1.bf16.msra.mxu0 %v3113
    %4233 = vmatprep.subr.bf16.mxu0 %v3118
    %4234 = vmatpush1.bf16.msra.mxu0 %v3117
    %4235 = vmatprep.subr.bf16.mxu0 %v3122
    %4236 = vmatpush1.bf16.msra.mxu0 %v3121
    %4237 = vmatprep.subr.bf16.mxu0 %v3126
    %4238 = vmatpush1.bf16.msra.mxu0 %v3125
    %4239 = vmatprep.subr.bf16.mxu0 %v3130
    %4240 = vmatpush1.bf16.msra.mxu0 %v3129
    %4241 = vmatprep.subr.bf16.mxu0 %v3134
    %4242 = vmatpush1.bf16.msra.mxu0 %v3133
    %4243 = vmatprep.subr.bf16.mxu0 %v3138
    %4244 = vmatpush1.bf16.msra.mxu0 %v3137
    %4245 = vmatprep.subr.bf16.mxu0 %v3142
    %4246 = vmatpush1.bf16.msra.mxu0 %v3141
    %4247 = vmatprep.subr.bf16.mxu0 %v3146
    %4248 = vmatpush1.bf16.msra.mxu0 %v3145
    %4249 = vmatprep.mubr.bf16.mxu0 %v365
    %4250 = vmatmul.mubr.bf16.gmra.mrb[0].mxu0 %v364
    %v4251 = vpop.f32.mrb[0].mxu0
    %v4252 = vadd.f32 %v4209, %v4251
    %v4253 = vpop.f32.mrb[0].mxu0
    %v4254 = vadd.f32 %v4211, %v4253
    %v4255 = vpop.f32.mrb[0].mxu0
    %v4256 = vadd.f32 %v4213, %v4255
    %v4257 = vpop.f32.mrb[0].mxu0
    %v4258 = vadd.f32 %v4215, %v4257
    %4259 = vdwg.mxu0
    %4260 = vmatprep.subr.bf16.mxu0 %v3150
    %4261 = vmatpush1.bf16.msra.mxu0 %v3149
    %4262 = vmatprep.subr.bf16.mxu0 %v3154
    %4263 = vmatpush1.bf16.msra.mxu0 %v3153
    %4264 = vmatprep.subr.bf16.mxu0 %v3158
    %4265 = vmatpush1.bf16.msra.mxu0 %v3157
    %4266 = vmatprep.subr.bf16.mxu0 %v3162
    %4267 = vmatpush1.bf16.msra.mxu0 %v3161
    %4268 = vmatprep.subr.bf16.mxu0 %v3166
    %4269 = vmatpush1.bf16.msra.mxu0 %v3165
    %4270 = vmatprep.subr.bf16.mxu0 %v3170
    %4271 = vmatpush1.bf16.msra.mxu0 %v3169
    %4272 = vmatprep.subr.bf16.mxu0 %v3174
    %4273 = vmatpush1.bf16.msra.mxu0 %v3173
    %4274 = vmatprep.subr.bf16.mxu0 %v3178
    %4275 = vmatpush1.bf16.msra.mxu0 %v3177
    %4276 = vmatprep.subr.bf16.mxu0 %v3182
    %4277 = vmatpush1.bf16.msra.mxu0 %v3181
    %4278 = vmatprep.subr.bf16.mxu0 %v3186
    %4279 = vmatpush1.bf16.msra.mxu0 %v3185
    %4280 = vmatprep.subr.bf16.mxu0 %v3190
    %4281 = vmatpush1.bf16.msra.mxu0 %v3189
    %4282 = vmatprep.subr.bf16.mxu0 %v3194
    %4283 = vmatpush1.bf16.msra.mxu0 %v3193
    %4284 = vmatprep.subr.bf16.mxu0 %v3198
    %4285 = vmatpush1.bf16.msra.mxu0 %v3197
    %4286 = vmatprep.subr.bf16.mxu0 %v3202
    %4287 = vmatpush1.bf16.msra.mxu0 %v3201
    %4288 = vmatprep.subr.bf16.mxu0 %v3206
    %4289 = vmatpush1.bf16.msra.mxu0 %v3205
    %4290 = vmatprep.subr.bf16.mxu0 %v3210
    %4291 = vmatpush1.bf16.msra.mxu0 %v3209
    %4292 = vmatprep.mubr.bf16.mxu0 %v367
    %4293 = vmatmul.mubr.bf16.gmra.mrb[0].mxu0 %v366
    %v4294 = vpop.f32.mrb[0].mxu0
    %v4295 = vadd.f32 %v4252, %v4294
    %v4296 = vpop.f32.mrb[0].mxu0
    %v4297 = vadd.f32 %v4254, %v4296
    %v4298 = vpop.f32.mrb[0].mxu0
    %v4299 = vadd.f32 %v4256, %v4298
    %v4300 = vpop.f32.mrb[0].mxu0
    %v4301 = vadd.f32 %v4258, %v4300
    %4302 = vdwg.mxu0
    %4303 = vmatprep.subr.bf16.mxu0 %v3214
    %4304 = vmatpush1.bf16.msra.mxu0 %v3213
    %4305 = vmatprep.subr.bf16.mxu0 %v3218
    %4306 = vmatpush1.bf16.msra.mxu0 %v3217
    %4307 = vmatprep.subr.bf16.mxu0 %v3222
    %4308 = vmatpush1.bf16.msra.mxu0 %v3221
    %4309 = vmatprep.subr.bf16.mxu0 %v3226
    %4310 = vmatpush1.bf16.msra.mxu0 %v3225
    %4311 = vmatprep.subr.bf16.mxu0 %v3230
    %4312 = vmatpush1.bf16.msra.mxu0 %v3229
    %4313 = vmatprep.subr.bf16.mxu0 %v3234
    %4314 = vmatpush1.bf16.msra.mxu0 %v3233
    %4315 = vmatprep.subr.bf16.mxu0 %v3238
    %4316 = vmatpush1.bf16.msra.mxu0 %v3237
    %4317 = vmatprep.subr.bf16.mxu0 %v3242
    %4318 = vmatpush1.bf16.msra.mxu0 %v3241
    %4319 = vmatprep.subr.bf16.mxu0 %v3246
    %4320 = vmatpush1.bf16.msra.mxu0 %v3245
    %4321 = vmatprep.subr.bf16.mxu0 %v3250
    %4322 = vmatpush1.bf16.msra.mxu0 %v3249
    %4323 = vmatprep.subr.bf16.mxu0 %v3254
    %4324 = vmatpush1.bf16.msra.mxu0 %v3253
    %4325 = vmatprep.subr.bf16.mxu0 %v3258
    %4326 = vmatpush1.bf16.msra.mxu0 %v3257
    %4327 = vmatprep.subr.bf16.mxu0 %v3262
    %4328 = vmatpush1.bf16.msra.mxu0 %v3261
    %4329 = vmatprep.subr.bf16.mxu0 %v3266
    %4330 = vmatpush1.bf16.msra.mxu0 %v3265
    %4331 = vmatprep.subr.bf16.mxu0 %v3270
    %4332 = vmatpush1.bf16.msra.mxu0 %v3269
    %4333 = vmatprep.subr.bf16.mxu0 %v3274
    %4334 = vmatpush1.bf16.msra.mxu0 %v3273
    %4335 = vmatprep.mubr.bf16.mxu0 %v369
    %4336 = vmatmul.mubr.bf16.gmra.mrb[0].mxu0 %v368
    %v4337 = vpop.f32.mrb[0].mxu0
    %v4338 = vadd.f32 %v4295, %v4337
    %v4339 = vpop.f32.mrb[0].mxu0
    %v4340 = vadd.f32 %v4297, %v4339
    %v4341 = vpop.f32.mrb[0].mxu0
    %v4342 = vadd.f32 %v4299, %v4341
    %v4343 = vpop.f32.mrb[0].mxu0
    %v4344 = vadd.f32 %v4301, %v4343
    %4345 = vdwg.mxu0
    %4346 = vmatprep.subr.bf16.mxu0 %v3278
    %4347 = vmatpush1.bf16.msra.mxu0 %v3277
    %4348 = vmatprep.subr.bf16.mxu0 %v3282
    %4349 = vmatpush1.bf16.msra.mxu0 %v3281
    %4350 = vmatprep.subr.bf16.mxu0 %v3286
    %4351 = vmatpush1.bf16.msra.mxu0 %v3285
    %4352 = vmatprep.subr.bf16.mxu0 %v3290
    %4353 = vmatpush1.bf16.msra.mxu0 %v3289
    %4354 = vmatprep.subr.bf16.mxu0 %v3294
    %4355 = vmatpush1.bf16.msra.mxu0 %v3293
    %4356 = vmatprep.subr.bf16.mxu0 %v3298
    %4357 = vmatpush1.bf16.msra.mxu0 %v3297
    %4358 = vmatprep.subr.bf16.mxu0 %v3302
    %4359 = vmatpush1.bf16.msra.mxu0 %v3301
    %4360 = vmatprep.subr.bf16.mxu0 %v3306
    %4361 = vmatpush1.bf16.msra.mxu0 %v3305
    %4362 = vmatprep.subr.bf16.mxu0 %v3310
    %4363 = vmatpush1.bf16.msra.mxu0 %v3309
    %4364 = vmatprep.subr.bf16.mxu0 %v3314
    %4365 = vmatpush1.bf16.msra.mxu0 %v3313
    %4366 = vmatprep.subr.bf16.mxu0 %v3318
    %4367 = vmatpush1.bf16.msra.mxu0 %v3317
    %4368 = vmatprep.subr.bf16.mxu0 %v3322
    %4369 = vmatpush1.bf16.msra.mxu0 %v3321
    %4370 = vmatprep.subr.bf16.mxu0 %v3326
    %4371 = vmatpush1.bf16.msra.mxu0 %v3325
    %4372 = vmatprep.subr.bf16.mxu0 %v3330
    %4373 = vmatpush1.bf16.msra.mxu0 %v3329
    %4374 = vmatprep.subr.bf16.mxu0 %v3334
    %4375 = vmatpush1.bf16.msra.mxu0 %v3333
    %4376 = vmatprep.subr.bf16.mxu0 %v3338
    %4377 = vmatpush1.bf16.msra.mxu0 %v3337
    %4378 = vmatprep.mubr.bf16.mxu0 %v371
    %4379 = vmatmul.mubr.bf16.gmra.mrb[0].mxu0 %v370
    %v4380 = vpop.f32.mrb[0].mxu0
    %v4381 = vadd.f32 %v4338, %v4380
    %v4382 = vpop.f32.mrb[0].mxu0
    %v4383 = vadd.f32 %v4340, %v4382
    %v4384 = vpop.f32.mrb[0].mxu0
    %v4385 = vadd.f32 %v4342, %v4384
    %v4386 = vpop.f32.mrb[0].mxu0
    %v4387 = vadd.f32 %v4344, %v4386
    %4388 = vdwg.mxu0
    %4389 = vmatprep.subr.bf16.mxu0 %v3342
    %4390 = vmatpush1.bf16.msra.mxu0 %v3341
    %4391 = vmatprep.subr.bf16.mxu0 %v3346
    %4392 = vmatpush1.bf16.msra.mxu0 %v3345
    %4393 = vmatprep.subr.bf16.mxu0 %v3350
    %4394 = vmatpush1.bf16.msra.mxu0 %v3349
    %4395 = vmatprep.subr.bf16.mxu0 %v3354
    %4396 = vmatpush1.bf16.msra.mxu0 %v3353
    %4397 = vmatprep.subr.bf16.mxu0 %v3358
    %4398 = vmatpush1.bf16.msra.mxu0 %v3357
    %4399 = vmatprep.subr.bf16.mxu0 %v3362
    %4400 = vmatpush1.bf16.msra.mxu0 %v3361
    %4401 = vmatprep.subr.bf16.mxu0 %v3366
    %4402 = vmatpush1.bf16.msra.mxu0 %v3365
    %4403 = vmatprep.subr.bf16.mxu0 %v3370
    %4404 = vmatpush1.bf16.msra.mxu0 %v3369
    %4405 = vmatprep.subr.bf16.mxu0 %v3374
    %4406 = vmatpush1.bf16.msra.mxu0 %v3373
    %4407 = vmatprep.subr.bf16.mxu0 %v3378
    %4408 = vmatpush1.bf16.msra.mxu0 %v3377
    %4409 = vmatprep.subr.bf16.mxu0 %v3382
    %4410 = vmatpush1.bf16.msra.mxu0 %v3381
    %4411 = vmatprep.subr.bf16.mxu0 %v3386
    %4412 = vmatpush1.bf16.msra.mxu0 %v3385
    %4413 = vmatprep.subr.bf16.mxu0 %v3390
    %4414 = vmatpush1.bf16.msra.mxu0 %v3389
    %4415 = vmatprep.subr.bf16.mxu0 %v3394
    %4416 = vmatpush1.bf16.msra.mxu0 %v3393
    %4417 = vmatprep.subr.bf16.mxu0 %v3398
    %4418 = vmatpush1.bf16.msra.mxu0 %v3397
    %4419 = vmatprep.subr.bf16.mxu0 %v3402
    %4420 = vmatpush1.bf16.msra.mxu0 %v3401
    %4421 = vmatprep.mubr.bf16.mxu0 %v373
    %4422 = vmatmul.mubr.bf16.gmra.mrb[0].mxu0 %v372
    %v4423 = vpop.f32.mrb[0].mxu0
    %v4424 = vadd.f32 %v4381, %v4423
    %v4425 = vpop.f32.mrb[0].mxu0
    %v4426 = vadd.f32 %v4383, %v4425
    %v4427 = vpop.f32.mrb[0].mxu0
    %v4428 = vadd.f32 %v4385, %v4427
    %v4429 = vpop.f32.mrb[0].mxu0
    %v4430 = vadd.f32 %v4387, %v4429
    %4431 = vdwg.mxu0
    %4432 = vmatprep.subr.bf16.mxu0 %v3406
    %4433 = vmatpush1.bf16.msra.mxu0 %v3405
    %4434 = vmatprep.subr.bf16.mxu0 %v3410
    %4435 = vmatpush1.bf16.msra.mxu0 %v3409
    %4436 = vmatprep.subr.bf16.mxu0 %v3414
    %4437 = vmatpush1.bf16.msra.mxu0 %v3413
    %4438 = vmatprep.subr.bf16.mxu0 %v3418
    %4439 = vmatpush1.bf16.msra.mxu0 %v3417
    %4440 = vmatprep.subr.bf16.mxu0 %v3422
    %4441 = vmatpush1.bf16.msra.mxu0 %v3421
    %4442 = vmatprep.subr.bf16.mxu0 %v3426
    %4443 = vmatpush1.bf16.msra.mxu0 %v3425
    %4444 = vmatprep.subr.bf16.mxu0 %v3430
    %4445 = vmatpush1.bf16.msra.mxu0 %v3429
    %4446 = vmatprep.subr.bf16.mxu0 %v3434
    %4447 = vmatpush1.bf16.msra.mxu0 %v3433
    %4448 = vmatprep.subr.bf16.mxu0 0
    %4449 = vmatpush1.bf16.msra.mxu0 0
    %4450 = vmatprep.subr.bf16.mxu0 0
    %4451 = vmatpush1.bf16.msra.mxu0 0
    %4452 = vmatprep.subr.bf16.mxu0 0
    %4453 = vmatpush1.bf16.msra.mxu0 0
    %4454 = vmatprep.subr.bf16.mxu0 0
    %4455 = vmatpush1.bf16.msra.mxu0 0
    %4456 = vmatprep.subr.bf16.mxu0 0
    %4457 = vmatpush1.bf16.msra.mxu0 0
    %4458 = vmatprep.subr.bf16.mxu0 0
    %4459 = vmatpush1.bf16.msra.mxu0 0
    %4460 = vmatprep.subr.bf16.mxu0 0
    %4461 = vmatpush1.bf16.msra.mxu0 0
    %4462 = vmatprep.subr.bf16.mxu0 0
    %4463 = vmatpush1.bf16.msra.mxu0 0
    %4464 = vmatprep.mubr.bf16.mxu0 0
    %4465 = vmatmul.mubr.bf16.gmra.mrb[0].mxu0 %v374
    %v4466 = vpop.f32.mrb[0].mxu0
    %v4467 = vadd.f32 %v4424, %v4466
    %v4468 = vpop.f32.mrb[0].mxu0
    %v4469 = vadd.f32 %v4426, %v4468
    %v4470 = vpop.f32.mrb[0].mxu0
    %v4471 = vadd.f32 %v4428, %v4470
    %v4472 = vpop.f32.mrb[0].mxu0
    %v4473 = vadd.f32 %v4430, %v4472
    %4474 = vdwg.mxu0
    %4475 = vmatprep.subr.bf16.mxu0 %v2832
    %4476 = vmatpush1.bf16.msra.mxu0 %v2831
    %4477 = vmatprep.subr.bf16.mxu0 %v2836
    %4478 = vmatpush1.bf16.msra.mxu0 %v2835
    %4479 = vmatprep.subr.bf16.mxu0 %v2840
    %4480 = vmatpush1.bf16.msra.mxu0 %v2839
    %4481 = vmatprep.subr.bf16.mxu0 %v2844
    %4482 = vmatpush1.bf16.msra.mxu0 %v2843
    %4483 = vmatprep.subr.bf16.mxu0 %v2848
    %4484 = vmatpush1.bf16.msra.mxu0 %v2847
    %4485 = vmatprep.subr.bf16.mxu0 %v2852
    %4486 = vmatpush1.bf16.msra.mxu0 %v2851
    %4487 = vmatprep.subr.bf16.mxu0 %v2856
    %4488 = vmatpush1.bf16.msra.mxu0 %v2855
    %4489 = vmatprep.subr.bf16.mxu0 %v2860
    %4490 = vmatpush1.bf16.msra.mxu0 %v2859
    %4491 = vmatprep.subr.bf16.mxu0 %v2864
    %4492 = vmatpush1.bf16.msra.mxu0 %v2863
    %4493 = vmatprep.subr.bf16.mxu0 %v2868
    %4494 = vmatpush1.bf16.msra.mxu0 %v2867
    %4495 = vmatprep.subr.bf16.mxu0 %v2872
    %4496 = vmatpush1.bf16.msra.mxu0 %v2871
    %4497 = vmatprep.subr.bf16.mxu0 %v2876
    %4498 = vmatpush1.bf16.msra.mxu0 %v2875
    %4499 = vmatprep.subr.bf16.mxu0 %v2880
    %4500 = vmatpush1.bf16.msra.mxu0 %v2879
    %4501 = vmatprep.subr.bf16.mxu0 %v2884
    %4502 = vmatpush1.bf16.msra.mxu0 %v2883
    %4503 = vmatprep.subr.bf16.mxu0 %v2888
    %4504 = vmatpush1.bf16.msra.mxu0 %v2887
    %4505 = vmatprep.subr.bf16.mxu0 %v2892
    %4506 = vmatpush1.bf16.msra.mxu0 %v2891
    %4507 = vmatprep.mubr.bf16.mxu0 %v357
    %4508 = vmatmul.mubr.bf16.gmra.mrb[0].mxu0 %v356
    %v4509 = vpop.f32.mrb[0].mxu0
    %v4510 = vadd.f32 %v996, %v4509
    %v4511 = vpop.f32.mrb[0].mxu0
    %v4512 = vadd.f32 %v1000, %v4511
    %v4513 = vpop.f32.mrb[0].mxu0
    %v4514 = vadd.f32 %v996, %v4513
    %v4515 = vpop.f32.mrb[0].mxu0
    %v4516 = vadd.f32 %v1000, %v4515
    %4517 = vdwg.mxu0
    %4518 = vmatprep.subr.bf16.mxu0 %v2896
    %4519 = vmatpush1.bf16.msra.mxu0 %v2895
    %4520 = vmatprep.subr.bf16.mxu0 %v2900
    %4521 = vmatpush1.bf16.msra.mxu0 %v2899
    %4522 = vmatprep.subr.bf16.mxu0 %v2904
    %4523 = vmatpush1.bf16.msra.mxu0 %v2903
    %4524 = vmatprep.subr.bf16.mxu0 %v2908
    %4525 = vmatpush1.bf16.msra.mxu0 %v2907
    %4526 = vmatprep.subr.bf16.mxu0 %v2912
    %4527 = vmatpush1.bf16.msra.mxu0 %v2911
    %4528 = vmatprep.subr.bf16.mxu0 %v2916
    %4529 = vmatpush1.bf16.msra.mxu0 %v2915
    %4530 = vmatprep.subr.bf16.mxu0 %v2920
    %4531 = vmatpush1.bf16.msra.mxu0 %v2919
    %4532 = vmatprep.subr.bf16.mxu0 %v2924
    %4533 = vmatpush1.bf16.msra.mxu0 %v2923
    %4534 = vmatprep.subr.bf16.mxu0 %v2928
    %4535 = vmatpush1.bf16.msra.mxu0 %v2927
    %4536 = vmatprep.subr.bf16.mxu0 %v2932
    %4537 = vmatpush1.bf16.msra.mxu0 %v2931
    %4538 = vmatprep.subr.bf16.mxu0 %v2936
    %4539 = vmatpush1.bf16.msra.mxu0 %v2935
    %4540 = vmatprep.subr.bf16.mxu0 %v2940
    %4541 = vmatpush1.bf16.msra.mxu0 %v2939
    %4542 = vmatprep.subr.bf16.mxu0 %v2944
    %4543 = vmatpush1.bf16.msra.mxu0 %v2943
    %4544 = vmatprep.subr.bf16.mxu0 %v2948
    %4545 = vmatpush1.bf16.msra.mxu0 %v2947
    %4546 = vmatprep.subr.bf16.mxu0 %v2952
    %4547 = vmatpush1.bf16.msra.mxu0 %v2951
    %4548 = vmatprep.subr.bf16.mxu0 %v2956
    %4549 = vmatpush1.bf16.msra.mxu0 %v2955
    %4550 = vmatprep.mubr.bf16.mxu0 %v359
    %4551 = vmatmul.mubr.bf16.gmra.mrb[0].mxu0 %v358
    %v4552 = vpop.f32.mrb[0].mxu0
    %v4553 = vadd.f32 %v4510, %v4552
    %v4554 = vpop.f32.mrb[0].mxu0
    %v4555 = vadd.f32 %v4512, %v4554
    %v4556 = vpop.f32.mrb[0].mxu0
    %v4557 = vadd.f32 %v4514, %v4556
    %v4558 = vpop.f32.mrb[0].mxu0
    %v4559 = vadd.f32 %v4516, %v4558
    %4560 = vdwg.mxu0
    %4561 = vmatprep.subr.bf16.mxu0 %v2960
    %4562 = vmatpush1.bf16.msra.mxu0 %v2959
    %4563 = vmatprep.subr.bf16.mxu0 %v2964
    %4564 = vmatpush1.bf16.msra.mxu0 %v2963
    %4565 = vmatprep.subr.bf16.mxu0 %v2968
    %4566 = vmatpush1.bf16.msra.mxu0 %v2967
    %4567 = vmatprep.subr.bf16.mxu0 %v2972
    %4568 = vmatpush1.bf16.msra.mxu0 %v2971
    %4569 = vmatprep.subr.bf16.mxu0 %v2976
    %4570 = vmatpush1.bf16.msra.mxu0 %v2975
    %4571 = vmatprep.subr.bf16.mxu0 %v2980
    %4572 = vmatpush1.bf16.msra.mxu0 %v2979
    %4573 = vmatprep.subr.bf16.mxu0 %v2984
    %4574 = vmatpush1.bf16.msra.mxu0 %v2983
    %4575 = vmatprep.subr.bf16.mxu0 %v2988
    %4576 = vmatpush1.bf16.msra.mxu0 %v2987
    %4577 = vmatprep.subr.bf16.mxu0 %v2992
    %4578 = vmatpush1.bf16.msra.mxu0 %v2991
    %4579 = vmatprep.subr.bf16.mxu0 %v2996
    %4580 = vmatpush1.bf16.msra.mxu0 %v2995
    %4581 = vmatprep.subr.bf16.mxu0 %v3000
    %4582 = vmatpush1.bf16.msra.mxu0 %v2999
    %4583 = vmatprep.subr.bf16.mxu0 %v3004
    %4584 = vmatpush1.bf16.msra.mxu0 %v3003
    %4585 = vmatprep.subr.bf16.mxu0 %v3008
    %4586 = vmatpush1.bf16.msra.mxu0 %v3007
    %4587 = vmatprep.subr.bf16.mxu0 %v3012
    %4588 = vmatpush1.bf16.msra.mxu0 %v3011
    %4589 = vmatprep.subr.bf16.mxu0 %v3016
    %4590 = vmatpush1.bf16.msra.mxu0 %v3015
    %4591 = vmatprep.subr.bf16.mxu0 %v3020
    %4592 = vmatpush1.bf16.msra.mxu0 %v3019
    %4593 = vmatprep.mubr.bf16.mxu0 %v361
    %4594 = vmatmul.mubr.bf16.gmra.mrb[0].mxu0 %v360
    %v4595 = vpop.f32.mrb[0].mxu0
    %v4596 = vadd.f32 %v4553, %v4595
    %v4597 = vpop.f32.mrb[0].mxu0
    %v4598 = vadd.f32 %v4555, %v4597
    %v4599 = vpop.f32.mrb[0].mxu0
    %v4600 = vadd.f32 %v4557, %v4599
    %v4601 = vpop.f32.mrb[0].mxu0
    %v4602 = vadd.f32 %v4559, %v4601
    %4603 = vdwg.mxu0
    %4604 = vmatprep.subr.bf16.mxu0 %v3024
    %4605 = vmatpush1.bf16.msra.mxu0 %v3023
    %4606 = vmatprep.subr.bf16.mxu0 %v3028
    %4607 = vmatpush1.bf16.msra.mxu0 %v3027
    %4608 = vmatprep.subr.bf16.mxu0 %v3032
    %4609 = vmatpush1.bf16.msra.mxu0 %v3031
    %4610 = vmatprep.subr.bf16.mxu0 %v3036
    %4611 = vmatpush1.bf16.msra.mxu0 %v3035
    %4612 = vmatprep.subr.bf16.mxu0 %v3040
    %4613 = vmatpush1.bf16.msra.mxu0 %v3039
    %4614 = vmatprep.subr.bf16.mxu0 %v3044
    %4615 = vmatpush1.bf16.msra.mxu0 %v3043
    %4616 = vmatprep.subr.bf16.mxu0 %v3048
    %4617 = vmatpush1.bf16.msra.mxu0 %v3047
    %4618 = vmatprep.subr.bf16.mxu0 %v3052
    %4619 = vmatpush1.bf16.msra.mxu0 %v3051
    %4620 = vmatprep.subr.bf16.mxu0 %v3056
    %4621 = vmatpush1.bf16.msra.mxu0 %v3055
    %4622 = vmatprep.subr.bf16.mxu0 %v3060
    %4623 = vmatpush1.bf16.msra.mxu0 %v3059
    %4624 = vmatprep.subr.bf16.mxu0 %v3064
    %4625 = vmatpush1.bf16.msra.mxu0 %v3063
    %4626 = vmatprep.subr.bf16.mxu0 %v3068
    %4627 = vmatpush1.bf16.msra.mxu0 %v3067
    %4628 = vmatprep.subr.bf16.mxu0 %v3072
    %4629 = vmatpush1.bf16.msra.mxu0 %v3071
    %4630 = vmatprep.subr.bf16.mxu0 %v3076
    %4631 = vmatpush1.bf16.msra.mxu0 %v3075
    %4632 = vmatprep.subr.bf16.mxu0 %v3080
    %4633 = vmatpush1.bf16.msra.mxu0 %v3079
    %4634 = vmatprep.subr.bf16.mxu0 %v3084
    %4635 = vmatpush1.bf16.msra.mxu0 %v3083
    %4636 = vmatprep.mubr.bf16.mxu0 %v363
    %4637 = vmatmul.mubr.bf16.gmra.mrb[0].mxu0 %v362
    %v4638 = vpop.f32.mrb[0].mxu0
    %v4639 = vadd.f32 %v4596, %v4638
    %v4640 = vpop.f32.mrb[0].mxu0
    %v4641 = vadd.f32 %v4598, %v4640
    %v4642 = vpop.f32.mrb[0].mxu0
    %v4643 = vadd.f32 %v4600, %v4642
    %v4644 = vpop.f32.mrb[0].mxu0
    %v4645 = vadd.f32 %v4602, %v4644
    %4646 = vdwg.mxu0
    %4647 = vmatprep.subr.bf16.mxu0 %v3088
    %4648 = vmatpush1.bf16.msra.mxu0 %v3087
    %4649 = vmatprep.subr.bf16.mxu0 %v3092
    %4650 = vmatpush1.bf16.msra.mxu0 %v3091
    %4651 = vmatprep.subr.bf16.mxu0 %v3096
    %4652 = vmatpush1.bf16.msra.mxu0 %v3095
    %4653 = vmatprep.subr.bf16.mxu0 %v3100
    %4654 = vmatpush1.bf16.msra.mxu0 %v3099
    %4655 = vmatprep.subr.bf16.mxu0 %v3104
    %4656 = vmatpush1.bf16.msra.mxu0 %v3103
    %4657 = vmatprep.subr.bf16.mxu0 %v3108
    %4658 = vmatpush1.bf16.msra.mxu0 %v3107
    %4659 = vmatprep.subr.bf16.mxu0 %v3112
    %4660 = vmatpush1.bf16.msra.mxu0 %v3111
    %4661 = vmatprep.subr.bf16.mxu0 %v3116
    %4662 = vmatpush1.bf16.msra.mxu0 %v3115
    %4663 = vmatprep.subr.bf16.mxu0 %v3120
    %4664 = vmatpush1.bf16.msra.mxu0 %v3119
    %4665 = vmatprep.subr.bf16.mxu0 %v3124
    %4666 = vmatpush1.bf16.msra.mxu0 %v3123
    %4667 = vmatprep.subr.bf16.mxu0 %v3128
    %4668 = vmatpush1.bf16.msra.mxu0 %v3127
    %4669 = vmatprep.subr.bf16.mxu0 %v3132
    %4670 = vmatpush1.bf16.msra.mxu0 %v3131
    %4671 = vmatprep.subr.bf16.mxu0 %v3136
    %4672 = vmatpush1.bf16.msra.mxu0 %v3135
    %4673 = vmatprep.subr.bf16.mxu0 %v3140
    %4674 = vmatpush1.bf16.msra.mxu0 %v3139
    %4675 = vmatprep.subr.bf16.mxu0 %v3144
    %4676 = vmatpush1.bf16.msra.mxu0 %v3143
    %4677 = vmatprep.subr.bf16.mxu0 %v3148
    %4678 = vmatpush1.bf16.msra.mxu0 %v3147
    %4679 = vmatprep.mubr.bf16.mxu0 %v365
    %4680 = vmatmul.mubr.bf16.gmra.mrb[0].mxu0 %v364
    %v4681 = vpop.f32.mrb[0].mxu0
    %v4682 = vadd.f32 %v4639, %v4681
    %v4683 = vpop.f32.mrb[0].mxu0
    %v4684 = vadd.f32 %v4641, %v4683
    %v4685 = vpop.f32.mrb[0].mxu0
    %v4686 = vadd.f32 %v4643, %v4685
    %v4687 = vpop.f32.mrb[0].mxu0
    %v4688 = vadd.f32 %v4645, %v4687
    %4689 = vdwg.mxu0
    %4690 = vmatprep.subr.bf16.mxu0 %v3152
    %4691 = vmatpush1.bf16.msra.mxu0 %v3151
    %4692 = vmatprep.subr.bf16.mxu0 %v3156
    %4693 = vmatpush1.bf16.msra.mxu0 %v3155
    %4694 = vmatprep.subr.bf16.mxu0 %v3160
    %4695 = vmatpush1.bf16.msra.mxu0 %v3159
    %4696 = vmatprep.subr.bf16.mxu0 %v3164
    %4697 = vmatpush1.bf16.msra.mxu0 %v3163
    %4698 = vmatprep.subr.bf16.mxu0 %v3168
    %4699 = vmatpush1.bf16.msra.mxu0 %v3167
    %4700 = vmatprep.subr.bf16.mxu0 %v3172
    %4701 = vmatpush1.bf16.msra.mxu0 %v3171
    %4702 = vmatprep.subr.bf16.mxu0 %v3176
    %4703 = vmatpush1.bf16.msra.mxu0 %v3175
    %4704 = vmatprep.subr.bf16.mxu0 %v3180
    %4705 = vmatpush1.bf16.msra.mxu0 %v3179
    %4706 = vmatprep.subr.bf16.mxu0 %v3184
    %4707 = vmatpush1.bf16.msra.mxu0 %v3183
    %4708 = vmatprep.subr.bf16.mxu0 %v3188
    %4709 = vmatpush1.bf16.msra.mxu0 %v3187
    %4710 = vmatprep.subr.bf16.mxu0 %v3192
    %4711 = vmatpush1.bf16.msra.mxu0 %v3191
    %4712 = vmatprep.subr.bf16.mxu0 %v3196
    %4713 = vmatpush1.bf16.msra.mxu0 %v3195
    %4714 = vmatprep.subr.bf16.mxu0 %v3200
    %4715 = vmatpush1.bf16.msra.mxu0 %v3199
    %4716 = vmatprep.subr.bf16.mxu0 %v3204
    %4717 = vmatpush1.bf16.msra.mxu0 %v3203
    %4718 = vmatprep.subr.bf16.mxu0 %v3208
    %4719 = vmatpush1.bf16.msra.mxu0 %v3207
    %4720 = vmatprep.subr.bf16.mxu0 %v3212
    %4721 = vmatpush1.bf16.msra.mxu0 %v3211
    %4722 = vmatprep.mubr.bf16.mxu0 %v367
    %4723 = vmatmul.mubr.bf16.gmra.mrb[0].mxu0 %v366
    %v4724 = vpop.f32.mrb[0].mxu0
    %v4725 = vadd.f32 %v4682, %v4724
    %v4726 = vpop.f32.mrb[0].mxu0
    %v4727 = vadd.f32 %v4684, %v4726
    %v4728 = vpop.f32.mrb[0].mxu0
    %v4729 = vadd.f32 %v4686, %v4728
    %v4730 = vpop.f32.mrb[0].mxu0
    %v4731 = vadd.f32 %v4688, %v4730
    %4732 = vdwg.mxu0
    %4733 = vmatprep.subr.bf16.mxu0 %v3216
    %4734 = vmatpush1.bf16.msra.mxu0 %v3215
    %4735 = vmatprep.subr.bf16.mxu0 %v3220
    %4736 = vmatpush1.bf16.msra.mxu0 %v3219
    %4737 = vmatprep.subr.bf16.mxu0 %v3224
    %4738 = vmatpush1.bf16.msra.mxu0 %v3223
    %4739 = vmatprep.subr.bf16.mxu0 %v3228
    %4740 = vmatpush1.bf16.msra.mxu0 %v3227
    %4741 = vmatprep.subr.bf16.mxu0 %v3232
    %4742 = vmatpush1.bf16.msra.mxu0 %v3231
    %4743 = vmatprep.subr.bf16.mxu0 %v3236
    %4744 = vmatpush1.bf16.msra.mxu0 %v3235
    %4745 = vmatprep.subr.bf16.mxu0 %v3240
    %4746 = vmatpush1.bf16.msra.mxu0 %v3239
    %4747 = vmatprep.subr.bf16.mxu0 %v3244
    %4748 = vmatpush1.bf16.msra.mxu0 %v3243
    %4749 = vmatprep.subr.bf16.mxu0 %v3248
    %4750 = vmatpush1.bf16.msra.mxu0 %v3247
    %4751 = vmatprep.subr.bf16.mxu0 %v3252
    %4752 = vmatpush1.bf16.msra.mxu0 %v3251
    %4753 = vmatprep.subr.bf16.mxu0 %v3256
    %4754 = vmatpush1.bf16.msra.mxu0 %v3255
    %4755 = vmatprep.subr.bf16.mxu0 %v3260
    %4756 = vmatpush1.bf16.msra.mxu0 %v3259
    %4757 = vmatprep.subr.bf16.mxu0 %v3264
    %4758 = vmatpush1.bf16.msra.mxu0 %v3263
    %4759 = vmatprep.subr.bf16.mxu0 %v3268
    %4760 = vmatpush1.bf16.msra.mxu0 %v3267
    %4761 = vmatprep.subr.bf16.mxu0 %v3272
    %4762 = vmatpush1.bf16.msra.mxu0 %v3271
    %4763 = vmatprep.subr.bf16.mxu0 %v3276
    %4764 = vmatpush1.bf16.msra.mxu0 %v3275
    %4765 = vmatprep.mubr.bf16.mxu0 %v369
    %4766 = vmatmul.mubr.bf16.gmra.mrb[0].mxu0 %v368
    %v4767 = vpop.f32.mrb[0].mxu0
    %v4768 = vadd.f32 %v4725, %v4767
    %v4769 = vpop.f32.mrb[0].mxu0
    %v4770 = vadd.f32 %v4727, %v4769
    %v4771 = vpop.f32.mrb[0].mxu0
    %v4772 = vadd.f32 %v4729, %v4771
    %v4773 = vpop.f32.mrb[0].mxu0
    %v4774 = vadd.f32 %v4731, %v4773
    %4775 = vdwg.mxu0
    %4776 = vmatprep.subr.bf16.mxu0 %v3280
    %4777 = vmatpush1.bf16.msra.mxu0 %v3279
    %4778 = vmatprep.subr.bf16.mxu0 %v3284
    %4779 = vmatpush1.bf16.msra.mxu0 %v3283
    %4780 = vmatprep.subr.bf16.mxu0 %v3288
    %4781 = vmatpush1.bf16.msra.mxu0 %v3287
    %4782 = vmatprep.subr.bf16.mxu0 %v3292
    %4783 = vmatpush1.bf16.msra.mxu0 %v3291
    %4784 = vmatprep.subr.bf16.mxu0 %v3296
    %4785 = vmatpush1.bf16.msra.mxu0 %v3295
    %4786 = vmatprep.subr.bf16.mxu0 %v3300
    %4787 = vmatpush1.bf16.msra.mxu0 %v3299
    %4788 = vmatprep.subr.bf16.mxu0 %v3304
    %4789 = vmatpush1.bf16.msra.mxu0 %v3303
    %4790 = vmatprep.subr.bf16.mxu0 %v3308
    %4791 = vmatpush1.bf16.msra.mxu0 %v3307
    %4792 = vmatprep.subr.bf16.mxu0 %v3312
    %4793 = vmatpush1.bf16.msra.mxu0 %v3311
    %4794 = vmatprep.subr.bf16.mxu0 %v3316
    %4795 = vmatpush1.bf16.msra.mxu0 %v3315
    %4796 = vmatprep.subr.bf16.mxu0 %v3320
    %4797 = vmatpush1.bf16.msra.mxu0 %v3319
    %4798 = vmatprep.subr.bf16.mxu0 %v3324
    %4799 = vmatpush1.bf16.msra.mxu0 %v3323
    %4800 = vmatprep.subr.bf16.mxu0 %v3328
    %4801 = vmatpush1.bf16.msra.mxu0 %v3327
    %4802 = vmatprep.subr.bf16.mxu0 %v3332
    %4803 = vmatpush1.bf16.msra.mxu0 %v3331
    %4804 = vmatprep.subr.bf16.mxu0 %v3336
    %4805 = vmatpush1.bf16.msra.mxu0 %v3335
    %4806 = vmatprep.subr.bf16.mxu0 %v3340
    %4807 = vmatpush1.bf16.msra.mxu0 %v3339
    %4808 = vmatprep.mubr.bf16.mxu0 %v371
    %4809 = vmatmul.mubr.bf16.gmra.mrb[0].mxu0 %v370
    %v4810 = vpop.f32.mrb[0].mxu0
    %v4811 = vadd.f32 %v4768, %v4810
    %v4812 = vpop.f32.mrb[0].mxu0
    %v4813 = vadd.f32 %v4770, %v4812
    %v4814 = vpop.f32.mrb[0].mxu0
    %v4815 = vadd.f32 %v4772, %v4814
    %v4816 = vpop.f32.mrb[0].mxu0
    %v4817 = vadd.f32 %v4774, %v4816
    %4818 = vdwg.mxu0
    %4819 = vmatprep.subr.bf16.mxu0 %v3344
    %4820 = vmatpush1.bf16.msra.mxu0 %v3343
    %4821 = vmatprep.subr.bf16.mxu0 %v3348
    %4822 = vmatpush1.bf16.msra.mxu0 %v3347
    %4823 = vmatprep.subr.bf16.mxu0 %v3352
    %4824 = vmatpush1.bf16.msra.mxu0 %v3351
    %4825 = vmatprep.subr.bf16.mxu0 %v3356
    %4826 = vmatpush1.bf16.msra.mxu0 %v3355
    %4827 = vmatprep.subr.bf16.mxu0 %v3360
    %4828 = vmatpush1.bf16.msra.mxu0 %v3359
    %4829 = vmatprep.subr.bf16.mxu0 %v3364
    %4830 = vmatpush1.bf16.msra.mxu0 %v3363
    %4831 = vmatprep.subr.bf16.mxu0 %v3368
    %4832 = vmatpush1.bf16.msra.mxu0 %v3367
    %4833 = vmatprep.subr.bf16.mxu0 %v3372
    %4834 = vmatpush1.bf16.msra.mxu0 %v3371
    %4835 = vmatprep.subr.bf16.mxu0 %v3376
    %4836 = vmatpush1.bf16.msra.mxu0 %v3375
    %4837 = vmatprep.subr.bf16.mxu0 %v3380
    %4838 = vmatpush1.bf16.msra.mxu0 %v3379
    %4839 = vmatprep.subr.bf16.mxu0 %v3384
    %4840 = vmatpush1.bf16.msra.mxu0 %v3383
    %4841 = vmatprep.subr.bf16.mxu0 %v3388
    %4842 = vmatpush1.bf16.msra.mxu0 %v3387
    %4843 = vmatprep.subr.bf16.mxu0 %v3392
    %4844 = vmatpush1.bf16.msra.mxu0 %v3391
    %4845 = vmatprep.subr.bf16.mxu0 %v3396
    %4846 = vmatpush1.bf16.msra.mxu0 %v3395
    %4847 = vmatprep.subr.bf16.mxu0 %v3400
    %4848 = vmatpush1.bf16.msra.mxu0 %v3399
    %4849 = vmatprep.subr.bf16.mxu0 %v3404
    %4850 = vmatpush1.bf16.msra.mxu0 %v3403
    %4851 = vmatprep.mubr.bf16.mxu0 %v373
    %4852 = vmatmul.mubr.bf16.gmra.mrb[0].mxu0 %v372
    %v4853 = vpop.f32.mrb[0].mxu0
    %v4854 = vadd.f32 %v4811, %v4853
    %v4855 = vpop.f32.mrb[0].mxu0
    %v4856 = vadd.f32 %v4813, %v4855
    %v4857 = vpop.f32.mrb[0].mxu0
    %v4858 = vadd.f32 %v4815, %v4857
    %v4859 = vpop.f32.mrb[0].mxu0
    %v4860 = vadd.f32 %v4817, %v4859
    %4861 = vdwg.mxu0
    %4862 = vmatprep.subr.bf16.mxu0 %v3408
    %4863 = vmatpush1.bf16.msra.mxu0 %v3407
    %4864 = vmatprep.subr.bf16.mxu0 %v3412
    %4865 = vmatpush1.bf16.msra.mxu0 %v3411
    %4866 = vmatprep.subr.bf16.mxu0 %v3416
    %4867 = vmatpush1.bf16.msra.mxu0 %v3415
    %4868 = vmatprep.subr.bf16.mxu0 %v3420
    %4869 = vmatpush1.bf16.msra.mxu0 %v3419
    %4870 = vmatprep.subr.bf16.mxu0 %v3424
    %4871 = vmatpush1.bf16.msra.mxu0 %v3423
    %4872 = vmatprep.subr.bf16.mxu0 %v3428
    %4873 = vmatpush1.bf16.msra.mxu0 %v3427
    %4874 = vmatprep.subr.bf16.mxu0 %v3432
    %4875 = vmatpush1.bf16.msra.mxu0 %v3431
    %4876 = vmatprep.subr.bf16.mxu0 %v3436
    %4877 = vmatpush1.bf16.msra.mxu0 %v3435
    %4878 = vmatprep.subr.bf16.mxu0 0
    %4879 = vmatpush1.bf16.msra.mxu0 0
    %4880 = vmatprep.subr.bf16.mxu0 0
    %4881 = vmatpush1.bf16.msra.mxu0 0
    %4882 = vmatprep.subr.bf16.mxu0 0
    %4883 = vmatpush1.bf16.msra.mxu0 0
    %4884 = vmatprep.subr.bf16.mxu0 0
    %4885 = vmatpush1.bf16.msra.mxu0 0
    %4886 = vmatprep.subr.bf16.mxu0 0
    %4887 = vmatpush1.bf16.msra.mxu0 0
    %4888 = vmatprep.subr.bf16.mxu0 0
    %4889 = vmatpush1.bf16.msra.mxu0 0
    %4890 = vmatprep.subr.bf16.mxu0 0
    %4891 = vmatpush1.bf16.msra.mxu0 0
    %4892 = vmatprep.subr.bf16.mxu0 0
    %4893 = vmatpush1.bf16.msra.mxu0 0
    %4894 = vmatprep.mubr.bf16.mxu0 0
    %4895 = vmatmul.mubr.bf16.gmra.mrb[0].mxu0 %v374
    %v4896 = vpop.f32.mrb[0].mxu0
    %v4897 = vadd.f32 %v4854, %v4896
    %v4898 = vpop.f32.mrb[0].mxu0
    %v4899 = vadd.f32 %v4856, %v4898
    %v4900 = vpop.f32.mrb[0].mxu0
    %v4901 = vadd.f32 %v4858, %v4900
    %v4902 = vpop.f32.mrb[0].mxu0
    %v4903 = vadd.f32 %v4860, %v4902
    %4904 = vdwg.mxu0
    %v4905 = vmax.f32 %v4467, 0.0
    %v4906 = vmax.f32 %v4469, 0.0
    %v4907 = vmax.f32 %v4897, 0.0
    %v4908 = vmax.f32 %v4899, 0.0
    %v4909 = vmax.f32 %v4471, 0.0
    %v4910 = vmax.f32 %v4473, 0.0
    %v4911 = vmax.f32 %v4901, 0.0
    %v4912 = vmax.f32 %v4903, 0.0
    %v4913 = vpack.c.bf16 %v4909, %v4905
    %v4914 = vpack.c.bf16 %v4910, %v4906
    %v4915 = vpack.c.bf16 %v4911, %v4907
    %v4916 = vpack.c.bf16 %v4912, %v4908
    %v4917 = vld [vmem:[#allocation7] sm:$0xff]
    %v4918 = vld [vmem:[#allocation7 + $0x8] sm:$0xff]
    %v4919 = vld [vmem:[#allocation7 + $0x10] sm:$0xff]
    %v4920 = vld [vmem:[#allocation7 + $0x18] sm:$0xff]
    %v4921 = vld [vmem:[#allocation7 + $0x20] sm:$0xff]
    %v4922 = vld [vmem:[#allocation7 + $0x28] sm:$0xff]
    %v4923 = vld [vmem:[#allocation7 + $0x30] sm:$0xff]
    %v4924 = vld [vmem:[#allocation7 + $0x38] sm:$0xff]
    %v4925 = vld [vmem:[#allocation7 + $0x40] sm:$0xff]
    %v4926 = vld [vmem:[#allocation7 + $0x48] sm:$0xff]
    %v4927 = vld [vmem:[#allocation7 + $0x50] sm:$0xff]
    %v4928 = vld [vmem:[#allocation7 + $0x58] sm:$0xff]
    %v4929 = vld [vmem:[#allocation7 + $0x60] sm:$0xff]
    %v4930 = vld [vmem:[#allocation7 + $0x68] sm:$0xff]
    %v4931 = vld [vmem:[#allocation7 + $0x70] sm:$0xff]
    %v4932 = vld [vmem:[#allocation7 + $0x78] sm:$0xff]
    %v4933 = vld [vmem:[#allocation7 + $0x80] sm:$0xff]
    %v4934 = vld [vmem:[#allocation7 + $0x88] sm:$0xff]
    %v4935 = vld [vmem:[#allocation7 + $0x90] sm:$0xff]
    %v4936 = vld [vmem:[#allocation7 + $0x98] sm:$0xff]
    %v4937 = vld [vmem:[#allocation7 + $0xa0] sm:$0xff]
    %v4938 = vld [vmem:[#allocation7 + $0xa8] sm:$0xff]
    %v4939 = vld [vmem:[#allocation7 + $0xb0] sm:$0xff]
    %v4940 = vld [vmem:[#allocation7 + $0xb8] sm:$0xff]
    %v4941 = vld [vmem:[#allocation7 + $0xc0] sm:$0xff]
    %v4942 = vld [vmem:[#allocation7 + $0xc8] sm:$0xff]
    %v4943 = vld [vmem:[#allocation7 + $0xd0] sm:$0xff]
    %v4944 = vld [vmem:[#allocation7 + $0xd8] sm:$0xff]
    %v4945 = vld [vmem:[#allocation7 + $0xe0] sm:$0xff]
    %v4946 = vld [vmem:[#allocation7 + $0xe8] sm:$0xff]
    %v4947 = vld [vmem:[#allocation7 + $0xf0] sm:$0xff]
    %v4948 = vld [vmem:[#allocation7 + $0xf8] sm:$0xff]
    %v4949 = vld [vmem:[#allocation7 + $0x100] sm:$0xff]
    %v4950 = vld [vmem:[#allocation7 + $0x108] sm:$0xff]
    %v4951 = vld [vmem:[#allocation7 + $0x110] sm:$0xff]
    %v4952 = vld [vmem:[#allocation7 + $0x118] sm:$0xff]
    %v4953 = vld [vmem:[#allocation7 + $0x120] sm:$0xff]
    %v4954 = vld [vmem:[#allocation7 + $0x128] sm:$0xff]
    %v4955 = vld [vmem:[#allocation7 + $0x130] sm:$0xff]
    %v4956 = vld [vmem:[#allocation7 + $0x138] sm:$0xff]
    %v4957 = vld [vmem:[#allocation7 + $0x140] sm:$0xff]
    %v4958 = vld [vmem:[#allocation7 + $0x148] sm:$0xff]
    %v4959 = vld [vmem:[#allocation7 + $0x150] sm:$0xff]
    %v4960 = vld [vmem:[#allocation7 + $0x158] sm:$0xff]
    %v4961 = vld [vmem:[#allocation7 + $0x160] sm:$0xff]
    %v4962 = vld [vmem:[#allocation7 + $0x168] sm:$0xff]
    %v4963 = vld [vmem:[#allocation7 + $0x170] sm:$0xff]
    %v4964 = vld [vmem:[#allocation7 + $0x178] sm:$0xff]
    %v4965 = vld [vmem:[#allocation7 + $0x180] sm:$0xff]
    %v4966 = vld [vmem:[#allocation7 + $0x188] sm:$0xff]
    %v4967 = vld [vmem:[#allocation7 + $0x190] sm:$0xff]
    %v4968 = vld [vmem:[#allocation7 + $0x198] sm:$0xff]
    %v4969 = vld [vmem:[#allocation7 + $0x1a0] sm:$0xff]
    %v4970 = vld [vmem:[#allocation7 + $0x1a8] sm:$0xff]
    %v4971 = vld [vmem:[#allocation7 + $0x1b0] sm:$0xff]
    %v4972 = vld [vmem:[#allocation7 + $0x1b8] sm:$0xff]
    %v4973 = vld [vmem:[#allocation7 + $0x1c0] sm:$0xff]
    %v4974 = vld [vmem:[#allocation7 + $0x1c8] sm:$0xff]
    %v4975 = vld [vmem:[#allocation7 + $0x1d0] sm:$0xff]
    %v4976 = vld [vmem:[#allocation7 + $0x1d8] sm:$0xff]
    %v4977 = vld [vmem:[#allocation7 + $0x1e0] sm:$0xff]
    %v4978 = vld [vmem:[#allocation7 + $0x1e8] sm:$0xff]
    %v4979 = vld [vmem:[#allocation7 + $0x1f0] sm:$0xff]
    %v4980 = vld [vmem:[#allocation7 + $0x1f8] sm:$0xff]
    %v4981 = vld [vmem:[#allocation8] sm:$0x3]
    %v4983 = vlaneseq
    %v4984 = vshrl.u32 %v4983, 7
    %v4985 = vsub.s32 0, %v4984
    %v4986 = vrot.slane %v4981, %v4985
    %v4987 = vlaneseq
    %v4988 = vshrl.u32 %v4987, 7
    %v4989 = vsub.s32 1, %v4988
    %v4990 = vrot.slane %v4981, %v4989
    %v5057 = vunpack.c.l.b16 %v4917
    %v5058 = vunpack.c.h.b16 %v4917
    %v5059 = vunpack.c.l.b16 %v4918
    %v5060 = vunpack.c.h.b16 %v4918
    %v5061 = vunpack.c.l.b16 %v4919
    %v5062 = vunpack.c.h.b16 %v4919
    %v5063 = vunpack.c.l.b16 %v4920
    %v5064 = vunpack.c.h.b16 %v4920
    %v5065 = vunpack.c.l.b16 %v4921
    %v5066 = vunpack.c.h.b16 %v4921
    %v5067 = vunpack.c.l.b16 %v4922
    %v5068 = vunpack.c.h.b16 %v4922
    %v5069 = vunpack.c.l.b16 %v4923
    %v5070 = vunpack.c.h.b16 %v4923
    %v5071 = vunpack.c.l.b16 %v4924
    %v5072 = vunpack.c.h.b16 %v4924
    %v5073 = vunpack.c.l.b16 %v4925
    %v5074 = vunpack.c.h.b16 %v4925
    %v5075 = vunpack.c.l.b16 %v4926
    %v5076 = vunpack.c.h.b16 %v4926
    %v5077 = vunpack.c.l.b16 %v4927
    %v5078 = vunpack.c.h.b16 %v4927
    %v5079 = vunpack.c.l.b16 %v4928
    %v5080 = vunpack.c.h.b16 %v4928
    %v5081 = vunpack.c.l.b16 %v4929
    %v5082 = vunpack.c.h.b16 %v4929
    %v5083 = vunpack.c.l.b16 %v4930
    %v5084 = vunpack.c.h.b16 %v4930
    %v5085 = vunpack.c.l.b16 %v4931
    %v5086 = vunpack.c.h.b16 %v4931
    %v5087 = vunpack.c.l.b16 %v4932
    %v5088 = vunpack.c.h.b16 %v4932
    %v5089 = vunpack.c.l.b16 %v4933
    %v5090 = vunpack.c.h.b16 %v4933
    %v5091 = vunpack.c.l.b16 %v4934
    %v5092 = vunpack.c.h.b16 %v4934
    %v5093 = vunpack.c.l.b16 %v4935
    %v5094 = vunpack.c.h.b16 %v4935
    %v5095 = vunpack.c.l.b16 %v4936
    %v5096 = vunpack.c.h.b16 %v4936
    %v5097 = vunpack.c.l.b16 %v4937
    %v5098 = vunpack.c.h.b16 %v4937
    %v5099 = vunpack.c.l.b16 %v4938
    %v5100 = vunpack.c.h.b16 %v4938
    %v5101 = vunpack.c.l.b16 %v4939
    %v5102 = vunpack.c.h.b16 %v4939
    %v5103 = vunpack.c.l.b16 %v4940
    %v5104 = vunpack.c.h.b16 %v4940
    %v5105 = vunpack.c.l.b16 %v4941
    %v5106 = vunpack.c.h.b16 %v4941
    %v5107 = vunpack.c.l.b16 %v4942
    %v5108 = vunpack.c.h.b16 %v4942
    %v5109 = vunpack.c.l.b16 %v4943
    %v5110 = vunpack.c.h.b16 %v4943
    %v5111 = vunpack.c.l.b16 %v4944
    %v5112 = vunpack.c.h.b16 %v4944
    %v5113 = vunpack.c.l.b16 %v4945
    %v5114 = vunpack.c.h.b16 %v4945
    %v5115 = vunpack.c.l.b16 %v4946
    %v5116 = vunpack.c.h.b16 %v4946
    %v5117 = vunpack.c.l.b16 %v4947
    %v5118 = vunpack.c.h.b16 %v4947
    %v5119 = vunpack.c.l.b16 %v4948
    %v5120 = vunpack.c.h.b16 %v4948
    %v5121 = vunpack.c.l.b16 %v4949
    %v5122 = vunpack.c.h.b16 %v4949
    %v5123 = vunpack.c.l.b16 %v4950
    %v5124 = vunpack.c.h.b16 %v4950
    %v5125 = vunpack.c.l.b16 %v4951
    %v5126 = vunpack.c.h.b16 %v4951
    %v5127 = vunpack.c.l.b16 %v4952
    %v5128 = vunpack.c.h.b16 %v4952
    %v5129 = vunpack.c.l.b16 %v4953
    %v5130 = vunpack.c.h.b16 %v4953
    %v5131 = vunpack.c.l.b16 %v4954
    %v5132 = vunpack.c.h.b16 %v4954
    %v5133 = vunpack.c.l.b16 %v4955
    %v5134 = vunpack.c.h.b16 %v4955
    %v5135 = vunpack.c.l.b16 %v4956
    %v5136 = vunpack.c.h.b16 %v4956
    %v5137 = vunpack.c.l.b16 %v4957
    %v5138 = vunpack.c.h.b16 %v4957
    %v5139 = vunpack.c.l.b16 %v4958
    %v5140 = vunpack.c.h.b16 %v4958
    %v5141 = vunpack.c.l.b16 %v4959
    %v5142 = vunpack.c.h.b16 %v4959
    %v5143 = vunpack.c.l.b16 %v4960
    %v5144 = vunpack.c.h.b16 %v4960
    %v5145 = vunpack.c.l.b16 %v4961
    %v5146 = vunpack.c.h.b16 %v4961
    %v5147 = vunpack.c.l.b16 %v4962
    %v5148 = vunpack.c.h.b16 %v4962
    %v5149 = vunpack.c.l.b16 %v4963
    %v5150 = vunpack.c.h.b16 %v4963
    %v5151 = vunpack.c.l.b16 %v4964
    %v5152 = vunpack.c.h.b16 %v4964
    %v5153 = vunpack.c.l.b16 %v4965
    %v5154 = vunpack.c.h.b16 %v4965
    %v5155 = vunpack.c.l.b16 %v4966
    %v5156 = vunpack.c.h.b16 %v4966
    %v5157 = vunpack.c.l.b16 %v4967
    %v5158 = vunpack.c.h.b16 %v4967
    %v5159 = vunpack.c.l.b16 %v4968
    %v5160 = vunpack.c.h.b16 %v4968
    %v5161 = vunpack.c.l.b16 %v4969
    %v5162 = vunpack.c.h.b16 %v4969
    %v5163 = vunpack.c.l.b16 %v4970
    %v5164 = vunpack.c.h.b16 %v4970
    %v5165 = vunpack.c.l.b16 %v4971
    %v5166 = vunpack.c.h.b16 %v4971
    %v5167 = vunpack.c.l.b16 %v4972
    %v5168 = vunpack.c.h.b16 %v4972
    %v5169 = vunpack.c.l.b16 %v4973
    %v5170 = vunpack.c.h.b16 %v4973
    %v5171 = vunpack.c.l.b16 %v4974
    %v5172 = vunpack.c.h.b16 %v4974
    %v5173 = vunpack.c.l.b16 %v4975
    %v5174 = vunpack.c.h.b16 %v4975
    %v5175 = vunpack.c.l.b16 %v4976
    %v5176 = vunpack.c.h.b16 %v4976
    %v5177 = vunpack.c.l.b16 %v4977
    %v5178 = vunpack.c.h.b16 %v4977
    %v5179 = vunpack.c.l.b16 %v4978
    %v5180 = vunpack.c.h.b16 %v4978
    %v5181 = vunpack.c.l.b16 %v4979
    %v5182 = vunpack.c.h.b16 %v4979
    %v5183 = vunpack.c.l.b16 %v4980
    %v5184 = vunpack.c.h.b16 %v4980
    %v5185 = vpack.c.b16 %v5059, %v5057
    %v5186 = vpack.c.b16 %v5060, %v5058
    %v5187 = vpack.c.b16 %v5063, %v5061
    %v5188 = vpack.c.b16 %v5064, %v5062
    %v5189 = vpack.c.b16 %v5067, %v5065
    %v5190 = vpack.c.b16 %v5068, %v5066
    %v5191 = vpack.c.b16 %v5071, %v5069
    %v5192 = vpack.c.b16 %v5072, %v5070
    %v5193 = vpack.c.b16 %v5075, %v5073
    %v5194 = vpack.c.b16 %v5076, %v5074
    %v5195 = vpack.c.b16 %v5079, %v5077
    %v5196 = vpack.c.b16 %v5080, %v5078
    %v5197 = vpack.c.b16 %v5083, %v5081
    %v5198 = vpack.c.b16 %v5084, %v5082
    %v5199 = vpack.c.b16 %v5087, %v5085
    %v5200 = vpack.c.b16 %v5088, %v5086
    %v5201 = vpack.c.b16 %v5091, %v5089
    %v5202 = vpack.c.b16 %v5092, %v5090
    %v5203 = vpack.c.b16 %v5095, %v5093
    %v5204 = vpack.c.b16 %v5096, %v5094
    %v5205 = vpack.c.b16 %v5099, %v5097
    %v5206 = vpack.c.b16 %v5100, %v5098
    %v5207 = vpack.c.b16 %v5103, %v5101
    %v5208 = vpack.c.b16 %v5104, %v5102
    %v5209 = vpack.c.b16 %v5107, %v5105
    %v5210 = vpack.c.b16 %v5108, %v5106
    %v5211 = vpack.c.b16 %v5111, %v5109
    %v5212 = vpack.c.b16 %v5112, %v5110
    %v5213 = vpack.c.b16 %v5115, %v5113
    %v5214 = vpack.c.b16 %v5116, %v5114
    %v5215 = vpack.c.b16 %v5119, %v5117
    %v5216 = vpack.c.b16 %v5120, %v5118
    %v5217 = vpack.c.b16 %v5123, %v5121
    %v5218 = vpack.c.b16 %v5124, %v5122
    %v5219 = vpack.c.b16 %v5127, %v5125
    %v5220 = vpack.c.b16 %v5128, %v5126
    %v5221 = vpack.c.b16 %v5131, %v5129
    %v5222 = vpack.c.b16 %v5132, %v5130
    %v5223 = vpack.c.b16 %v5135, %v5133
    %v5224 = vpack.c.b16 %v5136, %v5134
    %v5225 = vpack.c.b16 %v5139, %v5137
    %v5226 = vpack.c.b16 %v5140, %v5138
    %v5227 = vpack.c.b16 %v5143, %v5141
    %v5228 = vpack.c.b16 %v5144, %v5142
    %v5229 = vpack.c.b16 %v5147, %v5145
    %v5230 = vpack.c.b16 %v5148, %v5146
    %v5231 = vpack.c.b16 %v5151, %v5149
    %v5232 = vpack.c.b16 %v5152, %v5150
    %v5233 = vpack.c.b16 %v5155, %v5153
    %v5234 = vpack.c.b16 %v5156, %v5154
    %v5235 = vpack.c.b16 %v5159, %v5157
    %v5236 = vpack.c.b16 %v5160, %v5158
    %v5237 = vpack.c.b16 %v5163, %v5161
    %v5238 = vpack.c.b16 %v5164, %v5162
    %v5239 = vpack.c.b16 %v5167, %v5165
    %v5240 = vpack.c.b16 %v5168, %v5166
    %v5241 = vpack.c.b16 %v5171, %v5169
    %v5242 = vpack.c.b16 %v5172, %v5170
    %v5243 = vpack.c.b16 %v5175, %v5173
    %v5244 = vpack.c.b16 %v5176, %v5174
    %v5245 = vpack.c.b16 %v5179, %v5177
    %v5246 = vpack.c.b16 %v5180, %v5178
    %v5247 = vpack.c.b16 %v5183, %v5181
    %v5248 = vpack.c.b16 %v5184, %v5182
    %5313 = vmatprep.subr.bf16.mxu0 %v5186
    %5314 = vmatpush1.bf16.msra.mxu0 %v5185
    %5315 = vmatprep.subr.bf16.mxu0 %v5188
    %5316 = vmatpush1.bf16.msra.mxu0 %v5187
    %5317 = vmatprep.subr.bf16.mxu0 %v5190
    %5318 = vmatpush1.bf16.msra.mxu0 %v5189
    %5319 = vmatprep.subr.bf16.mxu0 %v5192
    %5320 = vmatpush1.bf16.msra.mxu0 %v5191
    %5321 = vmatprep.subr.bf16.mxu0 %v5194
    %5322 = vmatpush1.bf16.msra.mxu0 %v5193
    %5323 = vmatprep.subr.bf16.mxu0 %v5196
    %5324 = vmatpush1.bf16.msra.mxu0 %v5195
    %5325 = vmatprep.subr.bf16.mxu0 %v5198
    %5326 = vmatpush1.bf16.msra.mxu0 %v5197
    %5327 = vmatprep.subr.bf16.mxu0 %v5200
    %5328 = vmatpush1.bf16.msra.mxu0 %v5199
    %5329 = vmatprep.subr.bf16.mxu0 %v5202
    %5330 = vmatpush1.bf16.msra.mxu0 %v5201
    %5331 = vmatprep.subr.bf16.mxu0 %v5204
    %5332 = vmatpush1.bf16.msra.mxu0 %v5203
    %5333 = vmatprep.subr.bf16.mxu0 %v5206
    %5334 = vmatpush1.bf16.msra.mxu0 %v5205
    %5335 = vmatprep.subr.bf16.mxu0 %v5208
    %5336 = vmatpush1.bf16.msra.mxu0 %v5207
    %5337 = vmatprep.subr.bf16.mxu0 %v5210
    %5338 = vmatpush1.bf16.msra.mxu0 %v5209
    %5339 = vmatprep.subr.bf16.mxu0 %v5212
    %5340 = vmatpush1.bf16.msra.mxu0 %v5211
    %5341 = vmatprep.subr.bf16.mxu0 %v5214
    %5342 = vmatpush1.bf16.msra.mxu0 %v5213
    %5343 = vmatprep.subr.bf16.mxu0 %v5216
    %5344 = vmatpush1.bf16.msra.mxu0 %v5215
    %5345 = vmatprep.mubr.bf16.mxu0 %v4914
    %5346 = vmatmul.mubr.bf16.gmra.mrb[0].mxu0 %v4913
    %v5347 = vpop.f32.mrb[0].mxu0
    %v5348 = vadd.f32 %v4986, %v5347
    %v5349 = vpop.f32.mrb[0].mxu0
    %v5350 = vadd.f32 %v4990, %v5349
    %v5351 = vpop.f32.mrb[0].mxu0
    %v5352 = vadd.f32 %v4986, %v5351
    %v5353 = vpop.f32.mrb[0].mxu0
    %v5354 = vadd.f32 %v4990, %v5353
    %5355 = vdwg.mxu0
    %5356 = vmatprep.subr.bf16.mxu0 %v5218
    %5357 = vmatpush1.bf16.msra.mxu0 %v5217
    %5358 = vmatprep.subr.bf16.mxu0 %v5220
    %5359 = vmatpush1.bf16.msra.mxu0 %v5219
    %5360 = vmatprep.subr.bf16.mxu0 %v5222
    %5361 = vmatpush1.bf16.msra.mxu0 %v5221
    %5362 = vmatprep.subr.bf16.mxu0 %v5224
    %5363 = vmatpush1.bf16.msra.mxu0 %v5223
    %5364 = vmatprep.subr.bf16.mxu0 %v5226
    %5365 = vmatpush1.bf16.msra.mxu0 %v5225
    %5366 = vmatprep.subr.bf16.mxu0 %v5228
    %5367 = vmatpush1.bf16.msra.mxu0 %v5227
    %5368 = vmatprep.subr.bf16.mxu0 %v5230
    %5369 = vmatpush1.bf16.msra.mxu0 %v5229
    %5370 = vmatprep.subr.bf16.mxu0 %v5232
    %5371 = vmatpush1.bf16.msra.mxu0 %v5231
    %5372 = vmatprep.subr.bf16.mxu0 %v5234
    %5373 = vmatpush1.bf16.msra.mxu0 %v5233
    %5374 = vmatprep.subr.bf16.mxu0 %v5236
    %5375 = vmatpush1.bf16.msra.mxu0 %v5235
    %5376 = vmatprep.subr.bf16.mxu0 %v5238
    %5377 = vmatpush1.bf16.msra.mxu0 %v5237
    %5378 = vmatprep.subr.bf16.mxu0 %v5240
    %5379 = vmatpush1.bf16.msra.mxu0 %v5239
    %5380 = vmatprep.subr.bf16.mxu0 %v5242
    %5381 = vmatpush1.bf16.msra.mxu0 %v5241
    %5382 = vmatprep.subr.bf16.mxu0 %v5244
    %5383 = vmatpush1.bf16.msra.mxu0 %v5243
    %5384 = vmatprep.subr.bf16.mxu0 %v5246
    %5385 = vmatpush1.bf16.msra.mxu0 %v5245
    %5386 = vmatprep.subr.bf16.mxu0 %v5248
    %5387 = vmatpush1.bf16.msra.mxu0 %v5247
    %5388 = vmatprep.mubr.bf16.mxu0 %v4916
    %5389 = vmatmul.mubr.bf16.gmra.mrb[0].mxu0 %v4915
    %v5390 = vpop.f32.mrb[0].mxu0
    %v5391 = vadd.f32 %v5348, %v5390
    %v5392 = vpop.f32.mrb[0].mxu0
    %v5393 = vadd.f32 %v5350, %v5392
    %v5394 = vpop.f32.mrb[0].mxu0
    %v5395 = vadd.f32 %v5352, %v5394
    %v5396 = vpop.f32.mrb[0].mxu0
    %v5397 = vadd.f32 %v5354, %v5396
    %5398 = vdwg.mxu0
    %v5399 = vmax.f32 %v5391, 0.0
    %v5400 = vmax.f32 %v5393, 0.0
    %v5401 = vmax.f32 %v5395, 0.0
    %v5402 = vmax.f32 %v5397, 0.0
    %v5403 = vpack.c.bf16 %v5401, %v5399
    %v5404 = vpack.c.bf16 %v5402, %v5400
    %v5405 = vld [vmem:[#allocation10] sm:$0xf]
    %v5406 = vld [vmem:[#allocation10 + $0x4] sm:$0xf]
    %v5407 = vld [vmem:[#allocation10 + $0x8] sm:$0xf]
    %v5408 = vld [vmem:[#allocation10 + $0xc] sm:$0xf]
    %v5409 = vld [vmem:[#allocation10 + $0x10] sm:$0xf]
    %v5410 = vld [vmem:[#allocation10 + $0x14] sm:$0xf]
    %v5411 = vld [vmem:[#allocation10 + $0x18] sm:$0xf]
    %v5412 = vld [vmem:[#allocation10 + $0x1c] sm:$0xf]
    %v5413 = vld [vmem:[#allocation10 + $0x20] sm:$0xf]
    %v5414 = vld [vmem:[#allocation10 + $0x24] sm:$0xf]
    %v5415 = vld [vmem:[#allocation10 + $0x28] sm:$0xf]
    %v5416 = vld [vmem:[#allocation10 + $0x2c] sm:$0xf]
    %v5417 = vld [vmem:[#allocation10 + $0x30] sm:$0xf]
    %v5418 = vld [vmem:[#allocation10 + $0x34] sm:$0xf]
    %v5419 = vld [vmem:[#allocation10 + $0x38] sm:$0xf]
    %v5420 = vld [vmem:[#allocation10 + $0x3c] sm:$0xf]
    %v5421 = vld [vmem:[#allocation10 + $0x40] sm:$0xf]
    %v5422 = vld [vmem:[#allocation10 + $0x44] sm:$0xf]
    %v5423 = vld [vmem:[#allocation10 + $0x48] sm:$0xf]
    %v5424 = vld [vmem:[#allocation10 + $0x4c] sm:$0xf]
    %v5425 = vld [vmem:[#allocation10 + $0x50] sm:$0xf]
    %v5426 = vld [vmem:[#allocation10 + $0x54] sm:$0xf]
    %v5427 = vld [vmem:[#allocation10 + $0x58] sm:$0xf]
    %v5428 = vld [vmem:[#allocation10 + $0x5c] sm:$0xf]
    %v5429 = vld [vmem:[#allocation10 + $0x60] sm:$0xf]
    %v5430 = vld [vmem:[#allocation10 + $0x64] sm:$0xf]
    %v5431 = vld [vmem:[#allocation10 + $0x68] sm:$0xf]
    %v5432 = vld [vmem:[#allocation10 + $0x6c] sm:$0xf]
    %v5433 = vld [vmem:[#allocation10 + $0x70] sm:$0xf]
    %v5434 = vld [vmem:[#allocation10 + $0x74] sm:$0xf]
    %v5435 = vld [vmem:[#allocation10 + $0x78] sm:$0xf]
    %v5436 = vld [vmem:[#allocation10 + $0x7c] sm:$0xf]
    %v5437 = vld [vmem:[#allocation11] sm:$0x1]
    %v5439 = vlaneseq
    %v5440 = vshrl.u32 %v5439, 7
    %v5441 = vsub.s32 0, %v5440
    %v5442 = vrot.slane %v5437, %v5441
    %v5476 = vunpack.c.l.b16 %v5405
    %v5477 = vunpack.c.l.b16 %v5406
    %v5478 = vunpack.c.l.b16 %v5407
    %v5479 = vunpack.c.l.b16 %v5408
    %v5480 = vunpack.c.l.b16 %v5409
    %v5481 = vunpack.c.l.b16 %v5410
    %v5482 = vunpack.c.l.b16 %v5411
    %v5483 = vunpack.c.l.b16 %v5412
    %v5484 = vunpack.c.l.b16 %v5413
    %v5485 = vunpack.c.l.b16 %v5414
    %v5486 = vunpack.c.l.b16 %v5415
    %v5487 = vunpack.c.l.b16 %v5416
    %v5488 = vunpack.c.l.b16 %v5417
    %v5489 = vunpack.c.l.b16 %v5418
    %v5490 = vunpack.c.l.b16 %v5419
    %v5491 = vunpack.c.l.b16 %v5420
    %v5492 = vunpack.c.l.b16 %v5421
    %v5493 = vunpack.c.l.b16 %v5422
    %v5494 = vunpack.c.l.b16 %v5423
    %v5495 = vunpack.c.l.b16 %v5424
    %v5496 = vunpack.c.l.b16 %v5425
    %v5497 = vunpack.c.l.b16 %v5426
    %v5498 = vunpack.c.l.b16 %v5427
    %v5499 = vunpack.c.l.b16 %v5428
    %v5500 = vunpack.c.l.b16 %v5429
    %v5501 = vunpack.c.l.b16 %v5430
    %v5502 = vunpack.c.l.b16 %v5431
    %v5503 = vunpack.c.l.b16 %v5432
    %v5504 = vunpack.c.l.b16 %v5433
    %v5505 = vunpack.c.l.b16 %v5434
    %v5506 = vunpack.c.l.b16 %v5435
    %v5507 = vunpack.c.l.b16 %v5436
    %v5508 = vpack.c.b16 %v5477, %v5476
    %v5509 = vpack.c.b16 %v5479, %v5478
    %v5510 = vpack.c.b16 %v5481, %v5480
    %v5511 = vpack.c.b16 %v5483, %v5482
    %v5512 = vpack.c.b16 %v5485, %v5484
    %v5513 = vpack.c.b16 %v5487, %v5486
    %v5514 = vpack.c.b16 %v5489, %v5488
    %v5515 = vpack.c.b16 %v5491, %v5490
    %v5516 = vpack.c.b16 %v5493, %v5492
    %v5517 = vpack.c.b16 %v5495, %v5494
    %v5518 = vpack.c.b16 %v5497, %v5496
    %v5519 = vpack.c.b16 %v5499, %v5498
    %v5520 = vpack.c.b16 %v5501, %v5500
    %v5521 = vpack.c.b16 %v5503, %v5502
    %v5522 = vpack.c.b16 %v5505, %v5504
    %v5523 = vpack.c.b16 %v5507, %v5506
    %5540 = vmatprep.subr.bf16.mxu0 0
    %5541 = vmatpush1.bf16.msra.mxu0 %v5508
    %5542 = vmatprep.subr.bf16.mxu0 0
    %5543 = vmatpush1.bf16.msra.mxu0 %v5509
    %5544 = vmatprep.subr.bf16.mxu0 0
    %5545 = vmatpush1.bf16.msra.mxu0 %v5510
    %5546 = vmatprep.subr.bf16.mxu0 0
    %5547 = vmatpush1.bf16.msra.mxu0 %v5511
    %5548 = vmatprep.subr.bf16.mxu0 0
    %5549 = vmatpush1.bf16.msra.mxu0 %v5512
    %5550 = vmatprep.subr.bf16.mxu0 0
    %5551 = vmatpush1.bf16.msra.mxu0 %v5513
    %5552 = vmatprep.subr.bf16.mxu0 0
    %5553 = vmatpush1.bf16.msra.mxu0 %v5514
    %5554 = vmatprep.subr.bf16.mxu0 0
    %5555 = vmatpush1.bf16.msra.mxu0 %v5515
    %5556 = vmatprep.subr.bf16.mxu0 0
    %5557 = vmatpush1.bf16.msra.mxu0 %v5516
    %5558 = vmatprep.subr.bf16.mxu0 0
    %5559 = vmatpush1.bf16.msra.mxu0 %v5517
    %5560 = vmatprep.subr.bf16.mxu0 0
    %5561 = vmatpush1.bf16.msra.mxu0 %v5518
    %5562 = vmatprep.subr.bf16.mxu0 0
    %5563 = vmatpush1.bf16.msra.mxu0 %v5519
    %5564 = vmatprep.subr.bf16.mxu0 0
    %5565 = vmatpush1.bf16.msra.mxu0 %v5520
    %5566 = vmatprep.subr.bf16.mxu0 0
    %5567 = vmatpush1.bf16.msra.mxu0 %v5521
    %5568 = vmatprep.subr.bf16.mxu0 0
    %5569 = vmatpush1.bf16.msra.mxu0 %v5522
    %5570 = vmatprep.subr.bf16.mxu0 0
    %5571 = vmatpush1.bf16.msra.mxu0 %v5523
    %5572 = vmatprep.mubr.bf16.mxu0 %v5404
    %5573 = vmatmul.mubr.bf16.gmra.mrb[0].mxu0 %v5403
    %v5574 = vpop.f32.mrb[0].mxu0
    %v5575 = vadd.f32 %v5442, %v5574
    %v5576 = vpop.f32.mrb[0].mxu0
    %v5577 = vpop.f32.mrb[0].mxu0
    %v5578 = vadd.f32 %v5442, %v5577
    %v5579 = vpop.f32.mrb[0].mxu0
    %5580 = vdwg.mxu0
    %v5581 = vmax.f32 %v5575, 0.0
    %v5582 = vmax.f32 %v5578, 0.0
    %5585 = vrot.lane.b32.xlu0 %v5581, 112
    %v5586 = vpop.permute.xlu0 %5585
    %5587 = vrot.lane.b32.xlu0 %v5582, 112
    %v5588 = vpop.permute.xlu0 %5587
    %5591 = vrot.lane.b32.xlu0 %v5581, 96
    %v5592 = vpop.permute.xlu0 %5591
    %5593 = vrot.lane.b32.xlu0 %v5582, 96
    %v5594 = vpop.permute.xlu0 %5593
    %5597 = vrot.lane.b32.xlu0 %v5581, 80
    %v5598 = vpop.permute.xlu0 %5597
    %5599 = vrot.lane.b32.xlu0 %v5582, 80
    %v5600 = vpop.permute.xlu0 %5599
    %5603 = vrot.lane.b32.xlu0 %v5581, 64
    %v5604 = vpop.permute.xlu0 %5603
    %5605 = vrot.lane.b32.xlu0 %v5582, 64
    %v5606 = vpop.permute.xlu0 %5605
    %5609 = vrot.lane.b32.xlu0 %v5581, 48
    %v5610 = vpop.permute.xlu0 %5609
    %5611 = vrot.lane.b32.xlu0 %v5582, 48
    %v5612 = vpop.permute.xlu0 %5611
    %5615 = vrot.lane.b32.xlu0 %v5581, 32
    %v5616 = vpop.permute.xlu0 %5615
    %5617 = vrot.lane.b32.xlu0 %v5582, 32
    %v5618 = vpop.permute.xlu0 %5617
    %5621 = vrot.lane.b32.xlu0 %v5581, 16
    %v5622 = vpop.permute.xlu0 %5621
    %5623 = vrot.lane.b32.xlu0 %v5582, 16
    %v5624 = vpop.permute.xlu0 %5623
    %v5627 = vcombine.low %v5581, %v5592
    %v5628 = vcombine.high %v5581, %v5592
    %v5630 = vunpack.c.l.s4 1983009808
    %v5631 = vunpack.c.0.s8 %v5630
    %v5632 = vlaneseq
    %v5633 = vshrl.u32 %v5632, 7
    %v5634 = vsub.s32 %v5631, %v5633
    %v5635 = vrot.slane %v5627, %v5634
    %v5637 = vunpack.c.l.s4 1983009808
    %v5638 = vunpack.c.0.s8 %v5637
    %v5639 = vlaneseq
    %v5640 = vshrl.u32 %v5639, 7
    %v5641 = vsub.s32 %v5638, %v5640
    %v5642 = vrot.slane %v5628, %v5641
    %v5643 = vcombine.low %v5586, %v5598
    %v5644 = vcombine.high %v5586, %v5598
    %v5646 = vunpack.c.l.s4 1983009808
    %v5647 = vunpack.c.0.s8 %v5646
    %v5648 = vlaneseq
    %v5649 = vshrl.u32 %v5648, 7
    %v5650 = vsub.s32 %v5647, %v5649
    %v5651 = vrot.slane %v5643, %v5650
    %v5653 = vunpack.c.l.s4 1983009808
    %v5654 = vunpack.c.0.s8 %v5653
    %v5655 = vlaneseq
    %v5656 = vshrl.u32 %v5655, 7
    %v5657 = vsub.s32 %v5654, %v5656
    %v5658 = vrot.slane %v5644, %v5657
    %v5659 = vcombine.low %v5604, %v5616
    %v5660 = vcombine.high %v5604, %v5616
    %v5662 = vunpack.c.l.s4 1983009808
    %v5663 = vunpack.c.0.s8 %v5662
    %v5664 = vlaneseq
    %v5665 = vshrl.u32 %v5664, 7
    %v5666 = vsub.s32 %v5663, %v5665
    %v5667 = vrot.slane %v5659, %v5666
    %v5669 = vunpack.c.l.s4 1983009808
    %v5670 = vunpack.c.0.s8 %v5669
    %v5671 = vlaneseq
    %v5672 = vshrl.u32 %v5671, 7
    %v5673 = vsub.s32 %v5670, %v5672
    %v5674 = vrot.slane %v5660, %v5673
    %v5675 = vcombine.low %v5610, %v5622
    %v5676 = vcombine.high %v5610, %v5622
    %v5678 = vunpack.c.l.s4 1983009808
    %v5679 = vunpack.c.0.s8 %v5678
    %v5680 = vlaneseq
    %v5681 = vshrl.u32 %v5680, 7
    %v5682 = vsub.s32 %v5679, %v5681
    %v5683 = vrot.slane %v5675, %v5682
    %v5685 = vunpack.c.l.s4 1983009808
    %v5686 = vunpack.c.0.s8 %v5685
    %v5687 = vlaneseq
    %v5688 = vshrl.u32 %v5687, 7
    %v5689 = vsub.s32 %v5686, %v5688
    %v5690 = vrot.slane %v5676, %v5689
    %v5691 = vcombine.low %v5635, %v5651
    %v5692 = vcombine.high %v5635, %v5651
    %v5694 = vunpack.c.l.s4 1934713408
    %v5695 = vunpack.c.0.s8 %v5694
    %v5696 = vlaneseq
    %v5697 = vshrl.u32 %v5696, 7
    %v5698 = vsub.s32 %v5695, %v5697
    %v5699 = vrot.slane %v5691, %v5698
    %v5701 = vunpack.c.l.s4 1934713408
    %v5702 = vunpack.c.0.s8 %v5701
    %v5703 = vlaneseq
    %v5704 = vshrl.u32 %v5703, 7
    %v5705 = vsub.s32 %v5702, %v5704
    %v5706 = vrot.slane %v5692, %v5705
    %v5707 = vcombine.low %v5642, %v5658
    %v5708 = vcombine.high %v5642, %v5658
    %v5710 = vunpack.c.l.s4 1934713408
    %v5711 = vunpack.c.0.s8 %v5710
    %v5712 = vlaneseq
    %v5713 = vshrl.u32 %v5712, 7
    %v5714 = vsub.s32 %v5711, %v5713
    %v5715 = vrot.slane %v5707, %v5714
    %v5717 = vunpack.c.l.s4 1934713408
    %v5718 = vunpack.c.0.s8 %v5717
    %v5719 = vlaneseq
    %v5720 = vshrl.u32 %v5719, 7
    %v5721 = vsub.s32 %v5718, %v5720
    %v5722 = vrot.slane %v5708, %v5721
    %v5723 = vcombine.low %v5667, %v5683
    %v5724 = vcombine.high %v5667, %v5683
    %v5726 = vunpack.c.l.s4 1934713408
    %v5727 = vunpack.c.0.s8 %v5726
    %v5728 = vlaneseq
    %v5729 = vshrl.u32 %v5728, 7
    %v5730 = vsub.s32 %v5727, %v5729
    %v5731 = vrot.slane %v5723, %v5730
    %v5733 = vunpack.c.l.s4 1934713408
    %v5734 = vunpack.c.0.s8 %v5733
    %v5735 = vlaneseq
    %v5736 = vshrl.u32 %v5735, 7
    %v5737 = vsub.s32 %v5734, %v5736
    %v5738 = vrot.slane %v5724, %v5737
    %v5739 = vcombine.low %v5674, %v5690
    %v5740 = vcombine.high %v5674, %v5690
    %v5742 = vunpack.c.l.s4 1934713408
    %v5743 = vunpack.c.0.s8 %v5742
    %v5744 = vlaneseq
    %v5745 = vshrl.u32 %v5744, 7
    %v5746 = vsub.s32 %v5743, %v5745
    %v5747 = vrot.slane %v5739, %v5746
    %v5749 = vunpack.c.l.s4 1934713408
    %v5750 = vunpack.c.0.s8 %v5749
    %v5751 = vlaneseq
    %v5752 = vshrl.u32 %v5751, 7
    %v5753 = vsub.s32 %v5750, %v5752
    %v5754 = vrot.slane %v5740, %v5753
    %v5755 = vcombine.low %v5699, %v5731
    %v5756 = vcombine.high %v5699, %v5731
    %v5757 = vcombine.low %v5706, %v5738
    %v5758 = vcombine.high %v5706, %v5738
    %v5759 = vcombine.low %v5715, %v5747
    %v5760 = vcombine.high %v5715, %v5747
    %v5761 = vcombine.low %v5722, %v5754
    %v5762 = vcombine.high %v5722, %v5754
    %v5763 = vcombine.low %v5582, %v5594
    %v5764 = vcombine.high %v5582, %v5594
    %v5766 = vunpack.c.l.s4 1983009808
    %v5767 = vunpack.c.0.s8 %v5766
    %v5768 = vlaneseq
    %v5769 = vshrl.u32 %v5768, 7
    %v5770 = vsub.s32 %v5767, %v5769
    %v5771 = vrot.slane %v5763, %v5770
    %v5773 = vunpack.c.l.s4 1983009808
    %v5774 = vunpack.c.0.s8 %v5773
    %v5775 = vlaneseq
    %v5776 = vshrl.u32 %v5775, 7
    %v5777 = vsub.s32 %v5774, %v5776
    %v5778 = vrot.slane %v5764, %v5777
    %v5779 = vcombine.low %v5588, %v5600
    %v5780 = vcombine.high %v5588, %v5600
    %v5782 = vunpack.c.l.s4 1983009808
    %v5783 = vunpack.c.0.s8 %v5782
    %v5784 = vlaneseq
    %v5785 = vshrl.u32 %v5784, 7
    %v5786 = vsub.s32 %v5783, %v5785
    %v5787 = vrot.slane %v5779, %v5786
    %v5789 = vunpack.c.l.s4 1983009808
    %v5790 = vunpack.c.0.s8 %v5789
    %v5791 = vlaneseq
    %v5792 = vshrl.u32 %v5791, 7
    %v5793 = vsub.s32 %v5790, %v5792
    %v5794 = vrot.slane %v5780, %v5793
    %v5795 = vcombine.low %v5606, %v5618
    %v5796 = vcombine.high %v5606, %v5618
    %v5798 = vunpack.c.l.s4 1983009808
    %v5799 = vunpack.c.0.s8 %v5798
    %v5800 = vlaneseq
    %v5801 = vshrl.u32 %v5800, 7
    %v5802 = vsub.s32 %v5799, %v5801
    %v5803 = vrot.slane %v5795, %v5802
    %v5805 = vunpack.c.l.s4 1983009808
    %v5806 = vunpack.c.0.s8 %v5805
    %v5807 = vlaneseq
    %v5808 = vshrl.u32 %v5807, 7
    %v5809 = vsub.s32 %v5806, %v5808
    %v5810 = vrot.slane %v5796, %v5809
    %v5811 = vcombine.low %v5612, %v5624
    %v5812 = vcombine.high %v5612, %v5624
    %v5814 = vunpack.c.l.s4 1983009808
    %v5815 = vunpack.c.0.s8 %v5814
    %v5816 = vlaneseq
    %v5817 = vshrl.u32 %v5816, 7
    %v5818 = vsub.s32 %v5815, %v5817
    %v5819 = vrot.slane %v5811, %v5818
    %v5821 = vunpack.c.l.s4 1983009808
    %v5822 = vunpack.c.0.s8 %v5821
    %v5823 = vlaneseq
    %v5824 = vshrl.u32 %v5823, 7
    %v5825 = vsub.s32 %v5822, %v5824
    %v5826 = vrot.slane %v5812, %v5825
    %v5827 = vcombine.low %v5771, %v5787
    %v5828 = vcombine.high %v5771, %v5787
    %v5830 = vunpack.c.l.s4 1934713408
    %v5831 = vunpack.c.0.s8 %v5830
    %v5832 = vlaneseq
    %v5833 = vshrl.u32 %v5832, 7
    %v5834 = vsub.s32 %v5831, %v5833
    %v5835 = vrot.slane %v5827, %v5834
    %v5837 = vunpack.c.l.s4 1934713408
    %v5838 = vunpack.c.0.s8 %v5837
    %v5839 = vlaneseq
    %v5840 = vshrl.u32 %v5839, 7
    %v5841 = vsub.s32 %v5838, %v5840
    %v5842 = vrot.slane %v5828, %v5841
    %v5843 = vcombine.low %v5778, %v5794
    %v5844 = vcombine.high %v5778, %v5794
    %v5846 = vunpack.c.l.s4 1934713408
    %v5847 = vunpack.c.0.s8 %v5846
    %v5848 = vlaneseq
    %v5849 = vshrl.u32 %v5848, 7
    %v5850 = vsub.s32 %v5847, %v5849
    %v5851 = vrot.slane %v5843, %v5850
    %v5853 = vunpack.c.l.s4 1934713408
    %v5854 = vunpack.c.0.s8 %v5853
    %v5855 = vlaneseq
    %v5856 = vshrl.u32 %v5855, 7
    %v5857 = vsub.s32 %v5854, %v5856
    %v5858 = vrot.slane %v5844, %v5857
    %v5859 = vcombine.low %v5803, %v5819
    %v5860 = vcombine.high %v5803, %v5819
    %v5862 = vunpack.c.l.s4 1934713408
    %v5863 = vunpack.c.0.s8 %v5862
    %v5864 = vlaneseq
    %v5865 = vshrl.u32 %v5864, 7
    %v5866 = vsub.s32 %v5863, %v5865
    %v5867 = vrot.slane %v5859, %v5866
    %v5869 = vunpack.c.l.s4 1934713408
    %v5870 = vunpack.c.0.s8 %v5869
    %v5871 = vlaneseq
    %v5872 = vshrl.u32 %v5871, 7
    %v5873 = vsub.s32 %v5870, %v5872
    %v5874 = vrot.slane %v5860, %v5873
    %v5875 = vcombine.low %v5810, %v5826
    %v5876 = vcombine.high %v5810, %v5826
    %v5878 = vunpack.c.l.s4 1934713408
    %v5879 = vunpack.c.0.s8 %v5878
    %v5880 = vlaneseq
    %v5881 = vshrl.u32 %v5880, 7
    %v5882 = vsub.s32 %v5879, %v5881
    %v5883 = vrot.slane %v5875, %v5882
    %v5885 = vunpack.c.l.s4 1934713408
    %v5886 = vunpack.c.0.s8 %v5885
    %v5887 = vlaneseq
    %v5888 = vshrl.u32 %v5887, 7
    %v5889 = vsub.s32 %v5886, %v5888
    %v5890 = vrot.slane %v5876, %v5889
    %v5891 = vcombine.low %v5835, %v5867
    %v5892 = vcombine.high %v5835, %v5867
    %v5893 = vcombine.low %v5842, %v5874
    %v5894 = vcombine.high %v5842, %v5874
    %v5895 = vcombine.low %v5851, %v5883
    %v5896 = vcombine.high %v5851, %v5883
    %v5897 = vcombine.low %v5858, %v5890
    %v5898 = vcombine.high %v5858, %v5890
    %vm5899 = vcmask 130048
    %v5900 = vsel %vm5899, %v5755, -inf
    %5901 = vmax.xlane.f32.xlu0 %v5900
    %v5902 = vpop.xlane.xlu0 %5901
    %v5903 = vsel %vm5899, %v5756, -inf
    %5904 = vmax.xlane.f32.xlu0 %v5903
    %v5905 = vpop.xlane.xlu0 %5904
    %v5906 = vsel %vm5899, %v5757, -inf
    %5907 = vmax.xlane.f32.xlu0 %v5906
    %v5908 = vpop.xlane.xlu0 %5907
    %v5909 = vsel %vm5899, %v5758, -inf
    %5910 = vmax.xlane.f32.xlu0 %v5909
    %v5911 = vpop.xlane.xlu0 %5910
    %v5912 = vsel %vm5899, %v5759, -inf
    %5913 = vmax.xlane.f32.xlu0 %v5912
    %v5914 = vpop.xlane.xlu0 %5913
    %v5915 = vsel %vm5899, %v5760, -inf
    %5916 = vmax.xlane.f32.xlu0 %v5915
    %v5917 = vpop.xlane.xlu0 %5916
    %v5918 = vsel %vm5899, %v5761, -inf
    %5919 = vmax.xlane.f32.xlu0 %v5918
    %v5920 = vpop.xlane.xlu0 %5919
    %v5921 = vsel %vm5899, %v5762, -inf
    %5922 = vmax.xlane.f32.xlu0 %v5921
    %v5923 = vpop.xlane.xlu0 %5922
    %v5924 = vsel %vm5899, %v5891, -inf
    %5925 = vmax.xlane.f32.xlu0 %v5924
    %v5926 = vpop.xlane.xlu0 %5925
    %v5927 = vsel %vm5899, %v5892, -inf
    %5928 = vmax.xlane.f32.xlu0 %v5927
    %v5929 = vpop.xlane.xlu0 %5928
    %v5930 = vsel %vm5899, %v5893, -inf
    %5931 = vmax.xlane.f32.xlu0 %v5930
    %v5932 = vpop.xlane.xlu0 %5931
    %v5933 = vsel %vm5899, %v5894, -inf
    %5934 = vmax.xlane.f32.xlu0 %v5933
    %v5935 = vpop.xlane.xlu0 %5934
    %v5936 = vsel %vm5899, %v5895, -inf
    %5937 = vmax.xlane.f32.xlu0 %v5936
    %v5938 = vpop.xlane.xlu0 %5937
    %v5939 = vsel %vm5899, %v5896, -inf
    %5940 = vmax.xlane.f32.xlu0 %v5939
    %v5941 = vpop.xlane.xlu0 %5940
    %v5942 = vsel %vm5899, %v5897, -inf
    %5943 = vmax.xlane.f32.xlu0 %v5942
    %v5944 = vpop.xlane.xlu0 %5943
    %v5945 = vsel %vm5899, %v5898, -inf
    %5946 = vmax.xlane.f32.xlu0 %v5945
    %v5947 = vpop.xlane.xlu0 %5946
    %v5948 = vsub.f32 %v5755, %v5902
    %v5949 = vsub.f32 %v5756, %v5905
    %v5950 = vsub.f32 %v5757, %v5908
    %v5951 = vsub.f32 %v5758, %v5911
    %v5952 = vsub.f32 %v5759, %v5914
    %v5953 = vsub.f32 %v5760, %v5917
    %v5954 = vsub.f32 %v5761, %v5920
    %v5955 = vsub.f32 %v5762, %v5923
    %v5956 = vsub.f32 %v5891, %v5926
    %v5957 = vsub.f32 %v5892, %v5929
    %v5958 = vsub.f32 %v5893, %v5932
    %v5959 = vsub.f32 %v5894, %v5935
    %v5960 = vsub.f32 %v5895, %v5938
    %v5961 = vsub.f32 %v5896, %v5941
    %v5962 = vsub.f32 %v5897, %v5944
    %v5963 = vsub.f32 %v5898, %v5947
    %v5964 = vmul.f32 %v5948, 1.442695
    %v5965 = vpow.pop %v5964
    %v5966 = vmul.f32 %v5949, 1.442695
    %v5967 = vpow.pop %v5966
    %v5968 = vmul.f32 %v5950, 1.442695
    %v5969 = vpow.pop %v5968
    %v5970 = vmul.f32 %v5951, 1.442695
    %v5971 = vpow.pop %v5970
    %v5972 = vmul.f32 %v5952, 1.442695
    %v5973 = vpow.pop %v5972
    %v5974 = vmul.f32 %v5953, 1.442695
    %v5975 = vpow.pop %v5974
    %v5976 = vmul.f32 %v5954, 1.442695
    %v5977 = vpow.pop %v5976
    %v5978 = vmul.f32 %v5955, 1.442695
    %v5979 = vpow.pop %v5978
    %v5980 = vmul.f32 %v5956, 1.442695
    %v5981 = vpow.pop %v5980
    %v5982 = vmul.f32 %v5957, 1.442695
    %v5983 = vpow.pop %v5982
    %v5984 = vmul.f32 %v5958, 1.442695
    %v5985 = vpow.pop %v5984
    %v5986 = vmul.f32 %v5959, 1.442695
    %v5987 = vpow.pop %v5986
    %v5988 = vmul.f32 %v5960, 1.442695
    %v5989 = vpow.pop %v5988
    %v5990 = vmul.f32 %v5961, 1.442695
    %v5991 = vpow.pop %v5990
    %v5992 = vmul.f32 %v5962, 1.442695
    %v5993 = vpow.pop %v5992
    %v5994 = vmul.f32 %v5963, 1.442695
    %v5995 = vpow.pop %v5994
    %v5996 = vsel %vm5899, %v5965, 0.0
    %5997 = vadd.xlane.f32.xlu0 %v5996
    %v5998 = vpop.xlane.xlu0 %5997
    %v5999 = vsel %vm5899, %v5967, 0.0
    %6000 = vadd.xlane.f32.xlu0 %v5999
    %v6001 = vpop.xlane.xlu0 %6000
    %v6002 = vsel %vm5899, %v5969, 0.0
    %6003 = vadd.xlane.f32.xlu0 %v6002
    %v6004 = vpop.xlane.xlu0 %6003
    %v6005 = vsel %vm5899, %v5971, 0.0
    %6006 = vadd.xlane.f32.xlu0 %v6005
    %v6007 = vpop.xlane.xlu0 %6006
    %v6008 = vsel %vm5899, %v5973, 0.0
    %6009 = vadd.xlane.f32.xlu0 %v6008
    %v6010 = vpop.xlane.xlu0 %6009
    %v6011 = vsel %vm5899, %v5975, 0.0
    %6012 = vadd.xlane.f32.xlu0 %v6011
    %v6013 = vpop.xlane.xlu0 %6012
    %v6014 = vsel %vm5899, %v5977, 0.0
    %6015 = vadd.xlane.f32.xlu0 %v6014
    %v6016 = vpop.xlane.xlu0 %6015
    %v6017 = vsel %vm5899, %v5979, 0.0
    %6018 = vadd.xlane.f32.xlu0 %v6017
    %v6019 = vpop.xlane.xlu0 %6018
    %v6020 = vsel %vm5899, %v5981, 0.0
    %6021 = vadd.xlane.f32.xlu0 %v6020
    %v6022 = vpop.xlane.xlu0 %6021
    %v6023 = vsel %vm5899, %v5983, 0.0
    %6024 = vadd.xlane.f32.xlu0 %v6023
    %v6025 = vpop.xlane.xlu0 %6024
    %v6026 = vsel %vm5899, %v5985, 0.0
    %6027 = vadd.xlane.f32.xlu0 %v6026
    %v6028 = vpop.xlane.xlu0 %6027
    %v6029 = vsel %vm5899, %v5987, 0.0
    %6030 = vadd.xlane.f32.xlu0 %v6029
    %v6031 = vpop.xlane.xlu0 %6030
    %v6032 = vsel %vm5899, %v5989, 0.0
    %6033 = vadd.xlane.f32.xlu0 %v6032
    %v6034 = vpop.xlane.xlu0 %6033
    %v6035 = vsel %vm5899, %v5991, 0.0
    %6036 = vadd.xlane.f32.xlu0 %v6035
    %v6037 = vpop.xlane.xlu0 %6036
    %v6038 = vsel %vm5899, %v5993, 0.0
    %6039 = vadd.xlane.f32.xlu0 %v6038
    %v6040 = vpop.xlane.xlu0 %6039
    %v6041 = vsel %vm5899, %v5995, 0.0
    %6042 = vadd.xlane.f32.xlu0 %v6041
    %v6043 = vpop.xlane.xlu0 %6042
    %v6044 = vrcp.pop %v5998
    %v6045 = vmul.f32 %v5965, %v6044
    %v6046 = vrcp.pop %v6001
    %v6047 = vmul.f32 %v5967, %v6046
    %v6048 = vrcp.pop %v6004
    %v6049 = vmul.f32 %v5969, %v6048
    %v6050 = vrcp.pop %v6007
    %v6051 = vmul.f32 %v5971, %v6050
    %v6052 = vrcp.pop %v6010
    %v6053 = vmul.f32 %v5973, %v6052
    %v6054 = vrcp.pop %v6013
    %v6055 = vmul.f32 %v5975, %v6054
    %v6056 = vrcp.pop %v6016
    %v6057 = vmul.f32 %v5977, %v6056
    %v6058 = vrcp.pop %v6019
    %v6059 = vmul.f32 %v5979, %v6058
    %v6060 = vrcp.pop %v6022
    %v6061 = vmul.f32 %v5981, %v6060
    %v6062 = vrcp.pop %v6025
    %v6063 = vmul.f32 %v5983, %v6062
    %v6064 = vrcp.pop %v6028
    %v6065 = vmul.f32 %v5985, %v6064
    %v6066 = vrcp.pop %v6031
    %v6067 = vmul.f32 %v5987, %v6066
    %v6068 = vrcp.pop %v6034
    %v6069 = vmul.f32 %v5989, %v6068
    %v6070 = vrcp.pop %v6037
    %v6071 = vmul.f32 %v5991, %v6070
    %v6072 = vrcp.pop %v6040
    %v6073 = vmul.f32 %v5993, %v6072
    %v6074 = vrcp.pop %v6043
    %v6075 = vmul.f32 %v5995, %v6074
    %v6076 = vcombine.low %v6045, %v6049
    %v6077 = vcombine.high %v6045, %v6049
    %v6079 = vunpack.c.l.s4 1983009808
    %v6080 = vunpack.c.0.s8 %v6079
    %v6081 = vlaneseq
    %v6082 = vshrl.u32 %v6081, 7
    %v6083 = vsub.s32 %v6080, %v6082
    %v6084 = vrot.slane %v6076, %v6083
    %v6086 = vunpack.c.l.s4 1983009808
    %v6087 = vunpack.c.0.s8 %v6086
    %v6088 = vlaneseq
    %v6089 = vshrl.u32 %v6088, 7
    %v6090 = vsub.s32 %v6087, %v6089
    %v6091 = vrot.slane %v6077, %v6090
    %v6092 = vcombine.low %v6047, %v6051
    %v6093 = vcombine.high %v6047, %v6051
    %v6095 = vunpack.c.l.s4 1983009808
    %v6096 = vunpack.c.0.s8 %v6095
    %v6097 = vlaneseq
    %v6098 = vshrl.u32 %v6097, 7
    %v6099 = vsub.s32 %v6096, %v6098
    %v6100 = vrot.slane %v6092, %v6099
    %v6102 = vunpack.c.l.s4 1983009808
    %v6103 = vunpack.c.0.s8 %v6102
    %v6104 = vlaneseq
    %v6105 = vshrl.u32 %v6104, 7
    %v6106 = vsub.s32 %v6103, %v6105
    %v6107 = vrot.slane %v6093, %v6106
    %v6108 = vcombine.low %v6053, %v6057
    %v6109 = vcombine.high %v6053, %v6057
    %v6111 = vunpack.c.l.s4 1983009808
    %v6112 = vunpack.c.0.s8 %v6111
    %v6113 = vlaneseq
    %v6114 = vshrl.u32 %v6113, 7
    %v6115 = vsub.s32 %v6112, %v6114
    %v6116 = vrot.slane %v6108, %v6115
    %v6118 = vunpack.c.l.s4 1983009808
    %v6119 = vunpack.c.0.s8 %v6118
    %v6120 = vlaneseq
    %v6121 = vshrl.u32 %v6120, 7
    %v6122 = vsub.s32 %v6119, %v6121
    %v6123 = vrot.slane %v6109, %v6122
    %v6124 = vcombine.low %v6055, %v6059
    %v6125 = vcombine.high %v6055, %v6059
    %v6127 = vunpack.c.l.s4 1983009808
    %v6128 = vunpack.c.0.s8 %v6127
    %v6129 = vlaneseq
    %v6130 = vshrl.u32 %v6129, 7
    %v6131 = vsub.s32 %v6128, %v6130
    %v6132 = vrot.slane %v6124, %v6131
    %v6134 = vunpack.c.l.s4 1983009808
    %v6135 = vunpack.c.0.s8 %v6134
    %v6136 = vlaneseq
    %v6137 = vshrl.u32 %v6136, 7
    %v6138 = vsub.s32 %v6135, %v6137
    %v6139 = vrot.slane %v6125, %v6138
    %v6140 = vcombine.low %v6084, %v6100
    %v6141 = vcombine.high %v6084, %v6100
    %v6143 = vunpack.c.l.s4 1934713408
    %v6144 = vunpack.c.0.s8 %v6143
    %v6145 = vlaneseq
    %v6146 = vshrl.u32 %v6145, 7
    %v6147 = vsub.s32 %v6144, %v6146
    %v6148 = vrot.slane %v6140, %v6147
    %v6150 = vunpack.c.l.s4 1934713408
    %v6151 = vunpack.c.0.s8 %v6150
    %v6152 = vlaneseq
    %v6153 = vshrl.u32 %v6152, 7
    %v6154 = vsub.s32 %v6151, %v6153
    %v6155 = vrot.slane %v6141, %v6154
    %v6156 = vcombine.low %v6091, %v6107
    %v6157 = vcombine.high %v6091, %v6107
    %v6159 = vunpack.c.l.s4 1934713408
    %v6160 = vunpack.c.0.s8 %v6159
    %v6161 = vlaneseq
    %v6162 = vshrl.u32 %v6161, 7
    %v6163 = vsub.s32 %v6160, %v6162
    %v6164 = vrot.slane %v6156, %v6163
    %v6166 = vunpack.c.l.s4 1934713408
    %v6167 = vunpack.c.0.s8 %v6166
    %v6168 = vlaneseq
    %v6169 = vshrl.u32 %v6168, 7
    %v6170 = vsub.s32 %v6167, %v6169
    %v6171 = vrot.slane %v6157, %v6170
    %v6172 = vcombine.low %v6116, %v6132
    %v6173 = vcombine.high %v6116, %v6132
    %v6175 = vunpack.c.l.s4 1934713408
    %v6176 = vunpack.c.0.s8 %v6175
    %v6177 = vlaneseq
    %v6178 = vshrl.u32 %v6177, 7
    %v6179 = vsub.s32 %v6176, %v6178
    %v6180 = vrot.slane %v6172, %v6179
    %v6182 = vunpack.c.l.s4 1934713408
    %v6183 = vunpack.c.0.s8 %v6182
    %v6184 = vlaneseq
    %v6185 = vshrl.u32 %v6184, 7
    %v6186 = vsub.s32 %v6183, %v6185
    %v6187 = vrot.slane %v6173, %v6186
    %v6188 = vcombine.low %v6123, %v6139
    %v6189 = vcombine.high %v6123, %v6139
    %v6191 = vunpack.c.l.s4 1934713408
    %v6192 = vunpack.c.0.s8 %v6191
    %v6193 = vlaneseq
    %v6194 = vshrl.u32 %v6193, 7
    %v6195 = vsub.s32 %v6192, %v6194
    %v6196 = vrot.slane %v6188, %v6195
    %v6198 = vunpack.c.l.s4 1934713408
    %v6199 = vunpack.c.0.s8 %v6198
    %v6200 = vlaneseq
    %v6201 = vshrl.u32 %v6200, 7
    %v6202 = vsub.s32 %v6199, %v6201
    %v6203 = vrot.slane %v6189, %v6202
    %v6204 = vcombine.low %v6148, %v6180
    %v6205 = vcombine.high %v6148, %v6180
    %v6206 = vcombine.low %v6155, %v6187
    %v6207 = vcombine.high %v6155, %v6187
    %v6208 = vcombine.low %v6164, %v6196
    %v6209 = vcombine.high %v6164, %v6196
    %v6210 = vcombine.low %v6171, %v6203
    %v6211 = vcombine.high %v6171, %v6203
    %v6212 = vcombine.low %v6061, %v6065
    %v6213 = vcombine.high %v6061, %v6065
    %v6215 = vunpack.c.l.s4 1983009808
    %v6216 = vunpack.c.0.s8 %v6215
    %v6217 = vlaneseq
    %v6218 = vshrl.u32 %v6217, 7
    %v6219 = vsub.s32 %v6216, %v6218
    %v6220 = vrot.slane %v6212, %v6219
    %v6222 = vunpack.c.l.s4 1983009808
    %v6223 = vunpack.c.0.s8 %v6222
    %v6224 = vlaneseq
    %v6225 = vshrl.u32 %v6224, 7
    %v6226 = vsub.s32 %v6223, %v6225
    %v6227 = vrot.slane %v6213, %v6226
    %v6228 = vcombine.low %v6063, %v6067
    %v6229 = vcombine.high %v6063, %v6067
    %v6231 = vunpack.c.l.s4 1983009808
    %v6232 = vunpack.c.0.s8 %v6231
    %v6233 = vlaneseq
    %v6234 = vshrl.u32 %v6233, 7
    %v6235 = vsub.s32 %v6232, %v6234
    %v6236 = vrot.slane %v6228, %v6235
    %v6238 = vunpack.c.l.s4 1983009808
    %v6239 = vunpack.c.0.s8 %v6238
    %v6240 = vlaneseq
    %v6241 = vshrl.u32 %v6240, 7
    %v6242 = vsub.s32 %v6239, %v6241
    %v6243 = vrot.slane %v6229, %v6242
    %v6244 = vcombine.low %v6069, %v6073
    %v6245 = vcombine.high %v6069, %v6073
    %v6247 = vunpack.c.l.s4 1983009808
    %v6248 = vunpack.c.0.s8 %v6247
    %v6249 = vlaneseq
    %v6250 = vshrl.u32 %v6249, 7
    %v6251 = vsub.s32 %v6248, %v6250
    %v6252 = vrot.slane %v6244, %v6251
    %v6254 = vunpack.c.l.s4 1983009808
    %v6255 = vunpack.c.0.s8 %v6254
    %v6256 = vlaneseq
    %v6257 = vshrl.u32 %v6256, 7
    %v6258 = vsub.s32 %v6255, %v6257
    %v6259 = vrot.slane %v6245, %v6258
    %v6260 = vcombine.low %v6071, %v6075
    %v6261 = vcombine.high %v6071, %v6075
    %v6263 = vunpack.c.l.s4 1983009808
    %v6264 = vunpack.c.0.s8 %v6263
    %v6265 = vlaneseq
    %v6266 = vshrl.u32 %v6265, 7
    %v6267 = vsub.s32 %v6264, %v6266
    %v6268 = vrot.slane %v6260, %v6267
    %v6270 = vunpack.c.l.s4 1983009808
    %v6271 = vunpack.c.0.s8 %v6270
    %v6272 = vlaneseq
    %v6273 = vshrl.u32 %v6272, 7
    %v6274 = vsub.s32 %v6271, %v6273
    %v6275 = vrot.slane %v6261, %v6274
    %v6276 = vcombine.low %v6220, %v6236
    %v6277 = vcombine.high %v6220, %v6236
    %v6279 = vunpack.c.l.s4 1934713408
    %v6280 = vunpack.c.0.s8 %v6279
    %v6281 = vlaneseq
    %v6282 = vshrl.u32 %v6281, 7
    %v6283 = vsub.s32 %v6280, %v6282
    %v6284 = vrot.slane %v6276, %v6283
    %v6286 = vunpack.c.l.s4 1934713408
    %v6287 = vunpack.c.0.s8 %v6286
    %v6288 = vlaneseq
    %v6289 = vshrl.u32 %v6288, 7
    %v6290 = vsub.s32 %v6287, %v6289
    %v6291 = vrot.slane %v6277, %v6290
    %v6292 = vcombine.low %v6227, %v6243
    %v6293 = vcombine.high %v6227, %v6243
    %v6295 = vunpack.c.l.s4 1934713408
    %v6296 = vunpack.c.0.s8 %v6295
    %v6297 = vlaneseq
    %v6298 = vshrl.u32 %v6297, 7
    %v6299 = vsub.s32 %v6296, %v6298
    %v6300 = vrot.slane %v6292, %v6299
    %v6302 = vunpack.c.l.s4 1934713408
    %v6303 = vunpack.c.0.s8 %v6302
    %v6304 = vlaneseq
    %v6305 = vshrl.u32 %v6304, 7
    %v6306 = vsub.s32 %v6303, %v6305
    %v6307 = vrot.slane %v6293, %v6306
    %v6308 = vcombine.low %v6252, %v6268
    %v6309 = vcombine.high %v6252, %v6268
    %v6311 = vunpack.c.l.s4 1934713408
    %v6312 = vunpack.c.0.s8 %v6311
    %v6313 = vlaneseq
    %v6314 = vshrl.u32 %v6313, 7
    %v6315 = vsub.s32 %v6312, %v6314
    %v6316 = vrot.slane %v6308, %v6315
    %v6318 = vunpack.c.l.s4 1934713408
    %v6319 = vunpack.c.0.s8 %v6318
    %v6320 = vlaneseq
    %v6321 = vshrl.u32 %v6320, 7
    %v6322 = vsub.s32 %v6319, %v6321
    %v6323 = vrot.slane %v6309, %v6322
    %v6324 = vcombine.low %v6259, %v6275
    %v6325 = vcombine.high %v6259, %v6275
    %v6327 = vunpack.c.l.s4 1934713408
    %v6328 = vunpack.c.0.s8 %v6327
    %v6329 = vlaneseq
    %v6330 = vshrl.u32 %v6329, 7
    %v6331 = vsub.s32 %v6328, %v6330
    %v6332 = vrot.slane %v6324, %v6331
    %v6334 = vunpack.c.l.s4 1934713408
    %v6335 = vunpack.c.0.s8 %v6334
    %v6336 = vlaneseq
    %v6337 = vshrl.u32 %v6336, 7
    %v6338 = vsub.s32 %v6335, %v6337
    %v6339 = vrot.slane %v6325, %v6338
    %v6340 = vcombine.low %v6284, %v6316
    %v6341 = vcombine.high %v6284, %v6316
    %v6342 = vcombine.low %v6291, %v6323
    %v6343 = vcombine.high %v6291, %v6323
    %v6344 = vcombine.low %v6300, %v6332
    %v6345 = vcombine.high %v6300, %v6332
    %v6346 = vcombine.low %v6307, %v6339
    %v6347 = vcombine.high %v6307, %v6339
    %6350 = vrot.lane.b32.xlu0 %v6205, 16
    %v6351 = vpop.permute.xlu0 %6350
    %6352 = vrot.lane.b32.xlu0 %v6341, 16
    %v6353 = vpop.permute.xlu0 %6352
    %6358 = vrot.lane.b32.xlu0 %v6206, 32
    %v6359 = vpop.permute.xlu0 %6358
    %6360 = vrot.lane.b32.xlu0 %v6342, 32
    %v6361 = vpop.permute.xlu0 %6360
    %6366 = vrot.lane.b32.xlu0 %v6207, 48
    %v6367 = vpop.permute.xlu0 %6366
    %6368 = vrot.lane.b32.xlu0 %v6343, 48
    %v6369 = vpop.permute.xlu0 %6368
    %6374 = vrot.lane.b32.xlu0 %v6208, 64
    %v6375 = vpop.permute.xlu0 %6374
    %6376 = vrot.lane.b32.xlu0 %v6344, 64
    %v6377 = vpop.permute.xlu0 %6376
    %6382 = vrot.lane.b32.xlu0 %v6209, 80
    %v6383 = vpop.permute.xlu0 %6382
    %6384 = vrot.lane.b32.xlu0 %v6345, 80
    %v6385 = vpop.permute.xlu0 %6384
    %6390 = vrot.lane.b32.xlu0 %v6210, 96
    %v6391 = vpop.permute.xlu0 %6390
    %6392 = vrot.lane.b32.xlu0 %v6346, 96
    %v6393 = vpop.permute.xlu0 %6392
    %6398 = vrot.lane.b32.xlu0 %v6211, 112
    %v6399 = vpop.permute.xlu0 %6398
    %6400 = vrot.lane.b32.xlu0 %v6347, 112
    %v6401 = vpop.permute.xlu0 %6400
    %v6404 = vsel %vm5899, %v6204, %v6351
    %v6405 = vsel %vm5899, %v6340, %v6353
    %vm6406 = vcmask 261120
    %v6407 = vsel %vm6406, %v6404, %v6359
    %v6408 = vsel %vm6406, %v6405, %v6361
    %v6409 = vsel %vm354, %v6407, %v6367
    %v6410 = vsel %vm354, %v6408, %v6369
    %vm6411 = vcmask 523264
    %v6412 = vsel %vm6411, %v6409, %v6375
    %v6413 = vsel %vm6411, %v6410, %v6377
    %vm6414 = vcmask 654336
    %v6415 = vsel %vm6414, %v6412, %v6383
    %v6416 = vsel %vm6414, %v6413, %v6385
    %vm6417 = vcmask 785408
    %v6418 = vsel %vm6417, %v6415, %v6391
    %v6419 = vsel %vm6417, %v6416, %v6393
    %vm6420 = vcmask 916480
    %v6421 = vsel %vm6420, %v6418, %v6399
    %v6422 = vsel %vm6420, %v6419, %v6401
    %6423 = vst [vmem:[%s15] sm:$0xff] %v6421
    %6424 = vst [vmem:[%s15 + $0x8] sm:$0xff] %v6422
    %v6425 = vld [vmem:[%s1] sm:$0xff]
    %v6426 = vld [vmem:[%s1 + $0x8] sm:$0xff]
    %6429 = vrot.lane.b32.xlu0 %v6425, 112
    %v6430 = vpop.permute.xlu0 %6429
    %6431 = vrot.lane.b32.xlu0 %v6426, 112
    %v6432 = vpop.permute.xlu0 %6431
    %6435 = vrot.lane.b32.xlu0 %v6425, 96
    %v6436 = vpop.permute.xlu0 %6435
    %6437 = vrot.lane.b32.xlu0 %v6426, 96
    %v6438 = vpop.permute.xlu0 %6437
    %6441 = vrot.lane.b32.xlu0 %v6425, 80
    %v6442 = vpop.permute.xlu0 %6441
    %6443 = vrot.lane.b32.xlu0 %v6426, 80
    %v6444 = vpop.permute.xlu0 %6443
    %6447 = vrot.lane.b32.xlu0 %v6425, 64
    %v6448 = vpop.permute.xlu0 %6447
    %6449 = vrot.lane.b32.xlu0 %v6426, 64
    %v6450 = vpop.permute.xlu0 %6449
    %6453 = vrot.lane.b32.xlu0 %v6425, 48
    %v6454 = vpop.permute.xlu0 %6453
    %6455 = vrot.lane.b32.xlu0 %v6426, 48
    %v6456 = vpop.permute.xlu0 %6455
    %6459 = vrot.lane.b32.xlu0 %v6425, 32
    %v6460 = vpop.permute.xlu0 %6459
    %6461 = vrot.lane.b32.xlu0 %v6426, 32
    %v6462 = vpop.permute.xlu0 %6461
    %6465 = vrot.lane.b32.xlu0 %v6425, 16
    %v6466 = vpop.permute.xlu0 %6465
    %6467 = vrot.lane.b32.xlu0 %v6426, 16
    %v6468 = vpop.permute.xlu0 %6467
    %v6471 = vcombine.low %v6425, %v6436
    %v6472 = vcombine.high %v6425, %v6436
    %v6474 = vunpack.c.l.s4 1983009808
    %v6475 = vunpack.c.0.s8 %v6474
    %v6476 = vlaneseq
    %v6477 = vshrl.u32 %v6476, 7
    %v6478 = vsub.s32 %v6475, %v6477
    %v6479 = vrot.slane %v6471, %v6478
    %v6481 = vunpack.c.l.s4 1983009808
    %v6482 = vunpack.c.0.s8 %v6481
    %v6483 = vlaneseq
    %v6484 = vshrl.u32 %v6483, 7
    %v6485 = vsub.s32 %v6482, %v6484
    %v6486 = vrot.slane %v6472, %v6485
    %v6487 = vcombine.low %v6430, %v6442
    %v6488 = vcombine.high %v6430, %v6442
    %v6490 = vunpack.c.l.s4 1983009808
    %v6491 = vunpack.c.0.s8 %v6490
    %v6492 = vlaneseq
    %v6493 = vshrl.u32 %v6492, 7
    %v6494 = vsub.s32 %v6491, %v6493
    %v6495 = vrot.slane %v6487, %v6494
    %v6497 = vunpack.c.l.s4 1983009808
    %v6498 = vunpack.c.0.s8 %v6497
    %v6499 = vlaneseq
    %v6500 = vshrl.u32 %v6499, 7
    %v6501 = vsub.s32 %v6498, %v6500
    %v6502 = vrot.slane %v6488, %v6501
    %v6503 = vcombine.low %v6448, %v6460
    %v6504 = vcombine.high %v6448, %v6460
    %v6506 = vunpack.c.l.s4 1983009808
    %v6507 = vunpack.c.0.s8 %v6506
    %v6508 = vlaneseq
    %v6509 = vshrl.u32 %v6508, 7
    %v6510 = vsub.s32 %v6507, %v6509
    %v6511 = vrot.slane %v6503, %v6510
    %v6513 = vunpack.c.l.s4 1983009808
    %v6514 = vunpack.c.0.s8 %v6513
    %v6515 = vlaneseq
    %v6516 = vshrl.u32 %v6515, 7
    %v6517 = vsub.s32 %v6514, %v6516
    %v6518 = vrot.slane %v6504, %v6517
    %v6519 = vcombine.low %v6454, %v6466
    %v6520 = vcombine.high %v6454, %v6466
    %v6522 = vunpack.c.l.s4 1983009808
    %v6523 = vunpack.c.0.s8 %v6522
    %v6524 = vlaneseq
    %v6525 = vshrl.u32 %v6524, 7
    %v6526 = vsub.s32 %v6523, %v6525
    %v6527 = vrot.slane %v6519, %v6526
    %v6529 = vunpack.c.l.s4 1983009808
    %v6530 = vunpack.c.0.s8 %v6529
    %v6531 = vlaneseq
    %v6532 = vshrl.u32 %v6531, 7
    %v6533 = vsub.s32 %v6530, %v6532
    %v6534 = vrot.slane %v6520, %v6533
    %v6535 = vcombine.low %v6479, %v6495
    %v6536 = vcombine.high %v6479, %v6495
    %v6538 = vunpack.c.l.s4 1934713408
    %v6539 = vunpack.c.0.s8 %v6538
    %v6540 = vlaneseq
    %v6541 = vshrl.u32 %v6540, 7
    %v6542 = vsub.s32 %v6539, %v6541
    %v6543 = vrot.slane %v6535, %v6542
    %v6545 = vunpack.c.l.s4 1934713408
    %v6546 = vunpack.c.0.s8 %v6545
    %v6547 = vlaneseq
    %v6548 = vshrl.u32 %v6547, 7
    %v6549 = vsub.s32 %v6546, %v6548
    %v6550 = vrot.slane %v6536, %v6549
    %v6551 = vcombine.low %v6486, %v6502
    %v6552 = vcombine.high %v6486, %v6502
    %v6554 = vunpack.c.l.s4 1934713408
    %v6555 = vunpack.c.0.s8 %v6554
    %v6556 = vlaneseq
    %v6557 = vshrl.u32 %v6556, 7
    %v6558 = vsub.s32 %v6555, %v6557
    %v6559 = vrot.slane %v6551, %v6558
    %v6561 = vunpack.c.l.s4 1934713408
    %v6562 = vunpack.c.0.s8 %v6561
    %v6563 = vlaneseq
    %v6564 = vshrl.u32 %v6563, 7
    %v6565 = vsub.s32 %v6562, %v6564
    %v6566 = vrot.slane %v6552, %v6565
    %v6567 = vcombine.low %v6511, %v6527
    %v6568 = vcombine.high %v6511, %v6527
    %v6570 = vunpack.c.l.s4 1934713408
    %v6571 = vunpack.c.0.s8 %v6570
    %v6572 = vlaneseq
    %v6573 = vshrl.u32 %v6572, 7
    %v6574 = vsub.s32 %v6571, %v6573
    %v6575 = vrot.slane %v6567, %v6574
    %v6577 = vunpack.c.l.s4 1934713408
    %v6578 = vunpack.c.0.s8 %v6577
    %v6579 = vlaneseq
    %v6580 = vshrl.u32 %v6579, 7
    %v6581 = vsub.s32 %v6578, %v6580
    %v6582 = vrot.slane %v6568, %v6581
    %v6583 = vcombine.low %v6518, %v6534
    %v6584 = vcombine.high %v6518, %v6534
    %v6586 = vunpack.c.l.s4 1934713408
    %v6587 = vunpack.c.0.s8 %v6586
    %v6588 = vlaneseq
    %v6589 = vshrl.u32 %v6588, 7
    %v6590 = vsub.s32 %v6587, %v6589
    %v6591 = vrot.slane %v6583, %v6590
    %v6593 = vunpack.c.l.s4 1934713408
    %v6594 = vunpack.c.0.s8 %v6593
    %v6595 = vlaneseq
    %v6596 = vshrl.u32 %v6595, 7
    %v6597 = vsub.s32 %v6594, %v6596
    %v6598 = vrot.slane %v6584, %v6597
    %v6599 = vcombine.low %v6543, %v6575
    %v6600 = vcombine.high %v6543, %v6575
    %v6601 = vcombine.low %v6550, %v6582
    %v6602 = vcombine.high %v6550, %v6582
    %v6603 = vcombine.low %v6559, %v6591
    %v6604 = vcombine.high %v6559, %v6591
    %v6605 = vcombine.low %v6566, %v6598
    %v6606 = vcombine.high %v6566, %v6598
    %v6607 = vcombine.low %v6426, %v6438
    %v6608 = vcombine.high %v6426, %v6438
    %v6610 = vunpack.c.l.s4 1983009808
    %v6611 = vunpack.c.0.s8 %v6610
    %v6612 = vlaneseq
    %v6613 = vshrl.u32 %v6612, 7
    %v6614 = vsub.s32 %v6611, %v6613
    %v6615 = vrot.slane %v6607, %v6614
    %v6617 = vunpack.c.l.s4 1983009808
    %v6618 = vunpack.c.0.s8 %v6617
    %v6619 = vlaneseq
    %v6620 = vshrl.u32 %v6619, 7
    %v6621 = vsub.s32 %v6618, %v6620
    %v6622 = vrot.slane %v6608, %v6621
    %v6623 = vcombine.low %v6432, %v6444
    %v6624 = vcombine.high %v6432, %v6444
    %v6626 = vunpack.c.l.s4 1983009808
    %v6627 = vunpack.c.0.s8 %v6626
    %v6628 = vlaneseq
    %v6629 = vshrl.u32 %v6628, 7
    %v6630 = vsub.s32 %v6627, %v6629
    %v6631 = vrot.slane %v6623, %v6630
    %v6633 = vunpack.c.l.s4 1983009808
    %v6634 = vunpack.c.0.s8 %v6633
    %v6635 = vlaneseq
    %v6636 = vshrl.u32 %v6635, 7
    %v6637 = vsub.s32 %v6634, %v6636
    %v6638 = vrot.slane %v6624, %v6637
    %v6639 = vcombine.low %v6450, %v6462
    %v6640 = vcombine.high %v6450, %v6462
    %v6642 = vunpack.c.l.s4 1983009808
    %v6643 = vunpack.c.0.s8 %v6642
    %v6644 = vlaneseq
    %v6645 = vshrl.u32 %v6644, 7
    %v6646 = vsub.s32 %v6643, %v6645
    %v6647 = vrot.slane %v6639, %v6646
    %v6649 = vunpack.c.l.s4 1983009808
    %v6650 = vunpack.c.0.s8 %v6649
    %v6651 = vlaneseq
    %v6652 = vshrl.u32 %v6651, 7
    %v6653 = vsub.s32 %v6650, %v6652
    %v6654 = vrot.slane %v6640, %v6653
    %v6655 = vcombine.low %v6456, %v6468
    %v6656 = vcombine.high %v6456, %v6468
    %v6658 = vunpack.c.l.s4 1983009808
    %v6659 = vunpack.c.0.s8 %v6658
    %v6660 = vlaneseq
    %v6661 = vshrl.u32 %v6660, 7
    %v6662 = vsub.s32 %v6659, %v6661
    %v6663 = vrot.slane %v6655, %v6662
    %v6665 = vunpack.c.l.s4 1983009808
    %v6666 = vunpack.c.0.s8 %v6665
    %v6667 = vlaneseq
    %v6668 = vshrl.u32 %v6667, 7
    %v6669 = vsub.s32 %v6666, %v6668
    %v6670 = vrot.slane %v6656, %v6669
    %v6671 = vcombine.low %v6615, %v6631
    %v6672 = vcombine.high %v6615, %v6631
    %v6674 = vunpack.c.l.s4 1934713408
    %v6675 = vunpack.c.0.s8 %v6674
    %v6676 = vlaneseq
    %v6677 = vshrl.u32 %v6676, 7
    %v6678 = vsub.s32 %v6675, %v6677
    %v6679 = vrot.slane %v6671, %v6678
    %v6681 = vunpack.c.l.s4 1934713408
    %v6682 = vunpack.c.0.s8 %v6681
    %v6683 = vlaneseq
    %v6684 = vshrl.u32 %v6683, 7
    %v6685 = vsub.s32 %v6682, %v6684
    %v6686 = vrot.slane %v6672, %v6685
    %v6687 = vcombine.low %v6622, %v6638
    %v6688 = vcombine.high %v6622, %v6638
    %v6690 = vunpack.c.l.s4 1934713408
    %v6691 = vunpack.c.0.s8 %v6690
    %v6692 = vlaneseq
    %v6693 = vshrl.u32 %v6692, 7
    %v6694 = vsub.s32 %v6691, %v6693
    %v6695 = vrot.slane %v6687, %v6694
    %v6697 = vunpack.c.l.s4 1934713408
    %v6698 = vunpack.c.0.s8 %v6697
    %v6699 = vlaneseq
    %v6700 = vshrl.u32 %v6699, 7
    %v6701 = vsub.s32 %v6698, %v6700
    %v6702 = vrot.slane %v6688, %v6701
    %v6703 = vcombine.low %v6647, %v6663
    %v6704 = vcombine.high %v6647, %v6663
    %v6706 = vunpack.c.l.s4 1934713408
    %v6707 = vunpack.c.0.s8 %v6706
    %v6708 = vlaneseq
    %v6709 = vshrl.u32 %v6708, 7
    %v6710 = vsub.s32 %v6707, %v6709
    %v6711 = vrot.slane %v6703, %v6710
    %v6713 = vunpack.c.l.s4 1934713408
    %v6714 = vunpack.c.0.s8 %v6713
    %v6715 = vlaneseq
    %v6716 = vshrl.u32 %v6715, 7
    %v6717 = vsub.s32 %v6714, %v6716
    %v6718 = vrot.slane %v6704, %v6717
    %v6719 = vcombine.low %v6654, %v6670
    %v6720 = vcombine.high %v6654, %v6670
    %v6722 = vunpack.c.l.s4 1934713408
    %v6723 = vunpack.c.0.s8 %v6722
    %v6724 = vlaneseq
    %v6725 = vshrl.u32 %v6724, 7
    %v6726 = vsub.s32 %v6723, %v6725
    %v6727 = vrot.slane %v6719, %v6726
    %v6729 = vunpack.c.l.s4 1934713408
    %v6730 = vunpack.c.0.s8 %v6729
    %v6731 = vlaneseq
    %v6732 = vshrl.u32 %v6731, 7
    %v6733 = vsub.s32 %v6730, %v6732
    %v6734 = vrot.slane %v6720, %v6733
    %v6735 = vcombine.low %v6679, %v6711
    %v6736 = vcombine.high %v6679, %v6711
    %v6737 = vcombine.low %v6686, %v6718
    %v6738 = vcombine.high %v6686, %v6718
    %v6739 = vcombine.low %v6695, %v6727
    %v6740 = vcombine.high %v6695, %v6727
    %v6741 = vcombine.low %v6702, %v6734
    %v6742 = vcombine.high %v6702, %v6734
    %v6743 = vadd.f32 %v5755, %v6599
    %v6744 = vadd.f32 %v5756, %v6600
    %v6745 = vadd.f32 %v5757, %v6601
    %v6746 = vadd.f32 %v5758, %v6602
    %v6747 = vadd.f32 %v5759, %v6603
    %v6748 = vadd.f32 %v5760, %v6604
    %v6749 = vadd.f32 %v5761, %v6605
    %v6750 = vadd.f32 %v5762, %v6606
    %v6751 = vadd.f32 %v5891, %v6735
    %v6752 = vadd.f32 %v5892, %v6736
    %v6753 = vadd.f32 %v5893, %v6737
    %v6754 = vadd.f32 %v5894, %v6738
    %v6755 = vadd.f32 %v5895, %v6739
    %v6756 = vadd.f32 %v5896, %v6740
    %v6757 = vadd.f32 %v5897, %v6741
    %v6758 = vadd.f32 %v5898, %v6742
    %v6759 = vsel %vm5899, %v6743, -inf
    %6760 = vmax.xlane.f32.xlu0 %v6759
    %v6761 = vpop.xlane.xlu0 %6760
    %v6762 = vsel %vm5899, %v6744, -inf
    %6763 = vmax.xlane.f32.xlu0 %v6762
    %v6764 = vpop.xlane.xlu0 %6763
    %v6765 = vsel %vm5899, %v6745, -inf
    %6766 = vmax.xlane.f32.xlu0 %v6765
    %v6767 = vpop.xlane.xlu0 %6766
    %v6768 = vsel %vm5899, %v6746, -inf
    %6769 = vmax.xlane.f32.xlu0 %v6768
    %v6770 = vpop.xlane.xlu0 %6769
    %v6771 = vsel %vm5899, %v6747, -inf
    %6772 = vmax.xlane.f32.xlu0 %v6771
    %v6773 = vpop.xlane.xlu0 %6772
    %v6774 = vsel %vm5899, %v6748, -inf
    %6775 = vmax.xlane.f32.xlu0 %v6774
    %v6776 = vpop.xlane.xlu0 %6775
    %v6777 = vsel %vm5899, %v6749, -inf
    %6778 = vmax.xlane.f32.xlu0 %v6777
    %v6779 = vpop.xlane.xlu0 %6778
    %v6780 = vsel %vm5899, %v6750, -inf
    %6781 = vmax.xlane.f32.xlu0 %v6780
    %v6782 = vpop.xlane.xlu0 %6781
    %v6783 = vsel %vm5899, %v6751, -inf
    %6784 = vmax.xlane.f32.xlu0 %v6783
    %v6785 = vpop.xlane.xlu0 %6784
    %v6786 = vsel %vm5899, %v6752, -inf
    %6787 = vmax.xlane.f32.xlu0 %v6786
    %v6788 = vpop.xlane.xlu0 %6787
    %v6789 = vsel %vm5899, %v6753, -inf
    %6790 = vmax.xlane.f32.xlu0 %v6789
    %v6791 = vpop.xlane.xlu0 %6790
    %v6792 = vsel %vm5899, %v6754, -inf
    %6793 = vmax.xlane.f32.xlu0 %v6792
    %v6794 = vpop.xlane.xlu0 %6793
    %v6795 = vsel %vm5899, %v6755, -inf
    %6796 = vmax.xlane.f32.xlu0 %v6795
    %v6797 = vpop.xlane.xlu0 %6796
    %v6798 = vsel %vm5899, %v6756, -inf
    %6799 = vmax.xlane.f32.xlu0 %v6798
    %v6800 = vpop.xlane.xlu0 %6799
    %v6801 = vsel %vm5899, %v6757, -inf
    %6802 = vmax.xlane.f32.xlu0 %v6801
    %v6803 = vpop.xlane.xlu0 %6802
    %v6804 = vsel %vm5899, %v6758, -inf
    %6805 = vmax.xlane.f32.xlu0 %v6804
    %v6806 = vpop.xlane.xlu0 %6805
    %v6807 = vsub.f32 %v6743, %v6761
    %v6808 = vsub.f32 %v6744, %v6764
    %v6809 = vsub.f32 %v6745, %v6767
    %v6810 = vsub.f32 %v6746, %v6770
    %v6811 = vsub.f32 %v6747, %v6773
    %v6812 = vsub.f32 %v6748, %v6776
    %v6813 = vsub.f32 %v6749, %v6779
    %v6814 = vsub.f32 %v6750, %v6782
    %v6815 = vsub.f32 %v6751, %v6785
    %v6816 = vsub.f32 %v6752, %v6788
    %v6817 = vsub.f32 %v6753, %v6791
    %v6818 = vsub.f32 %v6754, %v6794
    %v6819 = vsub.f32 %v6755, %v6797
    %v6820 = vsub.f32 %v6756, %v6800
    %v6821 = vsub.f32 %v6757, %v6803
    %v6822 = vsub.f32 %v6758, %v6806
    %v6823 = vmul.f32 %v6807, 1.442695
    %v6824 = vpow.pop %v6823
    %v6825 = vmul.f32 %v6808, 1.442695
    %v6826 = vpow.pop %v6825
    %v6827 = vmul.f32 %v6809, 1.442695
    %v6828 = vpow.pop %v6827
    %v6829 = vmul.f32 %v6810, 1.442695
    %v6830 = vpow.pop %v6829
    %v6831 = vmul.f32 %v6811, 1.442695
    %v6832 = vpow.pop %v6831
    %v6833 = vmul.f32 %v6812, 1.442695
    %v6834 = vpow.pop %v6833
    %v6835 = vmul.f32 %v6813, 1.442695
    %v6836 = vpow.pop %v6835
    %v6837 = vmul.f32 %v6814, 1.442695
    %v6838 = vpow.pop %v6837
    %v6839 = vmul.f32 %v6815, 1.442695
    %v6840 = vpow.pop %v6839
    %v6841 = vmul.f32 %v6816, 1.442695
    %v6842 = vpow.pop %v6841
    %v6843 = vmul.f32 %v6817, 1.442695
    %v6844 = vpow.pop %v6843
    %v6845 = vmul.f32 %v6818, 1.442695
    %v6846 = vpow.pop %v6845
    %v6847 = vmul.f32 %v6819, 1.442695
    %v6848 = vpow.pop %v6847
    %v6849 = vmul.f32 %v6820, 1.442695
    %v6850 = vpow.pop %v6849
    %v6851 = vmul.f32 %v6821, 1.442695
    %v6852 = vpow.pop %v6851
    %v6853 = vmul.f32 %v6822, 1.442695
    %v6854 = vpow.pop %v6853
    %v6855 = vsel %vm5899, %v6824, 0.0
    %6856 = vadd.xlane.f32.xlu0 %v6855
    %v6857 = vpop.xlane.xlu0 %6856
    %v6858 = vsel %vm5899, %v6826, 0.0
    %6859 = vadd.xlane.f32.xlu0 %v6858
    %v6860 = vpop.xlane.xlu0 %6859
    %v6861 = vsel %vm5899, %v6828, 0.0
    %6862 = vadd.xlane.f32.xlu0 %v6861
    %v6863 = vpop.xlane.xlu0 %6862
    %v6864 = vsel %vm5899, %v6830, 0.0
    %6865 = vadd.xlane.f32.xlu0 %v6864
    %v6866 = vpop.xlane.xlu0 %6865
    %v6867 = vsel %vm5899, %v6832, 0.0
    %6868 = vadd.xlane.f32.xlu0 %v6867
    %v6869 = vpop.xlane.xlu0 %6868
    %v6870 = vsel %vm5899, %v6834, 0.0
    %6871 = vadd.xlane.f32.xlu0 %v6870
    %v6872 = vpop.xlane.xlu0 %6871
    %v6873 = vsel %vm5899, %v6836, 0.0
    %6874 = vadd.xlane.f32.xlu0 %v6873
    %v6875 = vpop.xlane.xlu0 %6874
    %v6876 = vsel %vm5899, %v6838, 0.0
    %6877 = vadd.xlane.f32.xlu0 %v6876
    %v6878 = vpop.xlane.xlu0 %6877
    %v6879 = vsel %vm5899, %v6840, 0.0
    %6880 = vadd.xlane.f32.xlu0 %v6879
    %v6881 = vpop.xlane.xlu0 %6880
    %v6882 = vsel %vm5899, %v6842, 0.0
    %6883 = vadd.xlane.f32.xlu0 %v6882
    %v6884 = vpop.xlane.xlu0 %6883
    %v6885 = vsel %vm5899, %v6844, 0.0
    %6886 = vadd.xlane.f32.xlu0 %v6885
    %v6887 = vpop.xlane.xlu0 %6886
    %v6888 = vsel %vm5899, %v6846, 0.0
    %6889 = vadd.xlane.f32.xlu0 %v6888
    %v6890 = vpop.xlane.xlu0 %6889
    %v6891 = vsel %vm5899, %v6848, 0.0
    %6892 = vadd.xlane.f32.xlu0 %v6891
    %v6893 = vpop.xlane.xlu0 %6892
    %v6894 = vsel %vm5899, %v6850, 0.0
    %6895 = vadd.xlane.f32.xlu0 %v6894
    %v6896 = vpop.xlane.xlu0 %6895
    %v6897 = vsel %vm5899, %v6852, 0.0
    %6898 = vadd.xlane.f32.xlu0 %v6897
    %v6899 = vpop.xlane.xlu0 %6898
    %v6900 = vsel %vm5899, %v6854, 0.0
    %6901 = vadd.xlane.f32.xlu0 %v6900
    %v6902 = vpop.xlane.xlu0 %6901
    %v6903 = vrcp.pop %v6857
    %v6904 = vmul.f32 %v6824, %v6903
    %v6905 = vrcp.pop %v6860
    %v6906 = vmul.f32 %v6826, %v6905
    %v6907 = vrcp.pop %v6863
    %v6908 = vmul.f32 %v6828, %v6907
    %v6909 = vrcp.pop %v6866
    %v6910 = vmul.f32 %v6830, %v6909
    %v6911 = vrcp.pop %v6869
    %v6912 = vmul.f32 %v6832, %v6911
    %v6913 = vrcp.pop %v6872
    %v6914 = vmul.f32 %v6834, %v6913
    %v6915 = vrcp.pop %v6875
    %v6916 = vmul.f32 %v6836, %v6915
    %v6917 = vrcp.pop %v6878
    %v6918 = vmul.f32 %v6838, %v6917
    %v6919 = vrcp.pop %v6881
    %v6920 = vmul.f32 %v6840, %v6919
    %v6921 = vrcp.pop %v6884
    %v6922 = vmul.f32 %v6842, %v6921
    %v6923 = vrcp.pop %v6887
    %v6924 = vmul.f32 %v6844, %v6923
    %v6925 = vrcp.pop %v6890
    %v6926 = vmul.f32 %v6846, %v6925
    %v6927 = vrcp.pop %v6893
    %v6928 = vmul.f32 %v6848, %v6927
    %v6929 = vrcp.pop %v6896
    %v6930 = vmul.f32 %v6850, %v6929
    %v6931 = vrcp.pop %v6899
    %v6932 = vmul.f32 %v6852, %v6931
    %v6933 = vrcp.pop %v6902
    %v6934 = vmul.f32 %v6854, %v6933
    %v6935 = vcombine.low %v6904, %v6908
    %v6936 = vcombine.high %v6904, %v6908
    %v6938 = vunpack.c.l.s4 1983009808
    %v6939 = vunpack.c.0.s8 %v6938
    %v6940 = vlaneseq
    %v6941 = vshrl.u32 %v6940, 7
    %v6942 = vsub.s32 %v6939, %v6941
    %v6943 = vrot.slane %v6935, %v6942
    %v6945 = vunpack.c.l.s4 1983009808
    %v6946 = vunpack.c.0.s8 %v6945
    %v6947 = vlaneseq
    %v6948 = vshrl.u32 %v6947, 7
    %v6949 = vsub.s32 %v6946, %v6948
    %v6950 = vrot.slane %v6936, %v6949
    %v6951 = vcombine.low %v6906, %v6910
    %v6952 = vcombine.high %v6906, %v6910
    %v6954 = vunpack.c.l.s4 1983009808
    %v6955 = vunpack.c.0.s8 %v6954
    %v6956 = vlaneseq
    %v6957 = vshrl.u32 %v6956, 7
    %v6958 = vsub.s32 %v6955, %v6957
    %v6959 = vrot.slane %v6951, %v6958
    %v6961 = vunpack.c.l.s4 1983009808
    %v6962 = vunpack.c.0.s8 %v6961
    %v6963 = vlaneseq
    %v6964 = vshrl.u32 %v6963, 7
    %v6965 = vsub.s32 %v6962, %v6964
    %v6966 = vrot.slane %v6952, %v6965
    %v6967 = vcombine.low %v6912, %v6916
    %v6968 = vcombine.high %v6912, %v6916
    %v6970 = vunpack.c.l.s4 1983009808
    %v6971 = vunpack.c.0.s8 %v6970
    %v6972 = vlaneseq
    %v6973 = vshrl.u32 %v6972, 7
    %v6974 = vsub.s32 %v6971, %v6973
    %v6975 = vrot.slane %v6967, %v6974
    %v6977 = vunpack.c.l.s4 1983009808
    %v6978 = vunpack.c.0.s8 %v6977
    %v6979 = vlaneseq
    %v6980 = vshrl.u32 %v6979, 7
    %v6981 = vsub.s32 %v6978, %v6980
    %v6982 = vrot.slane %v6968, %v6981
    %v6983 = vcombine.low %v6914, %v6918
    %v6984 = vcombine.high %v6914, %v6918
    %v6986 = vunpack.c.l.s4 1983009808
    %v6987 = vunpack.c.0.s8 %v6986
    %v6988 = vlaneseq
    %v6989 = vshrl.u32 %v6988, 7
    %v6990 = vsub.s32 %v6987, %v6989
    %v6991 = vrot.slane %v6983, %v6990
    %v6993 = vunpack.c.l.s4 1983009808
    %v6994 = vunpack.c.0.s8 %v6993
    %v6995 = vlaneseq
    %v6996 = vshrl.u32 %v6995, 7
    %v6997 = vsub.s32 %v6994, %v6996
    %v6998 = vrot.slane %v6984, %v6997
    %v6999 = vcombine.low %v6943, %v6959
    %v7000 = vcombine.high %v6943, %v6959
    %v7002 = vunpack.c.l.s4 1934713408
    %v7003 = vunpack.c.0.s8 %v7002
    %v7004 = vlaneseq
    %v7005 = vshrl.u32 %v7004, 7
    %v7006 = vsub.s32 %v7003, %v7005
    %v7007 = vrot.slane %v6999, %v7006
    %v7009 = vunpack.c.l.s4 1934713408
    %v7010 = vunpack.c.0.s8 %v7009
    %v7011 = vlaneseq
    %v7012 = vshrl.u32 %v7011, 7
    %v7013 = vsub.s32 %v7010, %v7012
    %v7014 = vrot.slane %v7000, %v7013
    %v7015 = vcombine.low %v6950, %v6966
    %v7016 = vcombine.high %v6950, %v6966
    %v7018 = vunpack.c.l.s4 1934713408
    %v7019 = vunpack.c.0.s8 %v7018
    %v7020 = vlaneseq
    %v7021 = vshrl.u32 %v7020, 7
    %v7022 = vsub.s32 %v7019, %v7021
    %v7023 = vrot.slane %v7015, %v7022
    %v7025 = vunpack.c.l.s4 1934713408
    %v7026 = vunpack.c.0.s8 %v7025
    %v7027 = vlaneseq
    %v7028 = vshrl.u32 %v7027, 7
    %v7029 = vsub.s32 %v7026, %v7028
    %v7030 = vrot.slane %v7016, %v7029
    %v7031 = vcombine.low %v6975, %v6991
    %v7032 = vcombine.high %v6975, %v6991
    %v7034 = vunpack.c.l.s4 1934713408
    %v7035 = vunpack.c.0.s8 %v7034
    %v7036 = vlaneseq
    %v7037 = vshrl.u32 %v7036, 7
    %v7038 = vsub.s32 %v7035, %v7037
    %v7039 = vrot.slane %v7031, %v7038
    %v7041 = vunpack.c.l.s4 1934713408
    %v7042 = vunpack.c.0.s8 %v7041
    %v7043 = vlaneseq
    %v7044 = vshrl.u32 %v7043, 7
    %v7045 = vsub.s32 %v7042, %v7044
    %v7046 = vrot.slane %v7032, %v7045
    %v7047 = vcombine.low %v6982, %v6998
    %v7048 = vcombine.high %v6982, %v6998
    %v7050 = vunpack.c.l.s4 1934713408
    %v7051 = vunpack.c.0.s8 %v7050
    %v7052 = vlaneseq
    %v7053 = vshrl.u32 %v7052, 7
    %v7054 = vsub.s32 %v7051, %v7053
    %v7055 = vrot.slane %v7047, %v7054
    %v7057 = vunpack.c.l.s4 1934713408
    %v7058 = vunpack.c.0.s8 %v7057
    %v7059 = vlaneseq
    %v7060 = vshrl.u32 %v7059, 7
    %v7061 = vsub.s32 %v7058, %v7060
    %v7062 = vrot.slane %v7048, %v7061
    %v7063 = vcombine.low %v7007, %v7039
    %v7064 = vcombine.high %v7007, %v7039
    %v7065 = vcombine.low %v7014, %v7046
    %v7066 = vcombine.high %v7014, %v7046
    %v7067 = vcombine.low %v7023, %v7055
    %v7068 = vcombine.high %v7023, %v7055
    %v7069 = vcombine.low %v7030, %v7062
    %v7070 = vcombine.high %v7030, %v7062
    %v7071 = vcombine.low %v6920, %v6924
    %v7072 = vcombine.high %v6920, %v6924
    %v7074 = vunpack.c.l.s4 1983009808
    %v7075 = vunpack.c.0.s8 %v7074
    %v7076 = vlaneseq
    %v7077 = vshrl.u32 %v7076, 7
    %v7078 = vsub.s32 %v7075, %v7077
    %v7079 = vrot.slane %v7071, %v7078
    %v7081 = vunpack.c.l.s4 1983009808
    %v7082 = vunpack.c.0.s8 %v7081
    %v7083 = vlaneseq
    %v7084 = vshrl.u32 %v7083, 7
    %v7085 = vsub.s32 %v7082, %v7084
    %v7086 = vrot.slane %v7072, %v7085
    %v7087 = vcombine.low %v6922, %v6926
    %v7088 = vcombine.high %v6922, %v6926
    %v7090 = vunpack.c.l.s4 1983009808
    %v7091 = vunpack.c.0.s8 %v7090
    %v7092 = vlaneseq
    %v7093 = vshrl.u32 %v7092, 7
    %v7094 = vsub.s32 %v7091, %v7093
    %v7095 = vrot.slane %v7087, %v7094
    %v7097 = vunpack.c.l.s4 1983009808
    %v7098 = vunpack.c.0.s8 %v7097
    %v7099 = vlaneseq
    %v7100 = vshrl.u32 %v7099, 7
    %v7101 = vsub.s32 %v7098, %v7100
    %v7102 = vrot.slane %v7088, %v7101
    %v7103 = vcombine.low %v6928, %v6932
    %v7104 = vcombine.high %v6928, %v6932
    %v7106 = vunpack.c.l.s4 1983009808
    %v7107 = vunpack.c.0.s8 %v7106
    %v7108 = vlaneseq
    %v7109 = vshrl.u32 %v7108, 7
    %v7110 = vsub.s32 %v7107, %v7109
    %v7111 = vrot.slane %v7103, %v7110
    %v7113 = vunpack.c.l.s4 1983009808
    %v7114 = vunpack.c.0.s8 %v7113
    %v7115 = vlaneseq
    %v7116 = vshrl.u32 %v7115, 7
    %v7117 = vsub.s32 %v7114, %v7116
    %v7118 = vrot.slane %v7104, %v7117
    %v7119 = vcombine.low %v6930, %v6934
    %v7120 = vcombine.high %v6930, %v6934
    %v7122 = vunpack.c.l.s4 1983009808
    %v7123 = vunpack.c.0.s8 %v7122
    %v7124 = vlaneseq
    %v7125 = vshrl.u32 %v7124, 7
    %v7126 = vsub.s32 %v7123, %v7125
    %v7127 = vrot.slane %v7119, %v7126
    %v7129 = vunpack.c.l.s4 1983009808
    %v7130 = vunpack.c.0.s8 %v7129
    %v7131 = vlaneseq
    %v7132 = vshrl.u32 %v7131, 7
    %v7133 = vsub.s32 %v7130, %v7132
    %v7134 = vrot.slane %v7120, %v7133
    %v7135 = vcombine.low %v7079, %v7095
    %v7136 = vcombine.high %v7079, %v7095
    %v7138 = vunpack.c.l.s4 1934713408
    %v7139 = vunpack.c.0.s8 %v7138
    %v7140 = vlaneseq
    %v7141 = vshrl.u32 %v7140, 7
    %v7142 = vsub.s32 %v7139, %v7141
    %v7143 = vrot.slane %v7135, %v7142
    %v7145 = vunpack.c.l.s4 1934713408
    %v7146 = vunpack.c.0.s8 %v7145
    %v7147 = vlaneseq
    %v7148 = vshrl.u32 %v7147, 7
    %v7149 = vsub.s32 %v7146, %v7148
    %v7150 = vrot.slane %v7136, %v7149
    %v7151 = vcombine.low %v7086, %v7102
    %v7152 = vcombine.high %v7086, %v7102
    %v7154 = vunpack.c.l.s4 1934713408
    %v7155 = vunpack.c.0.s8 %v7154
    %v7156 = vlaneseq
    %v7157 = vshrl.u32 %v7156, 7
    %v7158 = vsub.s32 %v7155, %v7157
    %v7159 = vrot.slane %v7151, %v7158
    %v7161 = vunpack.c.l.s4 1934713408
    %v7162 = vunpack.c.0.s8 %v7161
    %v7163 = vlaneseq
    %v7164 = vshrl.u32 %v7163, 7
    %v7165 = vsub.s32 %v7162, %v7164
    %v7166 = vrot.slane %v7152, %v7165
    %v7167 = vcombine.low %v7111, %v7127
    %v7168 = vcombine.high %v7111, %v7127
    %v7170 = vunpack.c.l.s4 1934713408
    %v7171 = vunpack.c.0.s8 %v7170
    %v7172 = vlaneseq
    %v7173 = vshrl.u32 %v7172, 7
    %v7174 = vsub.s32 %v7171, %v7173
    %v7175 = vrot.slane %v7167, %v7174
    %v7177 = vunpack.c.l.s4 1934713408
    %v7178 = vunpack.c.0.s8 %v7177
    %v7179 = vlaneseq
    %v7180 = vshrl.u32 %v7179, 7
    %v7181 = vsub.s32 %v7178, %v7180
    %v7182 = vrot.slane %v7168, %v7181
    %v7183 = vcombine.low %v7118, %v7134
    %v7184 = vcombine.high %v7118, %v7134
    %v7186 = vunpack.c.l.s4 1934713408
    %v7187 = vunpack.c.0.s8 %v7186
    %v7188 = vlaneseq
    %v7189 = vshrl.u32 %v7188, 7
    %v7190 = vsub.s32 %v7187, %v7189
    %v7191 = vrot.slane %v7183, %v7190
    %v7193 = vunpack.c.l.s4 1934713408
    %v7194 = vunpack.c.0.s8 %v7193
    %v7195 = vlaneseq
    %v7196 = vshrl.u32 %v7195, 7
    %v7197 = vsub.s32 %v7194, %v7196
    %v7198 = vrot.slane %v7184, %v7197
    %v7199 = vcombine.low %v7143, %v7175
    %v7200 = vcombine.high %v7143, %v7175
    %v7201 = vcombine.low %v7150, %v7182
    %v7202 = vcombine.high %v7150, %v7182
    %v7203 = vcombine.low %v7159, %v7191
    %v7204 = vcombine.high %v7159, %v7191
    %v7205 = vcombine.low %v7166, %v7198
    %v7206 = vcombine.high %v7166, %v7198
    %7209 = vrot.lane.b32.xlu0 %v7064, 16
    %v7210 = vpop.permute.xlu0 %7209
    %7211 = vrot.lane.b32.xlu0 %v7200, 16
    %v7212 = vpop.permute.xlu0 %7211
    %7217 = vrot.lane.b32.xlu0 %v7065, 32
    %v7218 = vpop.permute.xlu0 %7217
    %7219 = vrot.lane.b32.xlu0 %v7201, 32
    %v7220 = vpop.permute.xlu0 %7219
    %7225 = vrot.lane.b32.xlu0 %v7066, 48
    %v7226 = vpop.permute.xlu0 %7225
    %7227 = vrot.lane.b32.xlu0 %v7202, 48
    %v7228 = vpop.permute.xlu0 %7227
    %7233 = vrot.lane.b32.xlu0 %v7067, 64
    %v7234 = vpop.permute.xlu0 %7233
    %7235 = vrot.lane.b32.xlu0 %v7203, 64
    %v7236 = vpop.permute.xlu0 %7235
    %7241 = vrot.lane.b32.xlu0 %v7068, 80
    %v7242 = vpop.permute.xlu0 %7241
    %7243 = vrot.lane.b32.xlu0 %v7204, 80
    %v7244 = vpop.permute.xlu0 %7243
    %7249 = vrot.lane.b32.xlu0 %v7069, 96
    %v7250 = vpop.permute.xlu0 %7249
    %7251 = vrot.lane.b32.xlu0 %v7205, 96
    %v7252 = vpop.permute.xlu0 %7251
    %7257 = vrot.lane.b32.xlu0 %v7070, 112
    %v7258 = vpop.permute.xlu0 %7257
    %7259 = vrot.lane.b32.xlu0 %v7206, 112
    %v7260 = vpop.permute.xlu0 %7259
    %v7263 = vsel %vm5899, %v7063, %v7210
    %v7264 = vsel %vm5899, %v7199, %v7212
    %v7265 = vsel %vm6406, %v7263, %v7218
    %v7266 = vsel %vm6406, %v7264, %v7220
    %v7267 = vsel %vm354, %v7265, %v7226
    %v7268 = vsel %vm354, %v7266, %v7228
    %v7269 = vsel %vm6411, %v7267, %v7234
    %v7270 = vsel %vm6411, %v7268, %v7236
    %v7271 = vsel %vm6414, %v7269, %v7242
    %v7272 = vsel %vm6414, %v7270, %v7244
    %v7273 = vsel %vm6417, %v7271, %v7250
    %v7274 = vsel %vm6417, %v7272, %v7252
    %v7275 = vsel %vm6420, %v7273, %v7258
    %v7276 = vsel %vm6420, %v7274, %v7260
    %v7277 = vpack.c.bf16 %v7276, %v7275
    %v7278 = vld [vmem:[#allocation13] sm:$0xff]
    %v7279 = vld [vmem:[#allocation13 + $0x8] sm:$0xff]
    %v7280 = vld [vmem:[#allocation13 + $0x10] sm:$0xff]
    %v7281 = vld [vmem:[#allocation13 + $0x18] sm:$0xff]
    %v7282 = vld [vmem:[#allocation13 + $0x20] sm:$0xff]
    %v7283 = vld [vmem:[#allocation13 + $0x28] sm:$0xff]
    %v7284 = vld [vmem:[#allocation13 + $0x30] sm:$0xff]
    %v7285 = vld [vmem:[#allocation13 + $0x38] sm:$0xff]
    %v7286 = vld [vmem:[#allocation13 + $0x40] sm:$0xff]
    %v7287 = vld [vmem:[#allocation13 + $0x48] sm:$0xff]
    %v7288 = vld [vmem:[#allocation13 + $0x50] sm:$0xff]
    %v7289 = vld [vmem:[#allocation13 + $0x58] sm:$0xff]
    %v7290 = vld [vmem:[#allocation13 + $0x60] sm:$0xff]
    %v7291 = vld [vmem:[#allocation13 + $0x68] sm:$0xff]
    %v7292 = vld [vmem:[#allocation13 + $0x70] sm:$0xff]
    %v7293 = vld [vmem:[#allocation13 + $0x78] sm:$0xff]
    %v7294 = vld [vmem:[#allocation14] sm:$0x3]
    %v7296 = vlaneseq
    %v7297 = vshrl.u32 %v7296, 7
    %v7298 = vsub.s32 0, %v7297
    %v7299 = vrot.slane %v7294, %v7298
    %v7300 = vlaneseq
    %v7301 = vshrl.u32 %v7300, 7
    %v7302 = vsub.s32 1, %v7301
    %v7303 = vrot.slane %v7294, %v7302
    %v7322 = vunpack.c.l.b16 %v7278
    %v7323 = vunpack.c.h.b16 %v7278
    %v7324 = vunpack.c.l.b16 %v7279
    %v7325 = vunpack.c.h.b16 %v7279
    %v7326 = vunpack.c.l.b16 %v7280
    %v7327 = vunpack.c.h.b16 %v7280
    %v7328 = vunpack.c.l.b16 %v7281
    %v7329 = vunpack.c.h.b16 %v7281
    %v7330 = vunpack.c.l.b16 %v7282
    %v7331 = vunpack.c.h.b16 %v7282
    %v7332 = vunpack.c.l.b16 %v7283
    %v7333 = vunpack.c.h.b16 %v7283
    %v7334 = vunpack.c.l.b16 %v7284
    %v7335 = vunpack.c.h.b16 %v7284
    %v7336 = vunpack.c.l.b16 %v7285
    %v7337 = vunpack.c.h.b16 %v7285
    %v7338 = vunpack.c.l.b16 %v7286
    %v7339 = vunpack.c.h.b16 %v7286
    %v7340 = vunpack.c.l.b16 %v7287
    %v7341 = vunpack.c.h.b16 %v7287
    %v7342 = vunpack.c.l.b16 %v7288
    %v7343 = vunpack.c.h.b16 %v7288
    %v7344 = vunpack.c.l.b16 %v7289
    %v7345 = vunpack.c.h.b16 %v7289
    %v7346 = vunpack.c.l.b16 %v7290
    %v7347 = vunpack.c.h.b16 %v7290
    %v7348 = vunpack.c.l.b16 %v7291
    %v7349 = vunpack.c.h.b16 %v7291
    %v7350 = vunpack.c.l.b16 %v7292
    %v7351 = vunpack.c.h.b16 %v7292
    %v7352 = vunpack.c.l.b16 %v7293
    %v7353 = vunpack.c.h.b16 %v7293
    %v7354 = vpack.c.b16 %v7324, %v7322
    %v7355 = vpack.c.b16 %v7325, %v7323
    %v7356 = vpack.c.b16 %v7328, %v7326
    %v7357 = vpack.c.b16 %v7329, %v7327
    %v7358 = vpack.c.b16 %v7332, %v7330
    %v7359 = vpack.c.b16 %v7333, %v7331
    %v7360 = vpack.c.b16 %v7336, %v7334
    %v7361 = vpack.c.b16 %v7337, %v7335
    %v7362 = vpack.c.b16 %v7340, %v7338
    %v7363 = vpack.c.b16 %v7341, %v7339
    %v7364 = vpack.c.b16 %v7344, %v7342
    %v7365 = vpack.c.b16 %v7345, %v7343
    %v7366 = vpack.c.b16 %v7348, %v7346
    %v7367 = vpack.c.b16 %v7349, %v7347
    %v7368 = vpack.c.b16 %v7352, %v7350
    %v7369 = vpack.c.b16 %v7353, %v7351
    %7386 = vmatprep.subr.bf16.mxu0 %v7355
    %7387 = vmatpush1.bf16.msra.mxu0 %v7354
    %7388 = vmatprep.subr.bf16.mxu0 %v7357
    %7389 = vmatpush1.bf16.msra.mxu0 %v7356
    %7390 = vmatprep.subr.bf16.mxu0 %v7359
    %7391 = vmatpush1.bf16.msra.mxu0 %v7358
    %7392 = vmatprep.subr.bf16.mxu0 %v7361
    %7393 = vmatpush1.bf16.msra.mxu0 %v7360
    %7394 = vmatprep.subr.bf16.mxu0 %v7363
    %7395 = vmatpush1.bf16.msra.mxu0 %v7362
    %7396 = vmatprep.subr.bf16.mxu0 %v7365
    %7397 = vmatpush1.bf16.msra.mxu0 %v7364
    %7398 = vmatprep.subr.bf16.mxu0 %v7367
    %7399 = vmatpush1.bf16.msra.mxu0 %v7366
    %7400 = vmatprep.subr.bf16.mxu0 %v7369
    %7401 = vmatpush1.bf16.msra.mxu0 %v7368
    %7402 = vmatprep.subr.bf16.mxu0 0
    %7403 = vmatpush1.bf16.msra.mxu0 0
    %7404 = vmatprep.subr.bf16.mxu0 0
    %7405 = vmatpush1.bf16.msra.mxu0 0
    %7406 = vmatprep.subr.bf16.mxu0 0
    %7407 = vmatpush1.bf16.msra.mxu0 0
    %7408 = vmatprep.subr.bf16.mxu0 0
    %7409 = vmatpush1.bf16.msra.mxu0 0
    %7410 = vmatprep.subr.bf16.mxu0 0
    %7411 = vmatpush1.bf16.msra.mxu0 0
    %7412 = vmatprep.subr.bf16.mxu0 0
    %7413 = vmatpush1.bf16.msra.mxu0 0
    %7414 = vmatprep.subr.bf16.mxu0 0
    %7415 = vmatpush1.bf16.msra.mxu0 0
    %7416 = vmatprep.subr.bf16.mxu0 0
    %7417 = vmatpush1.bf16.msra.mxu0 0
    %7418 = vmatprep.mubr.bf16.mxu0 0
    %7419 = vmatmul.mubr.bf16.gmra.mrb[0].mxu0 %v7277
    %v7420 = vpop.f32.mrb[0].mxu0
    %v7421 = vadd.f32 %v7299, %v7420
    %v7422 = vpop.f32.mrb[0].mxu0
    %v7423 = vadd.f32 %v7303, %v7422
    %v7424 = vpop.f32.mrb[0].mxu0
    %v7425 = vadd.f32 %v7299, %v7424
    %v7426 = vpop.f32.mrb[0].mxu0
    %v7427 = vadd.f32 %v7303, %v7426
    %7428 = vdwg.mxu0
    %v7429 = vmax.f32 %v7421, 0.0
    %v7430 = vmax.f32 %v7423, 0.0
    %v7431 = vmax.f32 %v7425, 0.0
    %v7432 = vmax.f32 %v7427, 0.0
    %v7433 = vpack.c.bf16 %v7431, %v7429
    %v7434 = vpack.c.bf16 %v7432, %v7430
    %v7435 = vld [vmem:[#allocation16] sm:$0xff]
    %v7436 = vld [vmem:[#allocation16 + $0x8] sm:$0xff]
    %v7437 = vld [vmem:[#allocation16 + $0x10] sm:$0xff]
    %v7438 = vld [vmem:[#allocation16 + $0x18] sm:$0xff]
    %v7439 = vld [vmem:[#allocation16 + $0x20] sm:$0xff]
    %v7440 = vld [vmem:[#allocation16 + $0x28] sm:$0xff]
    %v7441 = vld [vmem:[#allocation16 + $0x30] sm:$0xff]
    %v7442 = vld [vmem:[#allocation16 + $0x38] sm:$0xff]
    %v7443 = vld [vmem:[#allocation16 + $0x40] sm:$0xff]
    %v7444 = vld [vmem:[#allocation16 + $0x48] sm:$0xff]
    %v7445 = vld [vmem:[#allocation16 + $0x50] sm:$0xff]
    %v7446 = vld [vmem:[#allocation16 + $0x58] sm:$0xff]
    %v7447 = vld [vmem:[#allocation16 + $0x60] sm:$0xff]
    %v7448 = vld [vmem:[#allocation16 + $0x68] sm:$0xff]
    %v7449 = vld [vmem:[#allocation16 + $0x70] sm:$0xff]
    %v7450 = vld [vmem:[#allocation16 + $0x78] sm:$0xff]
    %v7451 = vld [vmem:[#allocation16 + $0x80] sm:$0xff]
    %v7452 = vld [vmem:[#allocation16 + $0x88] sm:$0xff]
    %v7453 = vld [vmem:[#allocation16 + $0x90] sm:$0xff]
    %v7454 = vld [vmem:[#allocation16 + $0x98] sm:$0xff]
    %v7455 = vld [vmem:[#allocation16 + $0xa0] sm:$0xff]
    %v7456 = vld [vmem:[#allocation16 + $0xa8] sm:$0xff]
    %v7457 = vld [vmem:[#allocation16 + $0xb0] sm:$0xff]
    %v7458 = vld [vmem:[#allocation16 + $0xb8] sm:$0xff]
    %v7459 = vld [vmem:[#allocation16 + $0xc0] sm:$0xff]
    %v7460 = vld [vmem:[#allocation16 + $0xc8] sm:$0xff]
    %v7461 = vld [vmem:[#allocation16 + $0xd0] sm:$0xff]
    %v7462 = vld [vmem:[#allocation16 + $0xd8] sm:$0xff]
    %v7463 = vld [vmem:[#allocation16 + $0xe0] sm:$0xff]
    %v7464 = vld [vmem:[#allocation16 + $0xe8] sm:$0xff]
    %v7465 = vld [vmem:[#allocation16 + $0xf0] sm:$0xff]
    %v7466 = vld [vmem:[#allocation16 + $0xf8] sm:$0xff]
    %v7467 = vld [vmem:[#allocation16 + $0x100] sm:$0xff]
    %v7468 = vld [vmem:[#allocation16 + $0x108] sm:$0xff]
    %v7469 = vld [vmem:[#allocation16 + $0x110] sm:$0xff]
    %v7470 = vld [vmem:[#allocation16 + $0x118] sm:$0xff]
    %v7471 = vld [vmem:[#allocation16 + $0x120] sm:$0xff]
    %v7472 = vld [vmem:[#allocation16 + $0x128] sm:$0xff]
    %v7473 = vld [vmem:[#allocation16 + $0x130] sm:$0xff]
    %v7474 = vld [vmem:[#allocation16 + $0x138] sm:$0xff]
    %v7475 = vld [vmem:[#allocation16 + $0x140] sm:$0xff]
    %v7476 = vld [vmem:[#allocation16 + $0x148] sm:$0xff]
    %v7477 = vld [vmem:[#allocation16 + $0x150] sm:$0xff]
    %v7478 = vld [vmem:[#allocation16 + $0x158] sm:$0xff]
    %v7479 = vld [vmem:[#allocation16 + $0x160] sm:$0xff]
    %v7480 = vld [vmem:[#allocation16 + $0x168] sm:$0xff]
    %v7481 = vld [vmem:[#allocation16 + $0x170] sm:$0xff]
    %v7482 = vld [vmem:[#allocation16 + $0x178] sm:$0xff]
    %v7483 = vld [vmem:[#allocation16 + $0x180] sm:$0xff]
    %v7484 = vld [vmem:[#allocation16 + $0x188] sm:$0xff]
    %v7485 = vld [vmem:[#allocation16 + $0x190] sm:$0xff]
    %v7486 = vld [vmem:[#allocation16 + $0x198] sm:$0xff]
    %v7487 = vld [vmem:[#allocation16 + $0x1a0] sm:$0xff]
    %v7488 = vld [vmem:[#allocation16 + $0x1a8] sm:$0xff]
    %v7489 = vld [vmem:[#allocation16 + $0x1b0] sm:$0xff]
    %v7490 = vld [vmem:[#allocation16 + $0x1b8] sm:$0xff]
    %v7491 = vld [vmem:[#allocation16 + $0x1c0] sm:$0xff]
    %v7492 = vld [vmem:[#allocation16 + $0x1c8] sm:$0xff]
    %v7493 = vld [vmem:[#allocation16 + $0x1d0] sm:$0xff]
    %v7494 = vld [vmem:[#allocation16 + $0x1d8] sm:$0xff]
    %v7495 = vld [vmem:[#allocation16 + $0x1e0] sm:$0xff]
    %v7496 = vld [vmem:[#allocation16 + $0x1e8] sm:$0xff]
    %v7497 = vld [vmem:[#allocation16 + $0x1f0] sm:$0xff]
    %v7498 = vld [vmem:[#allocation16 + $0x1f8] sm:$0xff]
    %v7499 = vld [vmem:[#allocation17] sm:$0xf]
    %v7501 = vlaneseq
    %v7502 = vshrl.u32 %v7501, 7
    %v7503 = vsub.s32 0, %v7502
    %v7504 = vrot.slane %v7499, %v7503
    %v7505 = vlaneseq
    %v7506 = vshrl.u32 %v7505, 7
    %v7507 = vsub.s32 1, %v7506
    %v7508 = vrot.slane %v7499, %v7507
    %v7509 = vlaneseq
    %v7510 = vshrl.u32 %v7509, 7
    %v7511 = vsub.s32 2, %v7510
    %v7512 = vrot.slane %v7499, %v7511
    %v7513 = vlaneseq
    %v7514 = vshrl.u32 %v7513, 7
    %v7515 = vsub.s32 3, %v7514
    %v7516 = vrot.slane %v7499, %v7515
    %v7585 = vunpack.c.l.b16 %v7435
    %v7586 = vunpack.c.h.b16 %v7435
    %v7587 = vunpack.c.l.b16 %v7436
    %v7588 = vunpack.c.h.b16 %v7436
    %v7589 = vunpack.c.l.b16 %v7437
    %v7590 = vunpack.c.h.b16 %v7437
    %v7591 = vunpack.c.l.b16 %v7438
    %v7592 = vunpack.c.h.b16 %v7438
    %v7593 = vunpack.c.l.b16 %v7439
    %v7594 = vunpack.c.h.b16 %v7439
    %v7595 = vunpack.c.l.b16 %v7440
    %v7596 = vunpack.c.h.b16 %v7440
    %v7597 = vunpack.c.l.b16 %v7441
    %v7598 = vunpack.c.h.b16 %v7441
    %v7599 = vunpack.c.l.b16 %v7442
    %v7600 = vunpack.c.h.b16 %v7442
    %v7601 = vunpack.c.l.b16 %v7443
    %v7602 = vunpack.c.h.b16 %v7443
    %v7603 = vunpack.c.l.b16 %v7444
    %v7604 = vunpack.c.h.b16 %v7444
    %v7605 = vunpack.c.l.b16 %v7445
    %v7606 = vunpack.c.h.b16 %v7445
    %v7607 = vunpack.c.l.b16 %v7446
    %v7608 = vunpack.c.h.b16 %v7446
    %v7609 = vunpack.c.l.b16 %v7447
    %v7610 = vunpack.c.h.b16 %v7447
    %v7611 = vunpack.c.l.b16 %v7448
    %v7612 = vunpack.c.h.b16 %v7448
    %v7613 = vunpack.c.l.b16 %v7449
    %v7614 = vunpack.c.h.b16 %v7449
    %v7615 = vunpack.c.l.b16 %v7450
    %v7616 = vunpack.c.h.b16 %v7450
    %v7617 = vunpack.c.l.b16 %v7451
    %v7618 = vunpack.c.h.b16 %v7451
    %v7619 = vunpack.c.l.b16 %v7452
    %v7620 = vunpack.c.h.b16 %v7452
    %v7621 = vunpack.c.l.b16 %v7453
    %v7622 = vunpack.c.h.b16 %v7453
    %v7623 = vunpack.c.l.b16 %v7454
    %v7624 = vunpack.c.h.b16 %v7454
    %v7625 = vunpack.c.l.b16 %v7455
    %v7626 = vunpack.c.h.b16 %v7455
    %v7627 = vunpack.c.l.b16 %v7456
    %v7628 = vunpack.c.h.b16 %v7456
    %v7629 = vunpack.c.l.b16 %v7457
    %v7630 = vunpack.c.h.b16 %v7457
    %v7631 = vunpack.c.l.b16 %v7458
    %v7632 = vunpack.c.h.b16 %v7458
    %v7633 = vunpack.c.l.b16 %v7459
    %v7634 = vunpack.c.h.b16 %v7459
    %v7635 = vunpack.c.l.b16 %v7460
    %v7636 = vunpack.c.h.b16 %v7460
    %v7637 = vunpack.c.l.b16 %v7461
    %v7638 = vunpack.c.h.b16 %v7461
    %v7639 = vunpack.c.l.b16 %v7462
    %v7640 = vunpack.c.h.b16 %v7462
    %v7641 = vunpack.c.l.b16 %v7463
    %v7642 = vunpack.c.h.b16 %v7463
    %v7643 = vunpack.c.l.b16 %v7464
    %v7644 = vunpack.c.h.b16 %v7464
    %v7645 = vunpack.c.l.b16 %v7465
    %v7646 = vunpack.c.h.b16 %v7465
    %v7647 = vunpack.c.l.b16 %v7466
    %v7648 = vunpack.c.h.b16 %v7466
    %v7649 = vunpack.c.l.b16 %v7467
    %v7650 = vunpack.c.h.b16 %v7467
    %v7651 = vunpack.c.l.b16 %v7468
    %v7652 = vunpack.c.h.b16 %v7468
    %v7653 = vunpack.c.l.b16 %v7469
    %v7654 = vunpack.c.h.b16 %v7469
    %v7655 = vunpack.c.l.b16 %v7470
    %v7656 = vunpack.c.h.b16 %v7470
    %v7657 = vunpack.c.l.b16 %v7471
    %v7658 = vunpack.c.h.b16 %v7471
    %v7659 = vunpack.c.l.b16 %v7472
    %v7660 = vunpack.c.h.b16 %v7472
    %v7661 = vunpack.c.l.b16 %v7473
    %v7662 = vunpack.c.h.b16 %v7473
    %v7663 = vunpack.c.l.b16 %v7474
    %v7664 = vunpack.c.h.b16 %v7474
    %v7665 = vunpack.c.l.b16 %v7475
    %v7666 = vunpack.c.h.b16 %v7475
    %v7667 = vunpack.c.l.b16 %v7476
    %v7668 = vunpack.c.h.b16 %v7476
    %v7669 = vunpack.c.l.b16 %v7477
    %v7670 = vunpack.c.h.b16 %v7477
    %v7671 = vunpack.c.l.b16 %v7478
    %v7672 = vunpack.c.h.b16 %v7478
    %v7673 = vunpack.c.l.b16 %v7479
    %v7674 = vunpack.c.h.b16 %v7479
    %v7675 = vunpack.c.l.b16 %v7480
    %v7676 = vunpack.c.h.b16 %v7480
    %v7677 = vunpack.c.l.b16 %v7481
    %v7678 = vunpack.c.h.b16 %v7481
    %v7679 = vunpack.c.l.b16 %v7482
    %v7680 = vunpack.c.h.b16 %v7482
    %v7681 = vunpack.c.l.b16 %v7483
    %v7682 = vunpack.c.h.b16 %v7483
    %v7683 = vunpack.c.l.b16 %v7484
    %v7684 = vunpack.c.h.b16 %v7484
    %v7685 = vunpack.c.l.b16 %v7485
    %v7686 = vunpack.c.h.b16 %v7485
    %v7687 = vunpack.c.l.b16 %v7486
    %v7688 = vunpack.c.h.b16 %v7486
    %v7689 = vunpack.c.l.b16 %v7487
    %v7690 = vunpack.c.h.b16 %v7487
    %v7691 = vunpack.c.l.b16 %v7488
    %v7692 = vunpack.c.h.b16 %v7488
    %v7693 = vunpack.c.l.b16 %v7489
    %v7694 = vunpack.c.h.b16 %v7489
    %v7695 = vunpack.c.l.b16 %v7490
    %v7696 = vunpack.c.h.b16 %v7490
    %v7697 = vunpack.c.l.b16 %v7491
    %v7698 = vunpack.c.h.b16 %v7491
    %v7699 = vunpack.c.l.b16 %v7492
    %v7700 = vunpack.c.h.b16 %v7492
    %v7701 = vunpack.c.l.b16 %v7493
    %v7702 = vunpack.c.h.b16 %v7493
    %v7703 = vunpack.c.l.b16 %v7494
    %v7704 = vunpack.c.h.b16 %v7494
    %v7705 = vunpack.c.l.b16 %v7495
    %v7706 = vunpack.c.h.b16 %v7495
    %v7707 = vunpack.c.l.b16 %v7496
    %v7708 = vunpack.c.h.b16 %v7496
    %v7709 = vunpack.c.l.b16 %v7497
    %v7710 = vunpack.c.h.b16 %v7497
    %v7711 = vunpack.c.l.b16 %v7498
    %v7712 = vunpack.c.h.b16 %v7498
    %v7713 = vpack.c.b16 %v7589, %v7585
    %v7714 = vpack.c.b16 %v7590, %v7586
    %v7715 = vpack.c.b16 %v7591, %v7587
    %v7716 = vpack.c.b16 %v7592, %v7588
    %v7717 = vpack.c.b16 %v7597, %v7593
    %v7718 = vpack.c.b16 %v7598, %v7594
    %v7719 = vpack.c.b16 %v7599, %v7595
    %v7720 = vpack.c.b16 %v7600, %v7596
    %v7721 = vpack.c.b16 %v7605, %v7601
    %v7722 = vpack.c.b16 %v7606, %v7602
    %v7723 = vpack.c.b16 %v7607, %v7603
    %v7724 = vpack.c.b16 %v7608, %v7604
    %v7725 = vpack.c.b16 %v7613, %v7609
    %v7726 = vpack.c.b16 %v7614, %v7610
    %v7727 = vpack.c.b16 %v7615, %v7611
    %v7728 = vpack.c.b16 %v7616, %v7612
    %v7729 = vpack.c.b16 %v7621, %v7617
    %v7730 = vpack.c.b16 %v7622, %v7618
    %v7731 = vpack.c.b16 %v7623, %v7619
    %v7732 = vpack.c.b16 %v7624, %v7620
    %v7733 = vpack.c.b16 %v7629, %v7625
    %v7734 = vpack.c.b16 %v7630, %v7626
    %v7735 = vpack.c.b16 %v7631, %v7627
    %v7736 = vpack.c.b16 %v7632, %v7628
    %v7737 = vpack.c.b16 %v7637, %v7633
    %v7738 = vpack.c.b16 %v7638, %v7634
    %v7739 = vpack.c.b16 %v7639, %v7635
    %v7740 = vpack.c.b16 %v7640, %v7636
    %v7741 = vpack.c.b16 %v7645, %v7641
    %v7742 = vpack.c.b16 %v7646, %v7642
    %v7743 = vpack.c.b16 %v7647, %v7643
    %v7744 = vpack.c.b16 %v7648, %v7644
    %v7745 = vpack.c.b16 %v7653, %v7649
    %v7746 = vpack.c.b16 %v7654, %v7650
    %v7747 = vpack.c.b16 %v7655, %v7651
    %v7748 = vpack.c.b16 %v7656, %v7652
    %v7749 = vpack.c.b16 %v7661, %v7657
    %v7750 = vpack.c.b16 %v7662, %v7658
    %v7751 = vpack.c.b16 %v7663, %v7659
    %v7752 = vpack.c.b16 %v7664, %v7660
    %v7753 = vpack.c.b16 %v7669, %v7665
    %v7754 = vpack.c.b16 %v7670, %v7666
    %v7755 = vpack.c.b16 %v7671, %v7667
    %v7756 = vpack.c.b16 %v7672, %v7668
    %v7757 = vpack.c.b16 %v7677, %v7673
    %v7758 = vpack.c.b16 %v7678, %v7674
    %v7759 = vpack.c.b16 %v7679, %v7675
    %v7760 = vpack.c.b16 %v7680, %v7676
    %v7761 = vpack.c.b16 %v7685, %v7681
    %v7762 = vpack.c.b16 %v7686, %v7682
    %v7763 = vpack.c.b16 %v7687, %v7683
    %v7764 = vpack.c.b16 %v7688, %v7684
    %v7765 = vpack.c.b16 %v7693, %v7689
    %v7766 = vpack.c.b16 %v7694, %v7690
    %v7767 = vpack.c.b16 %v7695, %v7691
    %v7768 = vpack.c.b16 %v7696, %v7692
    %v7769 = vpack.c.b16 %v7701, %v7697
    %v7770 = vpack.c.b16 %v7702, %v7698
    %v7771 = vpack.c.b16 %v7703, %v7699
    %v7772 = vpack.c.b16 %v7704, %v7700
    %v7773 = vpack.c.b16 %v7709, %v7705
    %v7774 = vpack.c.b16 %v7710, %v7706
    %v7775 = vpack.c.b16 %v7711, %v7707
    %v7776 = vpack.c.b16 %v7712, %v7708
    %7841 = vmatprep.subr.bf16.mxu0 %v7714
    %7842 = vmatpush1.bf16.msra.mxu0 %v7713
    %7843 = vmatprep.subr.bf16.mxu0 %v7718
    %7844 = vmatpush1.bf16.msra.mxu0 %v7717
    %7845 = vmatprep.subr.bf16.mxu0 %v7722
    %7846 = vmatpush1.bf16.msra.mxu0 %v7721
    %7847 = vmatprep.subr.bf16.mxu0 %v7726
    %7848 = vmatpush1.bf16.msra.mxu0 %v7725
    %7849 = vmatprep.subr.bf16.mxu0 %v7730
    %7850 = vmatpush1.bf16.msra.mxu0 %v7729
    %7851 = vmatprep.subr.bf16.mxu0 %v7734
    %7852 = vmatpush1.bf16.msra.mxu0 %v7733
    %7853 = vmatprep.subr.bf16.mxu0 %v7738
    %7854 = vmatpush1.bf16.msra.mxu0 %v7737
    %7855 = vmatprep.subr.bf16.mxu0 %v7742
    %7856 = vmatpush1.bf16.msra.mxu0 %v7741
    %7857 = vmatprep.subr.bf16.mxu0 %v7746
    %7858 = vmatpush1.bf16.msra.mxu0 %v7745
    %7859 = vmatprep.subr.bf16.mxu0 %v7750
    %7860 = vmatpush1.bf16.msra.mxu0 %v7749
    %7861 = vmatprep.subr.bf16.mxu0 %v7754
    %7862 = vmatpush1.bf16.msra.mxu0 %v7753
    %7863 = vmatprep.subr.bf16.mxu0 %v7758
    %7864 = vmatpush1.bf16.msra.mxu0 %v7757
    %7865 = vmatprep.subr.bf16.mxu0 %v7762
    %7866 = vmatpush1.bf16.msra.mxu0 %v7761
    %7867 = vmatprep.subr.bf16.mxu0 %v7766
    %7868 = vmatpush1.bf16.msra.mxu0 %v7765
    %7869 = vmatprep.subr.bf16.mxu0 %v7770
    %7870 = vmatpush1.bf16.msra.mxu0 %v7769
    %7871 = vmatprep.subr.bf16.mxu0 %v7774
    %7872 = vmatpush1.bf16.msra.mxu0 %v7773
    %7873 = vmatprep.mubr.bf16.mxu0 %v7434
    %7874 = vmatmul.mubr.bf16.gmra.mrb[0].mxu0 %v7433
    %v7875 = vpop.f32.mrb[0].mxu0
    %v7876 = vadd.f32 %v7504, %v7875
    %v7877 = vpop.f32.mrb[0].mxu0
    %v7878 = vadd.f32 %v7508, %v7877
    %v7879 = vpop.f32.mrb[0].mxu0
    %v7880 = vadd.f32 %v7504, %v7879
    %v7881 = vpop.f32.mrb[0].mxu0
    %v7882 = vadd.f32 %v7508, %v7881
    %7883 = vdwg.mxu0
    %7884 = vmatprep.subr.bf16.mxu0 %v7716
    %7885 = vmatpush1.bf16.msra.mxu0 %v7715
    %7886 = vmatprep.subr.bf16.mxu0 %v7720
    %7887 = vmatpush1.bf16.msra.mxu0 %v7719
    %7888 = vmatprep.subr.bf16.mxu0 %v7724
    %7889 = vmatpush1.bf16.msra.mxu0 %v7723
    %7890 = vmatprep.subr.bf16.mxu0 %v7728
    %7891 = vmatpush1.bf16.msra.mxu0 %v7727
    %7892 = vmatprep.subr.bf16.mxu0 %v7732
    %7893 = vmatpush1.bf16.msra.mxu0 %v7731
    %7894 = vmatprep.subr.bf16.mxu0 %v7736
    %7895 = vmatpush1.bf16.msra.mxu0 %v7735
    %7896 = vmatprep.subr.bf16.mxu0 %v7740
    %7897 = vmatpush1.bf16.msra.mxu0 %v7739
    %7898 = vmatprep.subr.bf16.mxu0 %v7744
    %7899 = vmatpush1.bf16.msra.mxu0 %v7743
    %7900 = vmatprep.subr.bf16.mxu0 %v7748
    %7901 = vmatpush1.bf16.msra.mxu0 %v7747
    %7902 = vmatprep.subr.bf16.mxu0 %v7752
    %7903 = vmatpush1.bf16.msra.mxu0 %v7751
    %7904 = vmatprep.subr.bf16.mxu0 %v7756
    %7905 = vmatpush1.bf16.msra.mxu0 %v7755
    %7906 = vmatprep.subr.bf16.mxu0 %v7760
    %7907 = vmatpush1.bf16.msra.mxu0 %v7759
    %7908 = vmatprep.subr.bf16.mxu0 %v7764
    %7909 = vmatpush1.bf16.msra.mxu0 %v7763
    %7910 = vmatprep.subr.bf16.mxu0 %v7768
    %7911 = vmatpush1.bf16.msra.mxu0 %v7767
    %7912 = vmatprep.subr.bf16.mxu0 %v7772
    %7913 = vmatpush1.bf16.msra.mxu0 %v7771
    %7914 = vmatprep.subr.bf16.mxu0 %v7776
    %7915 = vmatpush1.bf16.msra.mxu0 %v7775
    %7916 = vmatprep.mubr.bf16.mxu0 %v7434
    %7917 = vmatmul.mubr.bf16.gmra.mrb[0].mxu0 %v7433
    %v7918 = vpop.f32.mrb[0].mxu0
    %v7919 = vadd.f32 %v7512, %v7918
    %v7920 = vpop.f32.mrb[0].mxu0
    %v7921 = vadd.f32 %v7516, %v7920
    %v7922 = vpop.f32.mrb[0].mxu0
    %v7923 = vadd.f32 %v7512, %v7922
    %v7924 = vpop.f32.mrb[0].mxu0
    %v7925 = vadd.f32 %v7516, %v7924
    %7926 = vdwg.mxu0
    %v7927 = vmax.f32 %v7876, 0.0
    %v7928 = vmax.f32 %v7878, 0.0
    %v7929 = vmax.f32 %v7919, 0.0
    %v7930 = vmax.f32 %v7921, 0.0
    %v7931 = vmax.f32 %v7880, 0.0
    %v7932 = vmax.f32 %v7882, 0.0
    %v7933 = vmax.f32 %v7923, 0.0
    %v7934 = vmax.f32 %v7925, 0.0
    %v7935 = vpack.c.bf16 %v7931, %v7927
    %v7936 = vpack.c.bf16 %v7932, %v7928
    %v7937 = vpack.c.bf16 %v7933, %v7929
    %v7938 = vpack.c.bf16 %v7934, %v7930
    %v7939 = vld [vmem:[#allocation19] sm:$0xff]
    %v7940 = vld [vmem:[#allocation19 + $0x8] sm:$0xff]
    %v7941 = vld [vmem:[#allocation19 + $0x10] sm:$0xff]
    %v7942 = vld [vmem:[#allocation19 + $0x18] sm:$0xff]
    %v7943 = vld [vmem:[#allocation19 + $0x20] sm:$0xff]
    %v7944 = vld [vmem:[#allocation19 + $0x28] sm:$0xff]
    %v7945 = vld [vmem:[#allocation19 + $0x30] sm:$0xff]
    %v7946 = vld [vmem:[#allocation19 + $0x38] sm:$0xff]
    %v7947 = vld [vmem:[#allocation19 + $0x40] sm:$0xff]
    %v7948 = vld [vmem:[#allocation19 + $0x48] sm:$0xf]
    %v7949 = vld [vmem:[#allocation19 + $0x4c] sm:$0xff]
    %v7950 = vld [vmem:[#allocation19 + $0x54] sm:$0xff]
    %v7951 = vld [vmem:[#allocation19 + $0x5c] sm:$0xff]
    %v7952 = vld [vmem:[#allocation19 + $0x64] sm:$0xff]
    %v7953 = vld [vmem:[#allocation19 + $0x6c] sm:$0xff]
    %v7954 = vld [vmem:[#allocation19 + $0x74] sm:$0xff]
    %v7955 = vld [vmem:[#allocation19 + $0x7c] sm:$0xff]
    %v7956 = vld [vmem:[#allocation19 + $0x84] sm:$0xff]
    %v7957 = vld [vmem:[#allocation19 + $0x8c] sm:$0xff]
    %v7958 = vld [vmem:[#allocation19 + $0x94] sm:$0xf]
    %v7959 = vld [vmem:[#allocation19 + $0x98] sm:$0xff]
    %v7960 = vld [vmem:[#allocation19 + $0xa0] sm:$0xff]
    %v7961 = vld [vmem:[#allocation19 + $0xa8] sm:$0xff]
    %v7962 = vld [vmem:[#allocation19 + $0xb0] sm:$0xff]
    %v7963 = vld [vmem:[#allocation19 + $0xb8] sm:$0xff]
    %v7964 = vld [vmem:[#allocation19 + $0xc0] sm:$0xff]
    %v7965 = vld [vmem:[#allocation19 + $0xc8] sm:$0xff]
    %v7966 = vld [vmem:[#allocation19 + $0xd0] sm:$0xff]
    %v7967 = vld [vmem:[#allocation19 + $0xd8] sm:$0xff]
    %v7968 = vld [vmem:[#allocation19 + $0xe0] sm:$0xf]
    %v7969 = vld [vmem:[#allocation19 + $0xe4] sm:$0xff]
    %v7970 = vld [vmem:[#allocation19 + $0xec] sm:$0xff]
    %v7971 = vld [vmem:[#allocation19 + $0xf4] sm:$0xff]
    %v7972 = vld [vmem:[#allocation19 + $0xfc] sm:$0xff]
    %v7973 = vld [vmem:[#allocation19 + $0x104] sm:$0xff]
    %v7974 = vld [vmem:[#allocation19 + $0x10c] sm:$0xff]
    %v7975 = vld [vmem:[#allocation19 + $0x114] sm:$0xff]
    %v7976 = vld [vmem:[#allocation19 + $0x11c] sm:$0xff]
    %v7977 = vld [vmem:[#allocation19 + $0x124] sm:$0xff]
    %v7978 = vld [vmem:[#allocation19 + $0x12c] sm:$0xf]
    %v7979 = vld [vmem:[#allocation19 + $0x130] sm:$0xff]
    %v7980 = vld [vmem:[#allocation19 + $0x138] sm:$0xff]
    %v7981 = vld [vmem:[#allocation19 + $0x140] sm:$0xff]
    %v7982 = vld [vmem:[#allocation19 + $0x148] sm:$0xff]
    %v7983 = vld [vmem:[#allocation19 + $0x150] sm:$0xff]
    %v7984 = vld [vmem:[#allocation19 + $0x158] sm:$0xff]
    %v7985 = vld [vmem:[#allocation19 + $0x160] sm:$0xff]
    %v7986 = vld [vmem:[#allocation19 + $0x168] sm:$0xff]
    %v7987 = vld [vmem:[#allocation19 + $0x170] sm:$0xff]
    %v7988 = vld [vmem:[#allocation19 + $0x178] sm:$0xf]
    %v7989 = vld [vmem:[#allocation19 + $0x17c] sm:$0xff]
    %v7990 = vld [vmem:[#allocation19 + $0x184] sm:$0xff]
    %v7991 = vld [vmem:[#allocation19 + $0x18c] sm:$0xff]
    %v7992 = vld [vmem:[#allocation19 + $0x194] sm:$0xff]
    %v7993 = vld [vmem:[#allocation19 + $0x19c] sm:$0xff]
    %v7994 = vld [vmem:[#allocation19 + $0x1a4] sm:$0xff]
    %v7995 = vld [vmem:[#allocation19 + $0x1ac] sm:$0xff]
    %v7996 = vld [vmem:[#allocation19 + $0x1b4] sm:$0xff]
    %v7997 = vld [vmem:[#allocation19 + $0x1bc] sm:$0xff]
    %v7998 = vld [vmem:[#allocation19 + $0x1c4] sm:$0xf]
    %v7999 = vld [vmem:[#allocation19 + $0x1c8] sm:$0xff]
    %v8000 = vld [vmem:[#allocation19 + $0x1d0] sm:$0xff]
    %v8001 = vld [vmem:[#allocation19 + $0x1d8] sm:$0xff]
    %v8002 = vld [vmem:[#allocation19 + $0x1e0] sm:$0xff]
    %v8003 = vld [vmem:[#allocation19 + $0x1e8] sm:$0xff]
    %v8004 = vld [vmem:[#allocation19 + $0x1f0] sm:$0xff]
    %v8005 = vld [vmem:[#allocation19 + $0x1f8] sm:$0xff]
    %v8006 = vld [vmem:[#allocation19 + $0x200] sm:$0xff]
    %v8007 = vld [vmem:[#allocation19 + $0x208] sm:$0xff]
    %v8008 = vld [vmem:[#allocation19 + $0x210] sm:$0xf]
    %v8009 = vld [vmem:[#allocation19 + $0x214] sm:$0xff]
    %v8010 = vld [vmem:[#allocation19 + $0x21c] sm:$0xff]
    %v8011 = vld [vmem:[#allocation19 + $0x224] sm:$0xff]
    %v8012 = vld [vmem:[#allocation19 + $0x22c] sm:$0xff]
    %v8013 = vld [vmem:[#allocation19 + $0x234] sm:$0xff]
    %v8014 = vld [vmem:[#allocation19 + $0x23c] sm:$0xff]
    %v8015 = vld [vmem:[#allocation19 + $0x244] sm:$0xff]
    %v8016 = vld [vmem:[#allocation19 + $0x24c] sm:$0xff]
    %v8017 = vld [vmem:[#allocation19 + $0x254] sm:$0xff]
    %v8018 = vld [vmem:[#allocation19 + $0x25c] sm:$0xf]
    %v8019 = vld [vmem:[#allocation19 + $0x260] sm:$0xff]
    %v8020 = vld [vmem:[#allocation19 + $0x268] sm:$0xff]
    %v8021 = vld [vmem:[#allocation19 + $0x270] sm:$0xff]
    %v8022 = vld [vmem:[#allocation19 + $0x278] sm:$0xff]
    %v8023 = vld [vmem:[#allocation19 + $0x280] sm:$0xff]
    %v8024 = vld [vmem:[#allocation19 + $0x288] sm:$0xff]
    %v8025 = vld [vmem:[#allocation19 + $0x290] sm:$0xff]
    %v8026 = vld [vmem:[#allocation19 + $0x298] sm:$0xff]
    %v8027 = vld [vmem:[#allocation19 + $0x2a0] sm:$0xff]
    %v8028 = vld [vmem:[#allocation19 + $0x2a8] sm:$0xf]
    %v8029 = vld [vmem:[#allocation19 + $0x2ac] sm:$0xff]
    %v8030 = vld [vmem:[#allocation19 + $0x2b4] sm:$0xff]
    %v8031 = vld [vmem:[#allocation19 + $0x2bc] sm:$0xff]
    %v8032 = vld [vmem:[#allocation19 + $0x2c4] sm:$0xff]
    %v8033 = vld [vmem:[#allocation19 + $0x2cc] sm:$0xff]
    %v8034 = vld [vmem:[#allocation19 + $0x2d4] sm:$0xff]
    %v8035 = vld [vmem:[#allocation19 + $0x2dc] sm:$0xff]
    %v8036 = vld [vmem:[#allocation19 + $0x2e4] sm:$0xff]
    %v8037 = vld [vmem:[#allocation19 + $0x2ec] sm:$0xff]
    %v8038 = vld [vmem:[#allocation19 + $0x2f4] sm:$0xf]
    %v8039 = vld [vmem:[#allocation19 + $0x2f8] sm:$0xff]
    %v8040 = vld [vmem:[#allocation19 + $0x300] sm:$0xff]
    %v8041 = vld [vmem:[#allocation19 + $0x308] sm:$0xff]
    %v8042 = vld [vmem:[#allocation19 + $0x310] sm:$0xff]
    %v8043 = vld [vmem:[#allocation19 + $0x318] sm:$0xff]
    %v8044 = vld [vmem:[#allocation19 + $0x320] sm:$0xff]
    %v8045 = vld [vmem:[#allocation19 + $0x328] sm:$0xff]
    %v8046 = vld [vmem:[#allocation19 + $0x330] sm:$0xff]
    %v8047 = vld [vmem:[#allocation19 + $0x338] sm:$0xff]
    %v8048 = vld [vmem:[#allocation19 + $0x340] sm:$0xf]
    %v8049 = vld [vmem:[#allocation19 + $0x344] sm:$0xff]
    %v8050 = vld [vmem:[#allocation19 + $0x34c] sm:$0xff]
    %v8051 = vld [vmem:[#allocation19 + $0x354] sm:$0xff]
    %v8052 = vld [vmem:[#allocation19 + $0x35c] sm:$0xff]
    %v8053 = vld [vmem:[#allocation19 + $0x364] sm:$0xff]
    %v8054 = vld [vmem:[#allocation19 + $0x36c] sm:$0xff]
    %v8055 = vld [vmem:[#allocation19 + $0x374] sm:$0xff]
    %v8056 = vld [vmem:[#allocation19 + $0x37c] sm:$0xff]
    %v8057 = vld [vmem:[#allocation19 + $0x384] sm:$0xff]
    %v8058 = vld [vmem:[#allocation19 + $0x38c] sm:$0xf]
    %v8059 = vld [vmem:[#allocation19 + $0x390] sm:$0xff]
    %v8060 = vld [vmem:[#allocation19 + $0x398] sm:$0xff]
    %v8061 = vld [vmem:[#allocation19 + $0x3a0] sm:$0xff]
    %v8062 = vld [vmem:[#allocation19 + $0x3a8] sm:$0xff]
    %v8063 = vld [vmem:[#allocation19 + $0x3b0] sm:$0xff]
    %v8064 = vld [vmem:[#allocation19 + $0x3b8] sm:$0xff]
    %v8065 = vld [vmem:[#allocation19 + $0x3c0] sm:$0xff]
    %v8066 = vld [vmem:[#allocation19 + $0x3c8] sm:$0xff]
    %v8067 = vld [vmem:[#allocation19 + $0x3d0] sm:$0xff]
    %v8068 = vld [vmem:[#allocation19 + $0x3d8] sm:$0xf]
    %v8069 = vld [vmem:[#allocation19 + $0x3dc] sm:$0xff]
    %v8070 = vld [vmem:[#allocation19 + $0x3e4] sm:$0xff]
    %v8071 = vld [vmem:[#allocation19 + $0x3ec] sm:$0xff]
    %v8072 = vld [vmem:[#allocation19 + $0x3f4] sm:$0xff]
    %v8073 = vld [vmem:[#allocation19 + $0x3fc] sm:$0xff]
    %v8074 = vld [vmem:[#allocation19 + $0x404] sm:$0xff]
    %v8075 = vld [vmem:[#allocation19 + $0x40c] sm:$0xff]
    %v8076 = vld [vmem:[#allocation19 + $0x414] sm:$0xff]
    %v8077 = vld [vmem:[#allocation19 + $0x41c] sm:$0xff]
    %v8078 = vld [vmem:[#allocation19 + $0x424] sm:$0xf]
    %v8079 = vld [vmem:[#allocation19 + $0x428] sm:$0xff]
    %v8080 = vld [vmem:[#allocation19 + $0x430] sm:$0xff]
    %v8081 = vld [vmem:[#allocation19 + $0x438] sm:$0xff]
    %v8082 = vld [vmem:[#allocation19 + $0x440] sm:$0xff]
    %v8083 = vld [vmem:[#allocation19 + $0x448] sm:$0xff]
    %v8084 = vld [vmem:[#allocation19 + $0x450] sm:$0xff]
    %v8085 = vld [vmem:[#allocation19 + $0x458] sm:$0xff]
    %v8086 = vld [vmem:[#allocation19 + $0x460] sm:$0xff]
    %v8087 = vld [vmem:[#allocation19 + $0x468] sm:$0xff]
    %v8088 = vld [vmem:[#allocation19 + $0x470] sm:$0xf]
    %v8089 = vld [vmem:[#allocation19 + $0x474] sm:$0xff]
    %v8090 = vld [vmem:[#allocation19 + $0x47c] sm:$0xff]
    %v8091 = vld [vmem:[#allocation19 + $0x484] sm:$0xff]
    %v8092 = vld [vmem:[#allocation19 + $0x48c] sm:$0xff]
    %v8093 = vld [vmem:[#allocation19 + $0x494] sm:$0xff]
    %v8094 = vld [vmem:[#allocation19 + $0x49c] sm:$0xff]
    %v8095 = vld [vmem:[#allocation19 + $0x4a4] sm:$0xff]
    %v8096 = vld [vmem:[#allocation19 + $0x4ac] sm:$0xff]
    %v8097 = vld [vmem:[#allocation19 + $0x4b4] sm:$0xff]
    %v8098 = vld [vmem:[#allocation19 + $0x4bc] sm:$0xf]
    %v8099 = vld [vmem:[#allocation19 + $0x4c0] sm:$0xff]
    %v8100 = vld [vmem:[#allocation19 + $0x4c8] sm:$0xff]
    %v8101 = vld [vmem:[#allocation19 + $0x4d0] sm:$0xff]
    %v8102 = vld [vmem:[#allocation19 + $0x4d8] sm:$0xff]
    %v8103 = vld [vmem:[#allocation19 + $0x4e0] sm:$0xff]
    %v8104 = vld [vmem:[#allocation19 + $0x4e8] sm:$0xff]
    %v8105 = vld [vmem:[#allocation19 + $0x4f0] sm:$0xff]
    %v8106 = vld [vmem:[#allocation19 + $0x4f8] sm:$0xff]
    %v8107 = vld [vmem:[#allocation19 + $0x500] sm:$0xff]
    %v8108 = vld [vmem:[#allocation19 + $0x508] sm:$0xf]
    %v8109 = vld [vmem:[#allocation19 + $0x50c] sm:$0xff]
    %v8110 = vld [vmem:[#allocation19 + $0x514] sm:$0xff]
    %v8111 = vld [vmem:[#allocation19 + $0x51c] sm:$0xff]
    %v8112 = vld [vmem:[#allocation19 + $0x524] sm:$0xff]
    %v8113 = vld [vmem:[#allocation19 + $0x52c] sm:$0xff]
    %v8114 = vld [vmem:[#allocation19 + $0x534] sm:$0xff]
    %v8115 = vld [vmem:[#allocation19 + $0x53c] sm:$0xff]
    %v8116 = vld [vmem:[#allocation19 + $0x544] sm:$0xff]
    %v8117 = vld [vmem:[#allocation19 + $0x54c] sm:$0xff]
    %v8118 = vld [vmem:[#allocation19 + $0x554] sm:$0xf]
    %v8119 = vld [vmem:[#allocation19 + $0x558] sm:$0xff]
    %v8120 = vld [vmem:[#allocation19 + $0x560] sm:$0xff]
    %v8121 = vld [vmem:[#allocation19 + $0x568] sm:$0xff]
    %v8122 = vld [vmem:[#allocation19 + $0x570] sm:$0xff]
    %v8123 = vld [vmem:[#allocation19 + $0x578] sm:$0xff]
    %v8124 = vld [vmem:[#allocation19 + $0x580] sm:$0xff]
    %v8125 = vld [vmem:[#allocation19 + $0x588] sm:$0xff]
    %v8126 = vld [vmem:[#allocation19 + $0x590] sm:$0xff]
    %v8127 = vld [vmem:[#allocation19 + $0x598] sm:$0xff]
    %v8128 = vld [vmem:[#allocation19 + $0x5a0] sm:$0xf]
    %v8129 = vld [vmem:[#allocation19 + $0x5a4] sm:$0xff]
    %v8130 = vld [vmem:[#allocation19 + $0x5ac] sm:$0xff]
    %v8131 = vld [vmem:[#allocation19 + $0x5b4] sm:$0xff]
    %v8132 = vld [vmem:[#allocation19 + $0x5bc] sm:$0xff]
    %v8133 = vld [vmem:[#allocation19 + $0x5c4] sm:$0xff]
    %v8134 = vld [vmem:[#allocation19 + $0x5cc] sm:$0xff]
    %v8135 = vld [vmem:[#allocation19 + $0x5d4] sm:$0xff]
    %v8136 = vld [vmem:[#allocation19 + $0x5dc] sm:$0xff]
    %v8137 = vld [vmem:[#allocation19 + $0x5e4] sm:$0xff]
    %v8138 = vld [vmem:[#allocation19 + $0x5ec] sm:$0xf]
    %v8139 = vld [vmem:[#allocation19 + $0x5f0] sm:$0xff]
    %v8140 = vld [vmem:[#allocation19 + $0x5f8] sm:$0xff]
    %v8141 = vld [vmem:[#allocation19 + $0x600] sm:$0xff]
    %v8142 = vld [vmem:[#allocation19 + $0x608] sm:$0xff]
    %v8143 = vld [vmem:[#allocation19 + $0x610] sm:$0xff]
    %v8144 = vld [vmem:[#allocation19 + $0x618] sm:$0xff]
    %v8145 = vld [vmem:[#allocation19 + $0x620] sm:$0xff]
    %v8146 = vld [vmem:[#allocation19 + $0x628] sm:$0xff]
    %v8147 = vld [vmem:[#allocation19 + $0x630] sm:$0xff]
    %v8148 = vld [vmem:[#allocation19 + $0x638] sm:$0xf]
    %v8149 = vld [vmem:[#allocation19 + $0x63c] sm:$0xff]
    %v8150 = vld [vmem:[#allocation19 + $0x644] sm:$0xff]
    %v8151 = vld [vmem:[#allocation19 + $0x64c] sm:$0xff]
    %v8152 = vld [vmem:[#allocation19 + $0x654] sm:$0xff]
    %v8153 = vld [vmem:[#allocation19 + $0x65c] sm:$0xff]
    %v8154 = vld [vmem:[#allocation19 + $0x664] sm:$0xff]
    %v8155 = vld [vmem:[#allocation19 + $0x66c] sm:$0xff]
    %v8156 = vld [vmem:[#allocation19 + $0x674] sm:$0xff]
    %v8157 = vld [vmem:[#allocation19 + $0x67c] sm:$0xff]
    %v8158 = vld [vmem:[#allocation19 + $0x684] sm:$0xf]
    %v8159 = vld [vmem:[#allocation19 + $0x688] sm:$0xff]
    %v8160 = vld [vmem:[#allocation19 + $0x690] sm:$0xff]
    %v8161 = vld [vmem:[#allocation19 + $0x698] sm:$0xff]
    %v8162 = vld [vmem:[#allocation19 + $0x6a0] sm:$0xff]
    %v8163 = vld [vmem:[#allocation19 + $0x6a8] sm:$0xff]
    %v8164 = vld [vmem:[#allocation19 + $0x6b0] sm:$0xff]
    %v8165 = vld [vmem:[#allocation19 + $0x6b8] sm:$0xff]
    %v8166 = vld [vmem:[#allocation19 + $0x6c0] sm:$0xff]
    %v8167 = vld [vmem:[#allocation19 + $0x6c8] sm:$0xff]
    %v8168 = vld [vmem:[#allocation19 + $0x6d0] sm:$0xf]
    %v8169 = vld [vmem:[#allocation19 + $0x6d4] sm:$0xff]
    %v8170 = vld [vmem:[#allocation19 + $0x6dc] sm:$0xff]
    %v8171 = vld [vmem:[#allocation19 + $0x6e4] sm:$0xff]
    %v8172 = vld [vmem:[#allocation19 + $0x6ec] sm:$0xff]
    %v8173 = vld [vmem:[#allocation19 + $0x6f4] sm:$0xff]
    %v8174 = vld [vmem:[#allocation19 + $0x6fc] sm:$0xff]
    %v8175 = vld [vmem:[#allocation19 + $0x704] sm:$0xff]
    %v8176 = vld [vmem:[#allocation19 + $0x70c] sm:$0xff]
    %v8177 = vld [vmem:[#allocation19 + $0x714] sm:$0xff]
    %v8178 = vld [vmem:[#allocation19 + $0x71c] sm:$0xf]
    %v8179 = vld [vmem:[#allocation19 + $0x720] sm:$0xff]
    %v8180 = vld [vmem:[#allocation19 + $0x728] sm:$0xff]
    %v8181 = vld [vmem:[#allocation19 + $0x730] sm:$0xff]
    %v8182 = vld [vmem:[#allocation19 + $0x738] sm:$0xff]
    %v8183 = vld [vmem:[#allocation19 + $0x740] sm:$0xff]
    %v8184 = vld [vmem:[#allocation19 + $0x748] sm:$0xff]
    %v8185 = vld [vmem:[#allocation19 + $0x750] sm:$0xff]
    %v8186 = vld [vmem:[#allocation19 + $0x758] sm:$0xff]
    %v8187 = vld [vmem:[#allocation19 + $0x760] sm:$0xff]
    %v8188 = vld [vmem:[#allocation19 + $0x768] sm:$0xf]
    %v8189 = vld [vmem:[#allocation19 + $0x76c] sm:$0xff]
    %v8190 = vld [vmem:[#allocation19 + $0x774] sm:$0xff]
    %v8191 = vld [vmem:[#allocation19 + $0x77c] sm:$0xff]
    %v8192 = vld [vmem:[#allocation19 + $0x784] sm:$0xff]
    %v8193 = vld [vmem:[#allocation19 + $0x78c] sm:$0xff]
    %v8194 = vld [vmem:[#allocation19 + $0x794] sm:$0xff]
    %v8195 = vld [vmem:[#allocation19 + $0x79c] sm:$0xff]
    %v8196 = vld [vmem:[#allocation19 + $0x7a4] sm:$0xff]
    %v8197 = vld [vmem:[#allocation19 + $0x7ac] sm:$0xff]
    %v8198 = vld [vmem:[#allocation19 + $0x7b4] sm:$0xf]
    %v8199 = vld [vmem:[#allocation19 + $0x7b8] sm:$0xff]
    %v8200 = vld [vmem:[#allocation19 + $0x7c0] sm:$0xff]
    %v8201 = vld [vmem:[#allocation19 + $0x7c8] sm:$0xff]
    %v8202 = vld [vmem:[#allocation19 + $0x7d0] sm:$0xff]
    %v8203 = vld [vmem:[#allocation19 + $0x7d8] sm:$0xff]
    %v8204 = vld [vmem:[#allocation19 + $0x7e0] sm:$0xff]
    %v8205 = vld [vmem:[#allocation19 + $0x7e8] sm:$0xff]
    %v8206 = vld [vmem:[#allocation19 + $0x7f0] sm:$0xff]
    %v8207 = vld [vmem:[#allocation19 + $0x7f8] sm:$0xff]
    %v8208 = vld [vmem:[#allocation19 + $0x800] sm:$0xf]
    %v8209 = vld [vmem:[#allocation19 + $0x804] sm:$0xff]
    %v8210 = vld [vmem:[#allocation19 + $0x80c] sm:$0xff]
    %v8211 = vld [vmem:[#allocation19 + $0x814] sm:$0xff]
    %v8212 = vld [vmem:[#allocation19 + $0x81c] sm:$0xff]
    %v8213 = vld [vmem:[#allocation19 + $0x824] sm:$0xff]
    %v8214 = vld [vmem:[#allocation19 + $0x82c] sm:$0xff]
    %v8215 = vld [vmem:[#allocation19 + $0x834] sm:$0xff]
    %v8216 = vld [vmem:[#allocation19 + $0x83c] sm:$0xff]
    %v8217 = vld [vmem:[#allocation19 + $0x844] sm:$0xff]
    %v8218 = vld [vmem:[#allocation19 + $0x84c] sm:$0xf]
    %v8219 = vld [vmem:[#allocation19 + $0x850] sm:$0xff]
    %v8220 = vld [vmem:[#allocation19 + $0x858] sm:$0xff]
    %v8221 = vld [vmem:[#allocation19 + $0x860] sm:$0xff]
    %v8222 = vld [vmem:[#allocation19 + $0x868] sm:$0xff]
    %v8223 = vld [vmem:[#allocation19 + $0x870] sm:$0xff]
    %v8224 = vld [vmem:[#allocation19 + $0x878] sm:$0xff]
    %v8225 = vld [vmem:[#allocation19 + $0x880] sm:$0xff]
    %v8226 = vld [vmem:[#allocation19 + $0x888] sm:$0xff]
    %v8227 = vld [vmem:[#allocation19 + $0x890] sm:$0xff]
    %v8228 = vld [vmem:[#allocation19 + $0x898] sm:$0xf]
    %v8229 = vld [vmem:[#allocation19 + $0x89c] sm:$0xff]
    %v8230 = vld [vmem:[#allocation19 + $0x8a4] sm:$0xff]
    %v8231 = vld [vmem:[#allocation19 + $0x8ac] sm:$0xff]
    %v8232 = vld [vmem:[#allocation19 + $0x8b4] sm:$0xff]
    %v8233 = vld [vmem:[#allocation19 + $0x8bc] sm:$0xff]
    %v8234 = vld [vmem:[#allocation19 + $0x8c4] sm:$0xff]
    %v8235 = vld [vmem:[#allocation19 + $0x8cc] sm:$0xff]
    %v8236 = vld [vmem:[#allocation19 + $0x8d4] sm:$0xff]
    %v8237 = vld [vmem:[#allocation19 + $0x8dc] sm:$0xff]
    %v8238 = vld [vmem:[#allocation19 + $0x8e4] sm:$0xf]
    %v8239 = vld [vmem:[#allocation19 + $0x8e8] sm:$0xff]
    %v8240 = vld [vmem:[#allocation19 + $0x8f0] sm:$0xff]
    %v8241 = vld [vmem:[#allocation19 + $0x8f8] sm:$0xff]
    %v8242 = vld [vmem:[#allocation19 + $0x900] sm:$0xff]
    %v8243 = vld [vmem:[#allocation19 + $0x908] sm:$0xff]
    %v8244 = vld [vmem:[#allocation19 + $0x910] sm:$0xff]
    %v8245 = vld [vmem:[#allocation19 + $0x918] sm:$0xff]
    %v8246 = vld [vmem:[#allocation19 + $0x920] sm:$0xff]
    %v8247 = vld [vmem:[#allocation19 + $0x928] sm:$0xff]
    %v8248 = vld [vmem:[#allocation19 + $0x930] sm:$0xf]
    %v8249 = vld [vmem:[#allocation19 + $0x934] sm:$0xff]
    %v8250 = vld [vmem:[#allocation19 + $0x93c] sm:$0xff]
    %v8251 = vld [vmem:[#allocation19 + $0x944] sm:$0xff]
    %v8252 = vld [vmem:[#allocation19 + $0x94c] sm:$0xff]
    %v8253 = vld [vmem:[#allocation19 + $0x954] sm:$0xff]
    %v8254 = vld [vmem:[#allocation19 + $0x95c] sm:$0xff]
    %v8255 = vld [vmem:[#allocation19 + $0x964] sm:$0xff]
    %v8256 = vld [vmem:[#allocation19 + $0x96c] sm:$0xff]
    %v8257 = vld [vmem:[#allocation19 + $0x974] sm:$0xff]
    %v8258 = vld [vmem:[#allocation19 + $0x97c] sm:$0xf]
    %v8259 = vld [vmem:[#allocation19 + $0x980] sm:$0xff]
    %v8260 = vld [vmem:[#allocation19 + $0x988] sm:$0xff]
    %v8261 = vld [vmem:[#allocation19 + $0x990] sm:$0xff]
    %v8262 = vld [vmem:[#allocation19 + $0x998] sm:$0xff]
    %v8263 = vld [vmem:[#allocation19 + $0x9a0] sm:$0xff]
    %v8264 = vld [vmem:[#allocation19 + $0x9a8] sm:$0xff]
    %v8265 = vld [vmem:[#allocation19 + $0x9b0] sm:$0xff]
    %v8266 = vld [vmem:[#allocation19 + $0x9b8] sm:$0xff]
    %v8267 = vld [vmem:[#allocation19 + $0x9c0] sm:$0xff]
    %v8268 = vld [vmem:[#allocation19 + $0x9c8] sm:$0xf]
    %v8269 = vld [vmem:[#allocation19 + $0x9cc] sm:$0xff]
    %v8270 = vld [vmem:[#allocation19 + $0x9d4] sm:$0xff]
    %v8271 = vld [vmem:[#allocation19 + $0x9dc] sm:$0xff]
    %v8272 = vld [vmem:[#allocation19 + $0x9e4] sm:$0xff]
    %v8273 = vld [vmem:[#allocation19 + $0x9ec] sm:$0xff]
    %v8274 = vld [vmem:[#allocation19 + $0x9f4] sm:$0xff]
    %v8275 = vld [vmem:[#allocation19 + $0x9fc] sm:$0xff]
    %v8276 = vld [vmem:[#allocation19 + $0xa04] sm:$0xff]
    %v8277 = vld [vmem:[#allocation19 + $0xa0c] sm:$0xff]
    %v8278 = vld [vmem:[#allocation19 + $0xa14] sm:$0xf]
    %v8279 = vld [vmem:[#allocation19 + $0xa18] sm:$0xff]
    %v8280 = vld [vmem:[#allocation19 + $0xa20] sm:$0xff]
    %v8281 = vld [vmem:[#allocation19 + $0xa28] sm:$0xff]
    %v8282 = vld [vmem:[#allocation19 + $0xa30] sm:$0xff]
    %v8283 = vld [vmem:[#allocation19 + $0xa38] sm:$0xff]
    %v8284 = vld [vmem:[#allocation19 + $0xa40] sm:$0xff]
    %v8285 = vld [vmem:[#allocation19 + $0xa48] sm:$0xff]
    %v8286 = vld [vmem:[#allocation19 + $0xa50] sm:$0xff]
    %v8287 = vld [vmem:[#allocation19 + $0xa58] sm:$0xff]
    %v8288 = vld [vmem:[#allocation19 + $0xa60] sm:$0xf]
    %v8289 = vld [vmem:[#allocation19 + $0xa64] sm:$0xff]
    %v8290 = vld [vmem:[#allocation19 + $0xa6c] sm:$0xff]
    %v8291 = vld [vmem:[#allocation19 + $0xa74] sm:$0xff]
    %v8292 = vld [vmem:[#allocation19 + $0xa7c] sm:$0xff]
    %v8293 = vld [vmem:[#allocation19 + $0xa84] sm:$0xff]
    %v8294 = vld [vmem:[#allocation19 + $0xa8c] sm:$0xff]
    %v8295 = vld [vmem:[#allocation19 + $0xa94] sm:$0xff]
    %v8296 = vld [vmem:[#allocation19 + $0xa9c] sm:$0xff]
    %v8297 = vld [vmem:[#allocation19 + $0xaa4] sm:$0xff]
    %v8298 = vld [vmem:[#allocation19 + $0xaac] sm:$0xf]
    %v8299 = vld [vmem:[#allocation19 + $0xab0] sm:$0xff]
    %v8300 = vld [vmem:[#allocation19 + $0xab8] sm:$0xff]
    %v8301 = vld [vmem:[#allocation19 + $0xac0] sm:$0xff]
    %v8302 = vld [vmem:[#allocation19 + $0xac8] sm:$0xff]
    %v8303 = vld [vmem:[#allocation19 + $0xad0] sm:$0xff]
    %v8304 = vld [vmem:[#allocation19 + $0xad8] sm:$0xff]
    %v8305 = vld [vmem:[#allocation19 + $0xae0] sm:$0xff]
    %v8306 = vld [vmem:[#allocation19 + $0xae8] sm:$0xff]
    %v8307 = vld [vmem:[#allocation19 + $0xaf0] sm:$0xff]
    %v8308 = vld [vmem:[#allocation19 + $0xaf8] sm:$0xf]
    %v8309 = vld [vmem:[#allocation19 + $0xafc] sm:$0xff]
    %v8310 = vld [vmem:[#allocation19 + $0xb04] sm:$0xff]
    %v8311 = vld [vmem:[#allocation19 + $0xb0c] sm:$0xff]
    %v8312 = vld [vmem:[#allocation19 + $0xb14] sm:$0xff]
    %v8313 = vld [vmem:[#allocation19 + $0xb1c] sm:$0xff]
    %v8314 = vld [vmem:[#allocation19 + $0xb24] sm:$0xff]
    %v8315 = vld [vmem:[#allocation19 + $0xb2c] sm:$0xff]
    %v8316 = vld [vmem:[#allocation19 + $0xb34] sm:$0xff]
    %v8317 = vld [vmem:[#allocation19 + $0xb3c] sm:$0xff]
    %v8318 = vld [vmem:[#allocation19 + $0xb44] sm:$0xf]
    %v8319 = vld [vmem:[#allocation19 + $0xb48] sm:$0xff]
    %v8320 = vld [vmem:[#allocation19 + $0xb50] sm:$0xff]
    %v8321 = vld [vmem:[#allocation19 + $0xb58] sm:$0xff]
    %v8322 = vld [vmem:[#allocation19 + $0xb60] sm:$0xff]
    %v8323 = vld [vmem:[#allocation19 + $0xb68] sm:$0xff]
    %v8324 = vld [vmem:[#allocation19 + $0xb70] sm:$0xff]
    %v8325 = vld [vmem:[#allocation19 + $0xb78] sm:$0xff]
    %v8326 = vld [vmem:[#allocation19 + $0xb80] sm:$0xff]
    %v8327 = vld [vmem:[#allocation19 + $0xb88] sm:$0xff]
    %v8328 = vld [vmem:[#allocation19 + $0xb90] sm:$0xf]
    %v8329 = vld [vmem:[#allocation19 + $0xb94] sm:$0xff]
    %v8330 = vld [vmem:[#allocation19 + $0xb9c] sm:$0xff]
    %v8331 = vld [vmem:[#allocation19 + $0xba4] sm:$0xff]
    %v8332 = vld [vmem:[#allocation19 + $0xbac] sm:$0xff]
    %v8333 = vld [vmem:[#allocation19 + $0xbb4] sm:$0xff]
    %v8334 = vld [vmem:[#allocation19 + $0xbbc] sm:$0xff]
    %v8335 = vld [vmem:[#allocation19 + $0xbc4] sm:$0xff]
    %v8336 = vld [vmem:[#allocation19 + $0xbcc] sm:$0xff]
    %v8337 = vld [vmem:[#allocation19 + $0xbd4] sm:$0xff]
    %v8338 = vld [vmem:[#allocation19 + $0xbdc] sm:$0xf]
    %v8339 = vld [vmem:[#allocation19 + $0xbe0] sm:$0xff]
    %v8340 = vld [vmem:[#allocation19 + $0xbe8] sm:$0xff]
    %v8341 = vld [vmem:[#allocation19 + $0xbf0] sm:$0xff]
    %v8342 = vld [vmem:[#allocation19 + $0xbf8] sm:$0xff]
    %v8343 = vld [vmem:[#allocation19 + $0xc00] sm:$0xff]
    %v8344 = vld [vmem:[#allocation19 + $0xc08] sm:$0xff]
    %v8345 = vld [vmem:[#allocation19 + $0xc10] sm:$0xff]
    %v8346 = vld [vmem:[#allocation19 + $0xc18] sm:$0xff]
    %v8347 = vld [vmem:[#allocation19 + $0xc20] sm:$0xff]
    %v8348 = vld [vmem:[#allocation19 + $0xc28] sm:$0xf]
    %v8349 = vld [vmem:[#allocation19 + $0xc2c] sm:$0xff]
    %v8350 = vld [vmem:[#allocation19 + $0xc34] sm:$0xff]
    %v8351 = vld [vmem:[#allocation19 + $0xc3c] sm:$0xff]
    %v8352 = vld [vmem:[#allocation19 + $0xc44] sm:$0xff]
    %v8353 = vld [vmem:[#allocation19 + $0xc4c] sm:$0xff]
    %v8354 = vld [vmem:[#allocation19 + $0xc54] sm:$0xff]
    %v8355 = vld [vmem:[#allocation19 + $0xc5c] sm:$0xff]
    %v8356 = vld [vmem:[#allocation19 + $0xc64] sm:$0xff]
    %v8357 = vld [vmem:[#allocation19 + $0xc6c] sm:$0xff]
    %v8358 = vld [vmem:[#allocation19 + $0xc74] sm:$0xf]
    %v8359 = vld [vmem:[#allocation19 + $0xc78] sm:$0xff]
    %v8360 = vld [vmem:[#allocation19 + $0xc80] sm:$0xff]
    %v8361 = vld [vmem:[#allocation19 + $0xc88] sm:$0xff]
    %v8362 = vld [vmem:[#allocation19 + $0xc90] sm:$0xff]
    %v8363 = vld [vmem:[#allocation19 + $0xc98] sm:$0xff]
    %v8364 = vld [vmem:[#allocation19 + $0xca0] sm:$0xff]
    %v8365 = vld [vmem:[#allocation19 + $0xca8] sm:$0xff]
    %v8366 = vld [vmem:[#allocation19 + $0xcb0] sm:$0xff]
    %v8367 = vld [vmem:[#allocation19 + $0xcb8] sm:$0xff]
    %v8368 = vld [vmem:[#allocation19 + $0xcc0] sm:$0xf]
    %v8369 = vld [vmem:[#allocation19 + $0xcc4] sm:$0xff]
    %v8370 = vld [vmem:[#allocation19 + $0xccc] sm:$0xff]
    %v8371 = vld [vmem:[#allocation19 + $0xcd4] sm:$0xff]
    %v8372 = vld [vmem:[#allocation19 + $0xcdc] sm:$0xff]
    %v8373 = vld [vmem:[#allocation19 + $0xce4] sm:$0xff]
    %v8374 = vld [vmem:[#allocation19 + $0xcec] sm:$0xff]
    %v8375 = vld [vmem:[#allocation19 + $0xcf4] sm:$0xff]
    %v8376 = vld [vmem:[#allocation19 + $0xcfc] sm:$0xff]
    %v8377 = vld [vmem:[#allocation19 + $0xd04] sm:$0xff]
    %v8378 = vld [vmem:[#allocation19 + $0xd0c] sm:$0xf]
    %v8379 = vld [vmem:[#allocation19 + $0xd10] sm:$0xff]
    %v8380 = vld [vmem:[#allocation19 + $0xd18] sm:$0xff]
    %v8381 = vld [vmem:[#allocation19 + $0xd20] sm:$0xff]
    %v8382 = vld [vmem:[#allocation19 + $0xd28] sm:$0xff]
    %v8383 = vld [vmem:[#allocation19 + $0xd30] sm:$0xff]
    %v8384 = vld [vmem:[#allocation19 + $0xd38] sm:$0xff]
    %v8385 = vld [vmem:[#allocation19 + $0xd40] sm:$0xff]
    %v8386 = vld [vmem:[#allocation19 + $0xd48] sm:$0xff]
    %v8387 = vld [vmem:[#allocation19 + $0xd50] sm:$0xff]
    %v8388 = vld [vmem:[#allocation19 + $0xd58] sm:$0xf]
    %v8389 = vld [vmem:[#allocation19 + $0xd5c] sm:$0xff]
    %v8390 = vld [vmem:[#allocation19 + $0xd64] sm:$0xff]
    %v8391 = vld [vmem:[#allocation19 + $0xd6c] sm:$0xff]
    %v8392 = vld [vmem:[#allocation19 + $0xd74] sm:$0xff]
    %v8393 = vld [vmem:[#allocation19 + $0xd7c] sm:$0xff]
    %v8394 = vld [vmem:[#allocation19 + $0xd84] sm:$0xff]
    %v8395 = vld [vmem:[#allocation19 + $0xd8c] sm:$0xff]
    %v8396 = vld [vmem:[#allocation19 + $0xd94] sm:$0xff]
    %v8397 = vld [vmem:[#allocation19 + $0xd9c] sm:$0xff]
    %v8398 = vld [vmem:[#allocation19 + $0xda4] sm:$0xf]
    %v8399 = vld [vmem:[#allocation19 + $0xda8] sm:$0xff]
    %v8400 = vld [vmem:[#allocation19 + $0xdb0] sm:$0xff]
    %v8401 = vld [vmem:[#allocation19 + $0xdb8] sm:$0xff]
    %v8402 = vld [vmem:[#allocation19 + $0xdc0] sm:$0xff]
    %v8403 = vld [vmem:[#allocation19 + $0xdc8] sm:$0xff]
    %v8404 = vld [vmem:[#allocation19 + $0xdd0] sm:$0xff]
    %v8405 = vld [vmem:[#allocation19 + $0xdd8] sm:$0xff]
    %v8406 = vld [vmem:[#allocation19 + $0xde0] sm:$0xff]
    %v8407 = vld [vmem:[#allocation19 + $0xde8] sm:$0xff]
    %v8408 = vld [vmem:[#allocation19 + $0xdf0] sm:$0xf]
    %v8409 = vld [vmem:[#allocation19 + $0xdf4] sm:$0xff]
    %v8410 = vld [vmem:[#allocation19 + $0xdfc] sm:$0xff]
    %v8411 = vld [vmem:[#allocation19 + $0xe04] sm:$0xff]
    %v8412 = vld [vmem:[#allocation19 + $0xe0c] sm:$0xff]
    %v8413 = vld [vmem:[#allocation19 + $0xe14] sm:$0xff]
    %v8414 = vld [vmem:[#allocation19 + $0xe1c] sm:$0xff]
    %v8415 = vld [vmem:[#allocation19 + $0xe24] sm:$0xff]
    %v8416 = vld [vmem:[#allocation19 + $0xe2c] sm:$0xff]
    %v8417 = vld [vmem:[#allocation19 + $0xe34] sm:$0xff]
    %v8418 = vld [vmem:[#allocation19 + $0xe3c] sm:$0xf]
    %v8419 = vld [vmem:[#allocation19 + $0xe40] sm:$0xff]
    %v8420 = vld [vmem:[#allocation19 + $0xe48] sm:$0xff]
    %v8421 = vld [vmem:[#allocation19 + $0xe50] sm:$0xff]
    %v8422 = vld [vmem:[#allocation19 + $0xe58] sm:$0xff]
    %v8423 = vld [vmem:[#allocation19 + $0xe60] sm:$0xff]
    %v8424 = vld [vmem:[#allocation19 + $0xe68] sm:$0xff]
    %v8425 = vld [vmem:[#allocation19 + $0xe70] sm:$0xff]
    %v8426 = vld [vmem:[#allocation19 + $0xe78] sm:$0xff]
    %v8427 = vld [vmem:[#allocation19 + $0xe80] sm:$0xff]
    %v8428 = vld [vmem:[#allocation19 + $0xe88] sm:$0xf]
    %v8429 = vld [vmem:[#allocation19 + $0xe8c] sm:$0xff]
    %v8430 = vld [vmem:[#allocation19 + $0xe94] sm:$0xff]
    %v8431 = vld [vmem:[#allocation19 + $0xe9c] sm:$0xff]
    %v8432 = vld [vmem:[#allocation19 + $0xea4] sm:$0xff]
    %v8433 = vld [vmem:[#allocation19 + $0xeac] sm:$0xff]
    %v8434 = vld [vmem:[#allocation19 + $0xeb4] sm:$0xff]
    %v8435 = vld [vmem:[#allocation19 + $0xebc] sm:$0xff]
    %v8436 = vld [vmem:[#allocation19 + $0xec4] sm:$0xff]
    %v8437 = vld [vmem:[#allocation19 + $0xecc] sm:$0xff]
    %v8438 = vld [vmem:[#allocation19 + $0xed4] sm:$0xf]
    %v8439 = vld [vmem:[#allocation19 + $0xed8] sm:$0xff]
    %v8440 = vld [vmem:[#allocation19 + $0xee0] sm:$0xff]
    %v8441 = vld [vmem:[#allocation19 + $0xee8] sm:$0xff]
    %v8442 = vld [vmem:[#allocation19 + $0xef0] sm:$0xff]
    %v8443 = vld [vmem:[#allocation19 + $0xef8] sm:$0xff]
    %v8444 = vld [vmem:[#allocation19 + $0xf00] sm:$0xff]
    %v8445 = vld [vmem:[#allocation19 + $0xf08] sm:$0xff]
    %v8446 = vld [vmem:[#allocation19 + $0xf10] sm:$0xff]
    %v8447 = vld [vmem:[#allocation19 + $0xf18] sm:$0xff]
    %v8448 = vld [vmem:[#allocation19 + $0xf20] sm:$0xf]
    %v8449 = vld [vmem:[#allocation19 + $0xf24] sm:$0xff]
    %v8450 = vld [vmem:[#allocation19 + $0xf2c] sm:$0xff]
    %v8451 = vld [vmem:[#allocation19 + $0xf34] sm:$0xff]
    %v8452 = vld [vmem:[#allocation19 + $0xf3c] sm:$0xff]
    %v8453 = vld [vmem:[#allocation19 + $0xf44] sm:$0xff]
    %v8454 = vld [vmem:[#allocation19 + $0xf4c] sm:$0xff]
    %v8455 = vld [vmem:[#allocation19 + $0xf54] sm:$0xff]
    %v8456 = vld [vmem:[#allocation19 + $0xf5c] sm:$0xff]
    %v8457 = vld [vmem:[#allocation19 + $0xf64] sm:$0xff]
    %v8458 = vld [vmem:[#allocation19 + $0xf6c] sm:$0xf]
    %v8459 = vld [vmem:[#allocation19 + $0xf70] sm:$0xff]
    %v8460 = vld [vmem:[#allocation19 + $0xf78] sm:$0xff]
    %v8461 = vld [vmem:[#allocation19 + $0xf80] sm:$0xff]
    %v8462 = vld [vmem:[#allocation19 + $0xf88] sm:$0xff]
    %v8463 = vld [vmem:[#allocation19 + $0xf90] sm:$0xff]
    %v8464 = vld [vmem:[#allocation19 + $0xf98] sm:$0xff]
    %v8465 = vld [vmem:[#allocation19 + $0xfa0] sm:$0xff]
    %v8466 = vld [vmem:[#allocation19 + $0xfa8] sm:$0xff]
    %v8467 = vld [vmem:[#allocation19 + $0xfb0] sm:$0xff]
    %v8468 = vld [vmem:[#allocation19 + $0xfb8] sm:$0xf]
    %v8469 = vld [vmem:[#allocation19 + $0xfbc] sm:$0xff]
    %v8470 = vld [vmem:[#allocation19 + $0xfc4] sm:$0xff]
    %v8471 = vld [vmem:[#allocation19 + $0xfcc] sm:$0xff]
    %v8472 = vld [vmem:[#allocation19 + $0xfd4] sm:$0xff]
    %v8473 = vld [vmem:[#allocation19 + $0xfdc] sm:$0xff]
    %v8474 = vld [vmem:[#allocation19 + $0xfe4] sm:$0xff]
    %v8475 = vld [vmem:[#allocation19 + $0xfec] sm:$0xff]
    %v8476 = vld [vmem:[#allocation19 + $0xff4] sm:$0xff]
    %v8477 = vld [vmem:[#allocation19 + $0xffc] sm:$0xff]
    %v8478 = vld [vmem:[#allocation19 + $0x1004] sm:$0xf]
    %v8479 = vld [vmem:[#allocation19 + $0x1008] sm:$0xff]
    %v8480 = vld [vmem:[#allocation19 + $0x1010] sm:$0xff]
    %v8481 = vld [vmem:[#allocation19 + $0x1018] sm:$0xff]
    %v8482 = vld [vmem:[#allocation19 + $0x1020] sm:$0xff]
    %v8483 = vld [vmem:[#allocation19 + $0x1028] sm:$0xff]
    %v8484 = vld [vmem:[#allocation19 + $0x1030] sm:$0xff]
    %v8485 = vld [vmem:[#allocation19 + $0x1038] sm:$0xff]
    %v8486 = vld [vmem:[#allocation19 + $0x1040] sm:$0xff]
    %v8487 = vld [vmem:[#allocation19 + $0x1048] sm:$0xff]
    %v8488 = vld [vmem:[#allocation19 + $0x1050] sm:$0xf]
    %v8489 = vld [vmem:[#allocation19 + $0x1054] sm:$0xff]
    %v8490 = vld [vmem:[#allocation19 + $0x105c] sm:$0xff]
    %v8491 = vld [vmem:[#allocation19 + $0x1064] sm:$0xff]
    %v8492 = vld [vmem:[#allocation19 + $0x106c] sm:$0xff]
    %v8493 = vld [vmem:[#allocation19 + $0x1074] sm:$0xff]
    %v8494 = vld [vmem:[#allocation19 + $0x107c] sm:$0xff]
    %v8495 = vld [vmem:[#allocation19 + $0x1084] sm:$0xff]
    %v8496 = vld [vmem:[#allocation19 + $0x108c] sm:$0xff]
    %v8497 = vld [vmem:[#allocation19 + $0x1094] sm:$0xff]
    %v8498 = vld [vmem:[#allocation19 + $0x109c] sm:$0xf]
    %v8499 = vld [vmem:[#allocation19 + $0x10a0] sm:$0xff]
    %v8500 = vld [vmem:[#allocation19 + $0x10a8] sm:$0xff]
    %v8501 = vld [vmem:[#allocation19 + $0x10b0] sm:$0xff]
    %v8502 = vld [vmem:[#allocation19 + $0x10b8] sm:$0xff]
    %v8503 = vld [vmem:[#allocation19 + $0x10c0] sm:$0xff]
    %v8504 = vld [vmem:[#allocation19 + $0x10c8] sm:$0xff]
    %v8505 = vld [vmem:[#allocation19 + $0x10d0] sm:$0xff]
    %v8506 = vld [vmem:[#allocation19 + $0x10d8] sm:$0xff]
    %v8507 = vld [vmem:[#allocation19 + $0x10e0] sm:$0xff]
    %v8508 = vld [vmem:[#allocation19 + $0x10e8] sm:$0xf]
    %v8509 = vld [vmem:[#allocation19 + $0x10ec] sm:$0xff]
    %v8510 = vld [vmem:[#allocation19 + $0x10f4] sm:$0xff]
    %v8511 = vld [vmem:[#allocation19 + $0x10fc] sm:$0xff]
    %v8512 = vld [vmem:[#allocation19 + $0x1104] sm:$0xff]
    %v8513 = vld [vmem:[#allocation19 + $0x110c] sm:$0xff]
    %v8514 = vld [vmem:[#allocation19 + $0x1114] sm:$0xff]
    %v8515 = vld [vmem:[#allocation19 + $0x111c] sm:$0xff]
    %v8516 = vld [vmem:[#allocation19 + $0x1124] sm:$0xff]
    %v8517 = vld [vmem:[#allocation19 + $0x112c] sm:$0xff]
    %v8518 = vld [vmem:[#allocation19 + $0x1134] sm:$0xf]
    %v8519 = vld [vmem:[#allocation19 + $0x1138] sm:$0xff]
    %v8520 = vld [vmem:[#allocation19 + $0x1140] sm:$0xff]
    %v8521 = vld [vmem:[#allocation19 + $0x1148] sm:$0xff]
    %v8522 = vld [vmem:[#allocation19 + $0x1150] sm:$0xff]
    %v8523 = vld [vmem:[#allocation19 + $0x1158] sm:$0xff]
    %v8524 = vld [vmem:[#allocation19 + $0x1160] sm:$0xff]
    %v8525 = vld [vmem:[#allocation19 + $0x1168] sm:$0xff]
    %v8526 = vld [vmem:[#allocation19 + $0x1170] sm:$0xff]
    %v8527 = vld [vmem:[#allocation19 + $0x1178] sm:$0xff]
    %v8528 = vld [vmem:[#allocation19 + $0x1180] sm:$0xf]
    %v8529 = vld [vmem:[#allocation19 + $0x1184] sm:$0xff]
    %v8530 = vld [vmem:[#allocation19 + $0x118c] sm:$0xff]
    %v8531 = vld [vmem:[#allocation19 + $0x1194] sm:$0xff]
    %v8532 = vld [vmem:[#allocation19 + $0x119c] sm:$0xff]
    %v8533 = vld [vmem:[#allocation19 + $0x11a4] sm:$0xff]
    %v8534 = vld [vmem:[#allocation19 + $0x11ac] sm:$0xff]
    %v8535 = vld [vmem:[#allocation19 + $0x11b4] sm:$0xff]
    %v8536 = vld [vmem:[#allocation19 + $0x11bc] sm:$0xff]
    %v8537 = vld [vmem:[#allocation19 + $0x11c4] sm:$0xff]
    %v8538 = vld [vmem:[#allocation19 + $0x11cc] sm:$0xf]
    %v8539 = vld [vmem:[#allocation19 + $0x11d0] sm:$0xff]
    %v8540 = vld [vmem:[#allocation19 + $0x11d8] sm:$0xff]
    %v8541 = vld [vmem:[#allocation19 + $0x11e0] sm:$0xff]
    %v8542 = vld [vmem:[#allocation19 + $0x11e8] sm:$0xff]
    %v8543 = vld [vmem:[#allocation19 + $0x11f0] sm:$0xff]
    %v8544 = vld [vmem:[#allocation19 + $0x11f8] sm:$0xff]
    %v8545 = vld [vmem:[#allocation19 + $0x1200] sm:$0xff]
    %v8546 = vld [vmem:[#allocation19 + $0x1208] sm:$0xff]
    %v8547 = vld [vmem:[#allocation19 + $0x1210] sm:$0xff]
    %v8548 = vld [vmem:[#allocation19 + $0x1218] sm:$0xf]
    %v8549 = vld [vmem:[#allocation19 + $0x121c] sm:$0xff]
    %v8550 = vld [vmem:[#allocation19 + $0x1224] sm:$0xff]
    %v8551 = vld [vmem:[#allocation19 + $0x122c] sm:$0xff]
    %v8552 = vld [vmem:[#allocation19 + $0x1234] sm:$0xff]
    %v8553 = vld [vmem:[#allocation19 + $0x123c] sm:$0xff]
    %v8554 = vld [vmem:[#allocation19 + $0x1244] sm:$0xff]
    %v8555 = vld [vmem:[#allocation19 + $0x124c] sm:$0xff]
    %v8556 = vld [vmem:[#allocation19 + $0x1254] sm:$0xff]
    %v8557 = vld [vmem:[#allocation19 + $0x125c] sm:$0xff]
    %v8558 = vld [vmem:[#allocation19 + $0x1264] sm:$0xf]
    %v8559 = vld [vmem:[#allocation19 + $0x1268] sm:$0xff]
    %v8560 = vld [vmem:[#allocation19 + $0x1270] sm:$0xff]
    %v8561 = vld [vmem:[#allocation19 + $0x1278] sm:$0xff]
    %v8562 = vld [vmem:[#allocation19 + $0x1280] sm:$0xff]
    %v8563 = vld [vmem:[#allocation19 + $0x1288] sm:$0xff]
    %v8564 = vld [vmem:[#allocation19 + $0x1290] sm:$0xff]
    %v8565 = vld [vmem:[#allocation19 + $0x1298] sm:$0xff]
    %v8566 = vld [vmem:[#allocation19 + $0x12a0] sm:$0xff]
    %v8567 = vld [vmem:[#allocation19 + $0x12a8] sm:$0xff]
    %v8568 = vld [vmem:[#allocation19 + $0x12b0] sm:$0xf]
    %v8569 = vld [vmem:[#allocation19 + $0x12b4] sm:$0xff]
    %v8570 = vld [vmem:[#allocation19 + $0x12bc] sm:$0xff]
    %v8571 = vld [vmem:[#allocation19 + $0x12c4] sm:$0xff]
    %v8572 = vld [vmem:[#allocation19 + $0x12cc] sm:$0xff]
    %v8573 = vld [vmem:[#allocation19 + $0x12d4] sm:$0xff]
    %v8574 = vld [vmem:[#allocation19 + $0x12dc] sm:$0xff]
    %v8575 = vld [vmem:[#allocation19 + $0x12e4] sm:$0xff]
    %v8576 = vld [vmem:[#allocation19 + $0x12ec] sm:$0xff]
    %v8577 = vld [vmem:[#allocation19 + $0x12f4] sm:$0xff]
    %v8578 = vld [vmem:[#allocation19 + $0x12fc] sm:$0xf]
    %v8579 = vld [vmem:[#allocation20] sm:$0xff]
    %v8580 = vld [vmem:[#allocation20 + $0x8] sm:$0xff]
    %v8581 = vld [vmem:[#allocation20 + $0x10] sm:$0x7]
    %v8585 = vlaneseq
    %v8586 = vshrl.u32 %v8585, 7
    %v8587 = vsub.s32 0, %v8586
    %v8588 = vrot.slane %v8579, %v8587
    %v8589 = vlaneseq
    %v8590 = vshrl.u32 %v8589, 7
    %v8591 = vsub.s32 1, %v8590
    %v8592 = vrot.slane %v8579, %v8591
    %v8593 = vlaneseq
    %v8594 = vshrl.u32 %v8593, 7
    %v8595 = vsub.s32 2, %v8594
    %v8596 = vrot.slane %v8579, %v8595
    %v8597 = vlaneseq
    %v8598 = vshrl.u32 %v8597, 7
    %v8599 = vsub.s32 3, %v8598
    %v8600 = vrot.slane %v8579, %v8599
    %v8601 = vlaneseq
    %v8602 = vshrl.u32 %v8601, 7
    %v8603 = vsub.s32 4, %v8602
    %v8604 = vrot.slane %v8579, %v8603
    %v8605 = vlaneseq
    %v8606 = vshrl.u32 %v8605, 7
    %v8607 = vsub.s32 5, %v8606
    %v8608 = vrot.slane %v8579, %v8607
    %v8609 = vlaneseq
    %v8610 = vshrl.u32 %v8609, 7
    %v8611 = vsub.s32 6, %v8610
    %v8612 = vrot.slane %v8579, %v8611
    %v8613 = vlaneseq
    %v8614 = vshrl.u32 %v8613, 7
    %v8615 = vsub.s32 7, %v8614
    %v8616 = vrot.slane %v8579, %v8615
    %v8617 = vlaneseq
    %v8618 = vshrl.u32 %v8617, 7
    %v8619 = vsub.s32 0, %v8618
    %v8620 = vrot.slane %v8580, %v8619
    %v8621 = vlaneseq
    %v8622 = vshrl.u32 %v8621, 7
    %v8623 = vsub.s32 1, %v8622
    %v8624 = vrot.slane %v8580, %v8623
    %v8625 = vlaneseq
    %v8626 = vshrl.u32 %v8625, 7
    %v8627 = vsub.s32 2, %v8626
    %v8628 = vrot.slane %v8580, %v8627
    %v8629 = vlaneseq
    %v8630 = vshrl.u32 %v8629, 7
    %v8631 = vsub.s32 3, %v8630
    %v8632 = vrot.slane %v8580, %v8631
    %v8633 = vlaneseq
    %v8634 = vshrl.u32 %v8633, 7
    %v8635 = vsub.s32 4, %v8634
    %v8636 = vrot.slane %v8580, %v8635
    %v8637 = vlaneseq
    %v8638 = vshrl.u32 %v8637, 7
    %v8639 = vsub.s32 5, %v8638
    %v8640 = vrot.slane %v8580, %v8639
    %v8641 = vlaneseq
    %v8642 = vshrl.u32 %v8641, 7
    %v8643 = vsub.s32 6, %v8642
    %v8644 = vrot.slane %v8580, %v8643
    %v8645 = vlaneseq
    %v8646 = vshrl.u32 %v8645, 7
    %v8647 = vsub.s32 7, %v8646
    %v8648 = vrot.slane %v8580, %v8647
    %v8649 = vlaneseq
    %v8650 = vshrl.u32 %v8649, 7
    %v8651 = vsub.s32 0, %v8650
    %v8652 = vrot.slane %v8581, %v8651
    %v8653 = vlaneseq
    %v8654 = vshrl.u32 %v8653, 7
    %v8655 = vsub.s32 1, %v8654
    %v8656 = vrot.slane %v8581, %v8655
    %v8657 = vlaneseq
    %v8658 = vshrl.u32 %v8657, 7
    %v8659 = vsub.s32 2, %v8658
    %v8660 = vrot.slane %v8581, %v8659
    %v9320 = vunpack.c.l.b16 %v7939
    %v9321 = vunpack.c.h.b16 %v7939
    %v9322 = vunpack.c.l.b16 %v7940
    %v9323 = vunpack.c.h.b16 %v7940
    %v9324 = vunpack.c.l.b16 %v7941
    %v9325 = vunpack.c.h.b16 %v7941
    %v9326 = vunpack.c.l.b16 %v7942
    %v9327 = vunpack.c.h.b16 %v7942
    %v9328 = vunpack.c.l.b16 %v7943
    %v9329 = vunpack.c.h.b16 %v7943
    %v9330 = vunpack.c.l.b16 %v7944
    %v9331 = vunpack.c.h.b16 %v7944
    %v9332 = vunpack.c.l.b16 %v7945
    %v9333 = vunpack.c.h.b16 %v7945
    %v9334 = vunpack.c.l.b16 %v7946
    %v9335 = vunpack.c.h.b16 %v7946
    %v9336 = vunpack.c.l.b16 %v7947
    %v9337 = vunpack.c.h.b16 %v7947
    %v9338 = vunpack.c.l.b16 %v7948
    %v9339 = vunpack.c.l.b16 %v7949
    %v9340 = vunpack.c.h.b16 %v7949
    %v9341 = vunpack.c.l.b16 %v7950
    %v9342 = vunpack.c.h.b16 %v7950
    %v9343 = vunpack.c.l.b16 %v7951
    %v9344 = vunpack.c.h.b16 %v7951
    %v9345 = vunpack.c.l.b16 %v7952
    %v9346 = vunpack.c.h.b16 %v7952
    %v9347 = vunpack.c.l.b16 %v7953
    %v9348 = vunpack.c.h.b16 %v7953
    %v9349 = vunpack.c.l.b16 %v7954
    %v9350 = vunpack.c.h.b16 %v7954
    %v9351 = vunpack.c.l.b16 %v7955
    %v9352 = vunpack.c.h.b16 %v7955
    %v9353 = vunpack.c.l.b16 %v7956
    %v9354 = vunpack.c.h.b16 %v7956
    %v9355 = vunpack.c.l.b16 %v7957
    %v9356 = vunpack.c.h.b16 %v7957
    %v9357 = vunpack.c.l.b16 %v7958
    %v9358 = vunpack.c.l.b16 %v7959
    %v9359 = vunpack.c.h.b16 %v7959
    %v9360 = vunpack.c.l.b16 %v7960
    %v9361 = vunpack.c.h.b16 %v7960
    %v9362 = vunpack.c.l.b16 %v7961
    %v9363 = vunpack.c.h.b16 %v7961
    %v9364 = vunpack.c.l.b16 %v7962
    %v9365 = vunpack.c.h.b16 %v7962
    %v9366 = vunpack.c.l.b16 %v7963
    %v9367 = vunpack.c.h.b16 %v7963
    %v9368 = vunpack.c.l.b16 %v7964
    %v9369 = vunpack.c.h.b16 %v7964
    %v9370 = vunpack.c.l.b16 %v7965
    %v9371 = vunpack.c.h.b16 %v7965
    %v9372 = vunpack.c.l.b16 %v7966
    %v9373 = vunpack.c.h.b16 %v7966
    %v9374 = vunpack.c.l.b16 %v7967
    %v9375 = vunpack.c.h.b16 %v7967
    %v9376 = vunpack.c.l.b16 %v7968
    %v9377 = vunpack.c.l.b16 %v7969
    %v9378 = vunpack.c.h.b16 %v7969
    %v9379 = vunpack.c.l.b16 %v7970
    %v9380 = vunpack.c.h.b16 %v7970
    %v9381 = vunpack.c.l.b16 %v7971
    %v9382 = vunpack.c.h.b16 %v7971
    %v9383 = vunpack.c.l.b16 %v7972
    %v9384 = vunpack.c.h.b16 %v7972
    %v9385 = vunpack.c.l.b16 %v7973
    %v9386 = vunpack.c.h.b16 %v7973
    %v9387 = vunpack.c.l.b16 %v7974
    %v9388 = vunpack.c.h.b16 %v7974
    %v9389 = vunpack.c.l.b16 %v7975
    %v9390 = vunpack.c.h.b16 %v7975
    %v9391 = vunpack.c.l.b16 %v7976
    %v9392 = vunpack.c.h.b16 %v7976
    %v9393 = vunpack.c.l.b16 %v7977
    %v9394 = vunpack.c.h.b16 %v7977
    %v9395 = vunpack.c.l.b16 %v7978
    %v9396 = vunpack.c.l.b16 %v7979
    %v9397 = vunpack.c.h.b16 %v7979
    %v9398 = vunpack.c.l.b16 %v7980
    %v9399 = vunpack.c.h.b16 %v7980
    %v9400 = vunpack.c.l.b16 %v7981
    %v9401 = vunpack.c.h.b16 %v7981
    %v9402 = vunpack.c.l.b16 %v7982
    %v9403 = vunpack.c.h.b16 %v7982
    %v9404 = vunpack.c.l.b16 %v7983
    %v9405 = vunpack.c.h.b16 %v7983
    %v9406 = vunpack.c.l.b16 %v7984
    %v9407 = vunpack.c.h.b16 %v7984
    %v9408 = vunpack.c.l.b16 %v7985
    %v9409 = vunpack.c.h.b16 %v7985
    %v9410 = vunpack.c.l.b16 %v7986
    %v9411 = vunpack.c.h.b16 %v7986
    %v9412 = vunpack.c.l.b16 %v7987
    %v9413 = vunpack.c.h.b16 %v7987
    %v9414 = vunpack.c.l.b16 %v7988
    %v9415 = vunpack.c.l.b16 %v7989
    %v9416 = vunpack.c.h.b16 %v7989
    %v9417 = vunpack.c.l.b16 %v7990
    %v9418 = vunpack.c.h.b16 %v7990
    %v9419 = vunpack.c.l.b16 %v7991
    %v9420 = vunpack.c.h.b16 %v7991
    %v9421 = vunpack.c.l.b16 %v7992
    %v9422 = vunpack.c.h.b16 %v7992
    %v9423 = vunpack.c.l.b16 %v7993
    %v9424 = vunpack.c.h.b16 %v7993
    %v9425 = vunpack.c.l.b16 %v7994
    %v9426 = vunpack.c.h.b16 %v7994
    %v9427 = vunpack.c.l.b16 %v7995
    %v9428 = vunpack.c.h.b16 %v7995
    %v9429 = vunpack.c.l.b16 %v7996
    %v9430 = vunpack.c.h.b16 %v7996
    %v9431 = vunpack.c.l.b16 %v7997
    %v9432 = vunpack.c.h.b16 %v7997
    %v9433 = vunpack.c.l.b16 %v7998
    %v9434 = vunpack.c.l.b16 %v7999
    %v9435 = vunpack.c.h.b16 %v7999
    %v9436 = vunpack.c.l.b16 %v8000
    %v9437 = vunpack.c.h.b16 %v8000
    %v9438 = vunpack.c.l.b16 %v8001
    %v9439 = vunpack.c.h.b16 %v8001
    %v9440 = vunpack.c.l.b16 %v8002
    %v9441 = vunpack.c.h.b16 %v8002
    %v9442 = vunpack.c.l.b16 %v8003
    %v9443 = vunpack.c.h.b16 %v8003
    %v9444 = vunpack.c.l.b16 %v8004
    %v9445 = vunpack.c.h.b16 %v8004
    %v9446 = vunpack.c.l.b16 %v8005
    %v9447 = vunpack.c.h.b16 %v8005
    %v9448 = vunpack.c.l.b16 %v8006
    %v9449 = vunpack.c.h.b16 %v8006
    %v9450 = vunpack.c.l.b16 %v8007
    %v9451 = vunpack.c.h.b16 %v8007
    %v9452 = vunpack.c.l.b16 %v8008
    %v9453 = vunpack.c.l.b16 %v8009
    %v9454 = vunpack.c.h.b16 %v8009
    %v9455 = vunpack.c.l.b16 %v8010
    %v9456 = vunpack.c.h.b16 %v8010
    %v9457 = vunpack.c.l.b16 %v8011
    %v9458 = vunpack.c.h.b16 %v8011
    %v9459 = vunpack.c.l.b16 %v8012
    %v9460 = vunpack.c.h.b16 %v8012
    %v9461 = vunpack.c.l.b16 %v8013
    %v9462 = vunpack.c.h.b16 %v8013
    %v9463 = vunpack.c.l.b16 %v8014
    %v9464 = vunpack.c.h.b16 %v8014
    %v9465 = vunpack.c.l.b16 %v8015
    %v9466 = vunpack.c.h.b16 %v8015
    %v9467 = vunpack.c.l.b16 %v8016
    %v9468 = vunpack.c.h.b16 %v8016
    %v9469 = vunpack.c.l.b16 %v8017
    %v9470 = vunpack.c.h.b16 %v8017
    %v9471 = vunpack.c.l.b16 %v8018
    %v9472 = vunpack.c.l.b16 %v8019
    %v9473 = vunpack.c.h.b16 %v8019
    %v9474 = vunpack.c.l.b16 %v8020
    %v9475 = vunpack.c.h.b16 %v8020
    %v9476 = vunpack.c.l.b16 %v8021
    %v9477 = vunpack.c.h.b16 %v8021
    %v9478 = vunpack.c.l.b16 %v8022
    %v9479 = vunpack.c.h.b16 %v8022
    %v9480 = vunpack.c.l.b16 %v8023
    %v9481 = vunpack.c.h.b16 %v8023
    %v9482 = vunpack.c.l.b16 %v8024
    %v9483 = vunpack.c.h.b16 %v8024
    %v9484 = vunpack.c.l.b16 %v8025
    %v9485 = vunpack.c.h.b16 %v8025
    %v9486 = vunpack.c.l.b16 %v8026
    %v9487 = vunpack.c.h.b16 %v8026
    %v9488 = vunpack.c.l.b16 %v8027
    %v9489 = vunpack.c.h.b16 %v8027
    %v9490 = vunpack.c.l.b16 %v8028
    %v9491 = vunpack.c.l.b16 %v8029
    %v9492 = vunpack.c.h.b16 %v8029
    %v9493 = vunpack.c.l.b16 %v8030
    %v9494 = vunpack.c.h.b16 %v8030
    %v9495 = vunpack.c.l.b16 %v8031
    %v9496 = vunpack.c.h.b16 %v8031
    %v9497 = vunpack.c.l.b16 %v8032
    %v9498 = vunpack.c.h.b16 %v8032
    %v9499 = vunpack.c.l.b16 %v8033
    %v9500 = vunpack.c.h.b16 %v8033
    %v9501 = vunpack.c.l.b16 %v8034
    %v9502 = vunpack.c.h.b16 %v8034
    %v9503 = vunpack.c.l.b16 %v8035
    %v9504 = vunpack.c.h.b16 %v8035
    %v9505 = vunpack.c.l.b16 %v8036
    %v9506 = vunpack.c.h.b16 %v8036
    %v9507 = vunpack.c.l.b16 %v8037
    %v9508 = vunpack.c.h.b16 %v8037
    %v9509 = vunpack.c.l.b16 %v8038
    %v9510 = vunpack.c.l.b16 %v8039
    %v9511 = vunpack.c.h.b16 %v8039
    %v9512 = vunpack.c.l.b16 %v8040
    %v9513 = vunpack.c.h.b16 %v8040
    %v9514 = vunpack.c.l.b16 %v8041
    %v9515 = vunpack.c.h.b16 %v8041
    %v9516 = vunpack.c.l.b16 %v8042
    %v9517 = vunpack.c.h.b16 %v8042
    %v9518 = vunpack.c.l.b16 %v8043
    %v9519 = vunpack.c.h.b16 %v8043
    %v9520 = vunpack.c.l.b16 %v8044
    %v9521 = vunpack.c.h.b16 %v8044
    %v9522 = vunpack.c.l.b16 %v8045
    %v9523 = vunpack.c.h.b16 %v8045
    %v9524 = vunpack.c.l.b16 %v8046
    %v9525 = vunpack.c.h.b16 %v8046
    %v9526 = vunpack.c.l.b16 %v8047
    %v9527 = vunpack.c.h.b16 %v8047
    %v9528 = vunpack.c.l.b16 %v8048
    %v9529 = vunpack.c.l.b16 %v8049
    %v9530 = vunpack.c.h.b16 %v8049
    %v9531 = vunpack.c.l.b16 %v8050
    %v9532 = vunpack.c.h.b16 %v8050
    %v9533 = vunpack.c.l.b16 %v8051
    %v9534 = vunpack.c.h.b16 %v8051
    %v9535 = vunpack.c.l.b16 %v8052
    %v9536 = vunpack.c.h.b16 %v8052
    %v9537 = vunpack.c.l.b16 %v8053
    %v9538 = vunpack.c.h.b16 %v8053
    %v9539 = vunpack.c.l.b16 %v8054
    %v9540 = vunpack.c.h.b16 %v8054
    %v9541 = vunpack.c.l.b16 %v8055
    %v9542 = vunpack.c.h.b16 %v8055
    %v9543 = vunpack.c.l.b16 %v8056
    %v9544 = vunpack.c.h.b16 %v8056
    %v9545 = vunpack.c.l.b16 %v8057
    %v9546 = vunpack.c.h.b16 %v8057
    %v9547 = vunpack.c.l.b16 %v8058
    %v9548 = vunpack.c.l.b16 %v8059
    %v9549 = vunpack.c.h.b16 %v8059
    %v9550 = vunpack.c.l.b16 %v8060
    %v9551 = vunpack.c.h.b16 %v8060
    %v9552 = vunpack.c.l.b16 %v8061
    %v9553 = vunpack.c.h.b16 %v8061
    %v9554 = vunpack.c.l.b16 %v8062
    %v9555 = vunpack.c.h.b16 %v8062
    %v9556 = vunpack.c.l.b16 %v8063
    %v9557 = vunpack.c.h.b16 %v8063
    %v9558 = vunpack.c.l.b16 %v8064
    %v9559 = vunpack.c.h.b16 %v8064
    %v9560 = vunpack.c.l.b16 %v8065
    %v9561 = vunpack.c.h.b16 %v8065
    %v9562 = vunpack.c.l.b16 %v8066
    %v9563 = vunpack.c.h.b16 %v8066
    %v9564 = vunpack.c.l.b16 %v8067
    %v9565 = vunpack.c.h.b16 %v8067
    %v9566 = vunpack.c.l.b16 %v8068
    %v9567 = vunpack.c.l.b16 %v8069
    %v9568 = vunpack.c.h.b16 %v8069
    %v9569 = vunpack.c.l.b16 %v8070
    %v9570 = vunpack.c.h.b16 %v8070
    %v9571 = vunpack.c.l.b16 %v8071
    %v9572 = vunpack.c.h.b16 %v8071
    %v9573 = vunpack.c.l.b16 %v8072
    %v9574 = vunpack.c.h.b16 %v8072
    %v9575 = vunpack.c.l.b16 %v8073
    %v9576 = vunpack.c.h.b16 %v8073
    %v9577 = vunpack.c.l.b16 %v8074
    %v9578 = vunpack.c.h.b16 %v8074
    %v9579 = vunpack.c.l.b16 %v8075
    %v9580 = vunpack.c.h.b16 %v8075
    %v9581 = vunpack.c.l.b16 %v8076
    %v9582 = vunpack.c.h.b16 %v8076
    %v9583 = vunpack.c.l.b16 %v8077
    %v9584 = vunpack.c.h.b16 %v8077
    %v9585 = vunpack.c.l.b16 %v8078
    %v9586 = vunpack.c.l.b16 %v8079
    %v9587 = vunpack.c.h.b16 %v8079
    %v9588 = vunpack.c.l.b16 %v8080
    %v9589 = vunpack.c.h.b16 %v8080
    %v9590 = vunpack.c.l.b16 %v8081
    %v9591 = vunpack.c.h.b16 %v8081
    %v9592 = vunpack.c.l.b16 %v8082
    %v9593 = vunpack.c.h.b16 %v8082
    %v9594 = vunpack.c.l.b16 %v8083
    %v9595 = vunpack.c.h.b16 %v8083
    %v9596 = vunpack.c.l.b16 %v8084
    %v9597 = vunpack.c.h.b16 %v8084
    %v9598 = vunpack.c.l.b16 %v8085
    %v9599 = vunpack.c.h.b16 %v8085
    %v9600 = vunpack.c.l.b16 %v8086
    %v9601 = vunpack.c.h.b16 %v8086
    %v9602 = vunpack.c.l.b16 %v8087
    %v9603 = vunpack.c.h.b16 %v8087
    %v9604 = vunpack.c.l.b16 %v8088
    %v9605 = vunpack.c.l.b16 %v8089
    %v9606 = vunpack.c.h.b16 %v8089
    %v9607 = vunpack.c.l.b16 %v8090
    %v9608 = vunpack.c.h.b16 %v8090
    %v9609 = vunpack.c.l.b16 %v8091
    %v9610 = vunpack.c.h.b16 %v8091
    %v9611 = vunpack.c.l.b16 %v8092
    %v9612 = vunpack.c.h.b16 %v8092
    %v9613 = vunpack.c.l.b16 %v8093
    %v9614 = vunpack.c.h.b16 %v8093
    %v9615 = vunpack.c.l.b16 %v8094
    %v9616 = vunpack.c.h.b16 %v8094
    %v9617 = vunpack.c.l.b16 %v8095
    %v9618 = vunpack.c.h.b16 %v8095
    %v9619 = vunpack.c.l.b16 %v8096
    %v9620 = vunpack.c.h.b16 %v8096
    %v9621 = vunpack.c.l.b16 %v8097
    %v9622 = vunpack.c.h.b16 %v8097
    %v9623 = vunpack.c.l.b16 %v8098
    %v9624 = vunpack.c.l.b16 %v8099
    %v9625 = vunpack.c.h.b16 %v8099
    %v9626 = vunpack.c.l.b16 %v8100
    %v9627 = vunpack.c.h.b16 %v8100
    %v9628 = vunpack.c.l.b16 %v8101
    %v9629 = vunpack.c.h.b16 %v8101
    %v9630 = vunpack.c.l.b16 %v8102
    %v9631 = vunpack.c.h.b16 %v8102
    %v9632 = vunpack.c.l.b16 %v8103
    %v9633 = vunpack.c.h.b16 %v8103
    %v9634 = vunpack.c.l.b16 %v8104
    %v9635 = vunpack.c.h.b16 %v8104
    %v9636 = vunpack.c.l.b16 %v8105
    %v9637 = vunpack.c.h.b16 %v8105
    %v9638 = vunpack.c.l.b16 %v8106
    %v9639 = vunpack.c.h.b16 %v8106
    %v9640 = vunpack.c.l.b16 %v8107
    %v9641 = vunpack.c.h.b16 %v8107
    %v9642 = vunpack.c.l.b16 %v8108
    %v9643 = vunpack.c.l.b16 %v8109
    %v9644 = vunpack.c.h.b16 %v8109
    %v9645 = vunpack.c.l.b16 %v8110
    %v9646 = vunpack.c.h.b16 %v8110
    %v9647 = vunpack.c.l.b16 %v8111
    %v9648 = vunpack.c.h.b16 %v8111
    %v9649 = vunpack.c.l.b16 %v8112
    %v9650 = vunpack.c.h.b16 %v8112
    %v9651 = vunpack.c.l.b16 %v8113
    %v9652 = vunpack.c.h.b16 %v8113
    %v9653 = vunpack.c.l.b16 %v8114
    %v9654 = vunpack.c.h.b16 %v8114
    %v9655 = vunpack.c.l.b16 %v8115
    %v9656 = vunpack.c.h.b16 %v8115
    %v9657 = vunpack.c.l.b16 %v8116
    %v9658 = vunpack.c.h.b16 %v8116
    %v9659 = vunpack.c.l.b16 %v8117
    %v9660 = vunpack.c.h.b16 %v8117
    %v9661 = vunpack.c.l.b16 %v8118
    %v9662 = vunpack.c.l.b16 %v8119
    %v9663 = vunpack.c.h.b16 %v8119
    %v9664 = vunpack.c.l.b16 %v8120
    %v9665 = vunpack.c.h.b16 %v8120
    %v9666 = vunpack.c.l.b16 %v8121
    %v9667 = vunpack.c.h.b16 %v8121
    %v9668 = vunpack.c.l.b16 %v8122
    %v9669 = vunpack.c.h.b16 %v8122
    %v9670 = vunpack.c.l.b16 %v8123
    %v9671 = vunpack.c.h.b16 %v8123
    %v9672 = vunpack.c.l.b16 %v8124
    %v9673 = vunpack.c.h.b16 %v8124
    %v9674 = vunpack.c.l.b16 %v8125
    %v9675 = vunpack.c.h.b16 %v8125
    %v9676 = vunpack.c.l.b16 %v8126
    %v9677 = vunpack.c.h.b16 %v8126
    %v9678 = vunpack.c.l.b16 %v8127
    %v9679 = vunpack.c.h.b16 %v8127
    %v9680 = vunpack.c.l.b16 %v8128
    %v9681 = vunpack.c.l.b16 %v8129
    %v9682 = vunpack.c.h.b16 %v8129
    %v9683 = vunpack.c.l.b16 %v8130
    %v9684 = vunpack.c.h.b16 %v8130
    %v9685 = vunpack.c.l.b16 %v8131
    %v9686 = vunpack.c.h.b16 %v8131
    %v9687 = vunpack.c.l.b16 %v8132
    %v9688 = vunpack.c.h.b16 %v8132
    %v9689 = vunpack.c.l.b16 %v8133
    %v9690 = vunpack.c.h.b16 %v8133
    %v9691 = vunpack.c.l.b16 %v8134
    %v9692 = vunpack.c.h.b16 %v8134
    %v9693 = vunpack.c.l.b16 %v8135
    %v9694 = vunpack.c.h.b16 %v8135
    %v9695 = vunpack.c.l.b16 %v8136
    %v9696 = vunpack.c.h.b16 %v8136
    %v9697 = vunpack.c.l.b16 %v8137
    %v9698 = vunpack.c.h.b16 %v8137
    %v9699 = vunpack.c.l.b16 %v8138
    %v9700 = vunpack.c.l.b16 %v8139
    %v9701 = vunpack.c.h.b16 %v8139
    %v9702 = vunpack.c.l.b16 %v8140
    %v9703 = vunpack.c.h.b16 %v8140
    %v9704 = vunpack.c.l.b16 %v8141
    %v9705 = vunpack.c.h.b16 %v8141
    %v9706 = vunpack.c.l.b16 %v8142
    %v9707 = vunpack.c.h.b16 %v8142
    %v9708 = vunpack.c.l.b16 %v8143
    %v9709 = vunpack.c.h.b16 %v8143
    %v9710 = vunpack.c.l.b16 %v8144
    %v9711 = vunpack.c.h.b16 %v8144
    %v9712 = vunpack.c.l.b16 %v8145
    %v9713 = vunpack.c.h.b16 %v8145
    %v9714 = vunpack.c.l.b16 %v8146
    %v9715 = vunpack.c.h.b16 %v8146
    %v9716 = vunpack.c.l.b16 %v8147
    %v9717 = vunpack.c.h.b16 %v8147
    %v9718 = vunpack.c.l.b16 %v8148
    %v9719 = vunpack.c.l.b16 %v8149
    %v9720 = vunpack.c.h.b16 %v8149
    %v9721 = vunpack.c.l.b16 %v8150
    %v9722 = vunpack.c.h.b16 %v8150
    %v9723 = vunpack.c.l.b16 %v8151
    %v9724 = vunpack.c.h.b16 %v8151
    %v9725 = vunpack.c.l.b16 %v8152
    %v9726 = vunpack.c.h.b16 %v8152
    %v9727 = vunpack.c.l.b16 %v8153
    %v9728 = vunpack.c.h.b16 %v8153
    %v9729 = vunpack.c.l.b16 %v8154
    %v9730 = vunpack.c.h.b16 %v8154
    %v9731 = vunpack.c.l.b16 %v8155
    %v9732 = vunpack.c.h.b16 %v8155
    %v9733 = vunpack.c.l.b16 %v8156
    %v9734 = vunpack.c.h.b16 %v8156
    %v9735 = vunpack.c.l.b16 %v8157
    %v9736 = vunpack.c.h.b16 %v8157
    %v9737 = vunpack.c.l.b16 %v8158
    %v9738 = vunpack.c.l.b16 %v8159
    %v9739 = vunpack.c.h.b16 %v8159
    %v9740 = vunpack.c.l.b16 %v8160
    %v9741 = vunpack.c.h.b16 %v8160
    %v9742 = vunpack.c.l.b16 %v8161
    %v9743 = vunpack.c.h.b16 %v8161
    %v9744 = vunpack.c.l.b16 %v8162
    %v9745 = vunpack.c.h.b16 %v8162
    %v9746 = vunpack.c.l.b16 %v8163
    %v9747 = vunpack.c.h.b16 %v8163
    %v9748 = vunpack.c.l.b16 %v8164
    %v9749 = vunpack.c.h.b16 %v8164
    %v9750 = vunpack.c.l.b16 %v8165
    %v9751 = vunpack.c.h.b16 %v8165
    %v9752 = vunpack.c.l.b16 %v8166
    %v9753 = vunpack.c.h.b16 %v8166
    %v9754 = vunpack.c.l.b16 %v8167
    %v9755 = vunpack.c.h.b16 %v8167
    %v9756 = vunpack.c.l.b16 %v8168
    %v9757 = vunpack.c.l.b16 %v8169
    %v9758 = vunpack.c.h.b16 %v8169
    %v9759 = vunpack.c.l.b16 %v8170
    %v9760 = vunpack.c.h.b16 %v8170
    %v9761 = vunpack.c.l.b16 %v8171
    %v9762 = vunpack.c.h.b16 %v8171
    %v9763 = vunpack.c.l.b16 %v8172
    %v9764 = vunpack.c.h.b16 %v8172
    %v9765 = vunpack.c.l.b16 %v8173
    %v9766 = vunpack.c.h.b16 %v8173
    %v9767 = vunpack.c.l.b16 %v8174
    %v9768 = vunpack.c.h.b16 %v8174
    %v9769 = vunpack.c.l.b16 %v8175
    %v9770 = vunpack.c.h.b16 %v8175
    %v9771 = vunpack.c.l.b16 %v8176
    %v9772 = vunpack.c.h.b16 %v8176
    %v9773 = vunpack.c.l.b16 %v8177
    %v9774 = vunpack.c.h.b16 %v8177
    %v9775 = vunpack.c.l.b16 %v8178
    %v9776 = vunpack.c.l.b16 %v8179
    %v9777 = vunpack.c.h.b16 %v8179
    %v9778 = vunpack.c.l.b16 %v8180
    %v9779 = vunpack.c.h.b16 %v8180
    %v9780 = vunpack.c.l.b16 %v8181
    %v9781 = vunpack.c.h.b16 %v8181
    %v9782 = vunpack.c.l.b16 %v8182
    %v9783 = vunpack.c.h.b16 %v8182
    %v9784 = vunpack.c.l.b16 %v8183
    %v9785 = vunpack.c.h.b16 %v8183
    %v9786 = vunpack.c.l.b16 %v8184
    %v9787 = vunpack.c.h.b16 %v8184
    %v9788 = vunpack.c.l.b16 %v8185
    %v9789 = vunpack.c.h.b16 %v8185
    %v9790 = vunpack.c.l.b16 %v8186
    %v9791 = vunpack.c.h.b16 %v8186
    %v9792 = vunpack.c.l.b16 %v8187
    %v9793 = vunpack.c.h.b16 %v8187
    %v9794 = vunpack.c.l.b16 %v8188
    %v9795 = vunpack.c.l.b16 %v8189
    %v9796 = vunpack.c.h.b16 %v8189
    %v9797 = vunpack.c.l.b16 %v8190
    %v9798 = vunpack.c.h.b16 %v8190
    %v9799 = vunpack.c.l.b16 %v8191
    %v9800 = vunpack.c.h.b16 %v8191
    %v9801 = vunpack.c.l.b16 %v8192
    %v9802 = vunpack.c.h.b16 %v8192
    %v9803 = vunpack.c.l.b16 %v8193
    %v9804 = vunpack.c.h.b16 %v8193
    %v9805 = vunpack.c.l.b16 %v8194
    %v9806 = vunpack.c.h.b16 %v8194
    %v9807 = vunpack.c.l.b16 %v8195
    %v9808 = vunpack.c.h.b16 %v8195
    %v9809 = vunpack.c.l.b16 %v8196
    %v9810 = vunpack.c.h.b16 %v8196
    %v9811 = vunpack.c.l.b16 %v8197
    %v9812 = vunpack.c.h.b16 %v8197
    %v9813 = vunpack.c.l.b16 %v8198
    %v9814 = vunpack.c.l.b16 %v8199
    %v9815 = vunpack.c.h.b16 %v8199
    %v9816 = vunpack.c.l.b16 %v8200
    %v9817 = vunpack.c.h.b16 %v8200
    %v9818 = vunpack.c.l.b16 %v8201
    %v9819 = vunpack.c.h.b16 %v8201
    %v9820 = vunpack.c.l.b16 %v8202
    %v9821 = vunpack.c.h.b16 %v8202
    %v9822 = vunpack.c.l.b16 %v8203
    %v9823 = vunpack.c.h.b16 %v8203
    %v9824 = vunpack.c.l.b16 %v8204
    %v9825 = vunpack.c.h.b16 %v8204
    %v9826 = vunpack.c.l.b16 %v8205
    %v9827 = vunpack.c.h.b16 %v8205
    %v9828 = vunpack.c.l.b16 %v8206
    %v9829 = vunpack.c.h.b16 %v8206
    %v9830 = vunpack.c.l.b16 %v8207
    %v9831 = vunpack.c.h.b16 %v8207
    %v9832 = vunpack.c.l.b16 %v8208
    %v9833 = vunpack.c.l.b16 %v8209
    %v9834 = vunpack.c.h.b16 %v8209
    %v9835 = vunpack.c.l.b16 %v8210
    %v9836 = vunpack.c.h.b16 %v8210
    %v9837 = vunpack.c.l.b16 %v8211
    %v9838 = vunpack.c.h.b16 %v8211
    %v9839 = vunpack.c.l.b16 %v8212
    %v9840 = vunpack.c.h.b16 %v8212
    %v9841 = vunpack.c.l.b16 %v8213
    %v9842 = vunpack.c.h.b16 %v8213
    %v9843 = vunpack.c.l.b16 %v8214
    %v9844 = vunpack.c.h.b16 %v8214
    %v9845 = vunpack.c.l.b16 %v8215
    %v9846 = vunpack.c.h.b16 %v8215
    %v9847 = vunpack.c.l.b16 %v8216
    %v9848 = vunpack.c.h.b16 %v8216
    %v9849 = vunpack.c.l.b16 %v8217
    %v9850 = vunpack.c.h.b16 %v8217
    %v9851 = vunpack.c.l.b16 %v8218
    %v9852 = vunpack.c.l.b16 %v8219
    %v9853 = vunpack.c.h.b16 %v8219
    %v9854 = vunpack.c.l.b16 %v8220
    %v9855 = vunpack.c.h.b16 %v8220
    %v9856 = vunpack.c.l.b16 %v8221
    %v9857 = vunpack.c.h.b16 %v8221
    %v9858 = vunpack.c.l.b16 %v8222
    %v9859 = vunpack.c.h.b16 %v8222
    %v9860 = vunpack.c.l.b16 %v8223
    %v9861 = vunpack.c.h.b16 %v8223
    %v9862 = vunpack.c.l.b16 %v8224
    %v9863 = vunpack.c.h.b16 %v8224
    %v9864 = vunpack.c.l.b16 %v8225
    %v9865 = vunpack.c.h.b16 %v8225
    %v9866 = vunpack.c.l.b16 %v8226
    %v9867 = vunpack.c.h.b16 %v8226
    %v9868 = vunpack.c.l.b16 %v8227
    %v9869 = vunpack.c.h.b16 %v8227
    %v9870 = vunpack.c.l.b16 %v8228
    %v9871 = vunpack.c.l.b16 %v8229
    %v9872 = vunpack.c.h.b16 %v8229
    %v9873 = vunpack.c.l.b16 %v8230
    %v9874 = vunpack.c.h.b16 %v8230
    %v9875 = vunpack.c.l.b16 %v8231
    %v9876 = vunpack.c.h.b16 %v8231
    %v9877 = vunpack.c.l.b16 %v8232
    %v9878 = vunpack.c.h.b16 %v8232
    %v9879 = vunpack.c.l.b16 %v8233
    %v9880 = vunpack.c.h.b16 %v8233
    %v9881 = vunpack.c.l.b16 %v8234
    %v9882 = vunpack.c.h.b16 %v8234
    %v9883 = vunpack.c.l.b16 %v8235
    %v9884 = vunpack.c.h.b16 %v8235
    %v9885 = vunpack.c.l.b16 %v8236
    %v9886 = vunpack.c.h.b16 %v8236
    %v9887 = vunpack.c.l.b16 %v8237
    %v9888 = vunpack.c.h.b16 %v8237
    %v9889 = vunpack.c.l.b16 %v8238
    %v9890 = vunpack.c.l.b16 %v8239
    %v9891 = vunpack.c.h.b16 %v8239
    %v9892 = vunpack.c.l.b16 %v8240
    %v9893 = vunpack.c.h.b16 %v8240
    %v9894 = vunpack.c.l.b16 %v8241
    %v9895 = vunpack.c.h.b16 %v8241
    %v9896 = vunpack.c.l.b16 %v8242
    %v9897 = vunpack.c.h.b16 %v8242
    %v9898 = vunpack.c.l.b16 %v8243
    %v9899 = vunpack.c.h.b16 %v8243
    %v9900 = vunpack.c.l.b16 %v8244
    %v9901 = vunpack.c.h.b16 %v8244
    %v9902 = vunpack.c.l.b16 %v8245
    %v9903 = vunpack.c.h.b16 %v8245
    %v9904 = vunpack.c.l.b16 %v8246
    %v9905 = vunpack.c.h.b16 %v8246
    %v9906 = vunpack.c.l.b16 %v8247
    %v9907 = vunpack.c.h.b16 %v8247
    %v9908 = vunpack.c.l.b16 %v8248
    %v9909 = vunpack.c.l.b16 %v8249
    %v9910 = vunpack.c.h.b16 %v8249
    %v9911 = vunpack.c.l.b16 %v8250
    %v9912 = vunpack.c.h.b16 %v8250
    %v9913 = vunpack.c.l.b16 %v8251
    %v9914 = vunpack.c.h.b16 %v8251
    %v9915 = vunpack.c.l.b16 %v8252
    %v9916 = vunpack.c.h.b16 %v8252
    %v9917 = vunpack.c.l.b16 %v8253
    %v9918 = vunpack.c.h.b16 %v8253
    %v9919 = vunpack.c.l.b16 %v8254
    %v9920 = vunpack.c.h.b16 %v8254
    %v9921 = vunpack.c.l.b16 %v8255
    %v9922 = vunpack.c.h.b16 %v8255
    %v9923 = vunpack.c.l.b16 %v8256
    %v9924 = vunpack.c.h.b16 %v8256
    %v9925 = vunpack.c.l.b16 %v8257
    %v9926 = vunpack.c.h.b16 %v8257
    %v9927 = vunpack.c.l.b16 %v8258
    %v9928 = vunpack.c.l.b16 %v8259
    %v9929 = vunpack.c.h.b16 %v8259
    %v9930 = vunpack.c.l.b16 %v8260
    %v9931 = vunpack.c.h.b16 %v8260
    %v9932 = vunpack.c.l.b16 %v8261
    %v9933 = vunpack.c.h.b16 %v8261
    %v9934 = vunpack.c.l.b16 %v8262
    %v9935 = vunpack.c.h.b16 %v8262
    %v9936 = vunpack.c.l.b16 %v8263
    %v9937 = vunpack.c.h.b16 %v8263
    %v9938 = vunpack.c.l.b16 %v8264
    %v9939 = vunpack.c.h.b16 %v8264
    %v9940 = vunpack.c.l.b16 %v8265
    %v9941 = vunpack.c.h.b16 %v8265
    %v9942 = vunpack.c.l.b16 %v8266
    %v9943 = vunpack.c.h.b16 %v8266
    %v9944 = vunpack.c.l.b16 %v8267
    %v9945 = vunpack.c.h.b16 %v8267
    %v9946 = vunpack.c.l.b16 %v8268
    %v9947 = vunpack.c.l.b16 %v8269
    %v9948 = vunpack.c.h.b16 %v8269
    %v9949 = vunpack.c.l.b16 %v8270
    %v9950 = vunpack.c.h.b16 %v8270
    %v9951 = vunpack.c.l.b16 %v8271
    %v9952 = vunpack.c.h.b16 %v8271
    %v9953 = vunpack.c.l.b16 %v8272
    %v9954 = vunpack.c.h.b16 %v8272
    %v9955 = vunpack.c.l.b16 %v8273
    %v9956 = vunpack.c.h.b16 %v8273
    %v9957 = vunpack.c.l.b16 %v8274
    %v9958 = vunpack.c.h.b16 %v8274
    %v9959 = vunpack.c.l.b16 %v8275
    %v9960 = vunpack.c.h.b16 %v8275
    %v9961 = vunpack.c.l.b16 %v8276
    %v9962 = vunpack.c.h.b16 %v8276
    %v9963 = vunpack.c.l.b16 %v8277
    %v9964 = vunpack.c.h.b16 %v8277
    %v9965 = vunpack.c.l.b16 %v8278
    %v9966 = vunpack.c.l.b16 %v8279
    %v9967 = vunpack.c.h.b16 %v8279
    %v9968 = vunpack.c.l.b16 %v8280
    %v9969 = vunpack.c.h.b16 %v8280
    %v9970 = vunpack.c.l.b16 %v8281
    %v9971 = vunpack.c.h.b16 %v8281
    %v9972 = vunpack.c.l.b16 %v8282
    %v9973 = vunpack.c.h.b16 %v8282
    %v9974 = vunpack.c.l.b16 %v8283
    %v9975 = vunpack.c.h.b16 %v8283
    %v9976 = vunpack.c.l.b16 %v8284
    %v9977 = vunpack.c.h.b16 %v8284
    %v9978 = vunpack.c.l.b16 %v8285
    %v9979 = vunpack.c.h.b16 %v8285
    %v9980 = vunpack.c.l.b16 %v8286
    %v9981 = vunpack.c.h.b16 %v8286
    %v9982 = vunpack.c.l.b16 %v8287
    %v9983 = vunpack.c.h.b16 %v8287
    %v9984 = vunpack.c.l.b16 %v8288
    %v9985 = vunpack.c.l.b16 %v8289
    %v9986 = vunpack.c.h.b16 %v8289
    %v9987 = vunpack.c.l.b16 %v8290
    %v9988 = vunpack.c.h.b16 %v8290
    %v9989 = vunpack.c.l.b16 %v8291
    %v9990 = vunpack.c.h.b16 %v8291
    %v9991 = vunpack.c.l.b16 %v8292
    %v9992 = vunpack.c.h.b16 %v8292
    %v9993 = vunpack.c.l.b16 %v8293
    %v9994 = vunpack.c.h.b16 %v8293
    %v9995 = vunpack.c.l.b16 %v8294
    %v9996 = vunpack.c.h.b16 %v8294
    %v9997 = vunpack.c.l.b16 %v8295
    %v9998 = vunpack.c.h.b16 %v8295
    %v9999 = vunpack.c.l.b16 %v8296
    %v10000 = vunpack.c.h.b16 %v8296
    %v10001 = vunpack.c.l.b16 %v8297
    %v10002 = vunpack.c.h.b16 %v8297
    %v10003 = vunpack.c.l.b16 %v8298
    %v10004 = vunpack.c.l.b16 %v8299
    %v10005 = vunpack.c.h.b16 %v8299
    %v10006 = vunpack.c.l.b16 %v8300
    %v10007 = vunpack.c.h.b16 %v8300
    %v10008 = vunpack.c.l.b16 %v8301
    %v10009 = vunpack.c.h.b16 %v8301
    %v10010 = vunpack.c.l.b16 %v8302
    %v10011 = vunpack.c.h.b16 %v8302
    %v10012 = vunpack.c.l.b16 %v8303
    %v10013 = vunpack.c.h.b16 %v8303
    %v10014 = vunpack.c.l.b16 %v8304
    %v10015 = vunpack.c.h.b16 %v8304
    %v10016 = vunpack.c.l.b16 %v8305
    %v10017 = vunpack.c.h.b16 %v8305
    %v10018 = vunpack.c.l.b16 %v8306
    %v10019 = vunpack.c.h.b16 %v8306
    %v10020 = vunpack.c.l.b16 %v8307
    %v10021 = vunpack.c.h.b16 %v8307
    %v10022 = vunpack.c.l.b16 %v8308
    %v10023 = vunpack.c.l.b16 %v8309
    %v10024 = vunpack.c.h.b16 %v8309
    %v10025 = vunpack.c.l.b16 %v8310
    %v10026 = vunpack.c.h.b16 %v8310
    %v10027 = vunpack.c.l.b16 %v8311
    %v10028 = vunpack.c.h.b16 %v8311
    %v10029 = vunpack.c.l.b16 %v8312
    %v10030 = vunpack.c.h.b16 %v8312
    %v10031 = vunpack.c.l.b16 %v8313
    %v10032 = vunpack.c.h.b16 %v8313
    %v10033 = vunpack.c.l.b16 %v8314
    %v10034 = vunpack.c.h.b16 %v8314
    %v10035 = vunpack.c.l.b16 %v8315
    %v10036 = vunpack.c.h.b16 %v8315
    %v10037 = vunpack.c.l.b16 %v8316
    %v10038 = vunpack.c.h.b16 %v8316
    %v10039 = vunpack.c.l.b16 %v8317
    %v10040 = vunpack.c.h.b16 %v8317
    %v10041 = vunpack.c.l.b16 %v8318
    %v10042 = vunpack.c.l.b16 %v8319
    %v10043 = vunpack.c.h.b16 %v8319
    %v10044 = vunpack.c.l.b16 %v8320
    %v10045 = vunpack.c.h.b16 %v8320
    %v10046 = vunpack.c.l.b16 %v8321
    %v10047 = vunpack.c.h.b16 %v8321
    %v10048 = vunpack.c.l.b16 %v8322
    %v10049 = vunpack.c.h.b16 %v8322
    %v10050 = vunpack.c.l.b16 %v8323
    %v10051 = vunpack.c.h.b16 %v8323
    %v10052 = vunpack.c.l.b16 %v8324
    %v10053 = vunpack.c.h.b16 %v8324
    %v10054 = vunpack.c.l.b16 %v8325
    %v10055 = vunpack.c.h.b16 %v8325
    %v10056 = vunpack.c.l.b16 %v8326
    %v10057 = vunpack.c.h.b16 %v8326
    %v10058 = vunpack.c.l.b16 %v8327
    %v10059 = vunpack.c.h.b16 %v8327
    %v10060 = vunpack.c.l.b16 %v8328
    %v10061 = vunpack.c.l.b16 %v8329
    %v10062 = vunpack.c.h.b16 %v8329
    %v10063 = vunpack.c.l.b16 %v8330
    %v10064 = vunpack.c.h.b16 %v8330
    %v10065 = vunpack.c.l.b16 %v8331
    %v10066 = vunpack.c.h.b16 %v8331
    %v10067 = vunpack.c.l.b16 %v8332
    %v10068 = vunpack.c.h.b16 %v8332
    %v10069 = vunpack.c.l.b16 %v8333
    %v10070 = vunpack.c.h.b16 %v8333
    %v10071 = vunpack.c.l.b16 %v8334
    %v10072 = vunpack.c.h.b16 %v8334
    %v10073 = vunpack.c.l.b16 %v8335
    %v10074 = vunpack.c.h.b16 %v8335
    %v10075 = vunpack.c.l.b16 %v8336
    %v10076 = vunpack.c.h.b16 %v8336
    %v10077 = vunpack.c.l.b16 %v8337
    %v10078 = vunpack.c.h.b16 %v8337
    %v10079 = vunpack.c.l.b16 %v8338
    %v10080 = vunpack.c.l.b16 %v8339
    %v10081 = vunpack.c.h.b16 %v8339
    %v10082 = vunpack.c.l.b16 %v8340
    %v10083 = vunpack.c.h.b16 %v8340
    %v10084 = vunpack.c.l.b16 %v8341
    %v10085 = vunpack.c.h.b16 %v8341
    %v10086 = vunpack.c.l.b16 %v8342
    %v10087 = vunpack.c.h.b16 %v8342
    %v10088 = vunpack.c.l.b16 %v8343
    %v10089 = vunpack.c.h.b16 %v8343
    %v10090 = vunpack.c.l.b16 %v8344
    %v10091 = vunpack.c.h.b16 %v8344
    %v10092 = vunpack.c.l.b16 %v8345
    %v10093 = vunpack.c.h.b16 %v8345
    %v10094 = vunpack.c.l.b16 %v8346
    %v10095 = vunpack.c.h.b16 %v8346
    %v10096 = vunpack.c.l.b16 %v8347
    %v10097 = vunpack.c.h.b16 %v8347
    %v10098 = vunpack.c.l.b16 %v8348
    %v10099 = vunpack.c.l.b16 %v8349
    %v10100 = vunpack.c.h.b16 %v8349
    %v10101 = vunpack.c.l.b16 %v8350
    %v10102 = vunpack.c.h.b16 %v8350
    %v10103 = vunpack.c.l.b16 %v8351
    %v10104 = vunpack.c.h.b16 %v8351
    %v10105 = vunpack.c.l.b16 %v8352
    %v10106 = vunpack.c.h.b16 %v8352
    %v10107 = vunpack.c.l.b16 %v8353
    %v10108 = vunpack.c.h.b16 %v8353
    %v10109 = vunpack.c.l.b16 %v8354
    %v10110 = vunpack.c.h.b16 %v8354
    %v10111 = vunpack.c.l.b16 %v8355
    %v10112 = vunpack.c.h.b16 %v8355
    %v10113 = vunpack.c.l.b16 %v8356
    %v10114 = vunpack.c.h.b16 %v8356
    %v10115 = vunpack.c.l.b16 %v8357
    %v10116 = vunpack.c.h.b16 %v8357
    %v10117 = vunpack.c.l.b16 %v8358
    %v10118 = vunpack.c.l.b16 %v8359
    %v10119 = vunpack.c.h.b16 %v8359
    %v10120 = vunpack.c.l.b16 %v8360
    %v10121 = vunpack.c.h.b16 %v8360
    %v10122 = vunpack.c.l.b16 %v8361
    %v10123 = vunpack.c.h.b16 %v8361
    %v10124 = vunpack.c.l.b16 %v8362
    %v10125 = vunpack.c.h.b16 %v8362
    %v10126 = vunpack.c.l.b16 %v8363
    %v10127 = vunpack.c.h.b16 %v8363
    %v10128 = vunpack.c.l.b16 %v8364
    %v10129 = vunpack.c.h.b16 %v8364
    %v10130 = vunpack.c.l.b16 %v8365
    %v10131 = vunpack.c.h.b16 %v8365
    %v10132 = vunpack.c.l.b16 %v8366
    %v10133 = vunpack.c.h.b16 %v8366
    %v10134 = vunpack.c.l.b16 %v8367
    %v10135 = vunpack.c.h.b16 %v8367
    %v10136 = vunpack.c.l.b16 %v8368
    %v10137 = vunpack.c.l.b16 %v8369
    %v10138 = vunpack.c.h.b16 %v8369
    %v10139 = vunpack.c.l.b16 %v8370
    %v10140 = vunpack.c.h.b16 %v8370
    %v10141 = vunpack.c.l.b16 %v8371
    %v10142 = vunpack.c.h.b16 %v8371
    %v10143 = vunpack.c.l.b16 %v8372
    %v10144 = vunpack.c.h.b16 %v8372
    %v10145 = vunpack.c.l.b16 %v8373
    %v10146 = vunpack.c.h.b16 %v8373
    %v10147 = vunpack.c.l.b16 %v8374
    %v10148 = vunpack.c.h.b16 %v8374
    %v10149 = vunpack.c.l.b16 %v8375
    %v10150 = vunpack.c.h.b16 %v8375
    %v10151 = vunpack.c.l.b16 %v8376
    %v10152 = vunpack.c.h.b16 %v8376
    %v10153 = vunpack.c.l.b16 %v8377
    %v10154 = vunpack.c.h.b16 %v8377
    %v10155 = vunpack.c.l.b16 %v8378
    %v10156 = vunpack.c.l.b16 %v8379
    %v10157 = vunpack.c.h.b16 %v8379
    %v10158 = vunpack.c.l.b16 %v8380
    %v10159 = vunpack.c.h.b16 %v8380
    %v10160 = vunpack.c.l.b16 %v8381
    %v10161 = vunpack.c.h.b16 %v8381
    %v10162 = vunpack.c.l.b16 %v8382
    %v10163 = vunpack.c.h.b16 %v8382
    %v10164 = vunpack.c.l.b16 %v8383
    %v10165 = vunpack.c.h.b16 %v8383
    %v10166 = vunpack.c.l.b16 %v8384
    %v10167 = vunpack.c.h.b16 %v8384
    %v10168 = vunpack.c.l.b16 %v8385
    %v10169 = vunpack.c.h.b16 %v8385
    %v10170 = vunpack.c.l.b16 %v8386
    %v10171 = vunpack.c.h.b16 %v8386
    %v10172 = vunpack.c.l.b16 %v8387
    %v10173 = vunpack.c.h.b16 %v8387
    %v10174 = vunpack.c.l.b16 %v8388
    %v10175 = vunpack.c.l.b16 %v8389
    %v10176 = vunpack.c.h.b16 %v8389
    %v10177 = vunpack.c.l.b16 %v8390
    %v10178 = vunpack.c.h.b16 %v8390
    %v10179 = vunpack.c.l.b16 %v8391
    %v10180 = vunpack.c.h.b16 %v8391
    %v10181 = vunpack.c.l.b16 %v8392
    %v10182 = vunpack.c.h.b16 %v8392
    %v10183 = vunpack.c.l.b16 %v8393
    %v10184 = vunpack.c.h.b16 %v8393
    %v10185 = vunpack.c.l.b16 %v8394
    %v10186 = vunpack.c.h.b16 %v8394
    %v10187 = vunpack.c.l.b16 %v8395
    %v10188 = vunpack.c.h.b16 %v8395
    %v10189 = vunpack.c.l.b16 %v8396
    %v10190 = vunpack.c.h.b16 %v8396
    %v10191 = vunpack.c.l.b16 %v8397
    %v10192 = vunpack.c.h.b16 %v8397
    %v10193 = vunpack.c.l.b16 %v8398
    %v10194 = vunpack.c.l.b16 %v8399
    %v10195 = vunpack.c.h.b16 %v8399
    %v10196 = vunpack.c.l.b16 %v8400
    %v10197 = vunpack.c.h.b16 %v8400
    %v10198 = vunpack.c.l.b16 %v8401
    %v10199 = vunpack.c.h.b16 %v8401
    %v10200 = vunpack.c.l.b16 %v8402
    %v10201 = vunpack.c.h.b16 %v8402
    %v10202 = vunpack.c.l.b16 %v8403
    %v10203 = vunpack.c.h.b16 %v8403
    %v10204 = vunpack.c.l.b16 %v8404
    %v10205 = vunpack.c.h.b16 %v8404
    %v10206 = vunpack.c.l.b16 %v8405
    %v10207 = vunpack.c.h.b16 %v8405
    %v10208 = vunpack.c.l.b16 %v8406
    %v10209 = vunpack.c.h.b16 %v8406
    %v10210 = vunpack.c.l.b16 %v8407
    %v10211 = vunpack.c.h.b16 %v8407
    %v10212 = vunpack.c.l.b16 %v8408
    %v10213 = vunpack.c.l.b16 %v8409
    %v10214 = vunpack.c.h.b16 %v8409
    %v10215 = vunpack.c.l.b16 %v8410
    %v10216 = vunpack.c.h.b16 %v8410
    %v10217 = vunpack.c.l.b16 %v8411
    %v10218 = vunpack.c.h.b16 %v8411
    %v10219 = vunpack.c.l.b16 %v8412
    %v10220 = vunpack.c.h.b16 %v8412
    %v10221 = vunpack.c.l.b16 %v8413
    %v10222 = vunpack.c.h.b16 %v8413
    %v10223 = vunpack.c.l.b16 %v8414
    %v10224 = vunpack.c.h.b16 %v8414
    %v10225 = vunpack.c.l.b16 %v8415
    %v10226 = vunpack.c.h.b16 %v8415
    %v10227 = vunpack.c.l.b16 %v8416
    %v10228 = vunpack.c.h.b16 %v8416
    %v10229 = vunpack.c.l.b16 %v8417
    %v10230 = vunpack.c.h.b16 %v8417
    %v10231 = vunpack.c.l.b16 %v8418
    %v10232 = vunpack.c.l.b16 %v8419
    %v10233 = vunpack.c.h.b16 %v8419
    %v10234 = vunpack.c.l.b16 %v8420
    %v10235 = vunpack.c.h.b16 %v8420
    %v10236 = vunpack.c.l.b16 %v8421
    %v10237 = vunpack.c.h.b16 %v8421
    %v10238 = vunpack.c.l.b16 %v8422
    %v10239 = vunpack.c.h.b16 %v8422
    %v10240 = vunpack.c.l.b16 %v8423
    %v10241 = vunpack.c.h.b16 %v8423
    %v10242 = vunpack.c.l.b16 %v8424
    %v10243 = vunpack.c.h.b16 %v8424
    %v10244 = vunpack.c.l.b16 %v8425
    %v10245 = vunpack.c.h.b16 %v8425
    %v10246 = vunpack.c.l.b16 %v8426
    %v10247 = vunpack.c.h.b16 %v8426
    %v10248 = vunpack.c.l.b16 %v8427
    %v10249 = vunpack.c.h.b16 %v8427
    %v10250 = vunpack.c.l.b16 %v8428
    %v10251 = vunpack.c.l.b16 %v8429
    %v10252 = vunpack.c.h.b16 %v8429
    %v10253 = vunpack.c.l.b16 %v8430
    %v10254 = vunpack.c.h.b16 %v8430
    %v10255 = vunpack.c.l.b16 %v8431
    %v10256 = vunpack.c.h.b16 %v8431
    %v10257 = vunpack.c.l.b16 %v8432
    %v10258 = vunpack.c.h.b16 %v8432
    %v10259 = vunpack.c.l.b16 %v8433
    %v10260 = vunpack.c.h.b16 %v8433
    %v10261 = vunpack.c.l.b16 %v8434
    %v10262 = vunpack.c.h.b16 %v8434
    %v10263 = vunpack.c.l.b16 %v8435
    %v10264 = vunpack.c.h.b16 %v8435
    %v10265 = vunpack.c.l.b16 %v8436
    %v10266 = vunpack.c.h.b16 %v8436
    %v10267 = vunpack.c.l.b16 %v8437
    %v10268 = vunpack.c.h.b16 %v8437
    %v10269 = vunpack.c.l.b16 %v8438
    %v10270 = vunpack.c.l.b16 %v8439
    %v10271 = vunpack.c.h.b16 %v8439
    %v10272 = vunpack.c.l.b16 %v8440
    %v10273 = vunpack.c.h.b16 %v8440
    %v10274 = vunpack.c.l.b16 %v8441
    %v10275 = vunpack.c.h.b16 %v8441
    %v10276 = vunpack.c.l.b16 %v8442
    %v10277 = vunpack.c.h.b16 %v8442
    %v10278 = vunpack.c.l.b16 %v8443
    %v10279 = vunpack.c.h.b16 %v8443
    %v10280 = vunpack.c.l.b16 %v8444
    %v10281 = vunpack.c.h.b16 %v8444
    %v10282 = vunpack.c.l.b16 %v8445
    %v10283 = vunpack.c.h.b16 %v8445
    %v10284 = vunpack.c.l.b16 %v8446
    %v10285 = vunpack.c.h.b16 %v8446
    %v10286 = vunpack.c.l.b16 %v8447
    %v10287 = vunpack.c.h.b16 %v8447
    %v10288 = vunpack.c.l.b16 %v8448
    %v10289 = vunpack.c.l.b16 %v8449
    %v10290 = vunpack.c.h.b16 %v8449
    %v10291 = vunpack.c.l.b16 %v8450
    %v10292 = vunpack.c.h.b16 %v8450
    %v10293 = vunpack.c.l.b16 %v8451
    %v10294 = vunpack.c.h.b16 %v8451
    %v10295 = vunpack.c.l.b16 %v8452
    %v10296 = vunpack.c.h.b16 %v8452
    %v10297 = vunpack.c.l.b16 %v8453
    %v10298 = vunpack.c.h.b16 %v8453
    %v10299 = vunpack.c.l.b16 %v8454
    %v10300 = vunpack.c.h.b16 %v8454
    %v10301 = vunpack.c.l.b16 %v8455
    %v10302 = vunpack.c.h.b16 %v8455
    %v10303 = vunpack.c.l.b16 %v8456
    %v10304 = vunpack.c.h.b16 %v8456
    %v10305 = vunpack.c.l.b16 %v8457
    %v10306 = vunpack.c.h.b16 %v8457
    %v10307 = vunpack.c.l.b16 %v8458
    %v10308 = vunpack.c.l.b16 %v8459
    %v10309 = vunpack.c.h.b16 %v8459
    %v10310 = vunpack.c.l.b16 %v8460
    %v10311 = vunpack.c.h.b16 %v8460
    %v10312 = vunpack.c.l.b16 %v8461
    %v10313 = vunpack.c.h.b16 %v8461
    %v10314 = vunpack.c.l.b16 %v8462
    %v10315 = vunpack.c.h.b16 %v8462
    %v10316 = vunpack.c.l.b16 %v8463
    %v10317 = vunpack.c.h.b16 %v8463
    %v10318 = vunpack.c.l.b16 %v8464
    %v10319 = vunpack.c.h.b16 %v8464
    %v10320 = vunpack.c.l.b16 %v8465
    %v10321 = vunpack.c.h.b16 %v8465
    %v10322 = vunpack.c.l.b16 %v8466
    %v10323 = vunpack.c.h.b16 %v8466
    %v10324 = vunpack.c.l.b16 %v8467
    %v10325 = vunpack.c.h.b16 %v8467
    %v10326 = vunpack.c.l.b16 %v8468
    %v10327 = vunpack.c.l.b16 %v8469
    %v10328 = vunpack.c.h.b16 %v8469
    %v10329 = vunpack.c.l.b16 %v8470
    %v10330 = vunpack.c.h.b16 %v8470
    %v10331 = vunpack.c.l.b16 %v8471
    %v10332 = vunpack.c.h.b16 %v8471
    %v10333 = vunpack.c.l.b16 %v8472
    %v10334 = vunpack.c.h.b16 %v8472
    %v10335 = vunpack.c.l.b16 %v8473
    %v10336 = vunpack.c.h.b16 %v8473
    %v10337 = vunpack.c.l.b16 %v8474
    %v10338 = vunpack.c.h.b16 %v8474
    %v10339 = vunpack.c.l.b16 %v8475
    %v10340 = vunpack.c.h.b16 %v8475
    %v10341 = vunpack.c.l.b16 %v8476
    %v10342 = vunpack.c.h.b16 %v8476
    %v10343 = vunpack.c.l.b16 %v8477
    %v10344 = vunpack.c.h.b16 %v8477
    %v10345 = vunpack.c.l.b16 %v8478
    %v10346 = vunpack.c.l.b16 %v8479
    %v10347 = vunpack.c.h.b16 %v8479
    %v10348 = vunpack.c.l.b16 %v8480
    %v10349 = vunpack.c.h.b16 %v8480
    %v10350 = vunpack.c.l.b16 %v8481
    %v10351 = vunpack.c.h.b16 %v8481
    %v10352 = vunpack.c.l.b16 %v8482
    %v10353 = vunpack.c.h.b16 %v8482
    %v10354 = vunpack.c.l.b16 %v8483
    %v10355 = vunpack.c.h.b16 %v8483
    %v10356 = vunpack.c.l.b16 %v8484
    %v10357 = vunpack.c.h.b16 %v8484
    %v10358 = vunpack.c.l.b16 %v8485
    %v10359 = vunpack.c.h.b16 %v8485
    %v10360 = vunpack.c.l.b16 %v8486
    %v10361 = vunpack.c.h.b16 %v8486
    %v10362 = vunpack.c.l.b16 %v8487
    %v10363 = vunpack.c.h.b16 %v8487
    %v10364 = vunpack.c.l.b16 %v8488
    %v10365 = vunpack.c.l.b16 %v8489
    %v10366 = vunpack.c.h.b16 %v8489
    %v10367 = vunpack.c.l.b16 %v8490
    %v10368 = vunpack.c.h.b16 %v8490
    %v10369 = vunpack.c.l.b16 %v8491
    %v10370 = vunpack.c.h.b16 %v8491
    %v10371 = vunpack.c.l.b16 %v8492
    %v10372 = vunpack.c.h.b16 %v8492
    %v10373 = vunpack.c.l.b16 %v8493
    %v10374 = vunpack.c.h.b16 %v8493
    %v10375 = vunpack.c.l.b16 %v8494
    %v10376 = vunpack.c.h.b16 %v8494
    %v10377 = vunpack.c.l.b16 %v8495
    %v10378 = vunpack.c.h.b16 %v8495
    %v10379 = vunpack.c.l.b16 %v8496
    %v10380 = vunpack.c.h.b16 %v8496
    %v10381 = vunpack.c.l.b16 %v8497
    %v10382 = vunpack.c.h.b16 %v8497
    %v10383 = vunpack.c.l.b16 %v8498
    %v10384 = vunpack.c.l.b16 %v8499
    %v10385 = vunpack.c.h.b16 %v8499
    %v10386 = vunpack.c.l.b16 %v8500
    %v10387 = vunpack.c.h.b16 %v8500
    %v10388 = vunpack.c.l.b16 %v8501
    %v10389 = vunpack.c.h.b16 %v8501
    %v10390 = vunpack.c.l.b16 %v8502
    %v10391 = vunpack.c.h.b16 %v8502
    %v10392 = vunpack.c.l.b16 %v8503
    %v10393 = vunpack.c.h.b16 %v8503
    %v10394 = vunpack.c.l.b16 %v8504
    %v10395 = vunpack.c.h.b16 %v8504
    %v10396 = vunpack.c.l.b16 %v8505
    %v10397 = vunpack.c.h.b16 %v8505
    %v10398 = vunpack.c.l.b16 %v8506
    %v10399 = vunpack.c.h.b16 %v8506
    %v10400 = vunpack.c.l.b16 %v8507
    %v10401 = vunpack.c.h.b16 %v8507
    %v10402 = vunpack.c.l.b16 %v8508
    %v10403 = vunpack.c.l.b16 %v8509
    %v10404 = vunpack.c.h.b16 %v8509
    %v10405 = vunpack.c.l.b16 %v8510
    %v10406 = vunpack.c.h.b16 %v8510
    %v10407 = vunpack.c.l.b16 %v8511
    %v10408 = vunpack.c.h.b16 %v8511
    %v10409 = vunpack.c.l.b16 %v8512
    %v10410 = vunpack.c.h.b16 %v8512
    %v10411 = vunpack.c.l.b16 %v8513
    %v10412 = vunpack.c.h.b16 %v8513
    %v10413 = vunpack.c.l.b16 %v8514
    %v10414 = vunpack.c.h.b16 %v8514
    %v10415 = vunpack.c.l.b16 %v8515
    %v10416 = vunpack.c.h.b16 %v8515
    %v10417 = vunpack.c.l.b16 %v8516
    %v10418 = vunpack.c.h.b16 %v8516
    %v10419 = vunpack.c.l.b16 %v8517
    %v10420 = vunpack.c.h.b16 %v8517
    %v10421 = vunpack.c.l.b16 %v8518
    %v10422 = vunpack.c.l.b16 %v8519
    %v10423 = vunpack.c.h.b16 %v8519
    %v10424 = vunpack.c.l.b16 %v8520
    %v10425 = vunpack.c.h.b16 %v8520
    %v10426 = vunpack.c.l.b16 %v8521
    %v10427 = vunpack.c.h.b16 %v8521
    %v10428 = vunpack.c.l.b16 %v8522
    %v10429 = vunpack.c.h.b16 %v8522
    %v10430 = vunpack.c.l.b16 %v8523
    %v10431 = vunpack.c.h.b16 %v8523
    %v10432 = vunpack.c.l.b16 %v8524
    %v10433 = vunpack.c.h.b16 %v8524
    %v10434 = vunpack.c.l.b16 %v8525
    %v10435 = vunpack.c.h.b16 %v8525
    %v10436 = vunpack.c.l.b16 %v8526
    %v10437 = vunpack.c.h.b16 %v8526
    %v10438 = vunpack.c.l.b16 %v8527
    %v10439 = vunpack.c.h.b16 %v8527
    %v10440 = vunpack.c.l.b16 %v8528
    %v10441 = vunpack.c.l.b16 %v8529
    %v10442 = vunpack.c.h.b16 %v8529
    %v10443 = vunpack.c.l.b16 %v8530
    %v10444 = vunpack.c.h.b16 %v8530
    %v10445 = vunpack.c.l.b16 %v8531
    %v10446 = vunpack.c.h.b16 %v8531
    %v10447 = vunpack.c.l.b16 %v8532
    %v10448 = vunpack.c.h.b16 %v8532
    %v10449 = vunpack.c.l.b16 %v8533
    %v10450 = vunpack.c.h.b16 %v8533
    %v10451 = vunpack.c.l.b16 %v8534
    %v10452 = vunpack.c.h.b16 %v8534
    %v10453 = vunpack.c.l.b16 %v8535
    %v10454 = vunpack.c.h.b16 %v8535
    %v10455 = vunpack.c.l.b16 %v8536
    %v10456 = vunpack.c.h.b16 %v8536
    %v10457 = vunpack.c.l.b16 %v8537
    %v10458 = vunpack.c.h.b16 %v8537
    %v10459 = vunpack.c.l.b16 %v8538
    %v10460 = vunpack.c.l.b16 %v8539
    %v10461 = vunpack.c.h.b16 %v8539
    %v10462 = vunpack.c.l.b16 %v8540
    %v10463 = vunpack.c.h.b16 %v8540
    %v10464 = vunpack.c.l.b16 %v8541
    %v10465 = vunpack.c.h.b16 %v8541
    %v10466 = vunpack.c.l.b16 %v8542
    %v10467 = vunpack.c.h.b16 %v8542
    %v10468 = vunpack.c.l.b16 %v8543
    %v10469 = vunpack.c.h.b16 %v8543
    %v10470 = vunpack.c.l.b16 %v8544
    %v10471 = vunpack.c.h.b16 %v8544
    %v10472 = vunpack.c.l.b16 %v8545
    %v10473 = vunpack.c.h.b16 %v8545
    %v10474 = vunpack.c.l.b16 %v8546
    %v10475 = vunpack.c.h.b16 %v8546
    %v10476 = vunpack.c.l.b16 %v8547
    %v10477 = vunpack.c.h.b16 %v8547
    %v10478 = vunpack.c.l.b16 %v8548
    %v10479 = vunpack.c.l.b16 %v8549
    %v10480 = vunpack.c.h.b16 %v8549
    %v10481 = vunpack.c.l.b16 %v8550
    %v10482 = vunpack.c.h.b16 %v8550
    %v10483 = vunpack.c.l.b16 %v8551
    %v10484 = vunpack.c.h.b16 %v8551
    %v10485 = vunpack.c.l.b16 %v8552
    %v10486 = vunpack.c.h.b16 %v8552
    %v10487 = vunpack.c.l.b16 %v8553
    %v10488 = vunpack.c.h.b16 %v8553
    %v10489 = vunpack.c.l.b16 %v8554
    %v10490 = vunpack.c.h.b16 %v8554
    %v10491 = vunpack.c.l.b16 %v8555
    %v10492 = vunpack.c.h.b16 %v8555
    %v10493 = vunpack.c.l.b16 %v8556
    %v10494 = vunpack.c.h.b16 %v8556
    %v10495 = vunpack.c.l.b16 %v8557
    %v10496 = vunpack.c.h.b16 %v8557
    %v10497 = vunpack.c.l.b16 %v8558
    %v10498 = vunpack.c.l.b16 %v8559
    %v10499 = vunpack.c.h.b16 %v8559
    %v10500 = vunpack.c.l.b16 %v8560
    %v10501 = vunpack.c.h.b16 %v8560
    %v10502 = vunpack.c.l.b16 %v8561
    %v10503 = vunpack.c.h.b16 %v8561
    %v10504 = vunpack.c.l.b16 %v8562
    %v10505 = vunpack.c.h.b16 %v8562
    %v10506 = vunpack.c.l.b16 %v8563
    %v10507 = vunpack.c.h.b16 %v8563
    %v10508 = vunpack.c.l.b16 %v8564
    %v10509 = vunpack.c.h.b16 %v8564
    %v10510 = vunpack.c.l.b16 %v8565
    %v10511 = vunpack.c.h.b16 %v8565
    %v10512 = vunpack.c.l.b16 %v8566
    %v10513 = vunpack.c.h.b16 %v8566
    %v10514 = vunpack.c.l.b16 %v8567
    %v10515 = vunpack.c.h.b16 %v8567
    %v10516 = vunpack.c.l.b16 %v8568
    %v10517 = vunpack.c.l.b16 %v8569
    %v10518 = vunpack.c.h.b16 %v8569
    %v10519 = vunpack.c.l.b16 %v8570
    %v10520 = vunpack.c.h.b16 %v8570
    %v10521 = vunpack.c.l.b16 %v8571
    %v10522 = vunpack.c.h.b16 %v8571
    %v10523 = vunpack.c.l.b16 %v8572
    %v10524 = vunpack.c.h.b16 %v8572
    %v10525 = vunpack.c.l.b16 %v8573
    %v10526 = vunpack.c.h.b16 %v8573
    %v10527 = vunpack.c.l.b16 %v8574
    %v10528 = vunpack.c.h.b16 %v8574
    %v10529 = vunpack.c.l.b16 %v8575
    %v10530 = vunpack.c.h.b16 %v8575
    %v10531 = vunpack.c.l.b16 %v8576
    %v10532 = vunpack.c.h.b16 %v8576
    %v10533 = vunpack.c.l.b16 %v8577
    %v10534 = vunpack.c.h.b16 %v8577
    %v10535 = vunpack.c.l.b16 %v8578
    %v10536 = vpack.c.b16 %v9339, %v9320
    %v10537 = vpack.c.b16 %v9340, %v9321
    %v10538 = vpack.c.b16 %v9341, %v9322
    %v10539 = vpack.c.b16 %v9342, %v9323
    %v10540 = vpack.c.b16 %v9343, %v9324
    %v10541 = vpack.c.b16 %v9344, %v9325
    %v10542 = vpack.c.b16 %v9345, %v9326
    %v10543 = vpack.c.b16 %v9346, %v9327
    %v10544 = vpack.c.b16 %v9347, %v9328
    %v10545 = vpack.c.b16 %v9348, %v9329
    %v10546 = vpack.c.b16 %v9349, %v9330
    %v10547 = vpack.c.b16 %v9350, %v9331
    %v10548 = vpack.c.b16 %v9351, %v9332
    %v10549 = vpack.c.b16 %v9352, %v9333
    %v10550 = vpack.c.b16 %v9353, %v9334
    %v10551 = vpack.c.b16 %v9354, %v9335
    %v10552 = vpack.c.b16 %v9355, %v9336
    %v10553 = vpack.c.b16 %v9356, %v9337
    %v10554 = vpack.c.b16 %v9357, %v9338
    %v10555 = vpack.c.b16 %v9377, %v9358
    %v10556 = vpack.c.b16 %v9378, %v9359
    %v10557 = vpack.c.b16 %v9379, %v9360
    %v10558 = vpack.c.b16 %v9380, %v9361
    %v10559 = vpack.c.b16 %v9381, %v9362
    %v10560 = vpack.c.b16 %v9382, %v9363
    %v10561 = vpack.c.b16 %v9383, %v9364
    %v10562 = vpack.c.b16 %v9384, %v9365
    %v10563 = vpack.c.b16 %v9385, %v9366
    %v10564 = vpack.c.b16 %v9386, %v9367
    %v10565 = vpack.c.b16 %v9387, %v9368
    %v10566 = vpack.c.b16 %v9388, %v9369
    %v10567 = vpack.c.b16 %v9389, %v9370
    %v10568 = vpack.c.b16 %v9390, %v9371
    %v10569 = vpack.c.b16 %v9391, %v9372
    %v10570 = vpack.c.b16 %v9392, %v9373
    %v10571 = vpack.c.b16 %v9393, %v9374
    %v10572 = vpack.c.b16 %v9394, %v9375
    %v10573 = vpack.c.b16 %v9395, %v9376
    %v10574 = vpack.c.b16 %v9415, %v9396
    %v10575 = vpack.c.b16 %v9416, %v9397
    %v10576 = vpack.c.b16 %v9417, %v9398
    %v10577 = vpack.c.b16 %v9418, %v9399
    %v10578 = vpack.c.b16 %v9419, %v9400
    %v10579 = vpack.c.b16 %v9420, %v9401
    %v10580 = vpack.c.b16 %v9421, %v9402
    %v10581 = vpack.c.b16 %v9422, %v9403
    %v10582 = vpack.c.b16 %v9423, %v9404
    %v10583 = vpack.c.b16 %v9424, %v9405
    %v10584 = vpack.c.b16 %v9425, %v9406
    %v10585 = vpack.c.b16 %v9426, %v9407
    %v10586 = vpack.c.b16 %v9427, %v9408
    %v10587 = vpack.c.b16 %v9428, %v9409
    %v10588 = vpack.c.b16 %v9429, %v9410
    %v10589 = vpack.c.b16 %v9430, %v9411
    %v10590 = vpack.c.b16 %v9431, %v9412
    %v10591 = vpack.c.b16 %v9432, %v9413
    %v10592 = vpack.c.b16 %v9433, %v9414
    %v10593 = vpack.c.b16 %v9453, %v9434
    %v10594 = vpack.c.b16 %v9454, %v9435
    %v10595 = vpack.c.b16 %v9455, %v9436
    %v10596 = vpack.c.b16 %v9456, %v9437
    %v10597 = vpack.c.b16 %v9457, %v9438
    %v10598 = vpack.c.b16 %v9458, %v9439
    %v10599 = vpack.c.b16 %v9459, %v9440
    %v10600 = vpack.c.b16 %v9460, %v9441
    %v10601 = vpack.c.b16 %v9461, %v9442
    %v10602 = vpack.c.b16 %v9462, %v9443
    %v10603 = vpack.c.b16 %v9463, %v9444
    %v10604 = vpack.c.b16 %v9464, %v9445
    %v10605 = vpack.c.b16 %v9465, %v9446
    %v10606 = vpack.c.b16 %v9466, %v9447
    %v10607 = vpack.c.b16 %v9467, %v9448
    %v10608 = vpack.c.b16 %v9468, %v9449
    %v10609 = vpack.c.b16 %v9469, %v9450
    %v10610 = vpack.c.b16 %v9470, %v9451
    %v10611 = vpack.c.b16 %v9471, %v9452
    %v10612 = vpack.c.b16 %v9491, %v9472
    %v10613 = vpack.c.b16 %v9492, %v9473
    %v10614 = vpack.c.b16 %v9493, %v9474
    %v10615 = vpack.c.b16 %v9494, %v9475
    %v10616 = vpack.c.b16 %v9495, %v9476
    %v10617 = vpack.c.b16 %v9496, %v9477
    %v10618 = vpack.c.b16 %v9497, %v9478
    %v10619 = vpack.c.b16 %v9498, %v9479
    %v10620 = vpack.c.b16 %v9499, %v9480
    %v10621 = vpack.c.b16 %v9500, %v9481
    %v10622 = vpack.c.b16 %v9501, %v9482
    %v10623 = vpack.c.b16 %v9502, %v9483
    %v10624 = vpack.c.b16 %v9503, %v9484
    %v10625 = vpack.c.b16 %v9504, %v9485
    %v10626 = vpack.c.b16 %v9505, %v9486
    %v10627 = vpack.c.b16 %v9506, %v9487
    %v10628 = vpack.c.b16 %v9507, %v9488
    %v10629 = vpack.c.b16 %v9508, %v9489
    %v10630 = vpack.c.b16 %v9509, %v9490
    %v10631 = vpack.c.b16 %v9529, %v9510
    %v10632 = vpack.c.b16 %v9530, %v9511
    %v10633 = vpack.c.b16 %v9531, %v9512
    %v10634 = vpack.c.b16 %v9532, %v9513
    %v10635 = vpack.c.b16 %v9533, %v9514
    %v10636 = vpack.c.b16 %v9534, %v9515
    %v10637 = vpack.c.b16 %v9535, %v9516
    %v10638 = vpack.c.b16 %v9536, %v9517
    %v10639 = vpack.c.b16 %v9537, %v9518
    %v10640 = vpack.c.b16 %v9538, %v9519
    %v10641 = vpack.c.b16 %v9539, %v9520
    %v10642 = vpack.c.b16 %v9540, %v9521
    %v10643 = vpack.c.b16 %v9541, %v9522
    %v10644 = vpack.c.b16 %v9542, %v9523
    %v10645 = vpack.c.b16 %v9543, %v9524
    %v10646 = vpack.c.b16 %v9544, %v9525
    %v10647 = vpack.c.b16 %v9545, %v9526
    %v10648 = vpack.c.b16 %v9546, %v9527
    %v10649 = vpack.c.b16 %v9547, %v9528
    %v10650 = vpack.c.b16 %v9567, %v9548
    %v10651 = vpack.c.b16 %v9568, %v9549
    %v10652 = vpack.c.b16 %v9569, %v9550
    %v10653 = vpack.c.b16 %v9570, %v9551
    %v10654 = vpack.c.b16 %v9571, %v9552
    %v10655 = vpack.c.b16 %v9572, %v9553
    %v10656 = vpack.c.b16 %v9573, %v9554
    %v10657 = vpack.c.b16 %v9574, %v9555
    %v10658 = vpack.c.b16 %v9575, %v9556
    %v10659 = vpack.c.b16 %v9576, %v9557
    %v10660 = vpack.c.b16 %v9577, %v9558
    %v10661 = vpack.c.b16 %v9578, %v9559
    %v10662 = vpack.c.b16 %v9579, %v9560
    %v10663 = vpack.c.b16 %v9580, %v9561
    %v10664 = vpack.c.b16 %v9581, %v9562
    %v10665 = vpack.c.b16 %v9582, %v9563
    %v10666 = vpack.c.b16 %v9583, %v9564
    %v10667 = vpack.c.b16 %v9584, %v9565
    %v10668 = vpack.c.b16 %v9585, %v9566
    %v10669 = vpack.c.b16 %v9605, %v9586
    %v10670 = vpack.c.b16 %v9606, %v9587
    %v10671 = vpack.c.b16 %v9607, %v9588
    %v10672 = vpack.c.b16 %v9608, %v9589
    %v10673 = vpack.c.b16 %v9609, %v9590
    %v10674 = vpack.c.b16 %v9610, %v9591
    %v10675 = vpack.c.b16 %v9611, %v9592
    %v10676 = vpack.c.b16 %v9612, %v9593
    %v10677 = vpack.c.b16 %v9613, %v9594
    %v10678 = vpack.c.b16 %v9614, %v9595
    %v10679 = vpack.c.b16 %v9615, %v9596
    %v10680 = vpack.c.b16 %v9616, %v9597
    %v10681 = vpack.c.b16 %v9617, %v9598
    %v10682 = vpack.c.b16 %v9618, %v9599
    %v10683 = vpack.c.b16 %v9619, %v9600
    %v10684 = vpack.c.b16 %v9620, %v9601
    %v10685 = vpack.c.b16 %v9621, %v9602
    %v10686 = vpack.c.b16 %v9622, %v9603
    %v10687 = vpack.c.b16 %v9623, %v9604
    %v10688 = vpack.c.b16 %v9643, %v9624
    %v10689 = vpack.c.b16 %v9644, %v9625
    %v10690 = vpack.c.b16 %v9645, %v9626
    %v10691 = vpack.c.b16 %v9646, %v9627
    %v10692 = vpack.c.b16 %v9647, %v9628
    %v10693 = vpack.c.b16 %v9648, %v9629
    %v10694 = vpack.c.b16 %v9649, %v9630
    %v10695 = vpack.c.b16 %v9650, %v9631
    %v10696 = vpack.c.b16 %v9651, %v9632
    %v10697 = vpack.c.b16 %v9652, %v9633
    %v10698 = vpack.c.b16 %v9653, %v9634
    %v10699 = vpack.c.b16 %v9654, %v9635
    %v10700 = vpack.c.b16 %v9655, %v9636
    %v10701 = vpack.c.b16 %v9656, %v9637
    %v10702 = vpack.c.b16 %v9657, %v9638
    %v10703 = vpack.c.b16 %v9658, %v9639
    %v10704 = vpack.c.b16 %v9659, %v9640
    %v10705 = vpack.c.b16 %v9660, %v9641
    %v10706 = vpack.c.b16 %v9661, %v9642
    %v10707 = vpack.c.b16 %v9681, %v9662
    %v10708 = vpack.c.b16 %v9682, %v9663
    %v10709 = vpack.c.b16 %v9683, %v9664
    %v10710 = vpack.c.b16 %v9684, %v9665
    %v10711 = vpack.c.b16 %v9685, %v9666
    %v10712 = vpack.c.b16 %v9686, %v9667
    %v10713 = vpack.c.b16 %v9687, %v9668
    %v10714 = vpack.c.b16 %v9688, %v9669
    %v10715 = vpack.c.b16 %v9689, %v9670
    %v10716 = vpack.c.b16 %v9690, %v9671
    %v10717 = vpack.c.b16 %v9691, %v9672
    %v10718 = vpack.c.b16 %v9692, %v9673
    %v10719 = vpack.c.b16 %v9693, %v9674
    %v10720 = vpack.c.b16 %v9694, %v9675
    %v10721 = vpack.c.b16 %v9695, %v9676
    %v10722 = vpack.c.b16 %v9696, %v9677
    %v10723 = vpack.c.b16 %v9697, %v9678
    %v10724 = vpack.c.b16 %v9698, %v9679
    %v10725 = vpack.c.b16 %v9699, %v9680
    %v10726 = vpack.c.b16 %v9719, %v9700
    %v10727 = vpack.c.b16 %v9720, %v9701
    %v10728 = vpack.c.b16 %v9721, %v9702
    %v10729 = vpack.c.b16 %v9722, %v9703
    %v10730 = vpack.c.b16 %v9723, %v9704
    %v10731 = vpack.c.b16 %v9724, %v9705
    %v10732 = vpack.c.b16 %v9725, %v9706
    %v10733 = vpack.c.b16 %v9726, %v9707
    %v10734 = vpack.c.b16 %v9727, %v9708
    %v10735 = vpack.c.b16 %v9728, %v9709
    %v10736 = vpack.c.b16 %v9729, %v9710
    %v10737 = vpack.c.b16 %v9730, %v9711
    %v10738 = vpack.c.b16 %v9731, %v9712
    %v10739 = vpack.c.b16 %v9732, %v9713
    %v10740 = vpack.c.b16 %v9733, %v9714
    %v10741 = vpack.c.b16 %v9734, %v9715
    %v10742 = vpack.c.b16 %v9735, %v9716
    %v10743 = vpack.c.b16 %v9736, %v9717
    %v10744 = vpack.c.b16 %v9737, %v9718
    %v10745 = vpack.c.b16 %v9757, %v9738
    %v10746 = vpack.c.b16 %v9758, %v9739
    %v10747 = vpack.c.b16 %v9759, %v9740
    %v10748 = vpack.c.b16 %v9760, %v9741
    %v10749 = vpack.c.b16 %v9761, %v9742
    %v10750 = vpack.c.b16 %v9762, %v9743
    %v10751 = vpack.c.b16 %v9763, %v9744
    %v10752 = vpack.c.b16 %v9764, %v9745
    %v10753 = vpack.c.b16 %v9765, %v9746
    %v10754 = vpack.c.b16 %v9766, %v9747
    %v10755 = vpack.c.b16 %v9767, %v9748
    %v10756 = vpack.c.b16 %v9768, %v9749
    %v10757 = vpack.c.b16 %v9769, %v9750
    %v10758 = vpack.c.b16 %v9770, %v9751
    %v10759 = vpack.c.b16 %v9771, %v9752
    %v10760 = vpack.c.b16 %v9772, %v9753
    %v10761 = vpack.c.b16 %v9773, %v9754
    %v10762 = vpack.c.b16 %v9774, %v9755
    %v10763 = vpack.c.b16 %v9775, %v9756
    %v10764 = vpack.c.b16 %v9795, %v9776
    %v10765 = vpack.c.b16 %v9796, %v9777
    %v10766 = vpack.c.b16 %v9797, %v9778
    %v10767 = vpack.c.b16 %v9798, %v9779
    %v10768 = vpack.c.b16 %v9799, %v9780
    %v10769 = vpack.c.b16 %v9800, %v9781
    %v10770 = vpack.c.b16 %v9801, %v9782
    %v10771 = vpack.c.b16 %v9802, %v9783
    %v10772 = vpack.c.b16 %v9803, %v9784
    %v10773 = vpack.c.b16 %v9804, %v9785
    %v10774 = vpack.c.b16 %v9805, %v9786
    %v10775 = vpack.c.b16 %v9806, %v9787
    %v10776 = vpack.c.b16 %v9807, %v9788
    %v10777 = vpack.c.b16 %v9808, %v9789
    %v10778 = vpack.c.b16 %v9809, %v9790
    %v10779 = vpack.c.b16 %v9810, %v9791
    %v10780 = vpack.c.b16 %v9811, %v9792
    %v10781 = vpack.c.b16 %v9812, %v9793
    %v10782 = vpack.c.b16 %v9813, %v9794
    %v10783 = vpack.c.b16 %v9833, %v9814
    %v10784 = vpack.c.b16 %v9834, %v9815
    %v10785 = vpack.c.b16 %v9835, %v9816
    %v10786 = vpack.c.b16 %v9836, %v9817
    %v10787 = vpack.c.b16 %v9837, %v9818
    %v10788 = vpack.c.b16 %v9838, %v9819
    %v10789 = vpack.c.b16 %v9839, %v9820
    %v10790 = vpack.c.b16 %v9840, %v9821
    %v10791 = vpack.c.b16 %v9841, %v9822
    %v10792 = vpack.c.b16 %v9842, %v9823
    %v10793 = vpack.c.b16 %v9843, %v9824
    %v10794 = vpack.c.b16 %v9844, %v9825
    %v10795 = vpack.c.b16 %v9845, %v9826
    %v10796 = vpack.c.b16 %v9846, %v9827
    %v10797 = vpack.c.b16 %v9847, %v9828
    %v10798 = vpack.c.b16 %v9848, %v9829
    %v10799 = vpack.c.b16 %v9849, %v9830
    %v10800 = vpack.c.b16 %v9850, %v9831
    %v10801 = vpack.c.b16 %v9851, %v9832
    %v10802 = vpack.c.b16 %v9871, %v9852
    %v10803 = vpack.c.b16 %v9872, %v9853
    %v10804 = vpack.c.b16 %v9873, %v9854
    %v10805 = vpack.c.b16 %v9874, %v9855
    %v10806 = vpack.c.b16 %v9875, %v9856
    %v10807 = vpack.c.b16 %v9876, %v9857
    %v10808 = vpack.c.b16 %v9877, %v9858
    %v10809 = vpack.c.b16 %v9878, %v9859
    %v10810 = vpack.c.b16 %v9879, %v9860
    %v10811 = vpack.c.b16 %v9880, %v9861
    %v10812 = vpack.c.b16 %v9881, %v9862
    %v10813 = vpack.c.b16 %v9882, %v9863
    %v10814 = vpack.c.b16 %v9883, %v9864
    %v10815 = vpack.c.b16 %v9884, %v9865
    %v10816 = vpack.c.b16 %v9885, %v9866
    %v10817 = vpack.c.b16 %v9886, %v9867
    %v10818 = vpack.c.b16 %v9887, %v9868
    %v10819 = vpack.c.b16 %v9888, %v9869
    %v10820 = vpack.c.b16 %v9889, %v9870
    %v10821 = vpack.c.b16 %v9909, %v9890
    %v10822 = vpack.c.b16 %v9910, %v9891
    %v10823 = vpack.c.b16 %v9911, %v9892
    %v10824 = vpack.c.b16 %v9912, %v9893
    %v10825 = vpack.c.b16 %v9913, %v9894
    %v10826 = vpack.c.b16 %v9914, %v9895
    %v10827 = vpack.c.b16 %v9915, %v9896
    %v10828 = vpack.c.b16 %v9916, %v9897
    %v10829 = vpack.c.b16 %v9917, %v9898
    %v10830 = vpack.c.b16 %v9918, %v9899
    %v10831 = vpack.c.b16 %v9919, %v9900
    %v10832 = vpack.c.b16 %v9920, %v9901
    %v10833 = vpack.c.b16 %v9921, %v9902
    %v10834 = vpack.c.b16 %v9922, %v9903
    %v10835 = vpack.c.b16 %v9923, %v9904
    %v10836 = vpack.c.b16 %v9924, %v9905
    %v10837 = vpack.c.b16 %v9925, %v9906
    %v10838 = vpack.c.b16 %v9926, %v9907
    %v10839 = vpack.c.b16 %v9927, %v9908
    %v10840 = vpack.c.b16 %v9947, %v9928
    %v10841 = vpack.c.b16 %v9948, %v9929
    %v10842 = vpack.c.b16 %v9949, %v9930
    %v10843 = vpack.c.b16 %v9950, %v9931
    %v10844 = vpack.c.b16 %v9951, %v9932
    %v10845 = vpack.c.b16 %v9952, %v9933
    %v10846 = vpack.c.b16 %v9953, %v9934
    %v10847 = vpack.c.b16 %v9954, %v9935
    %v10848 = vpack.c.b16 %v9955, %v9936
    %v10849 = vpack.c.b16 %v9956, %v9937
    %v10850 = vpack.c.b16 %v9957, %v9938
    %v10851 = vpack.c.b16 %v9958, %v9939
    %v10852 = vpack.c.b16 %v9959, %v9940
    %v10853 = vpack.c.b16 %v9960, %v9941
    %v10854 = vpack.c.b16 %v9961, %v9942
    %v10855 = vpack.c.b16 %v9962, %v9943
    %v10856 = vpack.c.b16 %v9963, %v9944
    %v10857 = vpack.c.b16 %v9964, %v9945
    %v10858 = vpack.c.b16 %v9965, %v9946
    %v10859 = vpack.c.b16 %v9985, %v9966
    %v10860 = vpack.c.b16 %v9986, %v9967
    %v10861 = vpack.c.b16 %v9987, %v9968
    %v10862 = vpack.c.b16 %v9988, %v9969
    %v10863 = vpack.c.b16 %v9989, %v9970
    %v10864 = vpack.c.b16 %v9990, %v9971
    %v10865 = vpack.c.b16 %v9991, %v9972
    %v10866 = vpack.c.b16 %v9992, %v9973
    %v10867 = vpack.c.b16 %v9993, %v9974
    %v10868 = vpack.c.b16 %v9994, %v9975
    %v10869 = vpack.c.b16 %v9995, %v9976
    %v10870 = vpack.c.b16 %v9996, %v9977
    %v10871 = vpack.c.b16 %v9997, %v9978
    %v10872 = vpack.c.b16 %v9998, %v9979
    %v10873 = vpack.c.b16 %v9999, %v9980
    %v10874 = vpack.c.b16 %v10000, %v9981
    %v10875 = vpack.c.b16 %v10001, %v9982
    %v10876 = vpack.c.b16 %v10002, %v9983
    %v10877 = vpack.c.b16 %v10003, %v9984
    %v10878 = vpack.c.b16 %v10023, %v10004
    %v10879 = vpack.c.b16 %v10024, %v10005
    %v10880 = vpack.c.b16 %v10025, %v10006
    %v10881 = vpack.c.b16 %v10026, %v10007
    %v10882 = vpack.c.b16 %v10027, %v10008
    %v10883 = vpack.c.b16 %v10028, %v10009
    %v10884 = vpack.c.b16 %v10029, %v10010
    %v10885 = vpack.c.b16 %v10030, %v10011
    %v10886 = vpack.c.b16 %v10031, %v10012
    %v10887 = vpack.c.b16 %v10032, %v10013
    %v10888 = vpack.c.b16 %v10033, %v10014
    %v10889 = vpack.c.b16 %v10034, %v10015
    %v10890 = vpack.c.b16 %v10035, %v10016
    %v10891 = vpack.c.b16 %v10036, %v10017
    %v10892 = vpack.c.b16 %v10037, %v10018
    %v10893 = vpack.c.b16 %v10038, %v10019
    %v10894 = vpack.c.b16 %v10039, %v10020
    %v10895 = vpack.c.b16 %v10040, %v10021
    %v10896 = vpack.c.b16 %v10041, %v10022
    %v10897 = vpack.c.b16 %v10061, %v10042
    %v10898 = vpack.c.b16 %v10062, %v10043
    %v10899 = vpack.c.b16 %v10063, %v10044
    %v10900 = vpack.c.b16 %v10064, %v10045
    %v10901 = vpack.c.b16 %v10065, %v10046
    %v10902 = vpack.c.b16 %v10066, %v10047
    %v10903 = vpack.c.b16 %v10067, %v10048
    %v10904 = vpack.c.b16 %v10068, %v10049
    %v10905 = vpack.c.b16 %v10069, %v10050
    %v10906 = vpack.c.b16 %v10070, %v10051
    %v10907 = vpack.c.b16 %v10071, %v10052
    %v10908 = vpack.c.b16 %v10072, %v10053
    %v10909 = vpack.c.b16 %v10073, %v10054
    %v10910 = vpack.c.b16 %v10074, %v10055
    %v10911 = vpack.c.b16 %v10075, %v10056
    %v10912 = vpack.c.b16 %v10076, %v10057
    %v10913 = vpack.c.b16 %v10077, %v10058
    %v10914 = vpack.c.b16 %v10078, %v10059
    %v10915 = vpack.c.b16 %v10079, %v10060
    %v10916 = vpack.c.b16 %v10099, %v10080
    %v10917 = vpack.c.b16 %v10100, %v10081
    %v10918 = vpack.c.b16 %v10101, %v10082
    %v10919 = vpack.c.b16 %v10102, %v10083
    %v10920 = vpack.c.b16 %v10103, %v10084
    %v10921 = vpack.c.b16 %v10104, %v10085
    %v10922 = vpack.c.b16 %v10105, %v10086
    %v10923 = vpack.c.b16 %v10106, %v10087
    %v10924 = vpack.c.b16 %v10107, %v10088
    %v10925 = vpack.c.b16 %v10108, %v10089
    %v10926 = vpack.c.b16 %v10109, %v10090
    %v10927 = vpack.c.b16 %v10110, %v10091
    %v10928 = vpack.c.b16 %v10111, %v10092
    %v10929 = vpack.c.b16 %v10112, %v10093
    %v10930 = vpack.c.b16 %v10113, %v10094
    %v10931 = vpack.c.b16 %v10114, %v10095
    %v10932 = vpack.c.b16 %v10115, %v10096
    %v10933 = vpack.c.b16 %v10116, %v10097
    %v10934 = vpack.c.b16 %v10117, %v10098
    %v10935 = vpack.c.b16 %v10137, %v10118
    %v10936 = vpack.c.b16 %v10138, %v10119
    %v10937 = vpack.c.b16 %v10139, %v10120
    %v10938 = vpack.c.b16 %v10140, %v10121
    %v10939 = vpack.c.b16 %v10141, %v10122
    %v10940 = vpack.c.b16 %v10142, %v10123
    %v10941 = vpack.c.b16 %v10143, %v10124
    %v10942 = vpack.c.b16 %v10144, %v10125
    %v10943 = vpack.c.b16 %v10145, %v10126
    %v10944 = vpack.c.b16 %v10146, %v10127
    %v10945 = vpack.c.b16 %v10147, %v10128
    %v10946 = vpack.c.b16 %v10148, %v10129
    %v10947 = vpack.c.b16 %v10149, %v10130
    %v10948 = vpack.c.b16 %v10150, %v10131
    %v10949 = vpack.c.b16 %v10151, %v10132
    %v10950 = vpack.c.b16 %v10152, %v10133
    %v10951 = vpack.c.b16 %v10153, %v10134
    %v10952 = vpack.c.b16 %v10154, %v10135
    %v10953 = vpack.c.b16 %v10155, %v10136
    %v10954 = vpack.c.b16 %v10175, %v10156
    %v10955 = vpack.c.b16 %v10176, %v10157
    %v10956 = vpack.c.b16 %v10177, %v10158
    %v10957 = vpack.c.b16 %v10178, %v10159
    %v10958 = vpack.c.b16 %v10179, %v10160
    %v10959 = vpack.c.b16 %v10180, %v10161
    %v10960 = vpack.c.b16 %v10181, %v10162
    %v10961 = vpack.c.b16 %v10182, %v10163
    %v10962 = vpack.c.b16 %v10183, %v10164
    %v10963 = vpack.c.b16 %v10184, %v10165
    %v10964 = vpack.c.b16 %v10185, %v10166
    %v10965 = vpack.c.b16 %v10186, %v10167
    %v10966 = vpack.c.b16 %v10187, %v10168
    %v10967 = vpack.c.b16 %v10188, %v10169
    %v10968 = vpack.c.b16 %v10189, %v10170
    %v10969 = vpack.c.b16 %v10190, %v10171
    %v10970 = vpack.c.b16 %v10191, %v10172
    %v10971 = vpack.c.b16 %v10192, %v10173
    %v10972 = vpack.c.b16 %v10193, %v10174
    %v10973 = vpack.c.b16 %v10213, %v10194
    %v10974 = vpack.c.b16 %v10214, %v10195
    %v10975 = vpack.c.b16 %v10215, %v10196
    %v10976 = vpack.c.b16 %v10216, %v10197
    %v10977 = vpack.c.b16 %v10217, %v10198
    %v10978 = vpack.c.b16 %v10218, %v10199
    %v10979 = vpack.c.b16 %v10219, %v10200
    %v10980 = vpack.c.b16 %v10220, %v10201
    %v10981 = vpack.c.b16 %v10221, %v10202
    %v10982 = vpack.c.b16 %v10222, %v10203
    %v10983 = vpack.c.b16 %v10223, %v10204
    %v10984 = vpack.c.b16 %v10224, %v10205
    %v10985 = vpack.c.b16 %v10225, %v10206
    %v10986 = vpack.c.b16 %v10226, %v10207
    %v10987 = vpack.c.b16 %v10227, %v10208
    %v10988 = vpack.c.b16 %v10228, %v10209
    %v10989 = vpack.c.b16 %v10229, %v10210
    %v10990 = vpack.c.b16 %v10230, %v10211
    %v10991 = vpack.c.b16 %v10231, %v10212
    %v10992 = vpack.c.b16 %v10251, %v10232
    %v10993 = vpack.c.b16 %v10252, %v10233
    %v10994 = vpack.c.b16 %v10253, %v10234
    %v10995 = vpack.c.b16 %v10254, %v10235
    %v10996 = vpack.c.b16 %v10255, %v10236
    %v10997 = vpack.c.b16 %v10256, %v10237
    %v10998 = vpack.c.b16 %v10257, %v10238
    %v10999 = vpack.c.b16 %v10258, %v10239
    %v11000 = vpack.c.b16 %v10259, %v10240
    %v11001 = vpack.c.b16 %v10260, %v10241
    %v11002 = vpack.c.b16 %v10261, %v10242
    %v11003 = vpack.c.b16 %v10262, %v10243
    %v11004 = vpack.c.b16 %v10263, %v10244
    %v11005 = vpack.c.b16 %v10264, %v10245
    %v11006 = vpack.c.b16 %v10265, %v10246
    %v11007 = vpack.c.b16 %v10266, %v10247
    %v11008 = vpack.c.b16 %v10267, %v10248
    %v11009 = vpack.c.b16 %v10268, %v10249
    %v11010 = vpack.c.b16 %v10269, %v10250
    %v11011 = vpack.c.b16 %v10289, %v10270
    %v11012 = vpack.c.b16 %v10290, %v10271
    %v11013 = vpack.c.b16 %v10291, %v10272
    %v11014 = vpack.c.b16 %v10292, %v10273
    %v11015 = vpack.c.b16 %v10293, %v10274
    %v11016 = vpack.c.b16 %v10294, %v10275
    %v11017 = vpack.c.b16 %v10295, %v10276
    %v11018 = vpack.c.b16 %v10296, %v10277
    %v11019 = vpack.c.b16 %v10297, %v10278
    %v11020 = vpack.c.b16 %v10298, %v10279
    %v11021 = vpack.c.b16 %v10299, %v10280
    %v11022 = vpack.c.b16 %v10300, %v10281
    %v11023 = vpack.c.b16 %v10301, %v10282
    %v11024 = vpack.c.b16 %v10302, %v10283
    %v11025 = vpack.c.b16 %v10303, %v10284
    %v11026 = vpack.c.b16 %v10304, %v10285
    %v11027 = vpack.c.b16 %v10305, %v10286
    %v11028 = vpack.c.b16 %v10306, %v10287
    %v11029 = vpack.c.b16 %v10307, %v10288
    %v11030 = vpack.c.b16 %v10327, %v10308
    %v11031 = vpack.c.b16 %v10328, %v10309
    %v11032 = vpack.c.b16 %v10329, %v10310
    %v11033 = vpack.c.b16 %v10330, %v10311
    %v11034 = vpack.c.b16 %v10331, %v10312
    %v11035 = vpack.c.b16 %v10332, %v10313
    %v11036 = vpack.c.b16 %v10333, %v10314
    %v11037 = vpack.c.b16 %v10334, %v10315
    %v11038 = vpack.c.b16 %v10335, %v10316
    %v11039 = vpack.c.b16 %v10336, %v10317
    %v11040 = vpack.c.b16 %v10337, %v10318
    %v11041 = vpack.c.b16 %v10338, %v10319
    %v11042 = vpack.c.b16 %v10339, %v10320
    %v11043 = vpack.c.b16 %v10340, %v10321
    %v11044 = vpack.c.b16 %v10341, %v10322
    %v11045 = vpack.c.b16 %v10342, %v10323
    %v11046 = vpack.c.b16 %v10343, %v10324
    %v11047 = vpack.c.b16 %v10344, %v10325
    %v11048 = vpack.c.b16 %v10345, %v10326
    %v11049 = vpack.c.b16 %v10365, %v10346
    %v11050 = vpack.c.b16 %v10366, %v10347
    %v11051 = vpack.c.b16 %v10367, %v10348
    %v11052 = vpack.c.b16 %v10368, %v10349
    %v11053 = vpack.c.b16 %v10369, %v10350
    %v11054 = vpack.c.b16 %v10370, %v10351
    %v11055 = vpack.c.b16 %v10371, %v10352
    %v11056 = vpack.c.b16 %v10372, %v10353
    %v11057 = vpack.c.b16 %v10373, %v10354
    %v11058 = vpack.c.b16 %v10374, %v10355
    %v11059 = vpack.c.b16 %v10375, %v10356
    %v11060 = vpack.c.b16 %v10376, %v10357
    %v11061 = vpack.c.b16 %v10377, %v10358
    %v11062 = vpack.c.b16 %v10378, %v10359
    %v11063 = vpack.c.b16 %v10379, %v10360
    %v11064 = vpack.c.b16 %v10380, %v10361
    %v11065 = vpack.c.b16 %v10381, %v10362
    %v11066 = vpack.c.b16 %v10382, %v10363
    %v11067 = vpack.c.b16 %v10383, %v10364
    %v11068 = vpack.c.b16 %v10403, %v10384
    %v11069 = vpack.c.b16 %v10404, %v10385
    %v11070 = vpack.c.b16 %v10405, %v10386
    %v11071 = vpack.c.b16 %v10406, %v10387
    %v11072 = vpack.c.b16 %v10407, %v10388
    %v11073 = vpack.c.b16 %v10408, %v10389
    %v11074 = vpack.c.b16 %v10409, %v10390
    %v11075 = vpack.c.b16 %v10410, %v10391
    %v11076 = vpack.c.b16 %v10411, %v10392
    %v11077 = vpack.c.b16 %v10412, %v10393
    %v11078 = vpack.c.b16 %v10413, %v10394
    %v11079 = vpack.c.b16 %v10414, %v10395
    %v11080 = vpack.c.b16 %v10415, %v10396
    %v11081 = vpack.c.b16 %v10416, %v10397
    %v11082 = vpack.c.b16 %v10417, %v10398
    %v11083 = vpack.c.b16 %v10418, %v10399
    %v11084 = vpack.c.b16 %v10419, %v10400
    %v11085 = vpack.c.b16 %v10420, %v10401
    %v11086 = vpack.c.b16 %v10421, %v10402
    %v11087 = vpack.c.b16 %v10441, %v10422
    %v11088 = vpack.c.b16 %v10442, %v10423
    %v11089 = vpack.c.b16 %v10443, %v10424
    %v11090 = vpack.c.b16 %v10444, %v10425
    %v11091 = vpack.c.b16 %v10445, %v10426
    %v11092 = vpack.c.b16 %v10446, %v10427
    %v11093 = vpack.c.b16 %v10447, %v10428
    %v11094 = vpack.c.b16 %v10448, %v10429
    %v11095 = vpack.c.b16 %v10449, %v10430
    %v11096 = vpack.c.b16 %v10450, %v10431
    %v11097 = vpack.c.b16 %v10451, %v10432
    %v11098 = vpack.c.b16 %v10452, %v10433
    %v11099 = vpack.c.b16 %v10453, %v10434
    %v11100 = vpack.c.b16 %v10454, %v10435
    %v11101 = vpack.c.b16 %v10455, %v10436
    %v11102 = vpack.c.b16 %v10456, %v10437
    %v11103 = vpack.c.b16 %v10457, %v10438
    %v11104 = vpack.c.b16 %v10458, %v10439
    %v11105 = vpack.c.b16 %v10459, %v10440
    %v11106 = vpack.c.b16 %v10479, %v10460
    %v11107 = vpack.c.b16 %v10480, %v10461
    %v11108 = vpack.c.b16 %v10481, %v10462
    %v11109 = vpack.c.b16 %v10482, %v10463
    %v11110 = vpack.c.b16 %v10483, %v10464
    %v11111 = vpack.c.b16 %v10484, %v10465
    %v11112 = vpack.c.b16 %v10485, %v10466
    %v11113 = vpack.c.b16 %v10486, %v10467
    %v11114 = vpack.c.b16 %v10487, %v10468
    %v11115 = vpack.c.b16 %v10488, %v10469
    %v11116 = vpack.c.b16 %v10489, %v10470
    %v11117 = vpack.c.b16 %v10490, %v10471
    %v11118 = vpack.c.b16 %v10491, %v10472
    %v11119 = vpack.c.b16 %v10492, %v10473
    %v11120 = vpack.c.b16 %v10493, %v10474
    %v11121 = vpack.c.b16 %v10494, %v10475
    %v11122 = vpack.c.b16 %v10495, %v10476
    %v11123 = vpack.c.b16 %v10496, %v10477
    %v11124 = vpack.c.b16 %v10497, %v10478
    %v11125 = vpack.c.b16 %v10517, %v10498
    %v11126 = vpack.c.b16 %v10518, %v10499
    %v11127 = vpack.c.b16 %v10519, %v10500
    %v11128 = vpack.c.b16 %v10520, %v10501
    %v11129 = vpack.c.b16 %v10521, %v10502
    %v11130 = vpack.c.b16 %v10522, %v10503
    %v11131 = vpack.c.b16 %v10523, %v10504
    %v11132 = vpack.c.b16 %v10524, %v10505
    %v11133 = vpack.c.b16 %v10525, %v10506
    %v11134 = vpack.c.b16 %v10526, %v10507
    %v11135 = vpack.c.b16 %v10527, %v10508
    %v11136 = vpack.c.b16 %v10528, %v10509
    %v11137 = vpack.c.b16 %v10529, %v10510
    %v11138 = vpack.c.b16 %v10530, %v10511
    %v11139 = vpack.c.b16 %v10531, %v10512
    %v11140 = vpack.c.b16 %v10532, %v10513
    %v11141 = vpack.c.b16 %v10533, %v10514
    %v11142 = vpack.c.b16 %v10534, %v10515
    %v11143 = vpack.c.b16 %v10535, %v10516
    %11752 = vmatprep.subr.bf16.mxu0 %v10537
    %11753 = vmatpush1.bf16.msra.mxu0 %v10536
    %11754 = vmatprep.subr.bf16.mxu0 %v10556
    %11755 = vmatpush1.bf16.msra.mxu0 %v10555
    %11756 = vmatprep.subr.bf16.mxu0 %v10575
    %11757 = vmatpush1.bf16.msra.mxu0 %v10574
    %11758 = vmatprep.subr.bf16.mxu0 %v10594
    %11759 = vmatpush1.bf16.msra.mxu0 %v10593
    %11760 = vmatprep.subr.bf16.mxu0 %v10613
    %11761 = vmatpush1.bf16.msra.mxu0 %v10612
    %11762 = vmatprep.subr.bf16.mxu0 %v10632
    %11763 = vmatpush1.bf16.msra.mxu0 %v10631
    %11764 = vmatprep.subr.bf16.mxu0 %v10651
    %11765 = vmatpush1.bf16.msra.mxu0 %v10650
    %11766 = vmatprep.subr.bf16.mxu0 %v10670
    %11767 = vmatpush1.bf16.msra.mxu0 %v10669
    %11768 = vmatprep.subr.bf16.mxu0 %v10689
    %11769 = vmatpush1.bf16.msra.mxu0 %v10688
    %11770 = vmatprep.subr.bf16.mxu0 %v10708
    %11771 = vmatpush1.bf16.msra.mxu0 %v10707
    %11772 = vmatprep.subr.bf16.mxu0 %v10727
    %11773 = vmatpush1.bf16.msra.mxu0 %v10726
    %11774 = vmatprep.subr.bf16.mxu0 %v10746
    %11775 = vmatpush1.bf16.msra.mxu0 %v10745
    %11776 = vmatprep.subr.bf16.mxu0 %v10765
    %11777 = vmatpush1.bf16.msra.mxu0 %v10764
    %11778 = vmatprep.subr.bf16.mxu0 %v10784
    %11779 = vmatpush1.bf16.msra.mxu0 %v10783
    %11780 = vmatprep.subr.bf16.mxu0 %v10803
    %11781 = vmatpush1.bf16.msra.mxu0 %v10802
    %11782 = vmatprep.subr.bf16.mxu0 %v10822
    %11783 = vmatpush1.bf16.msra.mxu0 %v10821
    %11784 = vmatprep.mubr.bf16.mxu0 %v7936
    %11785 = vmatmul.mubr.bf16.gmra.mrb[0].mxu0 %v7935
    %v11786 = vpop.f32.mrb[0].mxu0
    %v11787 = vadd.f32 %v8588, %v11786
    %v11788 = vpop.f32.mrb[0].mxu0
    %v11789 = vadd.f32 %v8592, %v11788
    %v11790 = vpop.f32.mrb[0].mxu0
    %v11791 = vadd.f32 %v8588, %v11790
    %v11792 = vpop.f32.mrb[0].mxu0
    %v11793 = vadd.f32 %v8592, %v11792
    %11794 = vdwg.mxu0
    %11795 = vmatprep.subr.bf16.mxu0 %v10841
    %11796 = vmatpush1.bf16.msra.mxu0 %v10840
    %11797 = vmatprep.subr.bf16.mxu0 %v10860
    %11798 = vmatpush1.bf16.msra.mxu0 %v10859
    %11799 = vmatprep.subr.bf16.mxu0 %v10879
    %11800 = vmatpush1.bf16.msra.mxu0 %v10878
    %11801 = vmatprep.subr.bf16.mxu0 %v10898
    %11802 = vmatpush1.bf16.msra.mxu0 %v10897
    %11803 = vmatprep.subr.bf16.mxu0 %v10917
    %11804 = vmatpush1.bf16.msra.mxu0 %v10916
    %11805 = vmatprep.subr.bf16.mxu0 %v10936
    %11806 = vmatpush1.bf16.msra.mxu0 %v10935
    %11807 = vmatprep.subr.bf16.mxu0 %v10955
    %11808 = vmatpush1.bf16.msra.mxu0 %v10954
    %11809 = vmatprep.subr.bf16.mxu0 %v10974
    %11810 = vmatpush1.bf16.msra.mxu0 %v10973
    %11811 = vmatprep.subr.bf16.mxu0 %v10993
    %11812 = vmatpush1.bf16.msra.mxu0 %v10992
    %11813 = vmatprep.subr.bf16.mxu0 %v11012
    %11814 = vmatpush1.bf16.msra.mxu0 %v11011
    %11815 = vmatprep.subr.bf16.mxu0 %v11031
    %11816 = vmatpush1.bf16.msra.mxu0 %v11030
    %11817 = vmatprep.subr.bf16.mxu0 %v11050
    %11818 = vmatpush1.bf16.msra.mxu0 %v11049
    %11819 = vmatprep.subr.bf16.mxu0 %v11069
    %11820 = vmatpush1.bf16.msra.mxu0 %v11068
    %11821 = vmatprep.subr.bf16.mxu0 %v11088
    %11822 = vmatpush1.bf16.msra.mxu0 %v11087
    %11823 = vmatprep.subr.bf16.mxu0 %v11107
    %11824 = vmatpush1.bf16.msra.mxu0 %v11106
    %11825 = vmatprep.subr.bf16.mxu0 %v11126
    %11826 = vmatpush1.bf16.msra.mxu0 %v11125
    %11827 = vmatprep.mubr.bf16.mxu0 %v7938
    %11828 = vmatmul.mubr.bf16.gmra.mrb[0].mxu0 %v7937
    %v11829 = vpop.f32.mrb[0].mxu0
    %v11830 = vadd.f32 %v11787, %v11829
    %v11831 = vpop.f32.mrb[0].mxu0
    %v11832 = vadd.f32 %v11789, %v11831
    %v11833 = vpop.f32.mrb[0].mxu0
    %v11834 = vadd.f32 %v11791, %v11833
    %v11835 = vpop.f32.mrb[0].mxu0
    %v11836 = vadd.f32 %v11793, %v11835
    %11837 = vdwg.mxu0
    %11838 = vmatprep.subr.bf16.mxu0 %v10539
    %11839 = vmatpush1.bf16.msra.mxu0 %v10538
    %11840 = vmatprep.subr.bf16.mxu0 %v10558
    %11841 = vmatpush1.bf16.msra.mxu0 %v10557
    %11842 = vmatprep.subr.bf16.mxu0 %v10577
    %11843 = vmatpush1.bf16.msra.mxu0 %v10576
    %11844 = vmatprep.subr.bf16.mxu0 %v10596
    %11845 = vmatpush1.bf16.msra.mxu0 %v10595
    %11846 = vmatprep.subr.bf16.mxu0 %v10615
    %11847 = vmatpush1.bf16.msra.mxu0 %v10614
    %11848 = vmatprep.subr.bf16.mxu0 %v10634
    %11849 = vmatpush1.bf16.msra.mxu0 %v10633
    %11850 = vmatprep.subr.bf16.mxu0 %v10653
    %11851 = vmatpush1.bf16.msra.mxu0 %v10652
    %11852 = vmatprep.subr.bf16.mxu0 %v10672
    %11853 = vmatpush1.bf16.msra.mxu0 %v10671
    %11854 = vmatprep.subr.bf16.mxu0 %v10691
    %11855 = vmatpush1.bf16.msra.mxu0 %v10690
    %11856 = vmatprep.subr.bf16.mxu0 %v10710
    %11857 = vmatpush1.bf16.msra.mxu0 %v10709
    %11858 = vmatprep.subr.bf16.mxu0 %v10729
    %11859 = vmatpush1.bf16.msra.mxu0 %v10728
    %11860 = vmatprep.subr.bf16.mxu0 %v10748
    %11861 = vmatpush1.bf16.msra.mxu0 %v10747
    %11862 = vmatprep.subr.bf16.mxu0 %v10767
    %11863 = vmatpush1.bf16.msra.mxu0 %v10766
    %11864 = vmatprep.subr.bf16.mxu0 %v10786
    %11865 = vmatpush1.bf16.msra.mxu0 %v10785
    %11866 = vmatprep.subr.bf16.mxu0 %v10805
    %11867 = vmatpush1.bf16.msra.mxu0 %v10804
    %11868 = vmatprep.subr.bf16.mxu0 %v10824
    %11869 = vmatpush1.bf16.msra.mxu0 %v10823
    %11870 = vmatprep.mubr.bf16.mxu0 %v7936
    %11871 = vmatmul.mubr.bf16.gmra.mrb[0].mxu0 %v7935
    %v11872 = vpop.f32.mrb[0].mxu0
    %v11873 = vadd.f32 %v8596, %v11872
    %v11874 = vpop.f32.mrb[0].mxu0
    %v11875 = vadd.f32 %v8600, %v11874
    %v11876 = vpop.f32.mrb[0].mxu0
    %v11877 = vadd.f32 %v8596, %v11876
    %v11878 = vpop.f32.mrb[0].mxu0
    %v11879 = vadd.f32 %v8600, %v11878
    %11880 = vdwg.mxu0
    %11881 = vmatprep.subr.bf16.mxu0 %v10843
    %11882 = vmatpush1.bf16.msra.mxu0 %v10842
    %11883 = vmatprep.subr.bf16.mxu0 %v10862
    %11884 = vmatpush1.bf16.msra.mxu0 %v10861
    %11885 = vmatprep.subr.bf16.mxu0 %v10881
    %11886 = vmatpush1.bf16.msra.mxu0 %v10880
    %11887 = vmatprep.subr.bf16.mxu0 %v10900
    %11888 = vmatpush1.bf16.msra.mxu0 %v10899
    %11889 = vmatprep.subr.bf16.mxu0 %v10919
    %11890 = vmatpush1.bf16.msra.mxu0 %v10918
    %11891 = vmatprep.subr.bf16.mxu0 %v10938
    %11892 = vmatpush1.bf16.msra.mxu0 %v10937
    %11893 = vmatprep.subr.bf16.mxu0 %v10957
    %11894 = vmatpush1.bf16.msra.mxu0 %v10956
    %11895 = vmatprep.subr.bf16.mxu0 %v10976
    %11896 = vmatpush1.bf16.msra.mxu0 %v10975
    %11897 = vmatprep.subr.bf16.mxu0 %v10995
    %11898 = vmatpush1.bf16.msra.mxu0 %v10994
    %11899 = vmatprep.subr.bf16.mxu0 %v11014
    %11900 = vmatpush1.bf16.msra.mxu0 %v11013
    %11901 = vmatprep.subr.bf16.mxu0 %v11033
    %11902 = vmatpush1.bf16.msra.mxu0 %v11032
    %11903 = vmatprep.subr.bf16.mxu0 %v11052
    %11904 = vmatpush1.bf16.msra.mxu0 %v11051
    %11905 = vmatprep.subr.bf16.mxu0 %v11071
    %11906 = vmatpush1.bf16.msra.mxu0 %v11070
    %11907 = vmatprep.subr.bf16.mxu0 %v11090
    %11908 = vmatpush1.bf16.msra.mxu0 %v11089
    %11909 = vmatprep.subr.bf16.mxu0 %v11109
    %11910 = vmatpush1.bf16.msra.mxu0 %v11108
    %11911 = vmatprep.subr.bf16.mxu0 %v11128
    %11912 = vmatpush1.bf16.msra.mxu0 %v11127
    %11913 = vmatprep.mubr.bf16.mxu0 %v7938
    %11914 = vmatmul.mubr.bf16.gmra.mrb[0].mxu0 %v7937
    %v11915 = vpop.f32.mrb[0].mxu0
    %v11916 = vadd.f32 %v11873, %v11915
    %v11917 = vpop.f32.mrb[0].mxu0
    %v11918 = vadd.f32 %v11875, %v11917
    %v11919 = vpop.f32.mrb[0].mxu0
    %v11920 = vadd.f32 %v11877, %v11919
    %v11921 = vpop.f32.mrb[0].mxu0
    %v11922 = vadd.f32 %v11879, %v11921
    %11923 = vdwg.mxu0
    %11924 = vmatprep.subr.bf16.mxu0 %v10541
    %11925 = vmatpush1.bf16.msra.mxu0 %v10540
    %11926 = vmatprep.subr.bf16.mxu0 %v10560
    %11927 = vmatpush1.bf16.msra.mxu0 %v10559
    %11928 = vmatprep.subr.bf16.mxu0 %v10579
    %11929 = vmatpush1.bf16.msra.mxu0 %v10578
    %11930 = vmatprep.subr.bf16.mxu0 %v10598
    %11931 = vmatpush1.bf16.msra.mxu0 %v10597
    %11932 = vmatprep.subr.bf16.mxu0 %v10617
    %11933 = vmatpush1.bf16.msra.mxu0 %v10616
    %11934 = vmatprep.subr.bf16.mxu0 %v10636
    %11935 = vmatpush1.bf16.msra.mxu0 %v10635
    %11936 = vmatprep.subr.bf16.mxu0 %v10655
    %11937 = vmatpush1.bf16.msra.mxu0 %v10654
    %11938 = vmatprep.subr.bf16.mxu0 %v10674
    %11939 = vmatpush1.bf16.msra.mxu0 %v10673
    %11940 = vmatprep.subr.bf16.mxu0 %v10693
    %11941 = vmatpush1.bf16.msra.mxu0 %v10692
    %11942 = vmatprep.subr.bf16.mxu0 %v10712
    %11943 = vmatpush1.bf16.msra.mxu0 %v10711
    %11944 = vmatprep.subr.bf16.mxu0 %v10731
    %11945 = vmatpush1.bf16.msra.mxu0 %v10730
    %11946 = vmatprep.subr.bf16.mxu0 %v10750
    %11947 = vmatpush1.bf16.msra.mxu0 %v10749
    %11948 = vmatprep.subr.bf16.mxu0 %v10769
    %11949 = vmatpush1.bf16.msra.mxu0 %v10768
    %11950 = vmatprep.subr.bf16.mxu0 %v10788
    %11951 = vmatpush1.bf16.msra.mxu0 %v10787
    %11952 = vmatprep.subr.bf16.mxu0 %v10807
    %11953 = vmatpush1.bf16.msra.mxu0 %v10806
    %11954 = vmatprep.subr.bf16.mxu0 %v10826
    %11955 = vmatpush1.bf16.msra.mxu0 %v10825
    %11956 = vmatprep.mubr.bf16.mxu0 %v7936
    %11957 = vmatmul.mubr.bf16.gmra.mrb[0].mxu0 %v7935
    %v11958 = vpop.f32.mrb[0].mxu0
    %v11959 = vadd.f32 %v8604, %v11958
    %v11960 = vpop.f32.mrb[0].mxu0
    %v11961 = vadd.f32 %v8608, %v11960
    %v11962 = vpop.f32.mrb[0].mxu0
    %v11963 = vadd.f32 %v8604, %v11962
    %v11964 = vpop.f32.mrb[0].mxu0
    %v11965 = vadd.f32 %v8608, %v11964
    %11966 = vdwg.mxu0
    %11967 = vmatprep.subr.bf16.mxu0 %v10845
    %11968 = vmatpush1.bf16.msra.mxu0 %v10844
    %11969 = vmatprep.subr.bf16.mxu0 %v10864
    %11970 = vmatpush1.bf16.msra.mxu0 %v10863
    %11971 = vmatprep.subr.bf16.mxu0 %v10883
    %11972 = vmatpush1.bf16.msra.mxu0 %v10882
    %11973 = vmatprep.subr.bf16.mxu0 %v10902
    %11974 = vmatpush1.bf16.msra.mxu0 %v10901
    %11975 = vmatprep.subr.bf16.mxu0 %v10921
    %11976 = vmatpush1.bf16.msra.mxu0 %v10920
    %11977 = vmatprep.subr.bf16.mxu0 %v10940
    %11978 = vmatpush1.bf16.msra.mxu0 %v10939
    %11979 = vmatprep.subr.bf16.mxu0 %v10959
    %11980 = vmatpush1.bf16.msra.mxu0 %v10958
    %11981 = vmatprep.subr.bf16.mxu0 %v10978
    %11982 = vmatpush1.bf16.msra.mxu0 %v10977
    %11983 = vmatprep.subr.bf16.mxu0 %v10997
    %11984 = vmatpush1.bf16.msra.mxu0 %v10996
    %11985 = vmatprep.subr.bf16.mxu0 %v11016
    %11986 = vmatpush1.bf16.msra.mxu0 %v11015
    %11987 = vmatprep.subr.bf16.mxu0 %v11035
    %11988 = vmatpush1.bf16.msra.mxu0 %v11034
    %11989 = vmatprep.subr.bf16.mxu0 %v11054
    %11990 = vmatpush1.bf16.msra.mxu0 %v11053
    %11991 = vmatprep.subr.bf16.mxu0 %v11073
    %11992 = vmatpush1.bf16.msra.mxu0 %v11072
    %11993 = vmatprep.subr.bf16.mxu0 %v11092
    %11994 = vmatpush1.bf16.msra.mxu0 %v11091
    %11995 = vmatprep.subr.bf16.mxu0 %v11111
    %11996 = vmatpush1.bf16.msra.mxu0 %v11110
    %11997 = vmatprep.subr.bf16.mxu0 %v11130
    %11998 = vmatpush1.bf16.msra.mxu0 %v11129
    %11999 = vmatprep.mubr.bf16.mxu0 %v7938
    %12000 = vmatmul.mubr.bf16.gmra.mrb[0].mxu0 %v7937
    %v12001 = vpop.f32.mrb[0].mxu0
    %v12002 = vadd.f32 %v11959, %v12001
    %v12003 = vpop.f32.mrb[0].mxu0
    %v12004 = vadd.f32 %v11961, %v12003
    %v12005 = vpop.f32.mrb[0].mxu0
    %v12006 = vadd.f32 %v11963, %v12005
    %v12007 = vpop.f32.mrb[0].mxu0
    %v12008 = vadd.f32 %v11965, %v12007
    %12009 = vdwg.mxu0
    %12010 = vmatprep.subr.bf16.mxu0 %v10543
    %12011 = vmatpush1.bf16.msra.mxu0 %v10542
    %12012 = vmatprep.subr.bf16.mxu0 %v10562
    %12013 = vmatpush1.bf16.msra.mxu0 %v10561
    %12014 = vmatprep.subr.bf16.mxu0 %v10581
    %12015 = vmatpush1.bf16.msra.mxu0 %v10580
    %12016 = vmatprep.subr.bf16.mxu0 %v10600
    %12017 = vmatpush1.bf16.msra.mxu0 %v10599
    %12018 = vmatprep.subr.bf16.mxu0 %v10619
    %12019 = vmatpush1.bf16.msra.mxu0 %v10618
    %12020 = vmatprep.subr.bf16.mxu0 %v10638
    %12021 = vmatpush1.bf16.msra.mxu0 %v10637
    %12022 = vmatprep.subr.bf16.mxu0 %v10657
    %12023 = vmatpush1.bf16.msra.mxu0 %v10656
    %12024 = vmatprep.subr.bf16.mxu0 %v10676
    %12025 = vmatpush1.bf16.msra.mxu0 %v10675
    %12026 = vmatprep.subr.bf16.mxu0 %v10695
    %12027 = vmatpush1.bf16.msra.mxu0 %v10694
    %12028 = vmatprep.subr.bf16.mxu0 %v10714
    %12029 = vmatpush1.bf16.msra.mxu0 %v10713
    %12030 = vmatprep.subr.bf16.mxu0 %v10733
    %12031 = vmatpush1.bf16.msra.mxu0 %v10732
    %12032 = vmatprep.subr.bf16.mxu0 %v10752
    %12033 = vmatpush1.bf16.msra.mxu0 %v10751
    %12034 = vmatprep.subr.bf16.mxu0 %v10771
    %12035 = vmatpush1.bf16.msra.mxu0 %v10770
    %12036 = vmatprep.subr.bf16.mxu0 %v10790
    %12037 = vmatpush1.bf16.msra.mxu0 %v10789
    %12038 = vmatprep.subr.bf16.mxu0 %v10809
    %12039 = vmatpush1.bf16.msra.mxu0 %v10808
    %12040 = vmatprep.subr.bf16.mxu0 %v10828
    %12041 = vmatpush1.bf16.msra.mxu0 %v10827
    %12042 = vmatprep.mubr.bf16.mxu0 %v7936
    %12043 = vmatmul.mubr.bf16.gmra.mrb[0].mxu0 %v7935
    %v12044 = vpop.f32.mrb[0].mxu0
    %v12045 = vadd.f32 %v8612, %v12044
    %v12046 = vpop.f32.mrb[0].mxu0
    %v12047 = vadd.f32 %v8616, %v12046
    %v12048 = vpop.f32.mrb[0].mxu0
    %v12049 = vadd.f32 %v8612, %v12048
    %v12050 = vpop.f32.mrb[0].mxu0
    %v12051 = vadd.f32 %v8616, %v12050
    %12052 = vdwg.mxu0
    %12053 = vmatprep.subr.bf16.mxu0 %v10847
    %12054 = vmatpush1.bf16.msra.mxu0 %v10846
    %12055 = vmatprep.subr.bf16.mxu0 %v10866
    %12056 = vmatpush1.bf16.msra.mxu0 %v10865
    %12057 = vmatprep.subr.bf16.mxu0 %v10885
    %12058 = vmatpush1.bf16.msra.mxu0 %v10884
    %12059 = vmatprep.subr.bf16.mxu0 %v10904
    %12060 = vmatpush1.bf16.msra.mxu0 %v10903
    %12061 = vmatprep.subr.bf16.mxu0 %v10923
    %12062 = vmatpush1.bf16.msra.mxu0 %v10922
    %12063 = vmatprep.subr.bf16.mxu0 %v10942
    %12064 = vmatpush1.bf16.msra.mxu0 %v10941
    %12065 = vmatprep.subr.bf16.mxu0 %v10961
    %12066 = vmatpush1.bf16.msra.mxu0 %v10960
    %12067 = vmatprep.subr.bf16.mxu0 %v10980
    %12068 = vmatpush1.bf16.msra.mxu0 %v10979
    %12069 = vmatprep.subr.bf16.mxu0 %v10999
    %12070 = vmatpush1.bf16.msra.mxu0 %v10998
    %12071 = vmatprep.subr.bf16.mxu0 %v11018
    %12072 = vmatpush1.bf16.msra.mxu0 %v11017
    %12073 = vmatprep.subr.bf16.mxu0 %v11037
    %12074 = vmatpush1.bf16.msra.mxu0 %v11036
    %12075 = vmatprep.subr.bf16.mxu0 %v11056
    %12076 = vmatpush1.bf16.msra.mxu0 %v11055
    %12077 = vmatprep.subr.bf16.mxu0 %v11075
    %12078 = vmatpush1.bf16.msra.mxu0 %v11074
    %12079 = vmatprep.subr.bf16.mxu0 %v11094
    %12080 = vmatpush1.bf16.msra.mxu0 %v11093
    %12081 = vmatprep.subr.bf16.mxu0 %v11113
    %12082 = vmatpush1.bf16.msra.mxu0 %v11112
    %12083 = vmatprep.subr.bf16.mxu0 %v11132
    %12084 = vmatpush1.bf16.msra.mxu0 %v11131
    %12085 = vmatprep.mubr.bf16.mxu0 %v7938
    %12086 = vmatmul.mubr.bf16.gmra.mrb[0].mxu0 %v7937
    %v12087 = vpop.f32.mrb[0].mxu0
    %v12088 = vadd.f32 %v12045, %v12087
    %v12089 = vpop.f32.mrb[0].mxu0
    %v12090 = vadd.f32 %v12047, %v12089
    %v12091 = vpop.f32.mrb[0].mxu0
    %v12092 = vadd.f32 %v12049, %v12091
    %v12093 = vpop.f32.mrb[0].mxu0
    %v12094 = vadd.f32 %v12051, %v12093
    %12095 = vdwg.mxu0
    %12096 = vmatprep.subr.bf16.mxu0 %v10545
    %12097 = vmatpush1.bf16.msra.mxu0 %v10544
    %12098 = vmatprep.subr.bf16.mxu0 %v10564
    %12099 = vmatpush1.bf16.msra.mxu0 %v10563
    %12100 = vmatprep.subr.bf16.mxu0 %v10583
    %12101 = vmatpush1.bf16.msra.mxu0 %v10582
    %12102 = vmatprep.subr.bf16.mxu0 %v10602
    %12103 = vmatpush1.bf16.msra.mxu0 %v10601
    %12104 = vmatprep.subr.bf16.mxu0 %v10621
    %12105 = vmatpush1.bf16.msra.mxu0 %v10620
    %12106 = vmatprep.subr.bf16.mxu0 %v10640
    %12107 = vmatpush1.bf16.msra.mxu0 %v10639
    %12108 = vmatprep.subr.bf16.mxu0 %v10659
    %12109 = vmatpush1.bf16.msra.mxu0 %v10658
    %12110 = vmatprep.subr.bf16.mxu0 %v10678
    %12111 = vmatpush1.bf16.msra.mxu0 %v10677
    %12112 = vmatprep.subr.bf16.mxu0 %v10697
    %12113 = vmatpush1.bf16.msra.mxu0 %v10696
    %12114 = vmatprep.subr.bf16.mxu0 %v10716
    %12115 = vmatpush1.bf16.msra.mxu0 %v10715
    %12116 = vmatprep.subr.bf16.mxu0 %v10735
    %12117 = vmatpush1.bf16.msra.mxu0 %v10734
    %12118 = vmatprep.subr.bf16.mxu0 %v10754
    %12119 = vmatpush1.bf16.msra.mxu0 %v10753
    %12120 = vmatprep.subr.bf16.mxu0 %v10773
    %12121 = vmatpush1.bf16.msra.mxu0 %v10772
    %12122 = vmatprep.subr.bf16.mxu0 %v10792
    %12123 = vmatpush1.bf16.msra.mxu0 %v10791
    %12124 = vmatprep.subr.bf16.mxu0 %v10811
    %12125 = vmatpush1.bf16.msra.mxu0 %v10810
    %12126 = vmatprep.subr.bf16.mxu0 %v10830
    %12127 = vmatpush1.bf16.msra.mxu0 %v10829
    %12128 = vmatprep.mubr.bf16.mxu0 %v7936
    %12129 = vmatmul.mubr.bf16.gmra.mrb[0].mxu0 %v7935
    %v12130 = vpop.f32.mrb[0].mxu0
    %v12131 = vadd.f32 %v8620, %v12130
    %v12132 = vpop.f32.mrb[0].mxu0
    %v12133 = vadd.f32 %v8624, %v12132
    %v12134 = vpop.f32.mrb[0].mxu0
    %v12135 = vadd.f32 %v8620, %v12134
    %v12136 = vpop.f32.mrb[0].mxu0
    %v12137 = vadd.f32 %v8624, %v12136
    %12138 = vdwg.mxu0
    %12139 = vmatprep.subr.bf16.mxu0 %v10849
    %12140 = vmatpush1.bf16.msra.mxu0 %v10848
    %12141 = vmatprep.subr.bf16.mxu0 %v10868
    %12142 = vmatpush1.bf16.msra.mxu0 %v10867
    %12143 = vmatprep.subr.bf16.mxu0 %v10887
    %12144 = vmatpush1.bf16.msra.mxu0 %v10886
    %12145 = vmatprep.subr.bf16.mxu0 %v10906
    %12146 = vmatpush1.bf16.msra.mxu0 %v10905
    %12147 = vmatprep.subr.bf16.mxu0 %v10925
    %12148 = vmatpush1.bf16.msra.mxu0 %v10924
    %12149 = vmatprep.subr.bf16.mxu0 %v10944
    %12150 = vmatpush1.bf16.msra.mxu0 %v10943
    %12151 = vmatprep.subr.bf16.mxu0 %v10963
    %12152 = vmatpush1.bf16.msra.mxu0 %v10962
    %12153 = vmatprep.subr.bf16.mxu0 %v10982
    %12154 = vmatpush1.bf16.msra.mxu0 %v10981
    %12155 = vmatprep.subr.bf16.mxu0 %v11001
    %12156 = vmatpush1.bf16.msra.mxu0 %v11000
    %12157 = vmatprep.subr.bf16.mxu0 %v11020
    %12158 = vmatpush1.bf16.msra.mxu0 %v11019
    %12159 = vmatprep.subr.bf16.mxu0 %v11039
    %12160 = vmatpush1.bf16.msra.mxu0 %v11038
    %12161 = vmatprep.subr.bf16.mxu0 %v11058
    %12162 = vmatpush1.bf16.msra.mxu0 %v11057
    %12163 = vmatprep.subr.bf16.mxu0 %v11077
    %12164 = vmatpush1.bf16.msra.mxu0 %v11076
    %12165 = vmatprep.subr.bf16.mxu0 %v11096
    %12166 = vmatpush1.bf16.msra.mxu0 %v11095
    %12167 = vmatprep.subr.bf16.mxu0 %v11115
    %12168 = vmatpush1.bf16.msra.mxu0 %v11114
    %12169 = vmatprep.subr.bf16.mxu0 %v11134
    %12170 = vmatpush1.bf16.msra.mxu0 %v11133
    %12171 = vmatprep.mubr.bf16.mxu0 %v7938
    %12172 = vmatmul.mubr.bf16.gmra.mrb[0].mxu0 %v7937
    %v12173 = vpop.f32.mrb[0].mxu0
    %v12174 = vadd.f32 %v12131, %v12173
    %v12175 = vpop.f32.mrb[0].mxu0
    %v12176 = vadd.f32 %v12133, %v12175
    %v12177 = vpop.f32.mrb[0].mxu0
    %v12178 = vadd.f32 %v12135, %v12177
    %v12179 = vpop.f32.mrb[0].mxu0
    %v12180 = vadd.f32 %v12137, %v12179
    %12181 = vdwg.mxu0
    %12182 = vmatprep.subr.bf16.mxu0 %v10547
    %12183 = vmatpush1.bf16.msra.mxu0 %v10546
    %12184 = vmatprep.subr.bf16.mxu0 %v10566
    %12185 = vmatpush1.bf16.msra.mxu0 %v10565
    %12186 = vmatprep.subr.bf16.mxu0 %v10585
    %12187 = vmatpush1.bf16.msra.mxu0 %v10584
    %12188 = vmatprep.subr.bf16.mxu0 %v10604
    %12189 = vmatpush1.bf16.msra.mxu0 %v10603
    %12190 = vmatprep.subr.bf16.mxu0 %v10623
    %12191 = vmatpush1.bf16.msra.mxu0 %v10622
    %12192 = vmatprep.subr.bf16.mxu0 %v10642
    %12193 = vmatpush1.bf16.msra.mxu0 %v10641
    %12194 = vmatprep.subr.bf16.mxu0 %v10661
    %12195 = vmatpush1.bf16.msra.mxu0 %v10660
    %12196 = vmatprep.subr.bf16.mxu0 %v10680
    %12197 = vmatpush1.bf16.msra.mxu0 %v10679
    %12198 = vmatprep.subr.bf16.mxu0 %v10699
    %12199 = vmatpush1.bf16.msra.mxu0 %v10698
    %12200 = vmatprep.subr.bf16.mxu0 %v10718
    %12201 = vmatpush1.bf16.msra.mxu0 %v10717
    %12202 = vmatprep.subr.bf16.mxu0 %v10737
    %12203 = vmatpush1.bf16.msra.mxu0 %v10736
    %12204 = vmatprep.subr.bf16.mxu0 %v10756
    %12205 = vmatpush1.bf16.msra.mxu0 %v10755
    %12206 = vmatprep.subr.bf16.mxu0 %v10775
    %12207 = vmatpush1.bf16.msra.mxu0 %v10774
    %12208 = vmatprep.subr.bf16.mxu0 %v10794
    %12209 = vmatpush1.bf16.msra.mxu0 %v10793
    %12210 = vmatprep.subr.bf16.mxu0 %v10813
    %12211 = vmatpush1.bf16.msra.mxu0 %v10812
    %12212 = vmatprep.subr.bf16.mxu0 %v10832
    %12213 = vmatpush1.bf16.msra.mxu0 %v10831
    %12214 = vmatprep.mubr.bf16.mxu0 %v7936
    %12215 = vmatmul.mubr.bf16.gmra.mrb[0].mxu0 %v7935
    %v12216 = vpop.f32.mrb[0].mxu0
    %v12217 = vadd.f32 %v8628, %v12216
    %v12218 = vpop.f32.mrb[0].mxu0
    %v12219 = vadd.f32 %v8632, %v12218
    %v12220 = vpop.f32.mrb[0].mxu0
    %v12221 = vadd.f32 %v8628, %v12220
    %v12222 = vpop.f32.mrb[0].mxu0
    %v12223 = vadd.f32 %v8632, %v12222
    %12224 = vdwg.mxu0
    %12225 = vmatprep.subr.bf16.mxu0 %v10851
    %12226 = vmatpush1.bf16.msra.mxu0 %v10850
    %12227 = vmatprep.subr.bf16.mxu0 %v10870
    %12228 = vmatpush1.bf16.msra.mxu0 %v10869
    %12229 = vmatprep.subr.bf16.mxu0 %v10889
    %12230 = vmatpush1.bf16.msra.mxu0 %v10888
    %12231 = vmatprep.subr.bf16.mxu0 %v10908
    %12232 = vmatpush1.bf16.msra.mxu0 %v10907
    %12233 = vmatprep.subr.bf16.mxu0 %v10927
    %12234 = vmatpush1.bf16.msra.mxu0 %v10926
    %12235 = vmatprep.subr.bf16.mxu0 %v10946
    %12236 = vmatpush1.bf16.msra.mxu0 %v10945
    %12237 = vmatprep.subr.bf16.mxu0 %v10965
    %12238 = vmatpush1.bf16.msra.mxu0 %v10964
    %12239 = vmatprep.subr.bf16.mxu0 %v10984
    %12240 = vmatpush1.bf16.msra.mxu0 %v10983
    %12241 = vmatprep.subr.bf16.mxu0 %v11003
    %12242 = vmatpush1.bf16.msra.mxu0 %v11002
    %12243 = vmatprep.subr.bf16.mxu0 %v11022
    %12244 = vmatpush1.bf16.msra.mxu0 %v11021
    %12245 = vmatprep.subr.bf16.mxu0 %v11041
    %12246 = vmatpush1.bf16.msra.mxu0 %v11040
    %12247 = vmatprep.subr.bf16.mxu0 %v11060
    %12248 = vmatpush1.bf16.msra.mxu0 %v11059
    %12249 = vmatprep.subr.bf16.mxu0 %v11079
    %12250 = vmatpush1.bf16.msra.mxu0 %v11078
    %12251 = vmatprep.subr.bf16.mxu0 %v11098
    %12252 = vmatpush1.bf16.msra.mxu0 %v11097
    %12253 = vmatprep.subr.bf16.mxu0 %v11117
    %12254 = vmatpush1.bf16.msra.mxu0 %v11116
    %12255 = vmatprep.subr.bf16.mxu0 %v11136
    %12256 = vmatpush1.bf16.msra.mxu0 %v11135
    %12257 = vmatprep.mubr.bf16.mxu0 %v7938
    %12258 = vmatmul.mubr.bf16.gmra.mrb[0].mxu0 %v7937
    %v12259 = vpop.f32.mrb[0].mxu0
    %v12260 = vadd.f32 %v12217, %v12259
    %v12261 = vpop.f32.mrb[0].mxu0
    %v12262 = vadd.f32 %v12219, %v12261
    %v12263 = vpop.f32.mrb[0].mxu0
    %v12264 = vadd.f32 %v12221, %v12263
    %v12265 = vpop.f32.mrb[0].mxu0
    %v12266 = vadd.f32 %v12223, %v12265
    %12267 = vdwg.mxu0
    %12268 = vmatprep.subr.bf16.mxu0 %v10549
    %12269 = vmatpush1.bf16.msra.mxu0 %v10548
    %12270 = vmatprep.subr.bf16.mxu0 %v10568
    %12271 = vmatpush1.bf16.msra.mxu0 %v10567
    %12272 = vmatprep.subr.bf16.mxu0 %v10587
    %12273 = vmatpush1.bf16.msra.mxu0 %v10586
    %12274 = vmatprep.subr.bf16.mxu0 %v10606
    %12275 = vmatpush1.bf16.msra.mxu0 %v10605
    %12276 = vmatprep.subr.bf16.mxu0 %v10625
    %12277 = vmatpush1.bf16.msra.mxu0 %v10624
    %12278 = vmatprep.subr.bf16.mxu0 %v10644
    %12279 = vmatpush1.bf16.msra.mxu0 %v10643
    %12280 = vmatprep.subr.bf16.mxu0 %v10663
    %12281 = vmatpush1.bf16.msra.mxu0 %v10662
    %12282 = vmatprep.subr.bf16.mxu0 %v10682
    %12283 = vmatpush1.bf16.msra.mxu0 %v10681
    %12284 = vmatprep.subr.bf16.mxu0 %v10701
    %12285 = vmatpush1.bf16.msra.mxu0 %v10700
    %12286 = vmatprep.subr.bf16.mxu0 %v10720
    %12287 = vmatpush1.bf16.msra.mxu0 %v10719
    %12288 = vmatprep.subr.bf16.mxu0 %v10739
    %12289 = vmatpush1.bf16.msra.mxu0 %v10738
    %12290 = vmatprep.subr.bf16.mxu0 %v10758
    %12291 = vmatpush1.bf16.msra.mxu0 %v10757
    %12292 = vmatprep.subr.bf16.mxu0 %v10777
    %12293 = vmatpush1.bf16.msra.mxu0 %v10776
    %12294 = vmatprep.subr.bf16.mxu0 %v10796
    %12295 = vmatpush1.bf16.msra.mxu0 %v10795
    %12296 = vmatprep.subr.bf16.mxu0 %v10815
    %12297 = vmatpush1.bf16.msra.mxu0 %v10814
    %12298 = vmatprep.subr.bf16.mxu0 %v10834
    %12299 = vmatpush1.bf16.msra.mxu0 %v10833
    %12300 = vmatprep.mubr.bf16.mxu0 %v7936
    %12301 = vmatmul.mubr.bf16.gmra.mrb[0].mxu0 %v7935
    %v12302 = vpop.f32.mrb[0].mxu0
    %v12303 = vadd.f32 %v8636, %v12302
    %v12304 = vpop.f32.mrb[0].mxu0
    %v12305 = vadd.f32 %v8640, %v12304
    %v12306 = vpop.f32.mrb[0].mxu0
    %v12307 = vadd.f32 %v8636, %v12306
    %v12308 = vpop.f32.mrb[0].mxu0
    %v12309 = vadd.f32 %v8640, %v12308
    %12310 = vdwg.mxu0
    %12311 = vmatprep.subr.bf16.mxu0 %v10853
    %12312 = vmatpush1.bf16.msra.mxu0 %v10852
    %12313 = vmatprep.subr.bf16.mxu0 %v10872
    %12314 = vmatpush1.bf16.msra.mxu0 %v10871
    %12315 = vmatprep.subr.bf16.mxu0 %v10891
    %12316 = vmatpush1.bf16.msra.mxu0 %v10890
    %12317 = vmatprep.subr.bf16.mxu0 %v10910
    %12318 = vmatpush1.bf16.msra.mxu0 %v10909
    %12319 = vmatprep.subr.bf16.mxu0 %v10929
    %12320 = vmatpush1.bf16.msra.mxu0 %v10928
    %12321 = vmatprep.subr.bf16.mxu0 %v10948
    %12322 = vmatpush1.bf16.msra.mxu0 %v10947
    %12323 = vmatprep.subr.bf16.mxu0 %v10967
    %12324 = vmatpush1.bf16.msra.mxu0 %v10966
    %12325 = vmatprep.subr.bf16.mxu0 %v10986
    %12326 = vmatpush1.bf16.msra.mxu0 %v10985
    %12327 = vmatprep.subr.bf16.mxu0 %v11005
    %12328 = vmatpush1.bf16.msra.mxu0 %v11004
    %12329 = vmatprep.subr.bf16.mxu0 %v11024
    %12330 = vmatpush1.bf16.msra.mxu0 %v11023
    %12331 = vmatprep.subr.bf16.mxu0 %v11043
    %12332 = vmatpush1.bf16.msra.mxu0 %v11042
    %12333 = vmatprep.subr.bf16.mxu0 %v11062
    %12334 = vmatpush1.bf16.msra.mxu0 %v11061
    %12335 = vmatprep.subr.bf16.mxu0 %v11081
    %12336 = vmatpush1.bf16.msra.mxu0 %v11080
    %12337 = vmatprep.subr.bf16.mxu0 %v11100
    %12338 = vmatpush1.bf16.msra.mxu0 %v11099
    %12339 = vmatprep.subr.bf16.mxu0 %v11119
    %12340 = vmatpush1.bf16.msra.mxu0 %v11118
    %12341 = vmatprep.subr.bf16.mxu0 %v11138
    %12342 = vmatpush1.bf16.msra.mxu0 %v11137
    %12343 = vmatprep.mubr.bf16.mxu0 %v7938
    %12344 = vmatmul.mubr.bf16.gmra.mrb[0].mxu0 %v7937
    %v12345 = vpop.f32.mrb[0].mxu0
    %v12346 = vadd.f32 %v12303, %v12345
    %v12347 = vpop.f32.mrb[0].mxu0
    %v12348 = vadd.f32 %v12305, %v12347
    %v12349 = vpop.f32.mrb[0].mxu0
    %v12350 = vadd.f32 %v12307, %v12349
    %v12351 = vpop.f32.mrb[0].mxu0
    %v12352 = vadd.f32 %v12309, %v12351
    %12353 = vdwg.mxu0
    %12354 = vmatprep.subr.bf16.mxu0 %v10551
    %12355 = vmatpush1.bf16.msra.mxu0 %v10550
    %12356 = vmatprep.subr.bf16.mxu0 %v10570
    %12357 = vmatpush1.bf16.msra.mxu0 %v10569
    %12358 = vmatprep.subr.bf16.mxu0 %v10589
    %12359 = vmatpush1.bf16.msra.mxu0 %v10588
    %12360 = vmatprep.subr.bf16.mxu0 %v10608
    %12361 = vmatpush1.bf16.msra.mxu0 %v10607
    %12362 = vmatprep.subr.bf16.mxu0 %v10627
    %12363 = vmatpush1.bf16.msra.mxu0 %v10626
    %12364 = vmatprep.subr.bf16.mxu0 %v10646
    %12365 = vmatpush1.bf16.msra.mxu0 %v10645
    %12366 = vmatprep.subr.bf16.mxu0 %v10665
    %12367 = vmatpush1.bf16.msra.mxu0 %v10664
    %12368 = vmatprep.subr.bf16.mxu0 %v10684
    %12369 = vmatpush1.bf16.msra.mxu0 %v10683
    %12370 = vmatprep.subr.bf16.mxu0 %v10703
    %12371 = vmatpush1.bf16.msra.mxu0 %v10702
    %12372 = vmatprep.subr.bf16.mxu0 %v10722
    %12373 = vmatpush1.bf16.msra.mxu0 %v10721
    %12374 = vmatprep.subr.bf16.mxu0 %v10741
    %12375 = vmatpush1.bf16.msra.mxu0 %v10740
    %12376 = vmatprep.subr.bf16.mxu0 %v10760
    %12377 = vmatpush1.bf16.msra.mxu0 %v10759
    %12378 = vmatprep.subr.bf16.mxu0 %v10779
    %12379 = vmatpush1.bf16.msra.mxu0 %v10778
    %12380 = vmatprep.subr.bf16.mxu0 %v10798
    %12381 = vmatpush1.bf16.msra.mxu0 %v10797
    %12382 = vmatprep.subr.bf16.mxu0 %v10817
    %12383 = vmatpush1.bf16.msra.mxu0 %v10816
    %12384 = vmatprep.subr.bf16.mxu0 %v10836
    %12385 = vmatpush1.bf16.msra.mxu0 %v10835
    %12386 = vmatprep.mubr.bf16.mxu0 %v7936
    %12387 = vmatmul.mubr.bf16.gmra.mrb[0].mxu0 %v7935
    %v12388 = vpop.f32.mrb[0].mxu0
    %v12389 = vadd.f32 %v8644, %v12388
    %v12390 = vpop.f32.mrb[0].mxu0
    %v12391 = vadd.f32 %v8648, %v12390
    %v12392 = vpop.f32.mrb[0].mxu0
    %v12393 = vadd.f32 %v8644, %v12392
    %v12394 = vpop.f32.mrb[0].mxu0
    %v12395 = vadd.f32 %v8648, %v12394
    %12396 = vdwg.mxu0
    %12397 = vmatprep.subr.bf16.mxu0 %v10855
    %12398 = vmatpush1.bf16.msra.mxu0 %v10854
    %12399 = vmatprep.subr.bf16.mxu0 %v10874
    %12400 = vmatpush1.bf16.msra.mxu0 %v10873
    %12401 = vmatprep.subr.bf16.mxu0 %v10893
    %12402 = vmatpush1.bf16.msra.mxu0 %v10892
    %12403 = vmatprep.subr.bf16.mxu0 %v10912
    %12404 = vmatpush1.bf16.msra.mxu0 %v10911
    %12405 = vmatprep.subr.bf16.mxu0 %v10931
    %12406 = vmatpush1.bf16.msra.mxu0 %v10930
    %12407 = vmatprep.subr.bf16.mxu0 %v10950
    %12408 = vmatpush1.bf16.msra.mxu0 %v10949
    %12409 = vmatprep.subr.bf16.mxu0 %v10969
    %12410 = vmatpush1.bf16.msra.mxu0 %v10968
    %12411 = vmatprep.subr.bf16.mxu0 %v10988
    %12412 = vmatpush1.bf16.msra.mxu0 %v10987
    %12413 = vmatprep.subr.bf16.mxu0 %v11007
    %12414 = vmatpush1.bf16.msra.mxu0 %v11006
    %12415 = vmatprep.subr.bf16.mxu0 %v11026
    %12416 = vmatpush1.bf16.msra.mxu0 %v11025
    %12417 = vmatprep.subr.bf16.mxu0 %v11045
    %12418 = vmatpush1.bf16.msra.mxu0 %v11044
    %12419 = vmatprep.subr.bf16.mxu0 %v11064
    %12420 = vmatpush1.bf16.msra.mxu0 %v11063
    %12421 = vmatprep.subr.bf16.mxu0 %v11083
    %12422 = vmatpush1.bf16.msra.mxu0 %v11082
    %12423 = vmatprep.subr.bf16.mxu0 %v11102
    %12424 = vmatpush1.bf16.msra.mxu0 %v11101
    %12425 = vmatprep.subr.bf16.mxu0 %v11121
    %12426 = vmatpush1.bf16.msra.mxu0 %v11120
    %12427 = vmatprep.subr.bf16.mxu0 %v11140
    %12428 = vmatpush1.bf16.msra.mxu0 %v11139
    %12429 = vmatprep.mubr.bf16.mxu0 %v7938
    %12430 = vmatmul.mubr.bf16.gmra.mrb[0].mxu0 %v7937
    %v12431 = vpop.f32.mrb[0].mxu0
    %v12432 = vadd.f32 %v12389, %v12431
    %v12433 = vpop.f32.mrb[0].mxu0
    %v12434 = vadd.f32 %v12391, %v12433
    %v12435 = vpop.f32.mrb[0].mxu0
    %v12436 = vadd.f32 %v12393, %v12435
    %v12437 = vpop.f32.mrb[0].mxu0
    %v12438 = vadd.f32 %v12395, %v12437
    %12439 = vdwg.mxu0
    %12440 = vmatprep.subr.bf16.mxu0 %v10553
    %12441 = vmatpush1.bf16.msra.mxu0 %v10552
    %12442 = vmatprep.subr.bf16.mxu0 %v10572
    %12443 = vmatpush1.bf16.msra.mxu0 %v10571
    %12444 = vmatprep.subr.bf16.mxu0 %v10591
    %12445 = vmatpush1.bf16.msra.mxu0 %v10590
    %12446 = vmatprep.subr.bf16.mxu0 %v10610
    %12447 = vmatpush1.bf16.msra.mxu0 %v10609
    %12448 = vmatprep.subr.bf16.mxu0 %v10629
    %12449 = vmatpush1.bf16.msra.mxu0 %v10628
    %12450 = vmatprep.subr.bf16.mxu0 %v10648
    %12451 = vmatpush1.bf16.msra.mxu0 %v10647
    %12452 = vmatprep.subr.bf16.mxu0 %v10667
    %12453 = vmatpush1.bf16.msra.mxu0 %v10666
    %12454 = vmatprep.subr.bf16.mxu0 %v10686
    %12455 = vmatpush1.bf16.msra.mxu0 %v10685
    %12456 = vmatprep.subr.bf16.mxu0 %v10705
    %12457 = vmatpush1.bf16.msra.mxu0 %v10704
    %12458 = vmatprep.subr.bf16.mxu0 %v10724
    %12459 = vmatpush1.bf16.msra.mxu0 %v10723
    %12460 = vmatprep.subr.bf16.mxu0 %v10743
    %12461 = vmatpush1.bf16.msra.mxu0 %v10742
    %12462 = vmatprep.subr.bf16.mxu0 %v10762
    %12463 = vmatpush1.bf16.msra.mxu0 %v10761
    %12464 = vmatprep.subr.bf16.mxu0 %v10781
    %12465 = vmatpush1.bf16.msra.mxu0 %v10780
    %12466 = vmatprep.subr.bf16.mxu0 %v10800
    %12467 = vmatpush1.bf16.msra.mxu0 %v10799
    %12468 = vmatprep.subr.bf16.mxu0 %v10819
    %12469 = vmatpush1.bf16.msra.mxu0 %v10818
    %12470 = vmatprep.subr.bf16.mxu0 %v10838
    %12471 = vmatpush1.bf16.msra.mxu0 %v10837
    %12472 = vmatprep.mubr.bf16.mxu0 %v7936
    %12473 = vmatmul.mubr.bf16.gmra.mrb[0].mxu0 %v7935
    %v12474 = vpop.f32.mrb[0].mxu0
    %v12475 = vadd.f32 %v8652, %v12474
    %v12476 = vpop.f32.mrb[0].mxu0
    %v12477 = vadd.f32 %v8656, %v12476
    %v12478 = vpop.f32.mrb[0].mxu0
    %v12479 = vadd.f32 %v8652, %v12478
    %v12480 = vpop.f32.mrb[0].mxu0
    %v12481 = vadd.f32 %v8656, %v12480
    %12482 = vdwg.mxu0
    %12483 = vmatprep.subr.bf16.mxu0 %v10857
    %12484 = vmatpush1.bf16.msra.mxu0 %v10856
    %12485 = vmatprep.subr.bf16.mxu0 %v10876
    %12486 = vmatpush1.bf16.msra.mxu0 %v10875
    %12487 = vmatprep.subr.bf16.mxu0 %v10895
    %12488 = vmatpush1.bf16.msra.mxu0 %v10894
    %12489 = vmatprep.subr.bf16.mxu0 %v10914
    %12490 = vmatpush1.bf16.msra.mxu0 %v10913
    %12491 = vmatprep.subr.bf16.mxu0 %v10933
    %12492 = vmatpush1.bf16.msra.mxu0 %v10932
    %12493 = vmatprep.subr.bf16.mxu0 %v10952
    %12494 = vmatpush1.bf16.msra.mxu0 %v10951
    %12495 = vmatprep.subr.bf16.mxu0 %v10971
    %12496 = vmatpush1.bf16.msra.mxu0 %v10970
    %12497 = vmatprep.subr.bf16.mxu0 %v10990
    %12498 = vmatpush1.bf16.msra.mxu0 %v10989
    %12499 = vmatprep.subr.bf16.mxu0 %v11009
    %12500 = vmatpush1.bf16.msra.mxu0 %v11008
    %12501 = vmatprep.subr.bf16.mxu0 %v11028
    %12502 = vmatpush1.bf16.msra.mxu0 %v11027
    %12503 = vmatprep.subr.bf16.mxu0 %v11047
    %12504 = vmatpush1.bf16.msra.mxu0 %v11046
    %12505 = vmatprep.subr.bf16.mxu0 %v11066
    %12506 = vmatpush1.bf16.msra.mxu0 %v11065
    %12507 = vmatprep.subr.bf16.mxu0 %v11085
    %12508 = vmatpush1.bf16.msra.mxu0 %v11084
    %12509 = vmatprep.subr.bf16.mxu0 %v11104
    %12510 = vmatpush1.bf16.msra.mxu0 %v11103
    %12511 = vmatprep.subr.bf16.mxu0 %v11123
    %12512 = vmatpush1.bf16.msra.mxu0 %v11122
    %12513 = vmatprep.subr.bf16.mxu0 %v11142
    %12514 = vmatpush1.bf16.msra.mxu0 %v11141
    %12515 = vmatprep.mubr.bf16.mxu0 %v7938
    %12516 = vmatmul.mubr.bf16.gmra.mrb[0].mxu0 %v7937
    %v12517 = vpop.f32.mrb[0].mxu0
    %v12518 = vadd.f32 %v12475, %v12517
    %v12519 = vpop.f32.mrb[0].mxu0
    %v12520 = vadd.f32 %v12477, %v12519
    %v12521 = vpop.f32.mrb[0].mxu0
    %v12522 = vadd.f32 %v12479, %v12521
    %v12523 = vpop.f32.mrb[0].mxu0
    %v12524 = vadd.f32 %v12481, %v12523
    %12525 = vdwg.mxu0
    %12526 = vmatprep.subr.bf16.mxu0 0
    %12527 = vmatpush1.bf16.msra.mxu0 %v10554
    %12528 = vmatprep.subr.bf16.mxu0 0
    %12529 = vmatpush1.bf16.msra.mxu0 %v10573
    %12530 = vmatprep.subr.bf16.mxu0 0
    %12531 = vmatpush1.bf16.msra.mxu0 %v10592
    %12532 = vmatprep.subr.bf16.mxu0 0
    %12533 = vmatpush1.bf16.msra.mxu0 %v10611
    %12534 = vmatprep.subr.bf16.mxu0 0
    %12535 = vmatpush1.bf16.msra.mxu0 %v10630
    %12536 = vmatprep.subr.bf16.mxu0 0
    %12537 = vmatpush1.bf16.msra.mxu0 %v10649
    %12538 = vmatprep.subr.bf16.mxu0 0
    %12539 = vmatpush1.bf16.msra.mxu0 %v10668
    %12540 = vmatprep.subr.bf16.mxu0 0
    %12541 = vmatpush1.bf16.msra.mxu0 %v10687
    %12542 = vmatprep.subr.bf16.mxu0 0
    %12543 = vmatpush1.bf16.msra.mxu0 %v10706
    %12544 = vmatprep.subr.bf16.mxu0 0
    %12545 = vmatpush1.bf16.msra.mxu0 %v10725
    %12546 = vmatprep.subr.bf16.mxu0 0
    %12547 = vmatpush1.bf16.msra.mxu0 %v10744
    %12548 = vmatprep.subr.bf16.mxu0 0
    %12549 = vmatpush1.bf16.msra.mxu0 %v10763
    %12550 = vmatprep.subr.bf16.mxu0 0
    %12551 = vmatpush1.bf16.msra.mxu0 %v10782
    %12552 = vmatprep.subr.bf16.mxu0 0
    %12553 = vmatpush1.bf16.msra.mxu0 %v10801
    %12554 = vmatprep.subr.bf16.mxu0 0
    %12555 = vmatpush1.bf16.msra.mxu0 %v10820
    %12556 = vmatprep.subr.bf16.mxu0 0
    %12557 = vmatpush1.bf16.msra.mxu0 %v10839
    %12558 = vmatprep.mubr.bf16.mxu0 %v7936
    %12559 = vmatmul.mubr.bf16.gmra.mrb[0].mxu0 %v7935
    %v12560 = vpop.f32.mrb[0].mxu0
    %v12561 = vadd.f32 %v8660, %v12560
    %v12562 = vpop.f32.mrb[0].mxu0
    %v12563 = vpop.f32.mrb[0].mxu0
    %v12564 = vadd.f32 %v8660, %v12563
    %v12565 = vpop.f32.mrb[0].mxu0
    %12566 = vdwg.mxu0
    %12567 = vmatprep.subr.bf16.mxu0 0
    %12568 = vmatpush1.bf16.msra.mxu0 %v10858
    %12569 = vmatprep.subr.bf16.mxu0 0
    %12570 = vmatpush1.bf16.msra.mxu0 %v10877
    %12571 = vmatprep.subr.bf16.mxu0 0
    %12572 = vmatpush1.bf16.msra.mxu0 %v10896
    %12573 = vmatprep.subr.bf16.mxu0 0
    %12574 = vmatpush1.bf16.msra.mxu0 %v10915
    %12575 = vmatprep.subr.bf16.mxu0 0
    %12576 = vmatpush1.bf16.msra.mxu0 %v10934
    %12577 = vmatprep.subr.bf16.mxu0 0
    %12578 = vmatpush1.bf16.msra.mxu0 %v10953
    %12579 = vmatprep.subr.bf16.mxu0 0
    %12580 = vmatpush1.bf16.msra.mxu0 %v10972
    %12581 = vmatprep.subr.bf16.mxu0 0
    %12582 = vmatpush1.bf16.msra.mxu0 %v10991
    %12583 = vmatprep.subr.bf16.mxu0 0
    %12584 = vmatpush1.bf16.msra.mxu0 %v11010
    %12585 = vmatprep.subr.bf16.mxu0 0
    %12586 = vmatpush1.bf16.msra.mxu0 %v11029
    %12587 = vmatprep.subr.bf16.mxu0 0
    %12588 = vmatpush1.bf16.msra.mxu0 %v11048
    %12589 = vmatprep.subr.bf16.mxu0 0
    %12590 = vmatpush1.bf16.msra.mxu0 %v11067
    %12591 = vmatprep.subr.bf16.mxu0 0
    %12592 = vmatpush1.bf16.msra.mxu0 %v11086
    %12593 = vmatprep.subr.bf16.mxu0 0
    %12594 = vmatpush1.bf16.msra.mxu0 %v11105
    %12595 = vmatprep.subr.bf16.mxu0 0
    %12596 = vmatpush1.bf16.msra.mxu0 %v11124
    %12597 = vmatprep.subr.bf16.mxu0 0
    %12598 = vmatpush1.bf16.msra.mxu0 %v11143
    %12599 = vmatprep.mubr.bf16.mxu0 %v7938
    %12600 = vmatmul.mubr.bf16.gmra.mrb[0].mxu0 %v7937
    %v12601 = vpop.f32.mrb[0].mxu0
    %v12602 = vadd.f32 %v12561, %v12601
    %v12603 = vpop.f32.mrb[0].mxu0
    %v12604 = vpop.f32.mrb[0].mxu0
    %v12605 = vadd.f32 %v12564, %v12604
    %v12606 = vpop.f32.mrb[0].mxu0
    %12607 = vdwg.mxu0
    %v12608 = vxor.u32 %v11830, 2147483648
    %v12609 = vxor.u32 %v11832, 2147483648
    %v12610 = vxor.u32 %v11916, 2147483648
    %v12611 = vxor.u32 %v11918, 2147483648
    %v12612 = vxor.u32 %v12002, 2147483648
    %v12613 = vxor.u32 %v12004, 2147483648
    %v12614 = vxor.u32 %v12088, 2147483648
    %v12615 = vxor.u32 %v12090, 2147483648
    %v12616 = vxor.u32 %v12174, 2147483648
    %v12617 = vxor.u32 %v12176, 2147483648
    %v12618 = vxor.u32 %v12260, 2147483648
    %v12619 = vxor.u32 %v12262, 2147483648
    %v12620 = vxor.u32 %v12346, 2147483648
    %v12621 = vxor.u32 %v12348, 2147483648
    %v12622 = vxor.u32 %v12432, 2147483648
    %v12623 = vxor.u32 %v12434, 2147483648
    %v12624 = vxor.u32 %v12518, 2147483648
    %v12625 = vxor.u32 %v12520, 2147483648
    %v12626 = vxor.u32 %v12602, 2147483648
    %v12627 = vxor.u32 %v11834, 2147483648
    %v12628 = vxor.u32 %v11836, 2147483648
    %v12629 = vxor.u32 %v11920, 2147483648
    %v12630 = vxor.u32 %v11922, 2147483648
    %v12631 = vxor.u32 %v12006, 2147483648
    %v12632 = vxor.u32 %v12008, 2147483648
    %v12633 = vxor.u32 %v12092, 2147483648
    %v12634 = vxor.u32 %v12094, 2147483648
    %v12635 = vxor.u32 %v12178, 2147483648
    %v12636 = vxor.u32 %v12180, 2147483648
    %v12637 = vxor.u32 %v12264, 2147483648
    %v12638 = vxor.u32 %v12266, 2147483648
    %v12639 = vxor.u32 %v12350, 2147483648
    %v12640 = vxor.u32 %v12352, 2147483648
    %v12641 = vxor.u32 %v12436, 2147483648
    %v12642 = vxor.u32 %v12438, 2147483648
    %v12643 = vxor.u32 %v12522, 2147483648
    %v12644 = vxor.u32 %v12524, 2147483648
    %v12645 = vxor.u32 %v12605, 2147483648
    %v12646 = vmul.f32 %v12608, 1.442695
    %v12647 = vpow.pop %v12646
    %v12648 = vmul.f32 %v12609, 1.442695
    %v12649 = vpow.pop %v12648
    %v12650 = vmul.f32 %v12610, 1.442695
    %v12651 = vpow.pop %v12650
    %v12652 = vmul.f32 %v12611, 1.442695
    %v12653 = vpow.pop %v12652
    %v12654 = vmul.f32 %v12612, 1.442695
    %v12655 = vpow.pop %v12654
    %v12656 = vmul.f32 %v12613, 1.442695
    %v12657 = vpow.pop %v12656
    %v12658 = vmul.f32 %v12614, 1.442695
    %v12659 = vpow.pop %v12658
    %v12660 = vmul.f32 %v12615, 1.442695
    %v12661 = vpow.pop %v12660
    %v12662 = vmul.f32 %v12616, 1.442695
    %v12663 = vpow.pop %v12662
    %v12664 = vmul.f32 %v12617, 1.442695
    %v12665 = vpow.pop %v12664
    %v12666 = vmul.f32 %v12618, 1.442695
    %v12667 = vpow.pop %v12666
    %v12668 = vmul.f32 %v12619, 1.442695
    %v12669 = vpow.pop %v12668
    %v12670 = vmul.f32 %v12620, 1.442695
    %v12671 = vpow.pop %v12670
    %v12672 = vmul.f32 %v12621, 1.442695
    %v12673 = vpow.pop %v12672
    %v12674 = vmul.f32 %v12622, 1.442695
    %v12675 = vpow.pop %v12674
    %v12676 = vmul.f32 %v12623, 1.442695
    %v12677 = vpow.pop %v12676
    %v12678 = vmul.f32 %v12624, 1.442695
    %v12679 = vpow.pop %v12678
    %v12680 = vmul.f32 %v12625, 1.442695
    %v12681 = vpow.pop %v12680
    %v12682 = vmul.f32 %v12626, 1.442695
    %v12683 = vpow.pop %v12682
    %v12684 = vmul.f32 %v12627, 1.442695
    %v12685 = vpow.pop %v12684
    %v12686 = vmul.f32 %v12628, 1.442695
    %v12687 = vpow.pop %v12686
    %v12688 = vmul.f32 %v12629, 1.442695
    %v12689 = vpow.pop %v12688
    %v12690 = vmul.f32 %v12630, 1.442695
    %v12691 = vpow.pop %v12690
    %v12692 = vmul.f32 %v12631, 1.442695
    %v12693 = vpow.pop %v12692
    %v12694 = vmul.f32 %v12632, 1.442695
    %v12695 = vpow.pop %v12694
    %v12696 = vmul.f32 %v12633, 1.442695
    %v12697 = vpow.pop %v12696
    %v12698 = vmul.f32 %v12634, 1.442695
    %v12699 = vpow.pop %v12698
    %v12700 = vmul.f32 %v12635, 1.442695
    %v12701 = vpow.pop %v12700
    %v12702 = vmul.f32 %v12636, 1.442695
    %v12703 = vpow.pop %v12702
    %v12704 = vmul.f32 %v12637, 1.442695
    %v12705 = vpow.pop %v12704
    %v12706 = vmul.f32 %v12638, 1.442695
    %v12707 = vpow.pop %v12706
    %v12708 = vmul.f32 %v12639, 1.442695
    %v12709 = vpow.pop %v12708
    %v12710 = vmul.f32 %v12640, 1.442695
    %v12711 = vpow.pop %v12710
    %v12712 = vmul.f32 %v12641, 1.442695
    %v12713 = vpow.pop %v12712
    %v12714 = vmul.f32 %v12642, 1.442695
    %v12715 = vpow.pop %v12714
    %v12716 = vmul.f32 %v12643, 1.442695
    %v12717 = vpow.pop %v12716
    %v12718 = vmul.f32 %v12644, 1.442695
    %v12719 = vpow.pop %v12718
    %v12720 = vmul.f32 %v12645, 1.442695
    %v12721 = vpow.pop %v12720
    %v12722 = vadd.f32 %v12647, 1.0
    %v12723 = vadd.f32 %v12649, 1.0
    %v12724 = vadd.f32 %v12651, 1.0
    %v12725 = vadd.f32 %v12653, 1.0
    %v12726 = vadd.f32 %v12655, 1.0
    %v12727 = vadd.f32 %v12657, 1.0
    %v12728 = vadd.f32 %v12659, 1.0
    %v12729 = vadd.f32 %v12661, 1.0
    %v12730 = vadd.f32 %v12663, 1.0
    %v12731 = vadd.f32 %v12665, 1.0
    %v12732 = vadd.f32 %v12667, 1.0
    %v12733 = vadd.f32 %v12669, 1.0
    %v12734 = vadd.f32 %v12671, 1.0
    %v12735 = vadd.f32 %v12673, 1.0
    %v12736 = vadd.f32 %v12675, 1.0
    %v12737 = vadd.f32 %v12677, 1.0
    %v12738 = vadd.f32 %v12679, 1.0
    %v12739 = vadd.f32 %v12681, 1.0
    %v12740 = vadd.f32 %v12683, 1.0
    %v12741 = vadd.f32 %v12685, 1.0
    %v12742 = vadd.f32 %v12687, 1.0
    %v12743 = vadd.f32 %v12689, 1.0
    %v12744 = vadd.f32 %v12691, 1.0
    %v12745 = vadd.f32 %v12693, 1.0
    %v12746 = vadd.f32 %v12695, 1.0
    %v12747 = vadd.f32 %v12697, 1.0
    %v12748 = vadd.f32 %v12699, 1.0
    %v12749 = vadd.f32 %v12701, 1.0
    %v12750 = vadd.f32 %v12703, 1.0
    %v12751 = vadd.f32 %v12705, 1.0
    %v12752 = vadd.f32 %v12707, 1.0
    %v12753 = vadd.f32 %v12709, 1.0
    %v12754 = vadd.f32 %v12711, 1.0
    %v12755 = vadd.f32 %v12713, 1.0
    %v12756 = vadd.f32 %v12715, 1.0
    %v12757 = vadd.f32 %v12717, 1.0
    %v12758 = vadd.f32 %v12719, 1.0
    %v12759 = vadd.f32 %v12721, 1.0
    %v12760 = vrcp.pop %v12722
    %v12761 = vmul.f32 1.0, %v12760
    %v12762 = vrcp.pop %v12723
    %v12763 = vmul.f32 1.0, %v12762
    %v12764 = vrcp.pop %v12724
    %v12765 = vmul.f32 1.0, %v12764
    %v12766 = vrcp.pop %v12725
    %v12767 = vmul.f32 1.0, %v12766
    %v12768 = vrcp.pop %v12726
    %v12769 = vmul.f32 1.0, %v12768
    %v12770 = vrcp.pop %v12727
    %v12771 = vmul.f32 1.0, %v12770
    %v12772 = vrcp.pop %v12728
    %v12773 = vmul.f32 1.0, %v12772
    %v12774 = vrcp.pop %v12729
    %v12775 = vmul.f32 1.0, %v12774
    %v12776 = vrcp.pop %v12730
    %v12777 = vmul.f32 1.0, %v12776
    %v12778 = vrcp.pop %v12731
    %v12779 = vmul.f32 1.0, %v12778
    %v12780 = vrcp.pop %v12732
    %v12781 = vmul.f32 1.0, %v12780
    %v12782 = vrcp.pop %v12733
    %v12783 = vmul.f32 1.0, %v12782
    %v12784 = vrcp.pop %v12734
    %v12785 = vmul.f32 1.0, %v12784
    %v12786 = vrcp.pop %v12735
    %v12787 = vmul.f32 1.0, %v12786
    %v12788 = vrcp.pop %v12736
    %v12789 = vmul.f32 1.0, %v12788
    %v12790 = vrcp.pop %v12737
    %v12791 = vmul.f32 1.0, %v12790
    %v12792 = vrcp.pop %v12738
    %v12793 = vmul.f32 1.0, %v12792
    %v12794 = vrcp.pop %v12739
    %v12795 = vmul.f32 1.0, %v12794
    %v12796 = vrcp.pop %v12740
    %v12797 = vmul.f32 1.0, %v12796
    %v12798 = vrcp.pop %v12741
    %v12799 = vmul.f32 1.0, %v12798
    %v12800 = vrcp.pop %v12742
    %v12801 = vmul.f32 1.0, %v12800
    %v12802 = vrcp.pop %v12743
    %v12803 = vmul.f32 1.0, %v12802
    %v12804 = vrcp.pop %v12744
    %v12805 = vmul.f32 1.0, %v12804
    %v12806 = vrcp.pop %v12745
    %v12807 = vmul.f32 1.0, %v12806
    %v12808 = vrcp.pop %v12746
    %v12809 = vmul.f32 1.0, %v12808
    %v12810 = vrcp.pop %v12747
    %v12811 = vmul.f32 1.0, %v12810
    %v12812 = vrcp.pop %v12748
    %v12813 = vmul.f32 1.0, %v12812
    %v12814 = vrcp.pop %v12749
    %v12815 = vmul.f32 1.0, %v12814
    %v12816 = vrcp.pop %v12750
    %v12817 = vmul.f32 1.0, %v12816
    %v12818 = vrcp.pop %v12751
    %v12819 = vmul.f32 1.0, %v12818
    %v12820 = vrcp.pop %v12752
    %v12821 = vmul.f32 1.0, %v12820
    %v12822 = vrcp.pop %v12753
    %v12823 = vmul.f32 1.0, %v12822
    %v12824 = vrcp.pop %v12754
    %v12825 = vmul.f32 1.0, %v12824
    %v12826 = vrcp.pop %v12755
    %v12827 = vmul.f32 1.0, %v12826
    %v12828 = vrcp.pop %v12756
    %v12829 = vmul.f32 1.0, %v12828
    %v12830 = vrcp.pop %v12757
    %v12831 = vmul.f32 1.0, %v12830
    %v12832 = vrcp.pop %v12758
    %v12833 = vmul.f32 1.0, %v12832
    %v12834 = vrcp.pop %v12759
    %v12835 = vmul.f32 1.0, %v12834
    %12836 = vst [vmem:[%s14] sm:$0xff] %v12761
    %12837 = vst [vmem:[%s14 + $0x8] sm:$0xff] %v12763
    %12838 = vst [vmem:[%s14 + $0x10] sm:$0xff] %v12765
    %12839 = vst [vmem:[%s14 + $0x18] sm:$0xff] %v12767
    %12840 = vst [vmem:[%s14 + $0x20] sm:$0xff] %v12769
    %12841 = vst [vmem:[%s14 + $0x28] sm:$0xff] %v12771
    %12842 = vst [vmem:[%s14 + $0x30] sm:$0xff] %v12773
    %12843 = vst [vmem:[%s14 + $0x38] sm:$0xff] %v12775
    %12844 = vst [vmem:[%s14 + $0x40] sm:$0xff] %v12777
    %12845 = vst [vmem:[%s14 + $0x48] sm:$0xff] %v12779
    %12846 = vst [vmem:[%s14 + $0x50] sm:$0xff] %v12781
    %12847 = vst [vmem:[%s14 + $0x58] sm:$0xff] %v12783
    %12848 = vst [vmem:[%s14 + $0x60] sm:$0xff] %v12785
    %12849 = vst [vmem:[%s14 + $0x68] sm:$0xff] %v12787
    %12850 = vst [vmem:[%s14 + $0x70] sm:$0xff] %v12789
    %12851 = vst [vmem:[%s14 + $0x78] sm:$0xff] %v12791
    %12852 = vst [vmem:[%s14 + $0x80] sm:$0xff] %v12793
    %12853 = vst [vmem:[%s14 + $0x88] sm:$0xff] %v12795
    %12854 = vst.msk [vmem:[%s14 + $0x90] sm:$0xff] %vm354, %v12797
    %12855 = vst [vmem:[%s14 + $0x98] sm:$0xff] %v12799
    %12856 = vst [vmem:[%s14 + $0xa0] sm:$0xff] %v12801
    %12857 = vst [vmem:[%s14 + $0xa8] sm:$0xff] %v12803
    %12858 = vst [vmem:[%s14 + $0xb0] sm:$0xff] %v12805
    %12859 = vst [vmem:[%s14 + $0xb8] sm:$0xff] %v12807
    %12860 = vst [vmem:[%s14 + $0xc0] sm:$0xff] %v12809
    %12861 = vst [vmem:[%s14 + $0xc8] sm:$0xff] %v12811
    %12862 = vst [vmem:[%s14 + $0xd0] sm:$0xff] %v12813
    %12863 = vst [vmem:[%s14 + $0xd8] sm:$0xff] %v12815
    %12864 = vst [vmem:[%s14 + $0xe0] sm:$0xff] %v12817
    %12865 = vst [vmem:[%s14 + $0xe8] sm:$0xff] %v12819
    %12866 = vst [vmem:[%s14 + $0xf0] sm:$0xff] %v12821
    %12867 = vst [vmem:[%s14 + $0xf8] sm:$0xff] %v12823
    %12868 = vst [vmem:[%s14 + $0x100] sm:$0xff] %v12825
    %12869 = vst [vmem:[%s14 + $0x108] sm:$0xff] %v12827
    %12870 = vst [vmem:[%s14 + $0x110] sm:$0xff] %v12829
    %12871 = vst [vmem:[%s14 + $0x118] sm:$0xff] %v12831
    %12872 = vst [vmem:[%s14 + $0x120] sm:$0xff] %v12833
    %12873 = vst.msk [vmem:[%s14 + $0x128] sm:$0xff] %vm354, %v12835
    // Predicated region
    $region106: #{discrete_vae_forward.1} parent=1 // pred_check
      _
    $region107: #{discrete_vae_forward.1} parent=1 // pred_check_branch
      %12875 = sbr.rel (0) target = $region109
    $region108: #{discrete_vae_forward.1} parent=1 // pred_region
      _
    $region109: #{discrete_vae_forward.1} parent=1 // pred_fallthru
      _
    // Predicated region
    $region110: #{discrete_vae_forward.1} parent=1 // pred_check
      _
    $region111: #{discrete_vae_forward.1} parent=1 // pred_check_branch
      %12877 = sbr.rel (0) target = $region113
    $region112: #{discrete_vae_forward.1} parent=1 // pred_region
      _
    $region113: #{discrete_vae_forward.1} parent=1 // pred_fallthru
      _
    // Predicated region
    $region114: #{discrete_vae_forward.1} parent=1 // pred_check
      _
    $region115: #{discrete_vae_forward.1} parent=1 // pred_check_branch
      %12879 = sbr.rel (0) target = $region117
    $region116: #{discrete_vae_forward.1} parent=1 // pred_region
      _
    $region117: #{discrete_vae_forward.1} parent=1 // pred_fallthru
      _
    // Predicated region
    $region118: #{discrete_vae_forward.1} parent=1 // pred_check
      _
    $region119: #{discrete_vae_forward.1} parent=1 // pred_check_branch
      %12881 = sbr.rel (0) target = $region121
    $region120: #{discrete_vae_forward.1} parent=1 // pred_region
      _
    $region121: #{discrete_vae_forward.1} parent=1 // pred_fallthru
      _
    %12882 = vsyncpa [#allocation4], 1
    %12883 = vsyncpa [#allocation6], 1
    %12884 = vsyncpa [#allocation9], 1
    %12885 = vsyncpa [#allocation12], 1
    %12886 = vsyncpa [#allocation15], 1
    %12887 = vsyncpa [#allocation18], 1
    %12888 = vsyncpa [#allocation21], 1

</llo_original>
